<compile_context>
chip_gen: v5e
topology: v5e:2x2
jax: 0.10.0
libtpu: 0.0.40
codegen_flags: <defaults>
</compile_context>

<pallas_src>
import jax
import jax.numpy as jnp
from jax.experimental import pallas as pl
from jax.experimental.pallas import tpu as pltpu

IN_DIM = 561
HID_DIM = 561
OUT_DIM = 12

PAD_IN = 640    # 5 * 128
PAD_HID = 640   # 5 * 128
PAD_OUT = 128   # 1 * 128


def mlp_kernel(x_ref, w1_ref, b1_ref, w2_ref, b2_ref, w3_ref, b3_ref, o_ref):
    # x / weights are bf16; MXU accumulates in f32; bias add + ReLU in f32.
    x = x_ref[...]
    h1 = jnp.dot(x, w1_ref[...], preferred_element_type=jnp.float32) + b1_ref[...]
    h1 = jnp.maximum(h1, 0.0)
    h2 = jnp.dot(h1.astype(jnp.bfloat16), w2_ref[...],
                 preferred_element_type=jnp.float32) + b2_ref[...]
    h2 = jnp.maximum(h2, 0.0)
    o_ref[...] = (jnp.dot(h2.astype(jnp.bfloat16), w3_ref[...],
                          preferred_element_type=jnp.float32)
                  + b3_ref[...]).astype(o_ref.dtype)


def normal_dense_net_forward(x, w1, b1, w2, b2, w3, b3, *, tm=256):
    """x: (B, 561) f32. Weights stored (in, out) — transposed vs. PyTorch (out, in)."""
    B = x.shape[0]
    B_pad = pl.cdiv(B, tm) * tm

    # Zero-pad to lane-dense shapes and cast matmul operands to bf16 (biases stay f32).
    xp = jnp.zeros((B_pad, PAD_IN), jnp.bfloat16).at[:B, :IN_DIM].set(
        x.astype(jnp.bfloat16))
    w1p = jnp.zeros((PAD_IN, PAD_HID), jnp.bfloat16).at[:IN_DIM, :HID_DIM].set(
        w1.astype(jnp.bfloat16))
    b1p = jnp.zeros((1, PAD_HID), jnp.float32).at[:, :HID_DIM].set(b1)
    w2p = jnp.zeros((PAD_HID, PAD_HID), jnp.bfloat16).at[:HID_DIM, :HID_DIM].set(
        w2.astype(jnp.bfloat16))
    b2p = jnp.zeros((1, PAD_HID), jnp.float32).at[:, :HID_DIM].set(b2)
    w3p = jnp.zeros((PAD_HID, PAD_OUT), jnp.bfloat16).at[:HID_DIM, :OUT_DIM].set(
        w3.astype(jnp.bfloat16))
    b3p = jnp.zeros((1, PAD_OUT), jnp.float32).at[:, :OUT_DIM].set(b3)

    grid = (B_pad // tm,)

    flops = 2 * B_pad * (PAD_IN * PAD_HID + PAD_HID * PAD_HID + PAD_HID * PAD_OUT)
    bytes_accessed = (xp.size * 2 + w1p.size * 2 + w2p.size * 2 + w3p.size * 2
                      + (b1p.size + b2p.size + b3p.size) * 4
                      + B_pad * PAD_OUT * 4)

    # Weights/biases are grid-invariant: single-buffer them.
    inv = dict(pipeline_mode=pl.Buffered(buffer_count=1))

    out = pl.pallas_call(
        mlp_kernel,
        out_shape=jax.ShapeDtypeStruct((B_pad, PAD_OUT), jnp.float32),
        grid_spec=pltpu.PrefetchScalarGridSpec(
            num_scalar_prefetch=0,
            grid=grid,
            in_specs=[
                pl.BlockSpec((tm, PAD_IN), lambda i: (i, 0)),             # x tile
                pl.BlockSpec((PAD_IN, PAD_HID), lambda i: (0, 0), **inv),  # w1
                pl.BlockSpec((1, PAD_HID), lambda i: (0, 0), **inv),       # b1
                pl.BlockSpec((PAD_HID, PAD_HID), lambda i: (0, 0), **inv), # w2
                pl.BlockSpec((1, PAD_HID), lambda i: (0, 0), **inv),       # b2
                pl.BlockSpec((PAD_HID, PAD_OUT), lambda i: (0, 0), **inv), # w3
                pl.BlockSpec((1, PAD_OUT), lambda i: (0, 0), **inv),       # b3
            ],
            out_specs=pl.BlockSpec((tm, PAD_OUT), lambda i: (i, 0)),
        ),
        compiler_params=pltpu.CompilerParams(
            dimension_semantics=("parallel",)),
        cost_estimate=pl.CostEstimate(
            flops=flops, transcendentals=0, bytes_accessed=bytes_accessed),
    )(xp, w1p, b1p, w2p, b2p, w3p, b3p)

    return out[:B, :OUT_DIM]


def init_params(key):
    """Deterministic init mimicking nn.Linear default (uniform +/- 1/sqrt(fan_in)).
    Weights stored as (in, out), i.e. transposed relative to PyTorch."""
    ks = jax.random.split(key, 6)

    def linear(kw, kb, fan_in, fan_out):
        bound = 1.0 / jnp.sqrt(fan_in)
        w = jax.random.uniform(kw, (fan_in, fan_out), jnp.float32, -bound, bound)
        b = jax.random.uniform(kb, (1, fan_out), jnp.float32, -bound, bound)
        return w, b

    w1, b1 = linear(ks[0], ks[1], IN_DIM, HID_DIM)
    w2, b2 = linear(ks[2], ks[3], HID_DIM, HID_DIM)
    w3, b3 = linear(ks[4], ks[5], HID_DIM, OUT_DIM)
    return w1, b1, w2, b2, w3, b3


def reference_forward(x, w1, b1, w2, b2, w3, b3):
    """Reference mirroring the kernel numerics: bf16 matmul inputs, f32 accumulation."""
    def dot_bf16(a, w):
        return jnp.dot(a.astype(jnp.bfloat16), w.astype(jnp.bfloat16),
                       preferred_element_type=jnp.float32)
    h1 = jnp.maximum(dot_bf16(x, w1) + b1, 0.0)
    h2 = jnp.maximum(dot_bf16(h1, w2) + b2, 0.0)
    return dot_bf16(h2, w3) + b3


if __name__ == "__main__":
    key = jax.random.PRNGKey(0)
    kx, kp = jax.random.split(key)
    batch = 512  # 2 grid steps at tm=256 (keeps both TensorCores busy on v7x)
    x = jax.random.normal(kx, (batch, IN_DIM), jnp.float32)
    params = init_params(kp)

    out = normal_dense_net_forward(x, *params, tm=256)
    out = jax.block_until_ready(out)

    ref = reference_forward(x, *params)
    assert out.shape == (batch, OUT_DIM)
    assert jnp.allclose(out, ref, atol=1e-3, rtol=1e-3), "mismatch vs reference"
    print("KERNEL_OK")
</pallas_src>

<mosaic_0001>
module attributes {stable_mosaic.version = 11 : i64} {
  func.func @mlp_kernel(%arg0: i32, %arg1: memref<256x640xbf16, #tpu.memory_space<vmem>>, %arg2: memref<640x640xbf16, #tpu.memory_space<vmem>>, %arg3: memref<1x640xf32, #tpu.memory_space<vmem>>, %arg4: memref<640x640xbf16, #tpu.memory_space<vmem>>, %arg5: memref<1x640xf32, #tpu.memory_space<vmem>>, %arg6: memref<640x128xbf16, #tpu.memory_space<vmem>>, %arg7: memref<1x128xf32, #tpu.memory_space<vmem>>, %arg8: memref<256x128xf32, #tpu.memory_space<vmem>>) attributes {dimension_semantics = [#tpu.dimension_semantics<parallel>], iteration_bounds = array<i64: 2>, scalar_prefetch = 0 : i64, scratch_operands = 0 : i64, tpu.core_type = #tpu.core_type<tc>, window_params = [{transform_indices = @transform_0, window_bounds = array<i64: 256, 640>}, {pipeline_mode = #tpu.pipeline_mode<synchronous>, transform_indices = @transform_1, window_bounds = array<i64: 640, 640>}, {pipeline_mode = #tpu.pipeline_mode<synchronous>, transform_indices = @transform_2, window_bounds = array<i64: 1, 640>}, {pipeline_mode = #tpu.pipeline_mode<synchronous>, transform_indices = @transform_3, window_bounds = array<i64: 640, 640>}, {pipeline_mode = #tpu.pipeline_mode<synchronous>, transform_indices = @transform_4, window_bounds = array<i64: 1, 640>}, {pipeline_mode = #tpu.pipeline_mode<synchronous>, transform_indices = @transform_5, window_bounds = array<i64: 640, 128>}, {pipeline_mode = #tpu.pipeline_mode<synchronous>, transform_indices = @transform_6, window_bounds = array<i64: 1, 128>}, {transform_indices = @transform_7, window_bounds = array<i64: 256, 128>}]} {
    %c0 = arith.constant 0 : index
    %c0_0 = arith.constant 0 : index
    %0 = vector.load %arg1[%c0, %c0_0] : memref<256x640xbf16, #tpu.memory_space<vmem>>, vector<256x640xbf16>
    %c0_1 = arith.constant 0 : index
    %c0_2 = arith.constant 0 : index
    %1 = vector.load %arg2[%c0_1, %c0_2] : memref<640x640xbf16, #tpu.memory_space<vmem>>, vector<640x640xbf16>
    %cst = arith.constant dense<0.000000e+00> : vector<256x640xf32>
    %2 = tpu.matmul %0, %1, %cst {dimension_numbers = #tpu.dot_dimension_numbers<[1], [0], [0], [1], [0, 0, 1, 1], [], []>} : vector<256x640xbf16>, vector<640x640xbf16>, vector<256x640xf32> -> vector<256x640xf32>
    %c0_3 = arith.constant 0 : index
    %c0_4 = arith.constant 0 : index
    %3 = vector.load %arg3[%c0_3, %c0_4] : memref<1x640xf32, #tpu.memory_space<vmem>>, vector<1x640xf32>
    %4 = vector.broadcast %3 : vector<1x640xf32> to vector<256x640xf32>
    %5 = arith.addf %2, %4 : vector<256x640xf32>
    %cst_5 = arith.constant 0.000000e+00 : f32
    %6 = vector.broadcast %cst_5 : f32 to vector<256x640xf32>
    %7 = arith.maximumf %5, %6 : vector<256x640xf32>
    %8 = arith.truncf %7 : vector<256x640xf32> to vector<256x640xbf16>
    %c0_6 = arith.constant 0 : index
    %c0_7 = arith.constant 0 : index
    %9 = vector.load %arg4[%c0_6, %c0_7] : memref<640x640xbf16, #tpu.memory_space<vmem>>, vector<640x640xbf16>
    %cst_8 = arith.constant dense<0.000000e+00> : vector<256x640xf32>
    %10 = tpu.matmul %8, %9, %cst_8 {dimension_numbers = #tpu.dot_dimension_numbers<[1], [0], [0], [1], [0, 0, 1, 1], [], []>} : vector<256x640xbf16>, vector<640x640xbf16>, vector<256x640xf32> -> vector<256x640xf32>
    %c0_9 = arith.constant 0 : index
    %c0_10 = arith.constant 0 : index
    %11 = vector.load %arg5[%c0_9, %c0_10] : memref<1x640xf32, #tpu.memory_space<vmem>>, vector<1x640xf32>
    %12 = vector.broadcast %11 : vector<1x640xf32> to vector<256x640xf32>
    %13 = arith.addf %10, %12 : vector<256x640xf32>
    %cst_11 = arith.constant 0.000000e+00 : f32
    %14 = vector.broadcast %cst_11 : f32 to vector<256x640xf32>
    %15 = arith.maximumf %13, %14 : vector<256x640xf32>
    %16 = arith.truncf %15 : vector<256x640xf32> to vector<256x640xbf16>
    %c0_12 = arith.constant 0 : index
    %c0_13 = arith.constant 0 : index
    %17 = vector.load %arg6[%c0_12, %c0_13] : memref<640x128xbf16, #tpu.memory_space<vmem>>, vector<640x128xbf16>
    %cst_14 = arith.constant dense<0.000000e+00> : vector<256x128xf32>
    %18 = tpu.matmul %16, %17, %cst_14 {dimension_numbers = #tpu.dot_dimension_numbers<[1], [0], [0], [1], [0, 0, 1, 1], [], []>} : vector<256x640xbf16>, vector<640x128xbf16>, vector<256x128xf32> -> vector<256x128xf32>
    %c0_15 = arith.constant 0 : index
    %c0_16 = arith.constant 0 : index
    %19 = vector.load %arg7[%c0_15, %c0_16] : memref<1x128xf32, #tpu.memory_space<vmem>>, vector<1x128xf32>
    %20 = vector.broadcast %19 : vector<1x128xf32> to vector<256x128xf32>
    %21 = arith.addf %18, %20 : vector<256x128xf32>
    %c0_17 = arith.constant 0 : index
    %c0_18 = arith.constant 0 : index
    %22 = vector.load %arg8[%c0_17, %c0_18] : memref<256x128xf32, #tpu.memory_space<vmem>>, vector<256x128xf32>
    tpu.vector_store %arg8[%c0_17, %c0_18], %21 {strides = array<i32>} : memref<256x128xf32, #tpu.memory_space<vmem>>, vector<256x128xf32>,
    return
  }
  func.func @transform_0(%arg0: i32) -> (i32, i32) {
    %c0_i32 = arith.constant 0 : i32
    %c0_i32_0 = arith.constant 0 : i32
    return %arg0, %c0_i32 : i32, i32
  }
  func.func @transform_1(%arg0: i32) -> (i32, i32) {
    %c0_i32 = arith.constant 0 : i32
    %c0_i32_0 = arith.constant 0 : i32
    %c0_i32_1 = arith.constant 0 : i32
    return %c0_i32, %c0_i32_0 : i32, i32
  }
  func.func @transform_2(%arg0: i32) -> (i32, i32) {
    %c0_i32 = arith.constant 0 : i32
    %c0_i32_0 = arith.constant 0 : i32
    %c0_i32_1 = arith.constant 0 : i32
    return %c0_i32, %c0_i32_0 : i32, i32
  }
  func.func @transform_3(%arg0: i32) -> (i32, i32) {
    %c0_i32 = arith.constant 0 : i32
    %c0_i32_0 = arith.constant 0 : i32
    %c0_i32_1 = arith.constant 0 : i32
    return %c0_i32, %c0_i32_0 : i32, i32
  }
  func.func @transform_4(%arg0: i32) -> (i32, i32) {
    %c0_i32 = arith.constant 0 : i32
    %c0_i32_0 = arith.constant 0 : i32
    %c0_i32_1 = arith.constant 0 : i32
    return %c0_i32, %c0_i32_0 : i32, i32
  }
  func.func @transform_5(%arg0: i32) -> (i32, i32) {
    %c0_i32 = arith.constant 0 : i32
    %c0_i32_0 = arith.constant 0 : i32
    %c0_i32_1 = arith.constant 0 : i32
    return %c0_i32, %c0_i32_0 : i32, i32
  }
  func.func @transform_6(%arg0: i32) -> (i32, i32) {
    %c0_i32 = arith.constant 0 : i32
    %c0_i32_0 = arith.constant 0 : i32
    %c0_i32_1 = arith.constant 0 : i32
    return %c0_i32, %c0_i32_0 : i32, i32
  }
  func.func @transform_7(%arg0: i32) -> (i32, i32) {
    %c0_i32 = arith.constant 0 : i32
    %c0_i32_0 = arith.constant 0 : i32
    return %arg0, %c0_i32 : i32, i32
  }
}

</mosaic_0001>

<llo_original>
// kernel: tpu_custom_call.1
$region0: #{tpu_custom_call.1}
  #allocation0 [shape = 'u32[]', space=smem, size = 0x4, offset = 0x4, fixed_abs, tag = 'smem constant byte address 0x4 - core index']
  #allocation1 [shape = 'u32[72,128]{1,0:T(1,128)}', space=vmem, size = 0x9000, scoped, tag = 'internal scratch']
  %s0 = inlined_call_operand.hbm [shape: bf16[512,640], index: 0, kind: input, shape index: {}]
  %s1 = inlined_call_operand.hbm [shape: bf16[640,640], index: 1, kind: input, shape index: {}]
  %s2 = inlined_call_operand.hbm [shape: f32[1,640], index: 2, kind: input, shape index: {}]
  %s3 = inlined_call_operand.hbm [shape: bf16[640,640], index: 3, kind: input, shape index: {}]
  %s4 = inlined_call_operand.hbm [shape: f32[1,640], index: 4, kind: input, shape index: {}]
  %s5 = inlined_call_operand.hbm [shape: bf16[640,128], index: 5, kind: input, shape index: {}]
  %s6 = inlined_call_operand.vmem [shape: f32[1,128], index: 6, kind: input, shape index: {}]
  %s7 = inlined_call_operand.hbm [shape: f32[512,128], index: 7, kind: output, shape index: {}]
  %s8 = sld [smem:[#allocation0]]
  $region85: #{tpu_custom_call.1} parent=0
    _
  %s10 = ssub.s32 1, %s8
  %s11 = scalar_select 0, %s10, %s8
  $region1: #{tpu_custom_call.1} parent=0
    #allocation2 [shape = 'u8[655360]{0}', space=vmem, size = 0xa0000, scoped, tag = 'input window, operand 0']
    #allocation3 [shape = 's32[2]{0}', space=sflag, size = 0x8, scoped, tag = 'scoped memory for tpu_custom_call.1']
    #allocation4 [shape = 's32[2]{0}', space=sflag, size = 0x8, scoped, tag = 'scoped memory for tpu_custom_call.1']
    #allocation5 [shape = 'u8[819200]{0}', space=vmem, size = 0xc8000, scoped, tag = 'input window, operand 1, single buffered']
    #allocation6 [shape = 's32[1]{0}', space=sflag, size = 0x4, scoped, tag = 'scoped memory for tpu_custom_call.1']
    #allocation7 [shape = 'u8[2560]{0}', space=vmem, size = 0xc00, scoped, tag = 'input window, operand 2, single buffered']
    #allocation8 [shape = 'u8[819200]{0}', space=vmem, size = 0xc8000, scoped, tag = 'input window, operand 3, single buffered']
    #allocation9 [shape = 's32[1]{0}', space=sflag, size = 0x4, scoped, tag = 'scoped memory for tpu_custom_call.1']
    #allocation10 [shape = 'u8[2560]{0}', space=vmem, size = 0xc00, scoped, tag = 'input window, operand 4, single buffered']
    #allocation11 [shape = 'u8[163840]{0}', space=vmem, size = 0x28000, scoped, tag = 'input window, operand 5, single buffered']
    #allocation12 [shape = 's32[1]{0}', space=sflag, size = 0x4, scoped, tag = 'scoped memory for tpu_custom_call.1']
    #allocation13 [shape = 'u8[262144]{0}', space=vmem, size = 0x40000, scoped, tag = 'output window, operand 0']
    %12 = vsyncpa [#allocation3], 0
    %s13 = scalar_lea.sflag [#allocation3], 1
    %14 = vsyncpa %s13, 0
    %15 = vsyncpa [#allocation6], 0
    %16 = vsyncpa [#allocation9], 0
    %17 = vsyncpa [#allocation12], 0
    %18 = vsyncpa [#allocation4], 0
    %s19 = scalar_lea.sflag [#allocation4], 1
    %20 = vsyncpa %s19, 0
    loop: start=0, step=1, limit=4
    $region2: #{tpu_custom_call.1} parent=1 // loop_pre_header
      _
    $region3: #{tpu_custom_call.1} parent=1 // loop_header
      %s22 = sphi 0, %s26
      %p23 = scmp.ge.s32.totalorder %s22, 4
      %s32 = sphi 0, %s34
      %s35 = sphi 0, %s32
      %s36 = sphi 0, %s35
      %s52 = sphi 0, %s36
      %s56 = sphi 0, %s56
      %s58 = sphi 0, %s56
      %s59 = sphi 0, %s58
      %s73 = sphi 0, %s59
      %s77 = sphi 0, %s77
      %s79 = sphi 0, %s77
      %s80 = sphi 0, %s79
      %s94 = sphi 0, %s80
      %s98 = sphi 0, %s98
      %s100 = sphi 0, %s98
      %s101 = sphi 0, %s100
      %s115 = sphi 0, %s101
      %s119 = sphi 0, %s119
      %s121 = sphi 0, %s119
      %s122 = sphi 0, %s121
      %s136 = sphi 0, %s122
      %s140 = sphi 0, %s140
      %s142 = sphi 0, %s140
      %s143 = sphi 0, %s142
      %s157 = sphi 0, %s143
      %s161 = sphi 0, %s161
      %s163 = sphi 0, %s161
      %s164 = sphi 0, %s163
      %s178 = sphi 0, %s164
      %s184 = sphi 0, %s186
      %s187 = sphi 0, %s184
      %s188 = sphi 0, %s187
      %s204 = sphi 0, %s188
    $region4: #{tpu_custom_call.1} parent=1 // loop_header_branch
      %25 = sbr.rel (%p23) target = $region8
    $region5: #{tpu_custom_call.1} parent=1 // loop_body
      %s27 = ssub.s32 %s22, 1
      %s28 = ssub.s32 %s22, 2
      %s29 = sadd.s32 %s22, 1
      %s30 = ssub.s32 %s22, %s29
      %p31 = scmp.eq.s32.totalorder %s30, 0
      %s33 = sadd.s32 %s32, 1
      %s34 = scalar_select %p31, %s32, %s33
      %p37 = pneg %p31
      %p38 = scmp.eq.s32.totalorder %s22, 1
      %p39 = por %p37, %p38
      %p40 = scmp.ne.s32.totalorder %s32, %s35
      %p41 = scmp.eq.s32.totalorder %s22, 0
      %p42 = por %p40, %p41
      %p43 = scmp.ne.s32.totalorder %s32, %s35
      %p44 = scmp.eq.s32.totalorder %s27, 1
      %p45 = por %p43, %p44
      %p46 = scmp.ne.s32.totalorder %s35, %s36
      %p47 = scmp.eq.s32.totalorder %s27, 0
      %p48 = por %p46, %p47
      %p49 = scmp.ne.s32.totalorder %s35, %s36
      %p50 = scmp.eq.s32.totalorder %s28, 1
      %p51 = por %p49, %p50
      %p53 = scmp.ne.s32.totalorder %s36, %s52
      %p54 = scmp.eq.s32.totalorder %s28, 0
      %p55 = por %p53, %p54
      %s57 = sadd.s32 %s56, 1
      %p60 = scmp.eq.s32.totalorder %s22, 1
      %p61 = scmp.ne.s32.totalorder %s56, %s58
      %p62 = scmp.eq.s32.totalorder %s22, 0
      %p63 = por %p61, %p62
      %p64 = scmp.ne.s32.totalorder %s56, %s58
      %p65 = scmp.eq.s32.totalorder %s27, 1
      %p66 = por %p64, %p65
      %p67 = scmp.ne.s32.totalorder %s58, %s59
      %p68 = scmp.eq.s32.totalorder %s27, 0
      %p69 = por %p67, %p68
      %p70 = scmp.ne.s32.totalorder %s58, %s59
      %p71 = scmp.eq.s32.totalorder %s28, 1
      %p72 = por %p70, %p71
      %p74 = scmp.ne.s32.totalorder %s59, %s73
      %p75 = scmp.eq.s32.totalorder %s28, 0
      %p76 = por %p74, %p75
      %s78 = sadd.s32 %s77, 1
      %p81 = scmp.eq.s32.totalorder %s22, 1
      %p82 = scmp.ne.s32.totalorder %s77, %s79
      %p83 = scmp.eq.s32.totalorder %s22, 0
      %p84 = por %p82, %p83
      %p85 = scmp.ne.s32.totalorder %s77, %s79
      %p86 = scmp.eq.s32.totalorder %s27, 1
      %p87 = por %p85, %p86
      %p88 = scmp.ne.s32.totalorder %s79, %s80
      %p89 = scmp.eq.s32.totalorder %s27, 0
      %p90 = por %p88, %p89
      %p91 = scmp.ne.s32.totalorder %s79, %s80
      %p92 = scmp.eq.s32.totalorder %s28, 1
      %p93 = por %p91, %p92
      %p95 = scmp.ne.s32.totalorder %s80, %s94
      %p96 = scmp.eq.s32.totalorder %s28, 0
      %p97 = por %p95, %p96
      %s99 = sadd.s32 %s98, 1
      %p102 = scmp.eq.s32.totalorder %s22, 1
      %p103 = scmp.ne.s32.totalorder %s98, %s100
      %p104 = scmp.eq.s32.totalorder %s22, 0
      %p105 = por %p103, %p104
      %p106 = scmp.ne.s32.totalorder %s98, %s100
      %p107 = scmp.eq.s32.totalorder %s27, 1
      %p108 = por %p106, %p107
      %p109 = scmp.ne.s32.totalorder %s100, %s101
      %p110 = scmp.eq.s32.totalorder %s27, 0
      %p111 = por %p109, %p110
      %p112 = scmp.ne.s32.totalorder %s100, %s101
      %p113 = scmp.eq.s32.totalorder %s28, 1
      %p114 = por %p112, %p113
      %p116 = scmp.ne.s32.totalorder %s101, %s115
      %p117 = scmp.eq.s32.totalorder %s28, 0
      %p118 = por %p116, %p117
      %s120 = sadd.s32 %s119, 1
      %p123 = scmp.eq.s32.totalorder %s22, 1
      %p124 = scmp.ne.s32.totalorder %s119, %s121
      %p125 = scmp.eq.s32.totalorder %s22, 0
      %p126 = por %p124, %p125
      %p127 = scmp.ne.s32.totalorder %s119, %s121
      %p128 = scmp.eq.s32.totalorder %s27, 1
      %p129 = por %p127, %p128
      %p130 = scmp.ne.s32.totalorder %s121, %s122
      %p131 = scmp.eq.s32.totalorder %s27, 0
      %p132 = por %p130, %p131
      %p133 = scmp.ne.s32.totalorder %s121, %s122
      %p134 = scmp.eq.s32.totalorder %s28, 1
      %p135 = por %p133, %p134
      %p137 = scmp.ne.s32.totalorder %s122, %s136
      %p138 = scmp.eq.s32.totalorder %s28, 0
      %p139 = por %p137, %p138
      %s141 = sadd.s32 %s140, 1
      %p144 = scmp.eq.s32.totalorder %s22, 1
      %p145 = scmp.ne.s32.totalorder %s140, %s142
      %p146 = scmp.eq.s32.totalorder %s22, 0
      %p147 = por %p145, %p146
      %p148 = scmp.ne.s32.totalorder %s140, %s142
      %p149 = scmp.eq.s32.totalorder %s27, 1
      %p150 = por %p148, %p149
      %p151 = scmp.ne.s32.totalorder %s142, %s143
      %p152 = scmp.eq.s32.totalorder %s27, 0
      %p153 = por %p151, %p152
      %p154 = scmp.ne.s32.totalorder %s142, %s143
      %p155 = scmp.eq.s32.totalorder %s28, 1
      %p156 = por %p154, %p155
      %p158 = scmp.ne.s32.totalorder %s143, %s157
      %p159 = scmp.eq.s32.totalorder %s28, 0
      %p160 = por %p158, %p159
      %s162 = sadd.s32 %s161, 1
      %p165 = scmp.eq.s32.totalorder %s22, 1
      %p166 = scmp.ne.s32.totalorder %s161, %s163
      %p167 = scmp.eq.s32.totalorder %s22, 0
      %p168 = por %p166, %p167
      %p169 = scmp.ne.s32.totalorder %s161, %s163
      %p170 = scmp.eq.s32.totalorder %s27, 1
      %p171 = por %p169, %p170
      %p172 = scmp.ne.s32.totalorder %s163, %s164
      %p173 = scmp.eq.s32.totalorder %s27, 0
      %p174 = por %p172, %p173
      %p175 = scmp.ne.s32.totalorder %s163, %s164
      %p176 = scmp.eq.s32.totalorder %s28, 1
      %p177 = por %p175, %p176
      %p179 = scmp.ne.s32.totalorder %s164, %s178
      %p180 = scmp.eq.s32.totalorder %s28, 0
      %p181 = por %p179, %p180
      %s182 = ssub.s32 %s22, %s29
      %p183 = scmp.eq.s32.totalorder %s182, 0
      %s185 = sadd.s32 %s184, 1
      %s186 = scalar_select %p183, %s184, %s185
      %p189 = pneg %p183
      %p190 = scmp.eq.s32.totalorder %s22, 1
      %p191 = por %p189, %p190
      %p192 = scmp.ne.s32.totalorder %s184, %s187
      %p193 = scmp.eq.s32.totalorder %s22, 0
      %p194 = por %p192, %p193
      %p195 = scmp.ne.s32.totalorder %s184, %s187
      %p196 = scmp.eq.s32.totalorder %s27, 1
      %p197 = por %p195, %p196
      %p198 = scmp.ne.s32.totalorder %s187, %s188
      %p199 = scmp.eq.s32.totalorder %s27, 0
      %p200 = por %p198, %p199
      %p201 = scmp.ne.s32.totalorder %s187, %s188
      %p202 = scmp.eq.s32.totalorder %s28, 1
      %p203 = por %p201, %p202
      %p205 = scmp.ne.s32.totalorder %s188, %s204
      %p206 = scmp.eq.s32.totalorder %s28, 0
      %p207 = por %p205, %p206
      %p208 = scmp.le.s32.totalorder 1, %s22
      %p209 = scmp.lt.s32.totalorder %s22, 3
      %p210 = pnand %p208, %p209
      %p211 = pneg %p210
      // Predicated region
      $region9: #{tpu_custom_call.1} parent=5 // pred_check
        _
      $region10: #{tpu_custom_call.1} parent=5 // pred_check_branch
        %213 = sbr.rel (%p210) target = $region12
      $region11: #{tpu_custom_call.1} parent=5 // pred_region
        %s214 = ssub.s32 %s22, 1
        // Predicated region
        $region13: #{tpu_custom_call.1} parent=11 // pred_check
          %p215 = pneg %p69
        $region14: #{tpu_custom_call.1} parent=11 // pred_check_branch
          %217 = sbr.rel (%p215) target = $region16
        $region15: #{tpu_custom_call.1} parent=11 // pred_region
          %219 = vsyncadd [#allocation6], 0
          %s220 = sshll.u32 %s1, 4
          %s221 = int_to_ptr.hbm [resolvable:$true] %s220
          %s222 = sshll.u32 [#allocation5], 4
          %s223 = int_to_ptr.vmem [resolvable:$true] %s222
          %228 = dma.hbm_to_vmem [thread:$0]  %s221, 25600, %s223, [#allocation6], 320, 320, 20
        $region16: #{tpu_custom_call.1} parent=11 // pred_fallthru
          _
        // Predicated region
        $region17: #{tpu_custom_call.1} parent=11 // pred_check
          %p229 = pneg %p90
        $region18: #{tpu_custom_call.1} parent=11 // pred_check_branch
          %231 = sbr.rel (%p229) target = $region20
        $region19: #{tpu_custom_call.1} parent=11 // pred_region
          %233 = vsyncadd [#allocation6], 0
          %s235 = sshll.u32 %s2, 4
          %s236 = int_to_ptr.hbm [resolvable:$true] %s235
          %s237 = sshll.u32 [#allocation7], 4
          %s238 = int_to_ptr.vmem [resolvable:$true] %s237
          %240 = dma.hbm_to_vmem [thread:$0]  %s236, 80, %s238, [#allocation6]
        $region20: #{tpu_custom_call.1} parent=11 // pred_fallthru
          _
        // Predicated region
        $region21: #{tpu_custom_call.1} parent=11 // pred_check
          %p241 = pneg %p111
        $region22: #{tpu_custom_call.1} parent=11 // pred_check_branch
          %243 = sbr.rel (%p241) target = $region24
        $region23: #{tpu_custom_call.1} parent=11 // pred_region
          %245 = vsyncadd [#allocation9], 0
          %s246 = sshll.u32 %s3, 4
          %s247 = int_to_ptr.hbm [resolvable:$true] %s246
          %s248 = sshll.u32 [#allocation8], 4
          %s249 = int_to_ptr.vmem [resolvable:$true] %s248
          %254 = dma.hbm_to_vmem [thread:$0]  %s247, 25600, %s249, [#allocation9], 320, 320, 20
        $region24: #{tpu_custom_call.1} parent=11 // pred_fallthru
          _
        // Predicated region
        $region25: #{tpu_custom_call.1} parent=11 // pred_check
          %p255 = pneg %p132
        $region26: #{tpu_custom_call.1} parent=11 // pred_check_branch
          %257 = sbr.rel (%p255) target = $region28
        $region27: #{tpu_custom_call.1} parent=11 // pred_region
          %259 = vsyncadd [#allocation9], 0
          %s261 = sshll.u32 %s4, 4
          %s262 = int_to_ptr.hbm [resolvable:$true] %s261
          %s263 = sshll.u32 [#allocation10], 4
          %s264 = int_to_ptr.vmem [resolvable:$true] %s263
          %266 = dma.hbm_to_vmem [thread:$0]  %s262, 80, %s264, [#allocation9]
        $region28: #{tpu_custom_call.1} parent=11 // pred_fallthru
          _
        // Predicated region
        $region29: #{tpu_custom_call.1} parent=11 // pred_check
          %p267 = pneg %p153
        $region30: #{tpu_custom_call.1} parent=11 // pred_check_branch
          %269 = sbr.rel (%p267) target = $region32
        $region31: #{tpu_custom_call.1} parent=11 // pred_region
          %271 = vsyncadd [#allocation12], 0
          %s272 = sshll.u32 %s5, 4
          %s273 = int_to_ptr.hbm [resolvable:$true] %s272
          %s274 = sshll.u32 [#allocation11], 4
          %s275 = int_to_ptr.vmem [resolvable:$true] %s274
          %280 = dma.hbm_to_vmem [thread:$0]  %s273, 5120, %s275, [#allocation12], 64, 64, 4
        $region32: #{tpu_custom_call.1} parent=11 // pred_fallthru
          _
        // Predicated region
        $region33: #{tpu_custom_call.1} parent=11 // pred_check
          %p281 = pneg %p174
        $region34: #{tpu_custom_call.1} parent=11 // pred_check_branch
          %283 = sbr.rel (%p281) target = $region36
        $region35: #{tpu_custom_call.1} parent=11 // pred_region
          _
        $region36: #{tpu_custom_call.1} parent=11 // pred_fallthru
          _
      $region12: #{tpu_custom_call.1} parent=5 // pred_fallthru
        _
      %p284 = scmp.lt.s32.totalorder %s22, 2
      // Predicated region
      $region37: #{tpu_custom_call.1} parent=5 // pred_check
        %p285 = pneg %p284
      $region38: #{tpu_custom_call.1} parent=5 // pred_check_branch
        %287 = sbr.rel (%p285) target = $region40
      $region39: #{tpu_custom_call.1} parent=5 // pred_region
        // Predicated region
        $region41: #{tpu_custom_call.1} parent=39 // pred_check
          %p288 = pneg %p42
        $region42: #{tpu_custom_call.1} parent=39 // pred_check_branch
          %290 = sbr.rel (%p288) target = $region44
        $region43: #{tpu_custom_call.1} parent=39 // pred_region
          %s291 = sand.u32 %s32, 1
          %s292 = scalar_lea.sflag [#allocation3], %s291
          %s293 = sand.u32 %s32, 1
          %s294 = smul.addr %s293, 640
          %s295 = scalar_lea.vmem [#allocation2], %s294
          %s296 = smul.u32 32, %s22
          %298 = vsyncadd %s292, 0
          %s299 = smul.addr %s296, 5
          %s300 = smul.addr %s299, 4
          %s301 = scalar_lea.hbm %s0, %s300
          %s302 = sshll.u32 %s301, 4
          %s303 = int_to_ptr.hbm [resolvable:$true] %s302
          %s304 = sshll.u32 %s295, 4
          %s305 = int_to_ptr.vmem [resolvable:$true] %s304
          %310 = dma.hbm_to_vmem [thread:$0]  %s303, 10240, %s305, %s292, 320, 320, 20
        $region44: #{tpu_custom_call.1} parent=39 // pred_fallthru
          _
      $region40: #{tpu_custom_call.1} parent=5 // pred_fallthru
        _
      %p311 = scmp.le.s32.totalorder 1, %s22
      %p312 = scmp.lt.s32.totalorder %s22, 3
      %p313 = pnand %p311, %p312
      %p314 = pneg %p313
      // Predicated region
      $region45: #{tpu_custom_call.1} parent=5 // pred_check
        _
      $region46: #{tpu_custom_call.1} parent=5 // pred_check_branch
        %316 = sbr.rel (%p313) target = $region48
      $region47: #{tpu_custom_call.1} parent=5 // pred_region
        %s317 = ssub.s32 %s22, 1
        %s318 = sand.u32 %s35, 1
        %s319 = scalar_lea.sflag [#allocation3], %s318
        %s320 = sand.u32 %s35, 1
        %s321 = smul.addr %s320, 640
        %s322 = scalar_lea.vmem [#allocation2], %s321
        // Predicated region
        $region49: #{tpu_custom_call.1} parent=47 // pred_check
          %p323 = pneg %p48
        $region50: #{tpu_custom_call.1} parent=47 // pred_check_branch
          %325 = sbr.rel (%p323) target = $region52
        $region51: #{tpu_custom_call.1} parent=47 // pred_region
          %327 = dma.done %s319, 10240
        $region52: #{tpu_custom_call.1} parent=47 // pred_fallthru
          _
        // Predicated region
        $region53: #{tpu_custom_call.1} parent=47 // pred_check
          %p328 = pneg %p69
        $region54: #{tpu_custom_call.1} parent=47 // pred_check_branch
          %330 = sbr.rel (%p328) target = $region56
        $region55: #{tpu_custom_call.1} parent=47 // pred_region
          %332 = dma.done [#allocation6], 25600
        $region56: #{tpu_custom_call.1} parent=47 // pred_fallthru
          _
        // Predicated region
        $region57: #{tpu_custom_call.1} parent=47 // pred_check
          %p333 = pneg %p90
        $region58: #{tpu_custom_call.1} parent=47 // pred_check_branch
          %335 = sbr.rel (%p333) target = $region60
        $region59: #{tpu_custom_call.1} parent=47 // pred_region
          %337 = dma.done [#allocation6], 80
        $region60: #{tpu_custom_call.1} parent=47 // pred_fallthru
          _
        // Predicated region
        $region61: #{tpu_custom_call.1} parent=47 // pred_check
          %p338 = pneg %p111
        $region62: #{tpu_custom_call.1} parent=47 // pred_check_branch
          %340 = sbr.rel (%p338) target = $region64
        $region63: #{tpu_custom_call.1} parent=47 // pred_region
          %342 = dma.done [#allocation9], 25600
        $region64: #{tpu_custom_call.1} parent=47 // pred_fallthru
          _
        // Predicated region
        $region65: #{tpu_custom_call.1} parent=47 // pred_check
          %p343 = pneg %p132
        $region66: #{tpu_custom_call.1} parent=47 // pred_check_branch
          %345 = sbr.rel (%p343) target = $region68
        $region67: #{tpu_custom_call.1} parent=47 // pred_region
          %347 = dma.done [#allocation9], 80
        $region68: #{tpu_custom_call.1} parent=47 // pred_fallthru
          _
        // Predicated region
        $region69: #{tpu_custom_call.1} parent=47 // pred_check
          %p348 = pneg %p153
        $region70: #{tpu_custom_call.1} parent=47 // pred_check_branch
          %350 = sbr.rel (%p348) target = $region72
        $region71: #{tpu_custom_call.1} parent=47 // pred_region
          %352 = dma.done [#allocation12], 5120
        $region72: #{tpu_custom_call.1} parent=47 // pred_fallthru
          _
        %s353 = sand.u32 %s35, 1
        %s354 = scalar_lea.sflag [#allocation3], %s353
        %s355 = sand.u32 %s35, 1
        %s356 = smul.addr %s355, 640
        %s357 = scalar_lea.vmem [#allocation2], %s356
        %p358 = pneg %p48
        %p359 = pneg %p45
        %p360 = pneg %p69
        %p361 = pneg %p66
        %p362 = pneg %p90
        %p363 = pneg %p87
        %p364 = pneg %p111
        %p365 = pneg %p108
        %p366 = pneg %p132
        %p367 = pneg %p129
        %p368 = pneg %p153
        %p369 = pneg %p150
        %p370 = pneg %p174
        %p371 = pneg %p171
        %p372 = pneg %p200
        %p373 = pneg %p197
        %s374 = sand.u32 %s187, 1
        %s375 = scalar_lea.sflag [#allocation4], %s374
        %s376 = sand.u32 %s187, 1
        %s377 = smul.addr %s376, 256
        %s378 = scalar_lea.vmem [#allocation13], %s377
        %s379 = smul.u32 32, %s27
        %s380 = smul.u32 32, %s27
        %v381 = vld [vmem:[%s322] sm:$0xff]
        %v382 = vld [vmem:[%s322 + $0x8] sm:$0xff]
        %v383 = vld [vmem:[%s322 + $0x10] sm:$0xf]
        %v384 = vld [vmem:[%s322 + $0x14] sm:$0xff]
        %v385 = vld [vmem:[%s322 + $0x1c] sm:$0xff]
        %v386 = vld [vmem:[%s322 + $0x24] sm:$0xf]
        %v387 = vld [vmem:[%s322 + $0x28] sm:$0xff]
        %v388 = vld [vmem:[%s322 + $0x30] sm:$0xff]
        %v389 = vld [vmem:[%s322 + $0x38] sm:$0xf]
        %v390 = vld [vmem:[%s322 + $0x3c] sm:$0xff]
        %v391 = vld [vmem:[%s322 + $0x44] sm:$0xff]
        %v392 = vld [vmem:[%s322 + $0x4c] sm:$0xf]
        %v393 = vld [vmem:[%s322 + $0x50] sm:$0xff]
        %v394 = vld [vmem:[%s322 + $0x58] sm:$0xff]
        %v395 = vld [vmem:[%s322 + $0x60] sm:$0xf]
        %v396 = vld [vmem:[%s322 + $0x64] sm:$0xff]
        %v397 = vld [vmem:[%s322 + $0x6c] sm:$0xff]
        %v398 = vld [vmem:[%s322 + $0x74] sm:$0xf]
        %v399 = vld [vmem:[%s322 + $0x78] sm:$0xff]
        %v400 = vld [vmem:[%s322 + $0x80] sm:$0xff]
        %v401 = vld [vmem:[%s322 + $0x88] sm:$0xf]
        %v402 = vld [vmem:[%s322 + $0x8c] sm:$0xff]
        %v403 = vld [vmem:[%s322 + $0x94] sm:$0xff]
        %v404 = vld [vmem:[%s322 + $0x9c] sm:$0xf]
        %v405 = vld [vmem:[%s322 + $0xa0] sm:$0xff]
        %v406 = vld [vmem:[%s322 + $0xa8] sm:$0xff]
        %v407 = vld [vmem:[%s322 + $0xb0] sm:$0xf]
        %v408 = vld [vmem:[%s322 + $0xb4] sm:$0xff]
        %v409 = vld [vmem:[%s322 + $0xbc] sm:$0xff]
        %v410 = vld [vmem:[%s322 + $0xc4] sm:$0xf]
        %v411 = vld [vmem:[%s322 + $0xc8] sm:$0xff]
        %v412 = vld [vmem:[%s322 + $0xd0] sm:$0xff]
        %v413 = vld [vmem:[%s322 + $0xd8] sm:$0xf]
        %v414 = vld [vmem:[%s322 + $0xdc] sm:$0xff]
        %v415 = vld [vmem:[%s322 + $0xe4] sm:$0xff]
        %v416 = vld [vmem:[%s322 + $0xec] sm:$0xf]
        %v417 = vld [vmem:[%s322 + $0xf0] sm:$0xff]
        %v418 = vld [vmem:[%s322 + $0xf8] sm:$0xff]
        %v419 = vld [vmem:[%s322 + $0x100] sm:$0xf]
        %v420 = vld [vmem:[%s322 + $0x104] sm:$0xff]
        %v421 = vld [vmem:[%s322 + $0x10c] sm:$0xff]
        %v422 = vld [vmem:[%s322 + $0x114] sm:$0xf]
        %v423 = vld [vmem:[%s322 + $0x118] sm:$0xff]
        %v424 = vld [vmem:[%s322 + $0x120] sm:$0xff]
        %v425 = vld [vmem:[%s322 + $0x128] sm:$0xf]
        %v426 = vld [vmem:[%s322 + $0x12c] sm:$0xff]
        %v427 = vld [vmem:[%s322 + $0x134] sm:$0xff]
        %v428 = vld [vmem:[%s322 + $0x13c] sm:$0xf]
        %v429 = vld [vmem:[%s322 + $0x140] sm:$0xff]
        %v430 = vld [vmem:[%s322 + $0x148] sm:$0xff]
        %v431 = vld [vmem:[%s322 + $0x150] sm:$0xf]
        %v432 = vld [vmem:[%s322 + $0x154] sm:$0xff]
        %v433 = vld [vmem:[%s322 + $0x15c] sm:$0xff]
        %v434 = vld [vmem:[%s322 + $0x164] sm:$0xf]
        %v435 = vld [vmem:[%s322 + $0x168] sm:$0xff]
        %v436 = vld [vmem:[%s322 + $0x170] sm:$0xff]
        %v437 = vld [vmem:[%s322 + $0x178] sm:$0xf]
        %v438 = vld [vmem:[%s322 + $0x17c] sm:$0xff]
        %v439 = vld [vmem:[%s322 + $0x184] sm:$0xff]
        %v440 = vld [vmem:[%s322 + $0x18c] sm:$0xf]
        %v441 = vld [vmem:[%s322 + $0x190] sm:$0xff]
        %v442 = vld [vmem:[%s322 + $0x198] sm:$0xff]
        %v443 = vld [vmem:[%s322 + $0x1a0] sm:$0xf]
        %v444 = vld [vmem:[%s322 + $0x1a4] sm:$0xff]
        %v445 = vld [vmem:[%s322 + $0x1ac] sm:$0xff]
        %v446 = vld [vmem:[%s322 + $0x1b4] sm:$0xf]
        %v447 = vld [vmem:[%s322 + $0x1b8] sm:$0xff]
        %v448 = vld [vmem:[%s322 + $0x1c0] sm:$0xff]
        %v449 = vld [vmem:[%s322 + $0x1c8] sm:$0xf]
        %v450 = vld [vmem:[%s322 + $0x1cc] sm:$0xff]
        %v451 = vld [vmem:[%s322 + $0x1d4] sm:$0xff]
        %v452 = vld [vmem:[%s322 + $0x1dc] sm:$0xf]
        %v453 = vld [vmem:[%s322 + $0x1e0] sm:$0xff]
        %v454 = vld [vmem:[%s322 + $0x1e8] sm:$0xff]
        %v455 = vld [vmem:[%s322 + $0x1f0] sm:$0xf]
        %v456 = vld [vmem:[%s322 + $0x1f4] sm:$0xff]
        %v457 = vld [vmem:[%s322 + $0x1fc] sm:$0xff]
        %v458 = vld [vmem:[%s322 + $0x204] sm:$0xf]
        %v459 = vld [vmem:[%s322 + $0x208] sm:$0xff]
        %v460 = vld [vmem:[%s322 + $0x210] sm:$0xff]
        %v461 = vld [vmem:[%s322 + $0x218] sm:$0xf]
        %v462 = vld [vmem:[%s322 + $0x21c] sm:$0xff]
        %v463 = vld [vmem:[%s322 + $0x224] sm:$0xff]
        %v464 = vld [vmem:[%s322 + $0x22c] sm:$0xf]
        %v465 = vld [vmem:[%s322 + $0x230] sm:$0xff]
        %v466 = vld [vmem:[%s322 + $0x238] sm:$0xff]
        %v467 = vld [vmem:[%s322 + $0x240] sm:$0xf]
        %v468 = vld [vmem:[%s322 + $0x244] sm:$0xff]
        %v469 = vld [vmem:[%s322 + $0x24c] sm:$0xff]
        %v470 = vld [vmem:[%s322 + $0x254] sm:$0xf]
        %v471 = vld [vmem:[%s322 + $0x258] sm:$0xff]
        %v472 = vld [vmem:[%s322 + $0x260] sm:$0xff]
        %v473 = vld [vmem:[%s322 + $0x268] sm:$0xf]
        %v474 = vld [vmem:[%s322 + $0x26c] sm:$0xff]
        %v475 = vld [vmem:[%s322 + $0x274] sm:$0xff]
        %v476 = vld [vmem:[%s322 + $0x27c] sm:$0xf]
        %v477 = vld [vmem:[#allocation5] sm:$0xff]
        %v478 = vld [vmem:[#allocation5 + $0x8] sm:$0xff]
        %v479 = vld [vmem:[#allocation5 + $0x10] sm:$0xf]
        %v480 = vld [vmem:[#allocation5 + $0x14] sm:$0xff]
        %v481 = vld [vmem:[#allocation5 + $0x1c] sm:$0xff]
        %v482 = vld [vmem:[#allocation5 + $0x24] sm:$0xf]
        %v483 = vld [vmem:[#allocation5 + $0x28] sm:$0xff]
        %v484 = vld [vmem:[#allocation5 + $0x30] sm:$0xff]
        %v485 = vld [vmem:[#allocation5 + $0x38] sm:$0xf]
        %v486 = vld [vmem:[#allocation5 + $0x3c] sm:$0xff]
        %v487 = vld [vmem:[#allocation5 + $0x44] sm:$0xff]
        %v488 = vld [vmem:[#allocation5 + $0x4c] sm:$0xf]
        %v489 = vld [vmem:[#allocation5 + $0x50] sm:$0xff]
        %v490 = vld [vmem:[#allocation5 + $0x58] sm:$0xff]
        %v491 = vld [vmem:[#allocation5 + $0x60] sm:$0xf]
        %v492 = vld [vmem:[#allocation5 + $0x64] sm:$0xff]
        %v493 = vld [vmem:[#allocation5 + $0x6c] sm:$0xff]
        %v494 = vld [vmem:[#allocation5 + $0x74] sm:$0xf]
        %v495 = vld [vmem:[#allocation5 + $0x78] sm:$0xff]
        %v496 = vld [vmem:[#allocation5 + $0x80] sm:$0xff]
        %v497 = vld [vmem:[#allocation5 + $0x88] sm:$0xf]
        %v498 = vld [vmem:[#allocation5 + $0x8c] sm:$0xff]
        %v499 = vld [vmem:[#allocation5 + $0x94] sm:$0xff]
        %v500 = vld [vmem:[#allocation5 + $0x9c] sm:$0xf]
        %v501 = vld [vmem:[#allocation5 + $0xa0] sm:$0xff]
        %v502 = vld [vmem:[#allocation5 + $0xa8] sm:$0xff]
        %v503 = vld [vmem:[#allocation5 + $0xb0] sm:$0xf]
        %v504 = vld [vmem:[#allocation5 + $0xb4] sm:$0xff]
        %v505 = vld [vmem:[#allocation5 + $0xbc] sm:$0xff]
        %v506 = vld [vmem:[#allocation5 + $0xc4] sm:$0xf]
        %v507 = vld [vmem:[#allocation5 + $0xc8] sm:$0xff]
        %v508 = vld [vmem:[#allocation5 + $0xd0] sm:$0xff]
        %v509 = vld [vmem:[#allocation5 + $0xd8] sm:$0xf]
        %v510 = vld [vmem:[#allocation5 + $0xdc] sm:$0xff]
        %v511 = vld [vmem:[#allocation5 + $0xe4] sm:$0xff]
        %v512 = vld [vmem:[#allocation5 + $0xec] sm:$0xf]
        %v513 = vld [vmem:[#allocation5 + $0xf0] sm:$0xff]
        %v514 = vld [vmem:[#allocation5 + $0xf8] sm:$0xff]
        %v515 = vld [vmem:[#allocation5 + $0x100] sm:$0xf]
        %v516 = vld [vmem:[#allocation5 + $0x104] sm:$0xff]
        %v517 = vld [vmem:[#allocation5 + $0x10c] sm:$0xff]
        %v518 = vld [vmem:[#allocation5 + $0x114] sm:$0xf]
        %v519 = vld [vmem:[#allocation5 + $0x118] sm:$0xff]
        %v520 = vld [vmem:[#allocation5 + $0x120] sm:$0xff]
        %v521 = vld [vmem:[#allocation5 + $0x128] sm:$0xf]
        %v522 = vld [vmem:[#allocation5 + $0x12c] sm:$0xff]
        %v523 = vld [vmem:[#allocation5 + $0x134] sm:$0xff]
        %v524 = vld [vmem:[#allocation5 + $0x13c] sm:$0xf]
        %v525 = vld [vmem:[#allocation5 + $0x140] sm:$0xff]
        %v526 = vld [vmem:[#allocation5 + $0x148] sm:$0xff]
        %v527 = vld [vmem:[#allocation5 + $0x150] sm:$0xf]
        %v528 = vld [vmem:[#allocation5 + $0x154] sm:$0xff]
        %v529 = vld [vmem:[#allocation5 + $0x15c] sm:$0xff]
        %v530 = vld [vmem:[#allocation5 + $0x164] sm:$0xf]
        %v531 = vld [vmem:[#allocation5 + $0x168] sm:$0xff]
        %v532 = vld [vmem:[#allocation5 + $0x170] sm:$0xff]
        %v533 = vld [vmem:[#allocation5 + $0x178] sm:$0xf]
        %v534 = vld [vmem:[#allocation5 + $0x17c] sm:$0xff]
        %v535 = vld [vmem:[#allocation5 + $0x184] sm:$0xff]
        %v536 = vld [vmem:[#allocation5 + $0x18c] sm:$0xf]
        %v537 = vld [vmem:[#allocation5 + $0x190] sm:$0xff]
        %v538 = vld [vmem:[#allocation5 + $0x198] sm:$0xff]
        %v539 = vld [vmem:[#allocation5 + $0x1a0] sm:$0xf]
        %v540 = vld [vmem:[#allocation5 + $0x1a4] sm:$0xff]
        %v541 = vld [vmem:[#allocation5 + $0x1ac] sm:$0xff]
        %v542 = vld [vmem:[#allocation5 + $0x1b4] sm:$0xf]
        %v543 = vld [vmem:[#allocation5 + $0x1b8] sm:$0xff]
        %v544 = vld [vmem:[#allocation5 + $0x1c0] sm:$0xff]
        %v545 = vld [vmem:[#allocation5 + $0x1c8] sm:$0xf]
        %v546 = vld [vmem:[#allocation5 + $0x1cc] sm:$0xff]
        %v547 = vld [vmem:[#allocation5 + $0x1d4] sm:$0xff]
        %v548 = vld [vmem:[#allocation5 + $0x1dc] sm:$0xf]
        %v549 = vld [vmem:[#allocation5 + $0x1e0] sm:$0xff]
        %v550 = vld [vmem:[#allocation5 + $0x1e8] sm:$0xff]
        %v551 = vld [vmem:[#allocation5 + $0x1f0] sm:$0xf]
        %v552 = vld [vmem:[#allocation5 + $0x1f4] sm:$0xff]
        %v553 = vld [vmem:[#allocation5 + $0x1fc] sm:$0xff]
        %v554 = vld [vmem:[#allocation5 + $0x204] sm:$0xf]
        %v555 = vld [vmem:[#allocation5 + $0x208] sm:$0xff]
        %v556 = vld [vmem:[#allocation5 + $0x210] sm:$0xff]
        %v557 = vld [vmem:[#allocation5 + $0x218] sm:$0xf]
        %v558 = vld [vmem:[#allocation5 + $0x21c] sm:$0xff]
        %v559 = vld [vmem:[#allocation5 + $0x224] sm:$0xff]
        %v560 = vld [vmem:[#allocation5 + $0x22c] sm:$0xf]
        %v561 = vld [vmem:[#allocation5 + $0x230] sm:$0xff]
        %v562 = vld [vmem:[#allocation5 + $0x238] sm:$0xff]
        %v563 = vld [vmem:[#allocation5 + $0x240] sm:$0xf]
        %v564 = vld [vmem:[#allocation5 + $0x244] sm:$0xff]
        %v565 = vld [vmem:[#allocation5 + $0x24c] sm:$0xff]
        %v566 = vld [vmem:[#allocation5 + $0x254] sm:$0xf]
        %v567 = vld [vmem:[#allocation5 + $0x258] sm:$0xff]
        %v568 = vld [vmem:[#allocation5 + $0x260] sm:$0xff]
        %v569 = vld [vmem:[#allocation5 + $0x268] sm:$0xf]
        %v570 = vld [vmem:[#allocation5 + $0x26c] sm:$0xff]
        %v571 = vld [vmem:[#allocation5 + $0x274] sm:$0xff]
        %v572 = vld [vmem:[#allocation5 + $0x27c] sm:$0xf]
        %v573 = vld [vmem:[#allocation5 + $0x280] sm:$0xff]
        %v574 = vld [vmem:[#allocation5 + $0x288] sm:$0xff]
        %v575 = vld [vmem:[#allocation5 + $0x290] sm:$0xf]
        %v576 = vld [vmem:[#allocation5 + $0x294] sm:$0xff]
        %v577 = vld [vmem:[#allocation5 + $0x29c] sm:$0xff]
        %v578 = vld [vmem:[#allocation5 + $0x2a4] sm:$0xf]
        %v579 = vld [vmem:[#allocation5 + $0x2a8] sm:$0xff]
        %v580 = vld [vmem:[#allocation5 + $0x2b0] sm:$0xff]
        %v581 = vld [vmem:[#allocation5 + $0x2b8] sm:$0xf]
        %v582 = vld [vmem:[#allocation5 + $0x2bc] sm:$0xff]
        %v583 = vld [vmem:[#allocation5 + $0x2c4] sm:$0xff]
        %v584 = vld [vmem:[#allocation5 + $0x2cc] sm:$0xf]
        %v585 = vld [vmem:[#allocation5 + $0x2d0] sm:$0xff]
        %v586 = vld [vmem:[#allocation5 + $0x2d8] sm:$0xff]
        %v587 = vld [vmem:[#allocation5 + $0x2e0] sm:$0xf]
        %v588 = vld [vmem:[#allocation5 + $0x2e4] sm:$0xff]
        %v589 = vld [vmem:[#allocation5 + $0x2ec] sm:$0xff]
        %v590 = vld [vmem:[#allocation5 + $0x2f4] sm:$0xf]
        %v591 = vld [vmem:[#allocation5 + $0x2f8] sm:$0xff]
        %v592 = vld [vmem:[#allocation5 + $0x300] sm:$0xff]
        %v593 = vld [vmem:[#allocation5 + $0x308] sm:$0xf]
        %v594 = vld [vmem:[#allocation5 + $0x30c] sm:$0xff]
        %v595 = vld [vmem:[#allocation5 + $0x314] sm:$0xff]
        %v596 = vld [vmem:[#allocation5 + $0x31c] sm:$0xf]
        %v597 = vld [vmem:[#allocation5 + $0x320] sm:$0xff]
        %v598 = vld [vmem:[#allocation5 + $0x328] sm:$0xff]
        %v599 = vld [vmem:[#allocation5 + $0x330] sm:$0xf]
        %v600 = vld [vmem:[#allocation5 + $0x334] sm:$0xff]
        %v601 = vld [vmem:[#allocation5 + $0x33c] sm:$0xff]
        %v602 = vld [vmem:[#allocation5 + $0x344] sm:$0xf]
        %v603 = vld [vmem:[#allocation5 + $0x348] sm:$0xff]
        %v604 = vld [vmem:[#allocation5 + $0x350] sm:$0xff]
        %v605 = vld [vmem:[#allocation5 + $0x358] sm:$0xf]
        %v606 = vld [vmem:[#allocation5 + $0x35c] sm:$0xff]
        %v607 = vld [vmem:[#allocation5 + $0x364] sm:$0xff]
        %v608 = vld [vmem:[#allocation5 + $0x36c] sm:$0xf]
        %v609 = vld [vmem:[#allocation5 + $0x370] sm:$0xff]
        %v610 = vld [vmem:[#allocation5 + $0x378] sm:$0xff]
        %v611 = vld [vmem:[#allocation5 + $0x380] sm:$0xf]
        %v612 = vld [vmem:[#allocation5 + $0x384] sm:$0xff]
        %v613 = vld [vmem:[#allocation5 + $0x38c] sm:$0xff]
        %v614 = vld [vmem:[#allocation5 + $0x394] sm:$0xf]
        %v615 = vld [vmem:[#allocation5 + $0x398] sm:$0xff]
        %v616 = vld [vmem:[#allocation5 + $0x3a0] sm:$0xff]
        %v617 = vld [vmem:[#allocation5 + $0x3a8] sm:$0xf]
        %v618 = vld [vmem:[#allocation5 + $0x3ac] sm:$0xff]
        %v619 = vld [vmem:[#allocation5 + $0x3b4] sm:$0xff]
        %v620 = vld [vmem:[#allocation5 + $0x3bc] sm:$0xf]
        %v621 = vld [vmem:[#allocation5 + $0x3c0] sm:$0xff]
        %v622 = vld [vmem:[#allocation5 + $0x3c8] sm:$0xff]
        %v623 = vld [vmem:[#allocation5 + $0x3d0] sm:$0xf]
        %v624 = vld [vmem:[#allocation5 + $0x3d4] sm:$0xff]
        %v625 = vld [vmem:[#allocation5 + $0x3dc] sm:$0xff]
        %v626 = vld [vmem:[#allocation5 + $0x3e4] sm:$0xf]
        %v627 = vld [vmem:[#allocation5 + $0x3e8] sm:$0xff]
        %v628 = vld [vmem:[#allocation5 + $0x3f0] sm:$0xff]
        %v629 = vld [vmem:[#allocation5 + $0x3f8] sm:$0xf]
        %v630 = vld [vmem:[#allocation5 + $0x3fc] sm:$0xff]
        %v631 = vld [vmem:[#allocation5 + $0x404] sm:$0xff]
        %v632 = vld [vmem:[#allocation5 + $0x40c] sm:$0xf]
        %v633 = vld [vmem:[#allocation5 + $0x410] sm:$0xff]
        %v634 = vld [vmem:[#allocation5 + $0x418] sm:$0xff]
        %v635 = vld [vmem:[#allocation5 + $0x420] sm:$0xf]
        %v636 = vld [vmem:[#allocation5 + $0x424] sm:$0xff]
        %v637 = vld [vmem:[#allocation5 + $0x42c] sm:$0xff]
        %v638 = vld [vmem:[#allocation5 + $0x434] sm:$0xf]
        %v639 = vld [vmem:[#allocation5 + $0x438] sm:$0xff]
        %v640 = vld [vmem:[#allocation5 + $0x440] sm:$0xff]
        %v641 = vld [vmem:[#allocation5 + $0x448] sm:$0xf]
        %v642 = vld [vmem:[#allocation5 + $0x44c] sm:$0xff]
        %v643 = vld [vmem:[#allocation5 + $0x454] sm:$0xff]
        %v644 = vld [vmem:[#allocation5 + $0x45c] sm:$0xf]
        %v645 = vld [vmem:[#allocation5 + $0x460] sm:$0xff]
        %v646 = vld [vmem:[#allocation5 + $0x468] sm:$0xff]
        %v647 = vld [vmem:[#allocation5 + $0x470] sm:$0xf]
        %v648 = vld [vmem:[#allocation5 + $0x474] sm:$0xff]
        %v649 = vld [vmem:[#allocation5 + $0x47c] sm:$0xff]
        %v650 = vld [vmem:[#allocation5 + $0x484] sm:$0xf]
        %v651 = vld [vmem:[#allocation5 + $0x488] sm:$0xff]
        %v652 = vld [vmem:[#allocation5 + $0x490] sm:$0xff]
        %v653 = vld [vmem:[#allocation5 + $0x498] sm:$0xf]
        %v654 = vld [vmem:[#allocation5 + $0x49c] sm:$0xff]
        %v655 = vld [vmem:[#allocation5 + $0x4a4] sm:$0xff]
        %v656 = vld [vmem:[#allocation5 + $0x4ac] sm:$0xf]
        %v657 = vld [vmem:[#allocation5 + $0x4b0] sm:$0xff]
        %v658 = vld [vmem:[#allocation5 + $0x4b8] sm:$0xff]
        %v659 = vld [vmem:[#allocation5 + $0x4c0] sm:$0xf]
        %v660 = vld [vmem:[#allocation5 + $0x4c4] sm:$0xff]
        %v661 = vld [vmem:[#allocation5 + $0x4cc] sm:$0xff]
        %v662 = vld [vmem:[#allocation5 + $0x4d4] sm:$0xf]
        %v663 = vld [vmem:[#allocation5 + $0x4d8] sm:$0xff]
        %v664 = vld [vmem:[#allocation5 + $0x4e0] sm:$0xff]
        %v665 = vld [vmem:[#allocation5 + $0x4e8] sm:$0xf]
        %v666 = vld [vmem:[#allocation5 + $0x4ec] sm:$0xff]
        %v667 = vld [vmem:[#allocation5 + $0x4f4] sm:$0xff]
        %v668 = vld [vmem:[#allocation5 + $0x4fc] sm:$0xf]
        %v669 = vld [vmem:[#allocation5 + $0x500] sm:$0xff]
        %v670 = vld [vmem:[#allocation5 + $0x508] sm:$0xff]
        %v671 = vld [vmem:[#allocation5 + $0x510] sm:$0xf]
        %v672 = vld [vmem:[#allocation5 + $0x514] sm:$0xff]
        %v673 = vld [vmem:[#allocation5 + $0x51c] sm:$0xff]
        %v674 = vld [vmem:[#allocation5 + $0x524] sm:$0xf]
        %v675 = vld [vmem:[#allocation5 + $0x528] sm:$0xff]
        %v676 = vld [vmem:[#allocation5 + $0x530] sm:$0xff]
        %v677 = vld [vmem:[#allocation5 + $0x538] sm:$0xf]
        %v678 = vld [vmem:[#allocation5 + $0x53c] sm:$0xff]
        %v679 = vld [vmem:[#allocation5 + $0x544] sm:$0xff]
        %v680 = vld [vmem:[#allocation5 + $0x54c] sm:$0xf]
        %v681 = vld [vmem:[#allocation5 + $0x550] sm:$0xff]
        %v682 = vld [vmem:[#allocation5 + $0x558] sm:$0xff]
        %v683 = vld [vmem:[#allocation5 + $0x560] sm:$0xf]
        %v684 = vld [vmem:[#allocation5 + $0x564] sm:$0xff]
        %v685 = vld [vmem:[#allocation5 + $0x56c] sm:$0xff]
        %v686 = vld [vmem:[#allocation5 + $0x574] sm:$0xf]
        %v687 = vld [vmem:[#allocation5 + $0x578] sm:$0xff]
        %v688 = vld [vmem:[#allocation5 + $0x580] sm:$0xff]
        %v689 = vld [vmem:[#allocation5 + $0x588] sm:$0xf]
        %v690 = vld [vmem:[#allocation5 + $0x58c] sm:$0xff]
        %v691 = vld [vmem:[#allocation5 + $0x594] sm:$0xff]
        %v692 = vld [vmem:[#allocation5 + $0x59c] sm:$0xf]
        %v693 = vld [vmem:[#allocation5 + $0x5a0] sm:$0xff]
        %v694 = vld [vmem:[#allocation5 + $0x5a8] sm:$0xff]
        %v695 = vld [vmem:[#allocation5 + $0x5b0] sm:$0xf]
        %v696 = vld [vmem:[#allocation5 + $0x5b4] sm:$0xff]
        %v697 = vld [vmem:[#allocation5 + $0x5bc] sm:$0xff]
        %v698 = vld [vmem:[#allocation5 + $0x5c4] sm:$0xf]
        %v699 = vld [vmem:[#allocation5 + $0x5c8] sm:$0xff]
        %v700 = vld [vmem:[#allocation5 + $0x5d0] sm:$0xff]
        %v701 = vld [vmem:[#allocation5 + $0x5d8] sm:$0xf]
        %v702 = vld [vmem:[#allocation5 + $0x5dc] sm:$0xff]
        %v703 = vld [vmem:[#allocation5 + $0x5e4] sm:$0xff]
        %v704 = vld [vmem:[#allocation5 + $0x5ec] sm:$0xf]
        %v705 = vld [vmem:[#allocation5 + $0x5f0] sm:$0xff]
        %v706 = vld [vmem:[#allocation5 + $0x5f8] sm:$0xff]
        %v707 = vld [vmem:[#allocation5 + $0x600] sm:$0xf]
        %v708 = vld [vmem:[#allocation5 + $0x604] sm:$0xff]
        %v709 = vld [vmem:[#allocation5 + $0x60c] sm:$0xff]
        %v710 = vld [vmem:[#allocation5 + $0x614] sm:$0xf]
        %v711 = vld [vmem:[#allocation5 + $0x618] sm:$0xff]
        %v712 = vld [vmem:[#allocation5 + $0x620] sm:$0xff]
        %v713 = vld [vmem:[#allocation5 + $0x628] sm:$0xf]
        %v714 = vld [vmem:[#allocation5 + $0x62c] sm:$0xff]
        %v715 = vld [vmem:[#allocation5 + $0x634] sm:$0xff]
        %v716 = vld [vmem:[#allocation5 + $0x63c] sm:$0xf]
        %v717 = vld [vmem:[#allocation7] sm:$0x1f]
        %v719 = vperm.slane %v717, 0
        %v720 = vperm.slane %v717, 1
        %v721 = vperm.slane %v717, 2
        %v722 = vperm.slane %v717, 3
        %v723 = vperm.slane %v717, 4
        %v825 = vunpack.c.l.b16 %v381
        %v826 = vunpack.c.h.b16 %v381
        %v827 = vunpack.c.l.b16 %v382
        %v828 = vunpack.c.h.b16 %v382
        %v829 = vunpack.c.l.b16 %v383
        %v830 = vunpack.c.l.b16 %v384
        %v831 = vunpack.c.h.b16 %v384
        %v832 = vunpack.c.l.b16 %v385
        %v833 = vunpack.c.h.b16 %v385
        %v834 = vunpack.c.l.b16 %v386
        %v835 = vunpack.c.l.b16 %v387
        %v836 = vunpack.c.h.b16 %v387
        %v837 = vunpack.c.l.b16 %v388
        %v838 = vunpack.c.h.b16 %v388
        %v839 = vunpack.c.l.b16 %v389
        %v840 = vunpack.c.l.b16 %v390
        %v841 = vunpack.c.h.b16 %v390
        %v842 = vunpack.c.l.b16 %v391
        %v843 = vunpack.c.h.b16 %v391
        %v844 = vunpack.c.l.b16 %v392
        %v845 = vunpack.c.l.b16 %v393
        %v846 = vunpack.c.h.b16 %v393
        %v847 = vunpack.c.l.b16 %v394
        %v848 = vunpack.c.h.b16 %v394
        %v849 = vunpack.c.l.b16 %v395
        %v850 = vunpack.c.l.b16 %v396
        %v851 = vunpack.c.h.b16 %v396
        %v852 = vunpack.c.l.b16 %v397
        %v853 = vunpack.c.h.b16 %v397
        %v854 = vunpack.c.l.b16 %v398
        %v855 = vunpack.c.l.b16 %v399
        %v856 = vunpack.c.h.b16 %v399
        %v857 = vunpack.c.l.b16 %v400
        %v858 = vunpack.c.h.b16 %v400
        %v859 = vunpack.c.l.b16 %v401
        %v860 = vunpack.c.l.b16 %v402
        %v861 = vunpack.c.h.b16 %v402
        %v862 = vunpack.c.l.b16 %v403
        %v863 = vunpack.c.h.b16 %v403
        %v864 = vunpack.c.l.b16 %v404
        %v865 = vunpack.c.l.b16 %v405
        %v866 = vunpack.c.h.b16 %v405
        %v867 = vunpack.c.l.b16 %v406
        %v868 = vunpack.c.h.b16 %v406
        %v869 = vunpack.c.l.b16 %v407
        %v870 = vunpack.c.l.b16 %v408
        %v871 = vunpack.c.h.b16 %v408
        %v872 = vunpack.c.l.b16 %v409
        %v873 = vunpack.c.h.b16 %v409
        %v874 = vunpack.c.l.b16 %v410
        %v875 = vunpack.c.l.b16 %v411
        %v876 = vunpack.c.h.b16 %v411
        %v877 = vunpack.c.l.b16 %v412
        %v878 = vunpack.c.h.b16 %v412
        %v879 = vunpack.c.l.b16 %v413
        %v880 = vunpack.c.l.b16 %v414
        %v881 = vunpack.c.h.b16 %v414
        %v882 = vunpack.c.l.b16 %v415
        %v883 = vunpack.c.h.b16 %v415
        %v884 = vunpack.c.l.b16 %v416
        %v885 = vunpack.c.l.b16 %v417
        %v886 = vunpack.c.h.b16 %v417
        %v887 = vunpack.c.l.b16 %v418
        %v888 = vunpack.c.h.b16 %v418
        %v889 = vunpack.c.l.b16 %v419
        %v890 = vunpack.c.l.b16 %v420
        %v891 = vunpack.c.h.b16 %v420
        %v892 = vunpack.c.l.b16 %v421
        %v893 = vunpack.c.h.b16 %v421
        %v894 = vunpack.c.l.b16 %v422
        %v895 = vunpack.c.l.b16 %v423
        %v896 = vunpack.c.h.b16 %v423
        %v897 = vunpack.c.l.b16 %v424
        %v898 = vunpack.c.h.b16 %v424
        %v899 = vunpack.c.l.b16 %v425
        %v900 = vunpack.c.l.b16 %v426
        %v901 = vunpack.c.h.b16 %v426
        %v902 = vunpack.c.l.b16 %v427
        %v903 = vunpack.c.h.b16 %v427
        %v904 = vunpack.c.l.b16 %v428
        %v905 = vunpack.c.l.b16 %v429
        %v906 = vunpack.c.h.b16 %v429
        %v907 = vunpack.c.l.b16 %v430
        %v908 = vunpack.c.h.b16 %v430
        %v909 = vunpack.c.l.b16 %v431
        %v910 = vunpack.c.l.b16 %v432
        %v911 = vunpack.c.h.b16 %v432
        %v912 = vunpack.c.l.b16 %v433
        %v913 = vunpack.c.h.b16 %v433
        %v914 = vunpack.c.l.b16 %v434
        %v915 = vunpack.c.l.b16 %v435
        %v916 = vunpack.c.h.b16 %v435
        %v917 = vunpack.c.l.b16 %v436
        %v918 = vunpack.c.h.b16 %v436
        %v919 = vunpack.c.l.b16 %v437
        %v920 = vunpack.c.l.b16 %v438
        %v921 = vunpack.c.h.b16 %v438
        %v922 = vunpack.c.l.b16 %v439
        %v923 = vunpack.c.h.b16 %v439
        %v924 = vunpack.c.l.b16 %v440
        %v925 = vunpack.c.l.b16 %v441
        %v926 = vunpack.c.h.b16 %v441
        %v927 = vunpack.c.l.b16 %v442
        %v928 = vunpack.c.h.b16 %v442
        %v929 = vunpack.c.l.b16 %v443
        %v930 = vunpack.c.l.b16 %v444
        %v931 = vunpack.c.h.b16 %v444
        %v932 = vunpack.c.l.b16 %v445
        %v933 = vunpack.c.h.b16 %v445
        %v934 = vunpack.c.l.b16 %v446
        %v935 = vunpack.c.l.b16 %v447
        %v936 = vunpack.c.h.b16 %v447
        %v937 = vunpack.c.l.b16 %v448
        %v938 = vunpack.c.h.b16 %v448
        %v939 = vunpack.c.l.b16 %v449
        %v940 = vunpack.c.l.b16 %v450
        %v941 = vunpack.c.h.b16 %v450
        %v942 = vunpack.c.l.b16 %v451
        %v943 = vunpack.c.h.b16 %v451
        %v944 = vunpack.c.l.b16 %v452
        %v945 = vunpack.c.l.b16 %v453
        %v946 = vunpack.c.h.b16 %v453
        %v947 = vunpack.c.l.b16 %v454
        %v948 = vunpack.c.h.b16 %v454
        %v949 = vunpack.c.l.b16 %v455
        %v950 = vunpack.c.l.b16 %v456
        %v951 = vunpack.c.h.b16 %v456
        %v952 = vunpack.c.l.b16 %v457
        %v953 = vunpack.c.h.b16 %v457
        %v954 = vunpack.c.l.b16 %v458
        %v955 = vunpack.c.l.b16 %v459
        %v956 = vunpack.c.h.b16 %v459
        %v957 = vunpack.c.l.b16 %v460
        %v958 = vunpack.c.h.b16 %v460
        %v959 = vunpack.c.l.b16 %v461
        %v960 = vunpack.c.l.b16 %v462
        %v961 = vunpack.c.h.b16 %v462
        %v962 = vunpack.c.l.b16 %v463
        %v963 = vunpack.c.h.b16 %v463
        %v964 = vunpack.c.l.b16 %v464
        %v965 = vunpack.c.l.b16 %v465
        %v966 = vunpack.c.h.b16 %v465
        %v967 = vunpack.c.l.b16 %v466
        %v968 = vunpack.c.h.b16 %v466
        %v969 = vunpack.c.l.b16 %v467
        %v970 = vunpack.c.l.b16 %v468
        %v971 = vunpack.c.h.b16 %v468
        %v972 = vunpack.c.l.b16 %v469
        %v973 = vunpack.c.h.b16 %v469
        %v974 = vunpack.c.l.b16 %v470
        %v975 = vunpack.c.l.b16 %v471
        %v976 = vunpack.c.h.b16 %v471
        %v977 = vunpack.c.l.b16 %v472
        %v978 = vunpack.c.h.b16 %v472
        %v979 = vunpack.c.l.b16 %v473
        %v980 = vunpack.c.l.b16 %v474
        %v981 = vunpack.c.h.b16 %v474
        %v982 = vunpack.c.l.b16 %v475
        %v983 = vunpack.c.h.b16 %v475
        %v984 = vunpack.c.l.b16 %v476
        %v985 = vpack.c.b16 %v830, %v825
        %v986 = vpack.c.b16 %v831, %v826
        %v987 = vpack.c.b16 %v832, %v827
        %v988 = vpack.c.b16 %v833, %v828
        %v989 = vpack.c.b16 %v834, %v829
        %v990 = vpack.c.b16 %v840, %v835
        %v991 = vpack.c.b16 %v841, %v836
        %v992 = vpack.c.b16 %v842, %v837
        %v993 = vpack.c.b16 %v843, %v838
        %v994 = vpack.c.b16 %v844, %v839
        %v995 = vpack.c.b16 %v850, %v845
        %v996 = vpack.c.b16 %v851, %v846
        %v997 = vpack.c.b16 %v852, %v847
        %v998 = vpack.c.b16 %v853, %v848
        %v999 = vpack.c.b16 %v854, %v849
        %v1000 = vpack.c.b16 %v860, %v855
        %v1001 = vpack.c.b16 %v861, %v856
        %v1002 = vpack.c.b16 %v862, %v857
        %v1003 = vpack.c.b16 %v863, %v858
        %v1004 = vpack.c.b16 %v864, %v859
        %v1005 = vpack.c.b16 %v870, %v865
        %v1006 = vpack.c.b16 %v871, %v866
        %v1007 = vpack.c.b16 %v872, %v867
        %v1008 = vpack.c.b16 %v873, %v868
        %v1009 = vpack.c.b16 %v874, %v869
        %v1010 = vpack.c.b16 %v880, %v875
        %v1011 = vpack.c.b16 %v881, %v876
        %v1012 = vpack.c.b16 %v882, %v877
        %v1013 = vpack.c.b16 %v883, %v878
        %v1014 = vpack.c.b16 %v884, %v879
        %v1015 = vpack.c.b16 %v890, %v885
        %v1016 = vpack.c.b16 %v891, %v886
        %v1017 = vpack.c.b16 %v892, %v887
        %v1018 = vpack.c.b16 %v893, %v888
        %v1019 = vpack.c.b16 %v894, %v889
        %v1020 = vpack.c.b16 %v900, %v895
        %v1021 = vpack.c.b16 %v901, %v896
        %v1022 = vpack.c.b16 %v902, %v897
        %v1023 = vpack.c.b16 %v903, %v898
        %v1024 = vpack.c.b16 %v904, %v899
        %v1025 = vpack.c.b16 %v910, %v905
        %v1026 = vpack.c.b16 %v911, %v906
        %v1027 = vpack.c.b16 %v912, %v907
        %v1028 = vpack.c.b16 %v913, %v908
        %v1029 = vpack.c.b16 %v914, %v909
        %v1030 = vpack.c.b16 %v920, %v915
        %v1031 = vpack.c.b16 %v921, %v916
        %v1032 = vpack.c.b16 %v922, %v917
        %v1033 = vpack.c.b16 %v923, %v918
        %v1034 = vpack.c.b16 %v924, %v919
        %v1035 = vpack.c.b16 %v930, %v925
        %v1036 = vpack.c.b16 %v931, %v926
        %v1037 = vpack.c.b16 %v932, %v927
        %v1038 = vpack.c.b16 %v933, %v928
        %v1039 = vpack.c.b16 %v934, %v929
        %v1040 = vpack.c.b16 %v940, %v935
        %v1041 = vpack.c.b16 %v941, %v936
        %v1042 = vpack.c.b16 %v942, %v937
        %v1043 = vpack.c.b16 %v943, %v938
        %v1044 = vpack.c.b16 %v944, %v939
        %v1045 = vpack.c.b16 %v950, %v945
        %v1046 = vpack.c.b16 %v951, %v946
        %v1047 = vpack.c.b16 %v952, %v947
        %v1048 = vpack.c.b16 %v953, %v948
        %v1049 = vpack.c.b16 %v954, %v949
        %v1050 = vpack.c.b16 %v960, %v955
        %v1051 = vpack.c.b16 %v961, %v956
        %v1052 = vpack.c.b16 %v962, %v957
        %v1053 = vpack.c.b16 %v963, %v958
        %v1054 = vpack.c.b16 %v964, %v959
        %v1055 = vpack.c.b16 %v970, %v965
        %v1056 = vpack.c.b16 %v971, %v966
        %v1057 = vpack.c.b16 %v972, %v967
        %v1058 = vpack.c.b16 %v973, %v968
        %v1059 = vpack.c.b16 %v974, %v969
        %v1060 = vpack.c.b16 %v980, %v975
        %v1061 = vpack.c.b16 %v981, %v976
        %v1062 = vpack.c.b16 %v982, %v977
        %v1063 = vpack.c.b16 %v983, %v978
        %v1064 = vpack.c.b16 %v984, %v979
        %v1385 = vunpack.c.l.b16 %v477
        %v1386 = vunpack.c.h.b16 %v477
        %v1387 = vunpack.c.l.b16 %v478
        %v1388 = vunpack.c.h.b16 %v478
        %v1389 = vunpack.c.l.b16 %v479
        %v1390 = vunpack.c.l.b16 %v480
        %v1391 = vunpack.c.h.b16 %v480
        %v1392 = vunpack.c.l.b16 %v481
        %v1393 = vunpack.c.h.b16 %v481
        %v1394 = vunpack.c.l.b16 %v482
        %v1395 = vunpack.c.l.b16 %v483
        %v1396 = vunpack.c.h.b16 %v483
        %v1397 = vunpack.c.l.b16 %v484
        %v1398 = vunpack.c.h.b16 %v484
        %v1399 = vunpack.c.l.b16 %v485
        %v1400 = vunpack.c.l.b16 %v486
        %v1401 = vunpack.c.h.b16 %v486
        %v1402 = vunpack.c.l.b16 %v487
        %v1403 = vunpack.c.h.b16 %v487
        %v1404 = vunpack.c.l.b16 %v488
        %v1405 = vunpack.c.l.b16 %v489
        %v1406 = vunpack.c.h.b16 %v489
        %v1407 = vunpack.c.l.b16 %v490
        %v1408 = vunpack.c.h.b16 %v490
        %v1409 = vunpack.c.l.b16 %v491
        %v1410 = vunpack.c.l.b16 %v492
        %v1411 = vunpack.c.h.b16 %v492
        %v1412 = vunpack.c.l.b16 %v493
        %v1413 = vunpack.c.h.b16 %v493
        %v1414 = vunpack.c.l.b16 %v494
        %v1415 = vunpack.c.l.b16 %v495
        %v1416 = vunpack.c.h.b16 %v495
        %v1417 = vunpack.c.l.b16 %v496
        %v1418 = vunpack.c.h.b16 %v496
        %v1419 = vunpack.c.l.b16 %v497
        %v1420 = vunpack.c.l.b16 %v498
        %v1421 = vunpack.c.h.b16 %v498
        %v1422 = vunpack.c.l.b16 %v499
        %v1423 = vunpack.c.h.b16 %v499
        %v1424 = vunpack.c.l.b16 %v500
        %v1425 = vunpack.c.l.b16 %v501
        %v1426 = vunpack.c.h.b16 %v501
        %v1427 = vunpack.c.l.b16 %v502
        %v1428 = vunpack.c.h.b16 %v502
        %v1429 = vunpack.c.l.b16 %v503
        %v1430 = vunpack.c.l.b16 %v504
        %v1431 = vunpack.c.h.b16 %v504
        %v1432 = vunpack.c.l.b16 %v505
        %v1433 = vunpack.c.h.b16 %v505
        %v1434 = vunpack.c.l.b16 %v506
        %v1435 = vunpack.c.l.b16 %v507
        %v1436 = vunpack.c.h.b16 %v507
        %v1437 = vunpack.c.l.b16 %v508
        %v1438 = vunpack.c.h.b16 %v508
        %v1439 = vunpack.c.l.b16 %v509
        %v1440 = vunpack.c.l.b16 %v510
        %v1441 = vunpack.c.h.b16 %v510
        %v1442 = vunpack.c.l.b16 %v511
        %v1443 = vunpack.c.h.b16 %v511
        %v1444 = vunpack.c.l.b16 %v512
        %v1445 = vunpack.c.l.b16 %v513
        %v1446 = vunpack.c.h.b16 %v513
        %v1447 = vunpack.c.l.b16 %v514
        %v1448 = vunpack.c.h.b16 %v514
        %v1449 = vunpack.c.l.b16 %v515
        %v1450 = vunpack.c.l.b16 %v516
        %v1451 = vunpack.c.h.b16 %v516
        %v1452 = vunpack.c.l.b16 %v517
        %v1453 = vunpack.c.h.b16 %v517
        %v1454 = vunpack.c.l.b16 %v518
        %v1455 = vunpack.c.l.b16 %v519
        %v1456 = vunpack.c.h.b16 %v519
        %v1457 = vunpack.c.l.b16 %v520
        %v1458 = vunpack.c.h.b16 %v520
        %v1459 = vunpack.c.l.b16 %v521
        %v1460 = vunpack.c.l.b16 %v522
        %v1461 = vunpack.c.h.b16 %v522
        %v1462 = vunpack.c.l.b16 %v523
        %v1463 = vunpack.c.h.b16 %v523
        %v1464 = vunpack.c.l.b16 %v524
        %v1465 = vunpack.c.l.b16 %v525
        %v1466 = vunpack.c.h.b16 %v525
        %v1467 = vunpack.c.l.b16 %v526
        %v1468 = vunpack.c.h.b16 %v526
        %v1469 = vunpack.c.l.b16 %v527
        %v1470 = vunpack.c.l.b16 %v528
        %v1471 = vunpack.c.h.b16 %v528
        %v1472 = vunpack.c.l.b16 %v529
        %v1473 = vunpack.c.h.b16 %v529
        %v1474 = vunpack.c.l.b16 %v530
        %v1475 = vunpack.c.l.b16 %v531
        %v1476 = vunpack.c.h.b16 %v531
        %v1477 = vunpack.c.l.b16 %v532
        %v1478 = vunpack.c.h.b16 %v532
        %v1479 = vunpack.c.l.b16 %v533
        %v1480 = vunpack.c.l.b16 %v534
        %v1481 = vunpack.c.h.b16 %v534
        %v1482 = vunpack.c.l.b16 %v535
        %v1483 = vunpack.c.h.b16 %v535
        %v1484 = vunpack.c.l.b16 %v536
        %v1485 = vunpack.c.l.b16 %v537
        %v1486 = vunpack.c.h.b16 %v537
        %v1487 = vunpack.c.l.b16 %v538
        %v1488 = vunpack.c.h.b16 %v538
        %v1489 = vunpack.c.l.b16 %v539
        %v1490 = vunpack.c.l.b16 %v540
        %v1491 = vunpack.c.h.b16 %v540
        %v1492 = vunpack.c.l.b16 %v541
        %v1493 = vunpack.c.h.b16 %v541
        %v1494 = vunpack.c.l.b16 %v542
        %v1495 = vunpack.c.l.b16 %v543
        %v1496 = vunpack.c.h.b16 %v543
        %v1497 = vunpack.c.l.b16 %v544
        %v1498 = vunpack.c.h.b16 %v544
        %v1499 = vunpack.c.l.b16 %v545
        %v1500 = vunpack.c.l.b16 %v546
        %v1501 = vunpack.c.h.b16 %v546
        %v1502 = vunpack.c.l.b16 %v547
        %v1503 = vunpack.c.h.b16 %v547
        %v1504 = vunpack.c.l.b16 %v548
        %v1505 = vunpack.c.l.b16 %v549
        %v1506 = vunpack.c.h.b16 %v549
        %v1507 = vunpack.c.l.b16 %v550
        %v1508 = vunpack.c.h.b16 %v550
        %v1509 = vunpack.c.l.b16 %v551
        %v1510 = vunpack.c.l.b16 %v552
        %v1511 = vunpack.c.h.b16 %v552
        %v1512 = vunpack.c.l.b16 %v553
        %v1513 = vunpack.c.h.b16 %v553
        %v1514 = vunpack.c.l.b16 %v554
        %v1515 = vunpack.c.l.b16 %v555
        %v1516 = vunpack.c.h.b16 %v555
        %v1517 = vunpack.c.l.b16 %v556
        %v1518 = vunpack.c.h.b16 %v556
        %v1519 = vunpack.c.l.b16 %v557
        %v1520 = vunpack.c.l.b16 %v558
        %v1521 = vunpack.c.h.b16 %v558
        %v1522 = vunpack.c.l.b16 %v559
        %v1523 = vunpack.c.h.b16 %v559
        %v1524 = vunpack.c.l.b16 %v560
        %v1525 = vunpack.c.l.b16 %v561
        %v1526 = vunpack.c.h.b16 %v561
        %v1527 = vunpack.c.l.b16 %v562
        %v1528 = vunpack.c.h.b16 %v562
        %v1529 = vunpack.c.l.b16 %v563
        %v1530 = vunpack.c.l.b16 %v564
        %v1531 = vunpack.c.h.b16 %v564
        %v1532 = vunpack.c.l.b16 %v565
        %v1533 = vunpack.c.h.b16 %v565
        %v1534 = vunpack.c.l.b16 %v566
        %v1535 = vunpack.c.l.b16 %v567
        %v1536 = vunpack.c.h.b16 %v567
        %v1537 = vunpack.c.l.b16 %v568
        %v1538 = vunpack.c.h.b16 %v568
        %v1539 = vunpack.c.l.b16 %v569
        %v1540 = vunpack.c.l.b16 %v570
        %v1541 = vunpack.c.h.b16 %v570
        %v1542 = vunpack.c.l.b16 %v571
        %v1543 = vunpack.c.h.b16 %v571
        %v1544 = vunpack.c.l.b16 %v572
        %v1545 = vunpack.c.l.b16 %v573
        %v1546 = vunpack.c.h.b16 %v573
        %v1547 = vunpack.c.l.b16 %v574
        %v1548 = vunpack.c.h.b16 %v574
        %v1549 = vunpack.c.l.b16 %v575
        %v1550 = vunpack.c.l.b16 %v576
        %v1551 = vunpack.c.h.b16 %v576
        %v1552 = vunpack.c.l.b16 %v577
        %v1553 = vunpack.c.h.b16 %v577
        %v1554 = vunpack.c.l.b16 %v578
        %v1555 = vunpack.c.l.b16 %v579
        %v1556 = vunpack.c.h.b16 %v579
        %v1557 = vunpack.c.l.b16 %v580
        %v1558 = vunpack.c.h.b16 %v580
        %v1559 = vunpack.c.l.b16 %v581
        %v1560 = vunpack.c.l.b16 %v582
        %v1561 = vunpack.c.h.b16 %v582
        %v1562 = vunpack.c.l.b16 %v583
        %v1563 = vunpack.c.h.b16 %v583
        %v1564 = vunpack.c.l.b16 %v584
        %v1565 = vunpack.c.l.b16 %v585
        %v1566 = vunpack.c.h.b16 %v585
        %v1567 = vunpack.c.l.b16 %v586
        %v1568 = vunpack.c.h.b16 %v586
        %v1569 = vunpack.c.l.b16 %v587
        %v1570 = vunpack.c.l.b16 %v588
        %v1571 = vunpack.c.h.b16 %v588
        %v1572 = vunpack.c.l.b16 %v589
        %v1573 = vunpack.c.h.b16 %v589
        %v1574 = vunpack.c.l.b16 %v590
        %v1575 = vunpack.c.l.b16 %v591
        %v1576 = vunpack.c.h.b16 %v591
        %v1577 = vunpack.c.l.b16 %v592
        %v1578 = vunpack.c.h.b16 %v592
        %v1579 = vunpack.c.l.b16 %v593
        %v1580 = vunpack.c.l.b16 %v594
        %v1581 = vunpack.c.h.b16 %v594
        %v1582 = vunpack.c.l.b16 %v595
        %v1583 = vunpack.c.h.b16 %v595
        %v1584 = vunpack.c.l.b16 %v596
        %v1585 = vunpack.c.l.b16 %v597
        %v1586 = vunpack.c.h.b16 %v597
        %v1587 = vunpack.c.l.b16 %v598
        %v1588 = vunpack.c.h.b16 %v598
        %v1589 = vunpack.c.l.b16 %v599
        %v1590 = vunpack.c.l.b16 %v600
        %v1591 = vunpack.c.h.b16 %v600
        %v1592 = vunpack.c.l.b16 %v601
        %v1593 = vunpack.c.h.b16 %v601
        %v1594 = vunpack.c.l.b16 %v602
        %v1595 = vunpack.c.l.b16 %v603
        %v1596 = vunpack.c.h.b16 %v603
        %v1597 = vunpack.c.l.b16 %v604
        %v1598 = vunpack.c.h.b16 %v604
        %v1599 = vunpack.c.l.b16 %v605
        %v1600 = vunpack.c.l.b16 %v606
        %v1601 = vunpack.c.h.b16 %v606
        %v1602 = vunpack.c.l.b16 %v607
        %v1603 = vunpack.c.h.b16 %v607
        %v1604 = vunpack.c.l.b16 %v608
        %v1605 = vunpack.c.l.b16 %v609
        %v1606 = vunpack.c.h.b16 %v609
        %v1607 = vunpack.c.l.b16 %v610
        %v1608 = vunpack.c.h.b16 %v610
        %v1609 = vunpack.c.l.b16 %v611
        %v1610 = vunpack.c.l.b16 %v612
        %v1611 = vunpack.c.h.b16 %v612
        %v1612 = vunpack.c.l.b16 %v613
        %v1613 = vunpack.c.h.b16 %v613
        %v1614 = vunpack.c.l.b16 %v614
        %v1615 = vunpack.c.l.b16 %v615
        %v1616 = vunpack.c.h.b16 %v615
        %v1617 = vunpack.c.l.b16 %v616
        %v1618 = vunpack.c.h.b16 %v616
        %v1619 = vunpack.c.l.b16 %v617
        %v1620 = vunpack.c.l.b16 %v618
        %v1621 = vunpack.c.h.b16 %v618
        %v1622 = vunpack.c.l.b16 %v619
        %v1623 = vunpack.c.h.b16 %v619
        %v1624 = vunpack.c.l.b16 %v620
        %v1625 = vunpack.c.l.b16 %v621
        %v1626 = vunpack.c.h.b16 %v621
        %v1627 = vunpack.c.l.b16 %v622
        %v1628 = vunpack.c.h.b16 %v622
        %v1629 = vunpack.c.l.b16 %v623
        %v1630 = vunpack.c.l.b16 %v624
        %v1631 = vunpack.c.h.b16 %v624
        %v1632 = vunpack.c.l.b16 %v625
        %v1633 = vunpack.c.h.b16 %v625
        %v1634 = vunpack.c.l.b16 %v626
        %v1635 = vunpack.c.l.b16 %v627
        %v1636 = vunpack.c.h.b16 %v627
        %v1637 = vunpack.c.l.b16 %v628
        %v1638 = vunpack.c.h.b16 %v628
        %v1639 = vunpack.c.l.b16 %v629
        %v1640 = vunpack.c.l.b16 %v630
        %v1641 = vunpack.c.h.b16 %v630
        %v1642 = vunpack.c.l.b16 %v631
        %v1643 = vunpack.c.h.b16 %v631
        %v1644 = vunpack.c.l.b16 %v632
        %v1645 = vunpack.c.l.b16 %v633
        %v1646 = vunpack.c.h.b16 %v633
        %v1647 = vunpack.c.l.b16 %v634
        %v1648 = vunpack.c.h.b16 %v634
        %v1649 = vunpack.c.l.b16 %v635
        %v1650 = vunpack.c.l.b16 %v636
        %v1651 = vunpack.c.h.b16 %v636
        %v1652 = vunpack.c.l.b16 %v637
        %v1653 = vunpack.c.h.b16 %v637
        %v1654 = vunpack.c.l.b16 %v638
        %v1655 = vunpack.c.l.b16 %v639
        %v1656 = vunpack.c.h.b16 %v639
        %v1657 = vunpack.c.l.b16 %v640
        %v1658 = vunpack.c.h.b16 %v640
        %v1659 = vunpack.c.l.b16 %v641
        %v1660 = vunpack.c.l.b16 %v642
        %v1661 = vunpack.c.h.b16 %v642
        %v1662 = vunpack.c.l.b16 %v643
        %v1663 = vunpack.c.h.b16 %v643
        %v1664 = vunpack.c.l.b16 %v644
        %v1665 = vunpack.c.l.b16 %v645
        %v1666 = vunpack.c.h.b16 %v645
        %v1667 = vunpack.c.l.b16 %v646
        %v1668 = vunpack.c.h.b16 %v646
        %v1669 = vunpack.c.l.b16 %v647
        %v1670 = vunpack.c.l.b16 %v648
        %v1671 = vunpack.c.h.b16 %v648
        %v1672 = vunpack.c.l.b16 %v649
        %v1673 = vunpack.c.h.b16 %v649
        %v1674 = vunpack.c.l.b16 %v650
        %v1675 = vunpack.c.l.b16 %v651
        %v1676 = vunpack.c.h.b16 %v651
        %v1677 = vunpack.c.l.b16 %v652
        %v1678 = vunpack.c.h.b16 %v652
        %v1679 = vunpack.c.l.b16 %v653
        %v1680 = vunpack.c.l.b16 %v654
        %v1681 = vunpack.c.h.b16 %v654
        %v1682 = vunpack.c.l.b16 %v655
        %v1683 = vunpack.c.h.b16 %v655
        %v1684 = vunpack.c.l.b16 %v656
        %v1685 = vunpack.c.l.b16 %v657
        %v1686 = vunpack.c.h.b16 %v657
        %v1687 = vunpack.c.l.b16 %v658
        %v1688 = vunpack.c.h.b16 %v658
        %v1689 = vunpack.c.l.b16 %v659
        %v1690 = vunpack.c.l.b16 %v660
        %v1691 = vunpack.c.h.b16 %v660
        %v1692 = vunpack.c.l.b16 %v661
        %v1693 = vunpack.c.h.b16 %v661
        %v1694 = vunpack.c.l.b16 %v662
        %v1695 = vunpack.c.l.b16 %v663
        %v1696 = vunpack.c.h.b16 %v663
        %v1697 = vunpack.c.l.b16 %v664
        %v1698 = vunpack.c.h.b16 %v664
        %v1699 = vunpack.c.l.b16 %v665
        %v1700 = vunpack.c.l.b16 %v666
        %v1701 = vunpack.c.h.b16 %v666
        %v1702 = vunpack.c.l.b16 %v667
        %v1703 = vunpack.c.h.b16 %v667
        %v1704 = vunpack.c.l.b16 %v668
        %v1705 = vunpack.c.l.b16 %v669
        %v1706 = vunpack.c.h.b16 %v669
        %v1707 = vunpack.c.l.b16 %v670
        %v1708 = vunpack.c.h.b16 %v670
        %v1709 = vunpack.c.l.b16 %v671
        %v1710 = vunpack.c.l.b16 %v672
        %v1711 = vunpack.c.h.b16 %v672
        %v1712 = vunpack.c.l.b16 %v673
        %v1713 = vunpack.c.h.b16 %v673
        %v1714 = vunpack.c.l.b16 %v674
        %v1715 = vunpack.c.l.b16 %v675
        %v1716 = vunpack.c.h.b16 %v675
        %v1717 = vunpack.c.l.b16 %v676
        %v1718 = vunpack.c.h.b16 %v676
        %v1719 = vunpack.c.l.b16 %v677
        %v1720 = vunpack.c.l.b16 %v678
        %v1721 = vunpack.c.h.b16 %v678
        %v1722 = vunpack.c.l.b16 %v679
        %v1723 = vunpack.c.h.b16 %v679
        %v1724 = vunpack.c.l.b16 %v680
        %v1725 = vunpack.c.l.b16 %v681
        %v1726 = vunpack.c.h.b16 %v681
        %v1727 = vunpack.c.l.b16 %v682
        %v1728 = vunpack.c.h.b16 %v682
        %v1729 = vunpack.c.l.b16 %v683
        %v1730 = vunpack.c.l.b16 %v684
        %v1731 = vunpack.c.h.b16 %v684
        %v1732 = vunpack.c.l.b16 %v685
        %v1733 = vunpack.c.h.b16 %v685
        %v1734 = vunpack.c.l.b16 %v686
        %v1735 = vunpack.c.l.b16 %v687
        %v1736 = vunpack.c.h.b16 %v687
        %v1737 = vunpack.c.l.b16 %v688
        %v1738 = vunpack.c.h.b16 %v688
        %v1739 = vunpack.c.l.b16 %v689
        %v1740 = vunpack.c.l.b16 %v690
        %v1741 = vunpack.c.h.b16 %v690
        %v1742 = vunpack.c.l.b16 %v691
        %v1743 = vunpack.c.h.b16 %v691
        %v1744 = vunpack.c.l.b16 %v692
        %v1745 = vunpack.c.l.b16 %v693
        %v1746 = vunpack.c.h.b16 %v693
        %v1747 = vunpack.c.l.b16 %v694
        %v1748 = vunpack.c.h.b16 %v694
        %v1749 = vunpack.c.l.b16 %v695
        %v1750 = vunpack.c.l.b16 %v696
        %v1751 = vunpack.c.h.b16 %v696
        %v1752 = vunpack.c.l.b16 %v697
        %v1753 = vunpack.c.h.b16 %v697
        %v1754 = vunpack.c.l.b16 %v698
        %v1755 = vunpack.c.l.b16 %v699
        %v1756 = vunpack.c.h.b16 %v699
        %v1757 = vunpack.c.l.b16 %v700
        %v1758 = vunpack.c.h.b16 %v700
        %v1759 = vunpack.c.l.b16 %v701
        %v1760 = vunpack.c.l.b16 %v702
        %v1761 = vunpack.c.h.b16 %v702
        %v1762 = vunpack.c.l.b16 %v703
        %v1763 = vunpack.c.h.b16 %v703
        %v1764 = vunpack.c.l.b16 %v704
        %v1765 = vunpack.c.l.b16 %v705
        %v1766 = vunpack.c.h.b16 %v705
        %v1767 = vunpack.c.l.b16 %v706
        %v1768 = vunpack.c.h.b16 %v706
        %v1769 = vunpack.c.l.b16 %v707
        %v1770 = vunpack.c.l.b16 %v708
        %v1771 = vunpack.c.h.b16 %v708
        %v1772 = vunpack.c.l.b16 %v709
        %v1773 = vunpack.c.h.b16 %v709
        %v1774 = vunpack.c.l.b16 %v710
        %v1775 = vunpack.c.l.b16 %v711
        %v1776 = vunpack.c.h.b16 %v711
        %v1777 = vunpack.c.l.b16 %v712
        %v1778 = vunpack.c.h.b16 %v712
        %v1779 = vunpack.c.l.b16 %v713
        %v1780 = vunpack.c.l.b16 %v714
        %v1781 = vunpack.c.h.b16 %v714
        %v1782 = vunpack.c.l.b16 %v715
        %v1783 = vunpack.c.h.b16 %v715
        %v1784 = vunpack.c.l.b16 %v716
        %v1785 = vpack.c.b16 %v1390, %v1385
        %v1786 = vpack.c.b16 %v1391, %v1386
        %v1787 = vpack.c.b16 %v1392, %v1387
        %v1788 = vpack.c.b16 %v1393, %v1388
        %v1789 = vpack.c.b16 %v1394, %v1389
        %v1790 = vpack.c.b16 %v1400, %v1395
        %v1791 = vpack.c.b16 %v1401, %v1396
        %v1792 = vpack.c.b16 %v1402, %v1397
        %v1793 = vpack.c.b16 %v1403, %v1398
        %v1794 = vpack.c.b16 %v1404, %v1399
        %v1795 = vpack.c.b16 %v1410, %v1405
        %v1796 = vpack.c.b16 %v1411, %v1406
        %v1797 = vpack.c.b16 %v1412, %v1407
        %v1798 = vpack.c.b16 %v1413, %v1408
        %v1799 = vpack.c.b16 %v1414, %v1409
        %v1800 = vpack.c.b16 %v1420, %v1415
        %v1801 = vpack.c.b16 %v1421, %v1416
        %v1802 = vpack.c.b16 %v1422, %v1417
        %v1803 = vpack.c.b16 %v1423, %v1418
        %v1804 = vpack.c.b16 %v1424, %v1419
        %v1805 = vpack.c.b16 %v1430, %v1425
        %v1806 = vpack.c.b16 %v1431, %v1426
        %v1807 = vpack.c.b16 %v1432, %v1427
        %v1808 = vpack.c.b16 %v1433, %v1428
        %v1809 = vpack.c.b16 %v1434, %v1429
        %v1810 = vpack.c.b16 %v1440, %v1435
        %v1811 = vpack.c.b16 %v1441, %v1436
        %v1812 = vpack.c.b16 %v1442, %v1437
        %v1813 = vpack.c.b16 %v1443, %v1438
        %v1814 = vpack.c.b16 %v1444, %v1439
        %v1815 = vpack.c.b16 %v1450, %v1445
        %v1816 = vpack.c.b16 %v1451, %v1446
        %v1817 = vpack.c.b16 %v1452, %v1447
        %v1818 = vpack.c.b16 %v1453, %v1448
        %v1819 = vpack.c.b16 %v1454, %v1449
        %v1820 = vpack.c.b16 %v1460, %v1455
        %v1821 = vpack.c.b16 %v1461, %v1456
        %v1822 = vpack.c.b16 %v1462, %v1457
        %v1823 = vpack.c.b16 %v1463, %v1458
        %v1824 = vpack.c.b16 %v1464, %v1459
        %v1825 = vpack.c.b16 %v1470, %v1465
        %v1826 = vpack.c.b16 %v1471, %v1466
        %v1827 = vpack.c.b16 %v1472, %v1467
        %v1828 = vpack.c.b16 %v1473, %v1468
        %v1829 = vpack.c.b16 %v1474, %v1469
        %v1830 = vpack.c.b16 %v1480, %v1475
        %v1831 = vpack.c.b16 %v1481, %v1476
        %v1832 = vpack.c.b16 %v1482, %v1477
        %v1833 = vpack.c.b16 %v1483, %v1478
        %v1834 = vpack.c.b16 %v1484, %v1479
        %v1835 = vpack.c.b16 %v1490, %v1485
        %v1836 = vpack.c.b16 %v1491, %v1486
        %v1837 = vpack.c.b16 %v1492, %v1487
        %v1838 = vpack.c.b16 %v1493, %v1488
        %v1839 = vpack.c.b16 %v1494, %v1489
        %v1840 = vpack.c.b16 %v1500, %v1495
        %v1841 = vpack.c.b16 %v1501, %v1496
        %v1842 = vpack.c.b16 %v1502, %v1497
        %v1843 = vpack.c.b16 %v1503, %v1498
        %v1844 = vpack.c.b16 %v1504, %v1499
        %v1845 = vpack.c.b16 %v1510, %v1505
        %v1846 = vpack.c.b16 %v1511, %v1506
        %v1847 = vpack.c.b16 %v1512, %v1507
        %v1848 = vpack.c.b16 %v1513, %v1508
        %v1849 = vpack.c.b16 %v1514, %v1509
        %v1850 = vpack.c.b16 %v1520, %v1515
        %v1851 = vpack.c.b16 %v1521, %v1516
        %v1852 = vpack.c.b16 %v1522, %v1517
        %v1853 = vpack.c.b16 %v1523, %v1518
        %v1854 = vpack.c.b16 %v1524, %v1519
        %v1855 = vpack.c.b16 %v1530, %v1525
        %v1856 = vpack.c.b16 %v1531, %v1526
        %v1857 = vpack.c.b16 %v1532, %v1527
        %v1858 = vpack.c.b16 %v1533, %v1528
        %v1859 = vpack.c.b16 %v1534, %v1529
        %v1860 = vpack.c.b16 %v1540, %v1535
        %v1861 = vpack.c.b16 %v1541, %v1536
        %v1862 = vpack.c.b16 %v1542, %v1537
        %v1863 = vpack.c.b16 %v1543, %v1538
        %v1864 = vpack.c.b16 %v1544, %v1539
        %v1865 = vpack.c.b16 %v1550, %v1545
        %v1866 = vpack.c.b16 %v1551, %v1546
        %v1867 = vpack.c.b16 %v1552, %v1547
        %v1868 = vpack.c.b16 %v1553, %v1548
        %v1869 = vpack.c.b16 %v1554, %v1549
        %v1870 = vpack.c.b16 %v1560, %v1555
        %v1871 = vpack.c.b16 %v1561, %v1556
        %v1872 = vpack.c.b16 %v1562, %v1557
        %v1873 = vpack.c.b16 %v1563, %v1558
        %v1874 = vpack.c.b16 %v1564, %v1559
        %v1875 = vpack.c.b16 %v1570, %v1565
        %v1876 = vpack.c.b16 %v1571, %v1566
        %v1877 = vpack.c.b16 %v1572, %v1567
        %v1878 = vpack.c.b16 %v1573, %v1568
        %v1879 = vpack.c.b16 %v1574, %v1569
        %v1880 = vpack.c.b16 %v1580, %v1575
        %v1881 = vpack.c.b16 %v1581, %v1576
        %v1882 = vpack.c.b16 %v1582, %v1577
        %v1883 = vpack.c.b16 %v1583, %v1578
        %v1884 = vpack.c.b16 %v1584, %v1579
        %v1885 = vpack.c.b16 %v1590, %v1585
        %v1886 = vpack.c.b16 %v1591, %v1586
        %v1887 = vpack.c.b16 %v1592, %v1587
        %v1888 = vpack.c.b16 %v1593, %v1588
        %v1889 = vpack.c.b16 %v1594, %v1589
        %v1890 = vpack.c.b16 %v1600, %v1595
        %v1891 = vpack.c.b16 %v1601, %v1596
        %v1892 = vpack.c.b16 %v1602, %v1597
        %v1893 = vpack.c.b16 %v1603, %v1598
        %v1894 = vpack.c.b16 %v1604, %v1599
        %v1895 = vpack.c.b16 %v1610, %v1605
        %v1896 = vpack.c.b16 %v1611, %v1606
        %v1897 = vpack.c.b16 %v1612, %v1607
        %v1898 = vpack.c.b16 %v1613, %v1608
        %v1899 = vpack.c.b16 %v1614, %v1609
        %v1900 = vpack.c.b16 %v1620, %v1615
        %v1901 = vpack.c.b16 %v1621, %v1616
        %v1902 = vpack.c.b16 %v1622, %v1617
        %v1903 = vpack.c.b16 %v1623, %v1618
        %v1904 = vpack.c.b16 %v1624, %v1619
        %v1905 = vpack.c.b16 %v1630, %v1625
        %v1906 = vpack.c.b16 %v1631, %v1626
        %v1907 = vpack.c.b16 %v1632, %v1627
        %v1908 = vpack.c.b16 %v1633, %v1628
        %v1909 = vpack.c.b16 %v1634, %v1629
        %v1910 = vpack.c.b16 %v1640, %v1635
        %v1911 = vpack.c.b16 %v1641, %v1636
        %v1912 = vpack.c.b16 %v1642, %v1637
        %v1913 = vpack.c.b16 %v1643, %v1638
        %v1914 = vpack.c.b16 %v1644, %v1639
        %v1915 = vpack.c.b16 %v1650, %v1645
        %v1916 = vpack.c.b16 %v1651, %v1646
        %v1917 = vpack.c.b16 %v1652, %v1647
        %v1918 = vpack.c.b16 %v1653, %v1648
        %v1919 = vpack.c.b16 %v1654, %v1649
        %v1920 = vpack.c.b16 %v1660, %v1655
        %v1921 = vpack.c.b16 %v1661, %v1656
        %v1922 = vpack.c.b16 %v1662, %v1657
        %v1923 = vpack.c.b16 %v1663, %v1658
        %v1924 = vpack.c.b16 %v1664, %v1659
        %v1925 = vpack.c.b16 %v1670, %v1665
        %v1926 = vpack.c.b16 %v1671, %v1666
        %v1927 = vpack.c.b16 %v1672, %v1667
        %v1928 = vpack.c.b16 %v1673, %v1668
        %v1929 = vpack.c.b16 %v1674, %v1669
        %v1930 = vpack.c.b16 %v1680, %v1675
        %v1931 = vpack.c.b16 %v1681, %v1676
        %v1932 = vpack.c.b16 %v1682, %v1677
        %v1933 = vpack.c.b16 %v1683, %v1678
        %v1934 = vpack.c.b16 %v1684, %v1679
        %v1935 = vpack.c.b16 %v1690, %v1685
        %v1936 = vpack.c.b16 %v1691, %v1686
        %v1937 = vpack.c.b16 %v1692, %v1687
        %v1938 = vpack.c.b16 %v1693, %v1688
        %v1939 = vpack.c.b16 %v1694, %v1689
        %v1940 = vpack.c.b16 %v1700, %v1695
        %v1941 = vpack.c.b16 %v1701, %v1696
        %v1942 = vpack.c.b16 %v1702, %v1697
        %v1943 = vpack.c.b16 %v1703, %v1698
        %v1944 = vpack.c.b16 %v1704, %v1699
        %v1945 = vpack.c.b16 %v1710, %v1705
        %v1946 = vpack.c.b16 %v1711, %v1706
        %v1947 = vpack.c.b16 %v1712, %v1707
        %v1948 = vpack.c.b16 %v1713, %v1708
        %v1949 = vpack.c.b16 %v1714, %v1709
        %v1950 = vpack.c.b16 %v1720, %v1715
        %v1951 = vpack.c.b16 %v1721, %v1716
        %v1952 = vpack.c.b16 %v1722, %v1717
        %v1953 = vpack.c.b16 %v1723, %v1718
        %v1954 = vpack.c.b16 %v1724, %v1719
        %v1955 = vpack.c.b16 %v1730, %v1725
        %v1956 = vpack.c.b16 %v1731, %v1726
        %v1957 = vpack.c.b16 %v1732, %v1727
        %v1958 = vpack.c.b16 %v1733, %v1728
        %v1959 = vpack.c.b16 %v1734, %v1729
        %v1960 = vpack.c.b16 %v1740, %v1735
        %v1961 = vpack.c.b16 %v1741, %v1736
        %v1962 = vpack.c.b16 %v1742, %v1737
        %v1963 = vpack.c.b16 %v1743, %v1738
        %v1964 = vpack.c.b16 %v1744, %v1739
        %v1965 = vpack.c.b16 %v1750, %v1745
        %v1966 = vpack.c.b16 %v1751, %v1746
        %v1967 = vpack.c.b16 %v1752, %v1747
        %v1968 = vpack.c.b16 %v1753, %v1748
        %v1969 = vpack.c.b16 %v1754, %v1749
        %v1970 = vpack.c.b16 %v1760, %v1755
        %v1971 = vpack.c.b16 %v1761, %v1756
        %v1972 = vpack.c.b16 %v1762, %v1757
        %v1973 = vpack.c.b16 %v1763, %v1758
        %v1974 = vpack.c.b16 %v1764, %v1759
        %v1975 = vpack.c.b16 %v1770, %v1765
        %v1976 = vpack.c.b16 %v1771, %v1766
        %v1977 = vpack.c.b16 %v1772, %v1767
        %v1978 = vpack.c.b16 %v1773, %v1768
        %v1979 = vpack.c.b16 %v1774, %v1769
        %v1980 = vpack.c.b16 %v1780, %v1775
        %v1981 = vpack.c.b16 %v1781, %v1776
        %v1982 = vpack.c.b16 %v1782, %v1777
        %v1983 = vpack.c.b16 %v1783, %v1778
        %v1984 = vpack.c.b16 %v1784, %v1779
        %2185 = vmatpush.bf16.msra.mxu0 %v1820
        %2186 = vmatpush.bf16.msra.mxu0 %v1815
        %2187 = vmatpush.bf16.msra.mxu0 %v1810
        %2188 = vmatpush.bf16.msra.mxu0 %v1805
        %2189 = vmatpush.bf16.msra.mxu0 %v1800
        %2190 = vmatpush.bf16.msra.mxu0 %v1795
        %2191 = vmatpush.bf16.msra.mxu0 %v1790
        %2192 = vmatpush.bf16.msra.mxu0 %v1785
        %2193 = vmatmul.bf16.gmra.mxu0 %v985
        %v2194 = vpop.f32.mrf.mxu0
        %v2195 = vadd.f32 %v719, %v2194
        %v2196 = vpop.f32.mrf.mxu0
        %v2197 = vadd.f32 %v719, %v2196
        %2198 = vmatmul.bf16.gmra.mxu0 %v990
        %v2199 = vpop.f32.mrf.mxu0
        %v2200 = vadd.f32 %v719, %v2199
        %v2201 = vpop.f32.mrf.mxu0
        %v2202 = vadd.f32 %v719, %v2201
        %2203 = vmatmul.bf16.gmra.mxu0 %v995
        %v2204 = vpop.f32.mrf.mxu0
        %v2205 = vadd.f32 %v719, %v2204
        %v2206 = vpop.f32.mrf.mxu0
        %v2207 = vadd.f32 %v719, %v2206
        %2208 = vmatmul.bf16.gmra.mxu0 %v1000
        %v2209 = vpop.f32.mrf.mxu0
        %v2210 = vadd.f32 %v719, %v2209
        %v2211 = vpop.f32.mrf.mxu0
        %v2212 = vadd.f32 %v719, %v2211
        %2213 = vmatmul.bf16.gmra.mxu0 %v1005
        %v2214 = vpop.f32.mrf.mxu0
        %v2215 = vadd.f32 %v719, %v2214
        %v2216 = vpop.f32.mrf.mxu0
        %v2217 = vadd.f32 %v719, %v2216
        %2218 = vmatmul.bf16.gmra.mxu0 %v1010
        %v2219 = vpop.f32.mrf.mxu0
        %v2220 = vadd.f32 %v719, %v2219
        %v2221 = vpop.f32.mrf.mxu0
        %v2222 = vadd.f32 %v719, %v2221
        %2223 = vmatmul.bf16.gmra.mxu0 %v1015
        %v2224 = vpop.f32.mrf.mxu0
        %v2225 = vadd.f32 %v719, %v2224
        %v2226 = vpop.f32.mrf.mxu0
        %v2227 = vadd.f32 %v719, %v2226
        %2228 = vmatmul.bf16.gmra.mxu0 %v1020
        %v2229 = vpop.f32.mrf.mxu0
        %v2230 = vadd.f32 %v719, %v2229
        %v2231 = vpop.f32.mrf.mxu0
        %v2232 = vadd.f32 %v719, %v2231
        %2233 = vmatmul.bf16.gmra.mxu0 %v1025
        %v2234 = vpop.f32.mrf.mxu0
        %v2235 = vadd.f32 %v719, %v2234
        %v2236 = vpop.f32.mrf.mxu0
        %v2237 = vadd.f32 %v719, %v2236
        %2238 = vmatmul.bf16.gmra.mxu0 %v1030
        %v2239 = vpop.f32.mrf.mxu0
        %v2240 = vadd.f32 %v719, %v2239
        %v2241 = vpop.f32.mrf.mxu0
        %v2242 = vadd.f32 %v719, %v2241
        %2243 = vmatmul.bf16.gmra.mxu0 %v1035
        %v2244 = vpop.f32.mrf.mxu0
        %v2245 = vadd.f32 %v719, %v2244
        %v2246 = vpop.f32.mrf.mxu0
        %v2247 = vadd.f32 %v719, %v2246
        %2248 = vmatmul.bf16.gmra.mxu0 %v1040
        %v2249 = vpop.f32.mrf.mxu0
        %v2250 = vadd.f32 %v719, %v2249
        %v2251 = vpop.f32.mrf.mxu0
        %v2252 = vadd.f32 %v719, %v2251
        %2253 = vmatmul.bf16.gmra.mxu0 %v1045
        %v2254 = vpop.f32.mrf.mxu0
        %v2255 = vadd.f32 %v719, %v2254
        %v2256 = vpop.f32.mrf.mxu0
        %v2257 = vadd.f32 %v719, %v2256
        %2258 = vmatmul.bf16.gmra.mxu0 %v1050
        %v2259 = vpop.f32.mrf.mxu0
        %v2260 = vadd.f32 %v719, %v2259
        %v2261 = vpop.f32.mrf.mxu0
        %v2262 = vadd.f32 %v719, %v2261
        %2263 = vmatmul.bf16.gmra.mxu0 %v1055
        %v2264 = vpop.f32.mrf.mxu0
        %v2265 = vadd.f32 %v719, %v2264
        %v2266 = vpop.f32.mrf.mxu0
        %v2267 = vadd.f32 %v719, %v2266
        %2268 = vmatmul.bf16.gmra.mxu0 %v1060
        %v2269 = vpop.f32.mrf.mxu0
        %v2270 = vadd.f32 %v719, %v2269
        %v2271 = vpop.f32.mrf.mxu0
        %v2272 = vadd.f32 %v719, %v2271
        %2273 = vdwg.mxu0
        %2274 = vmatpush.bf16.msra.mxu0 %v1860
        %2275 = vmatpush.bf16.msra.mxu0 %v1855
        %2276 = vmatpush.bf16.msra.mxu0 %v1850
        %2277 = vmatpush.bf16.msra.mxu0 %v1845
        %2278 = vmatpush.bf16.msra.mxu0 %v1840
        %2279 = vmatpush.bf16.msra.mxu0 %v1835
        %2280 = vmatpush.bf16.msra.mxu0 %v1830
        %2281 = vmatpush.bf16.msra.mxu0 %v1825
        %2282 = vmatmul.bf16.gmra.mxu0 %v986
        %v2283 = vpop.f32.mrf.mxu0
        %v2284 = vadd.f32 %v2195, %v2283
        %v2285 = vpop.f32.mrf.mxu0
        %v2286 = vadd.f32 %v2197, %v2285
        %2287 = vmatmul.bf16.gmra.mxu0 %v991
        %v2288 = vpop.f32.mrf.mxu0
        %v2289 = vadd.f32 %v2200, %v2288
        %v2290 = vpop.f32.mrf.mxu0
        %v2291 = vadd.f32 %v2202, %v2290
        %2292 = vmatmul.bf16.gmra.mxu0 %v996
        %v2293 = vpop.f32.mrf.mxu0
        %v2294 = vadd.f32 %v2205, %v2293
        %v2295 = vpop.f32.mrf.mxu0
        %v2296 = vadd.f32 %v2207, %v2295
        %2297 = vmatmul.bf16.gmra.mxu0 %v1001
        %v2298 = vpop.f32.mrf.mxu0
        %v2299 = vadd.f32 %v2210, %v2298
        %v2300 = vpop.f32.mrf.mxu0
        %v2301 = vadd.f32 %v2212, %v2300
        %2302 = vmatmul.bf16.gmra.mxu0 %v1006
        %v2303 = vpop.f32.mrf.mxu0
        %v2304 = vadd.f32 %v2215, %v2303
        %v2305 = vpop.f32.mrf.mxu0
        %v2306 = vadd.f32 %v2217, %v2305
        %2307 = vmatmul.bf16.gmra.mxu0 %v1011
        %v2308 = vpop.f32.mrf.mxu0
        %v2309 = vadd.f32 %v2220, %v2308
        %v2310 = vpop.f32.mrf.mxu0
        %v2311 = vadd.f32 %v2222, %v2310
        %2312 = vmatmul.bf16.gmra.mxu0 %v1016
        %v2313 = vpop.f32.mrf.mxu0
        %v2314 = vadd.f32 %v2225, %v2313
        %v2315 = vpop.f32.mrf.mxu0
        %v2316 = vadd.f32 %v2227, %v2315
        %2317 = vmatmul.bf16.gmra.mxu0 %v1021
        %v2318 = vpop.f32.mrf.mxu0
        %v2319 = vadd.f32 %v2230, %v2318
        %v2320 = vpop.f32.mrf.mxu0
        %v2321 = vadd.f32 %v2232, %v2320
        %2322 = vmatmul.bf16.gmra.mxu0 %v1026
        %v2323 = vpop.f32.mrf.mxu0
        %v2324 = vadd.f32 %v2235, %v2323
        %v2325 = vpop.f32.mrf.mxu0
        %v2326 = vadd.f32 %v2237, %v2325
        %2327 = vmatmul.bf16.gmra.mxu0 %v1031
        %v2328 = vpop.f32.mrf.mxu0
        %v2329 = vadd.f32 %v2240, %v2328
        %v2330 = vpop.f32.mrf.mxu0
        %v2331 = vadd.f32 %v2242, %v2330
        %2332 = vmatmul.bf16.gmra.mxu0 %v1036
        %v2333 = vpop.f32.mrf.mxu0
        %v2334 = vadd.f32 %v2245, %v2333
        %v2335 = vpop.f32.mrf.mxu0
        %v2336 = vadd.f32 %v2247, %v2335
        %2337 = vmatmul.bf16.gmra.mxu0 %v1041
        %v2338 = vpop.f32.mrf.mxu0
        %v2339 = vadd.f32 %v2250, %v2338
        %v2340 = vpop.f32.mrf.mxu0
        %v2341 = vadd.f32 %v2252, %v2340
        %2342 = vmatmul.bf16.gmra.mxu0 %v1046
        %v2343 = vpop.f32.mrf.mxu0
        %v2344 = vadd.f32 %v2255, %v2343
        %v2345 = vpop.f32.mrf.mxu0
        %v2346 = vadd.f32 %v2257, %v2345
        %2347 = vmatmul.bf16.gmra.mxu0 %v1051
        %v2348 = vpop.f32.mrf.mxu0
        %v2349 = vadd.f32 %v2260, %v2348
        %v2350 = vpop.f32.mrf.mxu0
        %v2351 = vadd.f32 %v2262, %v2350
        %2352 = vmatmul.bf16.gmra.mxu0 %v1056
        %v2353 = vpop.f32.mrf.mxu0
        %v2354 = vadd.f32 %v2265, %v2353
        %v2355 = vpop.f32.mrf.mxu0
        %v2356 = vadd.f32 %v2267, %v2355
        %2357 = vmatmul.bf16.gmra.mxu0 %v1061
        %v2358 = vpop.f32.mrf.mxu0
        %v2359 = vadd.f32 %v2270, %v2358
        %v2360 = vpop.f32.mrf.mxu0
        %v2361 = vadd.f32 %v2272, %v2360
        %2362 = vdwg.mxu0
        %2363 = vmatpush.bf16.msra.mxu0 %v1900
        %2364 = vmatpush.bf16.msra.mxu0 %v1895
        %2365 = vmatpush.bf16.msra.mxu0 %v1890
        %2366 = vmatpush.bf16.msra.mxu0 %v1885
        %2367 = vmatpush.bf16.msra.mxu0 %v1880
        %2368 = vmatpush.bf16.msra.mxu0 %v1875
        %2369 = vmatpush.bf16.msra.mxu0 %v1870
        %2370 = vmatpush.bf16.msra.mxu0 %v1865
        %2371 = vmatmul.bf16.gmra.mxu0 %v987
        %v2372 = vpop.f32.mrf.mxu0
        %v2373 = vadd.f32 %v2284, %v2372
        %v2374 = vpop.f32.mrf.mxu0
        %v2375 = vadd.f32 %v2286, %v2374
        %2376 = vmatmul.bf16.gmra.mxu0 %v992
        %v2377 = vpop.f32.mrf.mxu0
        %v2378 = vadd.f32 %v2289, %v2377
        %v2379 = vpop.f32.mrf.mxu0
        %v2380 = vadd.f32 %v2291, %v2379
        %2381 = vmatmul.bf16.gmra.mxu0 %v997
        %v2382 = vpop.f32.mrf.mxu0
        %v2383 = vadd.f32 %v2294, %v2382
        %v2384 = vpop.f32.mrf.mxu0
        %v2385 = vadd.f32 %v2296, %v2384
        %2386 = vmatmul.bf16.gmra.mxu0 %v1002
        %v2387 = vpop.f32.mrf.mxu0
        %v2388 = vadd.f32 %v2299, %v2387
        %v2389 = vpop.f32.mrf.mxu0
        %v2390 = vadd.f32 %v2301, %v2389
        %2391 = vmatmul.bf16.gmra.mxu0 %v1007
        %v2392 = vpop.f32.mrf.mxu0
        %v2393 = vadd.f32 %v2304, %v2392
        %v2394 = vpop.f32.mrf.mxu0
        %v2395 = vadd.f32 %v2306, %v2394
        %2396 = vmatmul.bf16.gmra.mxu0 %v1012
        %v2397 = vpop.f32.mrf.mxu0
        %v2398 = vadd.f32 %v2309, %v2397
        %v2399 = vpop.f32.mrf.mxu0
        %v2400 = vadd.f32 %v2311, %v2399
        %2401 = vmatmul.bf16.gmra.mxu0 %v1017
        %v2402 = vpop.f32.mrf.mxu0
        %v2403 = vadd.f32 %v2314, %v2402
        %v2404 = vpop.f32.mrf.mxu0
        %v2405 = vadd.f32 %v2316, %v2404
        %2406 = vmatmul.bf16.gmra.mxu0 %v1022
        %v2407 = vpop.f32.mrf.mxu0
        %v2408 = vadd.f32 %v2319, %v2407
        %v2409 = vpop.f32.mrf.mxu0
        %v2410 = vadd.f32 %v2321, %v2409
        %2411 = vmatmul.bf16.gmra.mxu0 %v1027
        %v2412 = vpop.f32.mrf.mxu0
        %v2413 = vadd.f32 %v2324, %v2412
        %v2414 = vpop.f32.mrf.mxu0
        %v2415 = vadd.f32 %v2326, %v2414
        %2416 = vmatmul.bf16.gmra.mxu0 %v1032
        %v2417 = vpop.f32.mrf.mxu0
        %v2418 = vadd.f32 %v2329, %v2417
        %v2419 = vpop.f32.mrf.mxu0
        %v2420 = vadd.f32 %v2331, %v2419
        %2421 = vmatmul.bf16.gmra.mxu0 %v1037
        %v2422 = vpop.f32.mrf.mxu0
        %v2423 = vadd.f32 %v2334, %v2422
        %v2424 = vpop.f32.mrf.mxu0
        %v2425 = vadd.f32 %v2336, %v2424
        %2426 = vmatmul.bf16.gmra.mxu0 %v1042
        %v2427 = vpop.f32.mrf.mxu0
        %v2428 = vadd.f32 %v2339, %v2427
        %v2429 = vpop.f32.mrf.mxu0
        %v2430 = vadd.f32 %v2341, %v2429
        %2431 = vmatmul.bf16.gmra.mxu0 %v1047
        %v2432 = vpop.f32.mrf.mxu0
        %v2433 = vadd.f32 %v2344, %v2432
        %v2434 = vpop.f32.mrf.mxu0
        %v2435 = vadd.f32 %v2346, %v2434
        %2436 = vmatmul.bf16.gmra.mxu0 %v1052
        %v2437 = vpop.f32.mrf.mxu0
        %v2438 = vadd.f32 %v2349, %v2437
        %v2439 = vpop.f32.mrf.mxu0
        %v2440 = vadd.f32 %v2351, %v2439
        %2441 = vmatmul.bf16.gmra.mxu0 %v1057
        %v2442 = vpop.f32.mrf.mxu0
        %v2443 = vadd.f32 %v2354, %v2442
        %v2444 = vpop.f32.mrf.mxu0
        %v2445 = vadd.f32 %v2356, %v2444
        %2446 = vmatmul.bf16.gmra.mxu0 %v1062
        %v2447 = vpop.f32.mrf.mxu0
        %v2448 = vadd.f32 %v2359, %v2447
        %v2449 = vpop.f32.mrf.mxu0
        %v2450 = vadd.f32 %v2361, %v2449
        %2451 = vdwg.mxu0
        %2452 = vmatpush.bf16.msra.mxu0 %v1940
        %2453 = vmatpush.bf16.msra.mxu0 %v1935
        %2454 = vmatpush.bf16.msra.mxu0 %v1930
        %2455 = vmatpush.bf16.msra.mxu0 %v1925
        %2456 = vmatpush.bf16.msra.mxu0 %v1920
        %2457 = vmatpush.bf16.msra.mxu0 %v1915
        %2458 = vmatpush.bf16.msra.mxu0 %v1910
        %2459 = vmatpush.bf16.msra.mxu0 %v1905
        %2460 = vmatmul.bf16.gmra.mxu0 %v988
        %v2461 = vpop.f32.mrf.mxu0
        %v2462 = vadd.f32 %v2373, %v2461
        %v2463 = vpop.f32.mrf.mxu0
        %v2464 = vadd.f32 %v2375, %v2463
        %2465 = vmatmul.bf16.gmra.mxu0 %v993
        %v2466 = vpop.f32.mrf.mxu0
        %v2467 = vadd.f32 %v2378, %v2466
        %v2468 = vpop.f32.mrf.mxu0
        %v2469 = vadd.f32 %v2380, %v2468
        %2470 = vmatmul.bf16.gmra.mxu0 %v998
        %v2471 = vpop.f32.mrf.mxu0
        %v2472 = vadd.f32 %v2383, %v2471
        %v2473 = vpop.f32.mrf.mxu0
        %v2474 = vadd.f32 %v2385, %v2473
        %2475 = vmatmul.bf16.gmra.mxu0 %v1003
        %v2476 = vpop.f32.mrf.mxu0
        %v2477 = vadd.f32 %v2388, %v2476
        %v2478 = vpop.f32.mrf.mxu0
        %v2479 = vadd.f32 %v2390, %v2478
        %2480 = vmatmul.bf16.gmra.mxu0 %v1008
        %v2481 = vpop.f32.mrf.mxu0
        %v2482 = vadd.f32 %v2393, %v2481
        %v2483 = vpop.f32.mrf.mxu0
        %v2484 = vadd.f32 %v2395, %v2483
        %2485 = vmatmul.bf16.gmra.mxu0 %v1013
        %v2486 = vpop.f32.mrf.mxu0
        %v2487 = vadd.f32 %v2398, %v2486
        %v2488 = vpop.f32.mrf.mxu0
        %v2489 = vadd.f32 %v2400, %v2488
        %2490 = vmatmul.bf16.gmra.mxu0 %v1018
        %v2491 = vpop.f32.mrf.mxu0
        %v2492 = vadd.f32 %v2403, %v2491
        %v2493 = vpop.f32.mrf.mxu0
        %v2494 = vadd.f32 %v2405, %v2493
        %2495 = vmatmul.bf16.gmra.mxu0 %v1023
        %v2496 = vpop.f32.mrf.mxu0
        %v2497 = vadd.f32 %v2408, %v2496
        %v2498 = vpop.f32.mrf.mxu0
        %v2499 = vadd.f32 %v2410, %v2498
        %2500 = vmatmul.bf16.gmra.mxu0 %v1028
        %v2501 = vpop.f32.mrf.mxu0
        %v2502 = vadd.f32 %v2413, %v2501
        %v2503 = vpop.f32.mrf.mxu0
        %v2504 = vadd.f32 %v2415, %v2503
        %2505 = vmatmul.bf16.gmra.mxu0 %v1033
        %v2506 = vpop.f32.mrf.mxu0
        %v2507 = vadd.f32 %v2418, %v2506
        %v2508 = vpop.f32.mrf.mxu0
        %v2509 = vadd.f32 %v2420, %v2508
        %2510 = vmatmul.bf16.gmra.mxu0 %v1038
        %v2511 = vpop.f32.mrf.mxu0
        %v2512 = vadd.f32 %v2423, %v2511
        %v2513 = vpop.f32.mrf.mxu0
        %v2514 = vadd.f32 %v2425, %v2513
        %2515 = vmatmul.bf16.gmra.mxu0 %v1043
        %v2516 = vpop.f32.mrf.mxu0
        %v2517 = vadd.f32 %v2428, %v2516
        %v2518 = vpop.f32.mrf.mxu0
        %v2519 = vadd.f32 %v2430, %v2518
        %2520 = vmatmul.bf16.gmra.mxu0 %v1048
        %v2521 = vpop.f32.mrf.mxu0
        %v2522 = vadd.f32 %v2433, %v2521
        %v2523 = vpop.f32.mrf.mxu0
        %v2524 = vadd.f32 %v2435, %v2523
        %2525 = vmatmul.bf16.gmra.mxu0 %v1053
        %v2526 = vpop.f32.mrf.mxu0
        %v2527 = vadd.f32 %v2438, %v2526
        %v2528 = vpop.f32.mrf.mxu0
        %v2529 = vadd.f32 %v2440, %v2528
        %2530 = vmatmul.bf16.gmra.mxu0 %v1058
        %v2531 = vpop.f32.mrf.mxu0
        %v2532 = vadd.f32 %v2443, %v2531
        %v2533 = vpop.f32.mrf.mxu0
        %v2534 = vadd.f32 %v2445, %v2533
        %2535 = vmatmul.bf16.gmra.mxu0 %v1063
        %v2536 = vpop.f32.mrf.mxu0
        %v2537 = vadd.f32 %v2448, %v2536
        %v2538 = vpop.f32.mrf.mxu0
        %v2539 = vadd.f32 %v2450, %v2538
        %2540 = vdwg.mxu0
        %2541 = vmatpush.bf16.msra.mxu0 %v1980
        %2542 = vmatpush.bf16.msra.mxu0 %v1975
        %2543 = vmatpush.bf16.msra.mxu0 %v1970
        %2544 = vmatpush.bf16.msra.mxu0 %v1965
        %2545 = vmatpush.bf16.msra.mxu0 %v1960
        %2546 = vmatpush.bf16.msra.mxu0 %v1955
        %2547 = vmatpush.bf16.msra.mxu0 %v1950
        %2548 = vmatpush.bf16.msra.mxu0 %v1945
        %2549 = vmatmul.bf16.gmra.mxu0 %v989
        %v2550 = vpop.f32.mrf.mxu0
        %v2551 = vadd.f32 %v2462, %v2550
        %v2552 = vpop.f32.mrf.mxu0
        %v2553 = vadd.f32 %v2464, %v2552
        %2554 = vmatmul.bf16.gmra.mxu0 %v994
        %v2555 = vpop.f32.mrf.mxu0
        %v2556 = vadd.f32 %v2467, %v2555
        %v2557 = vpop.f32.mrf.mxu0
        %v2558 = vadd.f32 %v2469, %v2557
        %2559 = vmatmul.bf16.gmra.mxu0 %v999
        %v2560 = vpop.f32.mrf.mxu0
        %v2561 = vadd.f32 %v2472, %v2560
        %v2562 = vpop.f32.mrf.mxu0
        %v2563 = vadd.f32 %v2474, %v2562
        %2564 = vmatmul.bf16.gmra.mxu0 %v1004
        %v2565 = vpop.f32.mrf.mxu0
        %v2566 = vadd.f32 %v2477, %v2565
        %v2567 = vpop.f32.mrf.mxu0
        %v2568 = vadd.f32 %v2479, %v2567
        %2569 = vmatmul.bf16.gmra.mxu0 %v1009
        %v2570 = vpop.f32.mrf.mxu0
        %v2571 = vadd.f32 %v2482, %v2570
        %v2572 = vpop.f32.mrf.mxu0
        %v2573 = vadd.f32 %v2484, %v2572
        %2574 = vmatmul.bf16.gmra.mxu0 %v1014
        %v2575 = vpop.f32.mrf.mxu0
        %v2576 = vadd.f32 %v2487, %v2575
        %v2577 = vpop.f32.mrf.mxu0
        %v2578 = vadd.f32 %v2489, %v2577
        %2579 = vmatmul.bf16.gmra.mxu0 %v1019
        %v2580 = vpop.f32.mrf.mxu0
        %v2581 = vadd.f32 %v2492, %v2580
        %v2582 = vpop.f32.mrf.mxu0
        %v2583 = vadd.f32 %v2494, %v2582
        %2584 = vmatmul.bf16.gmra.mxu0 %v1024
        %v2585 = vpop.f32.mrf.mxu0
        %v2586 = vadd.f32 %v2497, %v2585
        %v2587 = vpop.f32.mrf.mxu0
        %v2588 = vadd.f32 %v2499, %v2587
        %2589 = vmatmul.bf16.gmra.mxu0 %v1029
        %v2590 = vpop.f32.mrf.mxu0
        %v2591 = vadd.f32 %v2502, %v2590
        %v2592 = vpop.f32.mrf.mxu0
        %v2593 = vadd.f32 %v2504, %v2592
        %2594 = vmatmul.bf16.gmra.mxu0 %v1034
        %v2595 = vpop.f32.mrf.mxu0
        %v2596 = vadd.f32 %v2507, %v2595
        %v2597 = vpop.f32.mrf.mxu0
        %v2598 = vadd.f32 %v2509, %v2597
        %2599 = vmatmul.bf16.gmra.mxu0 %v1039
        %v2600 = vpop.f32.mrf.mxu0
        %v2601 = vadd.f32 %v2512, %v2600
        %v2602 = vpop.f32.mrf.mxu0
        %v2603 = vadd.f32 %v2514, %v2602
        %2604 = vmatmul.bf16.gmra.mxu0 %v1044
        %v2605 = vpop.f32.mrf.mxu0
        %v2606 = vadd.f32 %v2517, %v2605
        %v2607 = vpop.f32.mrf.mxu0
        %v2608 = vadd.f32 %v2519, %v2607
        %2609 = vmatmul.bf16.gmra.mxu0 %v1049
        %v2610 = vpop.f32.mrf.mxu0
        %v2611 = vadd.f32 %v2522, %v2610
        %v2612 = vpop.f32.mrf.mxu0
        %v2613 = vadd.f32 %v2524, %v2612
        %2614 = vmatmul.bf16.gmra.mxu0 %v1054
        %v2615 = vpop.f32.mrf.mxu0
        %v2616 = vadd.f32 %v2527, %v2615
        %v2617 = vpop.f32.mrf.mxu0
        %v2618 = vadd.f32 %v2529, %v2617
        %2619 = vmatmul.bf16.gmra.mxu0 %v1059
        %v2620 = vpop.f32.mrf.mxu0
        %v2621 = vadd.f32 %v2532, %v2620
        %v2622 = vpop.f32.mrf.mxu0
        %v2623 = vadd.f32 %v2534, %v2622
        %2624 = vmatmul.bf16.gmra.mxu0 %v1064
        %v2625 = vpop.f32.mrf.mxu0
        %v2626 = vadd.f32 %v2537, %v2625
        %v2627 = vpop.f32.mrf.mxu0
        %v2628 = vadd.f32 %v2539, %v2627
        %2629 = vdwg.mxu0
        %2630 = vmatpush.bf16.msra.mxu0 %v1821
        %2631 = vmatpush.bf16.msra.mxu0 %v1816
        %2632 = vmatpush.bf16.msra.mxu0 %v1811
        %2633 = vmatpush.bf16.msra.mxu0 %v1806
        %2634 = vmatpush.bf16.msra.mxu0 %v1801
        %2635 = vmatpush.bf16.msra.mxu0 %v1796
        %2636 = vmatpush.bf16.msra.mxu0 %v1791
        %2637 = vmatpush.bf16.msra.mxu0 %v1786
        %2638 = vmatmul.bf16.gmra.mxu0 %v985
        %v2639 = vpop.f32.mrf.mxu0
        %v2640 = vadd.f32 %v720, %v2639
        %v2641 = vpop.f32.mrf.mxu0
        %v2642 = vadd.f32 %v720, %v2641
        %2643 = vmatmul.bf16.gmra.mxu0 %v990
        %v2644 = vpop.f32.mrf.mxu0
        %v2645 = vadd.f32 %v720, %v2644
        %v2646 = vpop.f32.mrf.mxu0
        %v2647 = vadd.f32 %v720, %v2646
        %2648 = vmatmul.bf16.gmra.mxu0 %v995
        %v2649 = vpop.f32.mrf.mxu0
        %v2650 = vadd.f32 %v720, %v2649
        %v2651 = vpop.f32.mrf.mxu0
        %v2652 = vadd.f32 %v720, %v2651
        %2653 = vmatmul.bf16.gmra.mxu0 %v1000
        %v2654 = vpop.f32.mrf.mxu0
        %v2655 = vadd.f32 %v720, %v2654
        %v2656 = vpop.f32.mrf.mxu0
        %v2657 = vadd.f32 %v720, %v2656
        %2658 = vmatmul.bf16.gmra.mxu0 %v1005
        %v2659 = vpop.f32.mrf.mxu0
        %v2660 = vadd.f32 %v720, %v2659
        %v2661 = vpop.f32.mrf.mxu0
        %v2662 = vadd.f32 %v720, %v2661
        %2663 = vmatmul.bf16.gmra.mxu0 %v1010
        %v2664 = vpop.f32.mrf.mxu0
        %v2665 = vadd.f32 %v720, %v2664
        %v2666 = vpop.f32.mrf.mxu0
        %v2667 = vadd.f32 %v720, %v2666
        %2668 = vmatmul.bf16.gmra.mxu0 %v1015
        %v2669 = vpop.f32.mrf.mxu0
        %v2670 = vadd.f32 %v720, %v2669
        %v2671 = vpop.f32.mrf.mxu0
        %v2672 = vadd.f32 %v720, %v2671
        %2673 = vmatmul.bf16.gmra.mxu0 %v1020
        %v2674 = vpop.f32.mrf.mxu0
        %v2675 = vadd.f32 %v720, %v2674
        %v2676 = vpop.f32.mrf.mxu0
        %v2677 = vadd.f32 %v720, %v2676
        %2678 = vmatmul.bf16.gmra.mxu0 %v1025
        %v2679 = vpop.f32.mrf.mxu0
        %v2680 = vadd.f32 %v720, %v2679
        %v2681 = vpop.f32.mrf.mxu0
        %v2682 = vadd.f32 %v720, %v2681
        %2683 = vmatmul.bf16.gmra.mxu0 %v1030
        %v2684 = vpop.f32.mrf.mxu0
        %v2685 = vadd.f32 %v720, %v2684
        %v2686 = vpop.f32.mrf.mxu0
        %v2687 = vadd.f32 %v720, %v2686
        %2688 = vmatmul.bf16.gmra.mxu0 %v1035
        %v2689 = vpop.f32.mrf.mxu0
        %v2690 = vadd.f32 %v720, %v2689
        %v2691 = vpop.f32.mrf.mxu0
        %v2692 = vadd.f32 %v720, %v2691
        %2693 = vmatmul.bf16.gmra.mxu0 %v1040
        %v2694 = vpop.f32.mrf.mxu0
        %v2695 = vadd.f32 %v720, %v2694
        %v2696 = vpop.f32.mrf.mxu0
        %v2697 = vadd.f32 %v720, %v2696
        %2698 = vmatmul.bf16.gmra.mxu0 %v1045
        %v2699 = vpop.f32.mrf.mxu0
        %v2700 = vadd.f32 %v720, %v2699
        %v2701 = vpop.f32.mrf.mxu0
        %v2702 = vadd.f32 %v720, %v2701
        %2703 = vmatmul.bf16.gmra.mxu0 %v1050
        %v2704 = vpop.f32.mrf.mxu0
        %v2705 = vadd.f32 %v720, %v2704
        %v2706 = vpop.f32.mrf.mxu0
        %v2707 = vadd.f32 %v720, %v2706
        %2708 = vmatmul.bf16.gmra.mxu0 %v1055
        %v2709 = vpop.f32.mrf.mxu0
        %v2710 = vadd.f32 %v720, %v2709
        %v2711 = vpop.f32.mrf.mxu0
        %v2712 = vadd.f32 %v720, %v2711
        %2713 = vmatmul.bf16.gmra.mxu0 %v1060
        %v2714 = vpop.f32.mrf.mxu0
        %v2715 = vadd.f32 %v720, %v2714
        %v2716 = vpop.f32.mrf.mxu0
        %v2717 = vadd.f32 %v720, %v2716
        %2718 = vdwg.mxu0
        %2719 = vmatpush.bf16.msra.mxu0 %v1861
        %2720 = vmatpush.bf16.msra.mxu0 %v1856
        %2721 = vmatpush.bf16.msra.mxu0 %v1851
        %2722 = vmatpush.bf16.msra.mxu0 %v1846
        %2723 = vmatpush.bf16.msra.mxu0 %v1841
        %2724 = vmatpush.bf16.msra.mxu0 %v1836
        %2725 = vmatpush.bf16.msra.mxu0 %v1831
        %2726 = vmatpush.bf16.msra.mxu0 %v1826
        %2727 = vmatmul.bf16.gmra.mxu0 %v986
        %v2728 = vpop.f32.mrf.mxu0
        %v2729 = vadd.f32 %v2640, %v2728
        %v2730 = vpop.f32.mrf.mxu0
        %v2731 = vadd.f32 %v2642, %v2730
        %2732 = vmatmul.bf16.gmra.mxu0 %v991
        %v2733 = vpop.f32.mrf.mxu0
        %v2734 = vadd.f32 %v2645, %v2733
        %v2735 = vpop.f32.mrf.mxu0
        %v2736 = vadd.f32 %v2647, %v2735
        %2737 = vmatmul.bf16.gmra.mxu0 %v996
        %v2738 = vpop.f32.mrf.mxu0
        %v2739 = vadd.f32 %v2650, %v2738
        %v2740 = vpop.f32.mrf.mxu0
        %v2741 = vadd.f32 %v2652, %v2740
        %2742 = vmatmul.bf16.gmra.mxu0 %v1001
        %v2743 = vpop.f32.mrf.mxu0
        %v2744 = vadd.f32 %v2655, %v2743
        %v2745 = vpop.f32.mrf.mxu0
        %v2746 = vadd.f32 %v2657, %v2745
        %2747 = vmatmul.bf16.gmra.mxu0 %v1006
        %v2748 = vpop.f32.mrf.mxu0
        %v2749 = vadd.f32 %v2660, %v2748
        %v2750 = vpop.f32.mrf.mxu0
        %v2751 = vadd.f32 %v2662, %v2750
        %2752 = vmatmul.bf16.gmra.mxu0 %v1011
        %v2753 = vpop.f32.mrf.mxu0
        %v2754 = vadd.f32 %v2665, %v2753
        %v2755 = vpop.f32.mrf.mxu0
        %v2756 = vadd.f32 %v2667, %v2755
        %2757 = vmatmul.bf16.gmra.mxu0 %v1016
        %v2758 = vpop.f32.mrf.mxu0
        %v2759 = vadd.f32 %v2670, %v2758
        %v2760 = vpop.f32.mrf.mxu0
        %v2761 = vadd.f32 %v2672, %v2760
        %2762 = vmatmul.bf16.gmra.mxu0 %v1021
        %v2763 = vpop.f32.mrf.mxu0
        %v2764 = vadd.f32 %v2675, %v2763
        %v2765 = vpop.f32.mrf.mxu0
        %v2766 = vadd.f32 %v2677, %v2765
        %2767 = vmatmul.bf16.gmra.mxu0 %v1026
        %v2768 = vpop.f32.mrf.mxu0
        %v2769 = vadd.f32 %v2680, %v2768
        %v2770 = vpop.f32.mrf.mxu0
        %v2771 = vadd.f32 %v2682, %v2770
        %2772 = vmatmul.bf16.gmra.mxu0 %v1031
        %v2773 = vpop.f32.mrf.mxu0
        %v2774 = vadd.f32 %v2685, %v2773
        %v2775 = vpop.f32.mrf.mxu0
        %v2776 = vadd.f32 %v2687, %v2775
        %2777 = vmatmul.bf16.gmra.mxu0 %v1036
        %v2778 = vpop.f32.mrf.mxu0
        %v2779 = vadd.f32 %v2690, %v2778
        %v2780 = vpop.f32.mrf.mxu0
        %v2781 = vadd.f32 %v2692, %v2780
        %2782 = vmatmul.bf16.gmra.mxu0 %v1041
        %v2783 = vpop.f32.mrf.mxu0
        %v2784 = vadd.f32 %v2695, %v2783
        %v2785 = vpop.f32.mrf.mxu0
        %v2786 = vadd.f32 %v2697, %v2785
        %2787 = vmatmul.bf16.gmra.mxu0 %v1046
        %v2788 = vpop.f32.mrf.mxu0
        %v2789 = vadd.f32 %v2700, %v2788
        %v2790 = vpop.f32.mrf.mxu0
        %v2791 = vadd.f32 %v2702, %v2790
        %2792 = vmatmul.bf16.gmra.mxu0 %v1051
        %v2793 = vpop.f32.mrf.mxu0
        %v2794 = vadd.f32 %v2705, %v2793
        %v2795 = vpop.f32.mrf.mxu0
        %v2796 = vadd.f32 %v2707, %v2795
        %2797 = vmatmul.bf16.gmra.mxu0 %v1056
        %v2798 = vpop.f32.mrf.mxu0
        %v2799 = vadd.f32 %v2710, %v2798
        %v2800 = vpop.f32.mrf.mxu0
        %v2801 = vadd.f32 %v2712, %v2800
        %2802 = vmatmul.bf16.gmra.mxu0 %v1061
        %v2803 = vpop.f32.mrf.mxu0
        %v2804 = vadd.f32 %v2715, %v2803
        %v2805 = vpop.f32.mrf.mxu0
        %v2806 = vadd.f32 %v2717, %v2805
        %2807 = vdwg.mxu0
        %2808 = vmatpush.bf16.msra.mxu0 %v1901
        %2809 = vmatpush.bf16.msra.mxu0 %v1896
        %2810 = vmatpush.bf16.msra.mxu0 %v1891
        %2811 = vmatpush.bf16.msra.mxu0 %v1886
        %2812 = vmatpush.bf16.msra.mxu0 %v1881
        %2813 = vmatpush.bf16.msra.mxu0 %v1876
        %2814 = vmatpush.bf16.msra.mxu0 %v1871
        %2815 = vmatpush.bf16.msra.mxu0 %v1866
        %2816 = vmatmul.bf16.gmra.mxu0 %v987
        %v2817 = vpop.f32.mrf.mxu0
        %v2818 = vadd.f32 %v2729, %v2817
        %v2819 = vpop.f32.mrf.mxu0
        %v2820 = vadd.f32 %v2731, %v2819
        %2821 = vmatmul.bf16.gmra.mxu0 %v992
        %v2822 = vpop.f32.mrf.mxu0
        %v2823 = vadd.f32 %v2734, %v2822
        %v2824 = vpop.f32.mrf.mxu0
        %v2825 = vadd.f32 %v2736, %v2824
        %2826 = vmatmul.bf16.gmra.mxu0 %v997
        %v2827 = vpop.f32.mrf.mxu0
        %v2828 = vadd.f32 %v2739, %v2827
        %v2829 = vpop.f32.mrf.mxu0
        %v2830 = vadd.f32 %v2741, %v2829
        %2831 = vmatmul.bf16.gmra.mxu0 %v1002
        %v2832 = vpop.f32.mrf.mxu0
        %v2833 = vadd.f32 %v2744, %v2832
        %v2834 = vpop.f32.mrf.mxu0
        %v2835 = vadd.f32 %v2746, %v2834
        %2836 = vmatmul.bf16.gmra.mxu0 %v1007
        %v2837 = vpop.f32.mrf.mxu0
        %v2838 = vadd.f32 %v2749, %v2837
        %v2839 = vpop.f32.mrf.mxu0
        %v2840 = vadd.f32 %v2751, %v2839
        %2841 = vmatmul.bf16.gmra.mxu0 %v1012
        %v2842 = vpop.f32.mrf.mxu0
        %v2843 = vadd.f32 %v2754, %v2842
        %v2844 = vpop.f32.mrf.mxu0
        %v2845 = vadd.f32 %v2756, %v2844
        %2846 = vmatmul.bf16.gmra.mxu0 %v1017
        %v2847 = vpop.f32.mrf.mxu0
        %v2848 = vadd.f32 %v2759, %v2847
        %v2849 = vpop.f32.mrf.mxu0
        %v2850 = vadd.f32 %v2761, %v2849
        %2851 = vmatmul.bf16.gmra.mxu0 %v1022
        %v2852 = vpop.f32.mrf.mxu0
        %v2853 = vadd.f32 %v2764, %v2852
        %v2854 = vpop.f32.mrf.mxu0
        %v2855 = vadd.f32 %v2766, %v2854
        %2856 = vmatmul.bf16.gmra.mxu0 %v1027
        %v2857 = vpop.f32.mrf.mxu0
        %v2858 = vadd.f32 %v2769, %v2857
        %v2859 = vpop.f32.mrf.mxu0
        %v2860 = vadd.f32 %v2771, %v2859
        %2861 = vmatmul.bf16.gmra.mxu0 %v1032
        %v2862 = vpop.f32.mrf.mxu0
        %v2863 = vadd.f32 %v2774, %v2862
        %v2864 = vpop.f32.mrf.mxu0
        %v2865 = vadd.f32 %v2776, %v2864
        %2866 = vmatmul.bf16.gmra.mxu0 %v1037
        %v2867 = vpop.f32.mrf.mxu0
        %v2868 = vadd.f32 %v2779, %v2867
        %v2869 = vpop.f32.mrf.mxu0
        %v2870 = vadd.f32 %v2781, %v2869
        %2871 = vmatmul.bf16.gmra.mxu0 %v1042
        %v2872 = vpop.f32.mrf.mxu0
        %v2873 = vadd.f32 %v2784, %v2872
        %v2874 = vpop.f32.mrf.mxu0
        %v2875 = vadd.f32 %v2786, %v2874
        %2876 = vmatmul.bf16.gmra.mxu0 %v1047
        %v2877 = vpop.f32.mrf.mxu0
        %v2878 = vadd.f32 %v2789, %v2877
        %v2879 = vpop.f32.mrf.mxu0
        %v2880 = vadd.f32 %v2791, %v2879
        %2881 = vmatmul.bf16.gmra.mxu0 %v1052
        %v2882 = vpop.f32.mrf.mxu0
        %v2883 = vadd.f32 %v2794, %v2882
        %v2884 = vpop.f32.mrf.mxu0
        %v2885 = vadd.f32 %v2796, %v2884
        %2886 = vmatmul.bf16.gmra.mxu0 %v1057
        %v2887 = vpop.f32.mrf.mxu0
        %v2888 = vadd.f32 %v2799, %v2887
        %v2889 = vpop.f32.mrf.mxu0
        %v2890 = vadd.f32 %v2801, %v2889
        %2891 = vmatmul.bf16.gmra.mxu0 %v1062
        %v2892 = vpop.f32.mrf.mxu0
        %v2893 = vadd.f32 %v2804, %v2892
        %v2894 = vpop.f32.mrf.mxu0
        %v2895 = vadd.f32 %v2806, %v2894
        %2896 = vdwg.mxu0
        %2897 = vmatpush.bf16.msra.mxu0 %v1941
        %2898 = vmatpush.bf16.msra.mxu0 %v1936
        %2899 = vmatpush.bf16.msra.mxu0 %v1931
        %2900 = vmatpush.bf16.msra.mxu0 %v1926
        %2901 = vmatpush.bf16.msra.mxu0 %v1921
        %2902 = vmatpush.bf16.msra.mxu0 %v1916
        %2903 = vmatpush.bf16.msra.mxu0 %v1911
        %2904 = vmatpush.bf16.msra.mxu0 %v1906
        %2905 = vmatmul.bf16.gmra.mxu0 %v988
        %v2906 = vpop.f32.mrf.mxu0
        %v2907 = vadd.f32 %v2818, %v2906
        %v2908 = vpop.f32.mrf.mxu0
        %v2909 = vadd.f32 %v2820, %v2908
        %2910 = vmatmul.bf16.gmra.mxu0 %v993
        %v2911 = vpop.f32.mrf.mxu0
        %v2912 = vadd.f32 %v2823, %v2911
        %v2913 = vpop.f32.mrf.mxu0
        %v2914 = vadd.f32 %v2825, %v2913
        %2915 = vmatmul.bf16.gmra.mxu0 %v998
        %v2916 = vpop.f32.mrf.mxu0
        %v2917 = vadd.f32 %v2828, %v2916
        %v2918 = vpop.f32.mrf.mxu0
        %v2919 = vadd.f32 %v2830, %v2918
        %2920 = vmatmul.bf16.gmra.mxu0 %v1003
        %v2921 = vpop.f32.mrf.mxu0
        %v2922 = vadd.f32 %v2833, %v2921
        %v2923 = vpop.f32.mrf.mxu0
        %v2924 = vadd.f32 %v2835, %v2923
        %2925 = vmatmul.bf16.gmra.mxu0 %v1008
        %v2926 = vpop.f32.mrf.mxu0
        %v2927 = vadd.f32 %v2838, %v2926
        %v2928 = vpop.f32.mrf.mxu0
        %v2929 = vadd.f32 %v2840, %v2928
        %2930 = vmatmul.bf16.gmra.mxu0 %v1013
        %v2931 = vpop.f32.mrf.mxu0
        %v2932 = vadd.f32 %v2843, %v2931
        %v2933 = vpop.f32.mrf.mxu0
        %v2934 = vadd.f32 %v2845, %v2933
        %2935 = vmatmul.bf16.gmra.mxu0 %v1018
        %v2936 = vpop.f32.mrf.mxu0
        %v2937 = vadd.f32 %v2848, %v2936
        %v2938 = vpop.f32.mrf.mxu0
        %v2939 = vadd.f32 %v2850, %v2938
        %2940 = vmatmul.bf16.gmra.mxu0 %v1023
        %v2941 = vpop.f32.mrf.mxu0
        %v2942 = vadd.f32 %v2853, %v2941
        %v2943 = vpop.f32.mrf.mxu0
        %v2944 = vadd.f32 %v2855, %v2943
        %2945 = vmatmul.bf16.gmra.mxu0 %v1028
        %v2946 = vpop.f32.mrf.mxu0
        %v2947 = vadd.f32 %v2858, %v2946
        %v2948 = vpop.f32.mrf.mxu0
        %v2949 = vadd.f32 %v2860, %v2948
        %2950 = vmatmul.bf16.gmra.mxu0 %v1033
        %v2951 = vpop.f32.mrf.mxu0
        %v2952 = vadd.f32 %v2863, %v2951
        %v2953 = vpop.f32.mrf.mxu0
        %v2954 = vadd.f32 %v2865, %v2953
        %2955 = vmatmul.bf16.gmra.mxu0 %v1038
        %v2956 = vpop.f32.mrf.mxu0
        %v2957 = vadd.f32 %v2868, %v2956
        %v2958 = vpop.f32.mrf.mxu0
        %v2959 = vadd.f32 %v2870, %v2958
        %2960 = vmatmul.bf16.gmra.mxu0 %v1043
        %v2961 = vpop.f32.mrf.mxu0
        %v2962 = vadd.f32 %v2873, %v2961
        %v2963 = vpop.f32.mrf.mxu0
        %v2964 = vadd.f32 %v2875, %v2963
        %2965 = vmatmul.bf16.gmra.mxu0 %v1048
        %v2966 = vpop.f32.mrf.mxu0
        %v2967 = vadd.f32 %v2878, %v2966
        %v2968 = vpop.f32.mrf.mxu0
        %v2969 = vadd.f32 %v2880, %v2968
        %2970 = vmatmul.bf16.gmra.mxu0 %v1053
        %v2971 = vpop.f32.mrf.mxu0
        %v2972 = vadd.f32 %v2883, %v2971
        %v2973 = vpop.f32.mrf.mxu0
        %v2974 = vadd.f32 %v2885, %v2973
        %2975 = vmatmul.bf16.gmra.mxu0 %v1058
        %v2976 = vpop.f32.mrf.mxu0
        %v2977 = vadd.f32 %v2888, %v2976
        %v2978 = vpop.f32.mrf.mxu0
        %v2979 = vadd.f32 %v2890, %v2978
        %2980 = vmatmul.bf16.gmra.mxu0 %v1063
        %v2981 = vpop.f32.mrf.mxu0
        %v2982 = vadd.f32 %v2893, %v2981
        %v2983 = vpop.f32.mrf.mxu0
        %v2984 = vadd.f32 %v2895, %v2983
        %2985 = vdwg.mxu0
        %2986 = vmatpush.bf16.msra.mxu0 %v1981
        %2987 = vmatpush.bf16.msra.mxu0 %v1976
        %2988 = vmatpush.bf16.msra.mxu0 %v1971
        %2989 = vmatpush.bf16.msra.mxu0 %v1966
        %2990 = vmatpush.bf16.msra.mxu0 %v1961
        %2991 = vmatpush.bf16.msra.mxu0 %v1956
        %2992 = vmatpush.bf16.msra.mxu0 %v1951
        %2993 = vmatpush.bf16.msra.mxu0 %v1946
        %2994 = vmatmul.bf16.gmra.mxu0 %v989
        %v2995 = vpop.f32.mrf.mxu0
        %v2996 = vadd.f32 %v2907, %v2995
        %v2997 = vpop.f32.mrf.mxu0
        %v2998 = vadd.f32 %v2909, %v2997
        %2999 = vmatmul.bf16.gmra.mxu0 %v994
        %v3000 = vpop.f32.mrf.mxu0
        %v3001 = vadd.f32 %v2912, %v3000
        %v3002 = vpop.f32.mrf.mxu0
        %v3003 = vadd.f32 %v2914, %v3002
        %3004 = vmatmul.bf16.gmra.mxu0 %v999
        %v3005 = vpop.f32.mrf.mxu0
        %v3006 = vadd.f32 %v2917, %v3005
        %v3007 = vpop.f32.mrf.mxu0
        %v3008 = vadd.f32 %v2919, %v3007
        %3009 = vmatmul.bf16.gmra.mxu0 %v1004
        %v3010 = vpop.f32.mrf.mxu0
        %v3011 = vadd.f32 %v2922, %v3010
        %v3012 = vpop.f32.mrf.mxu0
        %v3013 = vadd.f32 %v2924, %v3012
        %3014 = vmatmul.bf16.gmra.mxu0 %v1009
        %v3015 = vpop.f32.mrf.mxu0
        %v3016 = vadd.f32 %v2927, %v3015
        %v3017 = vpop.f32.mrf.mxu0
        %v3018 = vadd.f32 %v2929, %v3017
        %3019 = vmatmul.bf16.gmra.mxu0 %v1014
        %v3020 = vpop.f32.mrf.mxu0
        %v3021 = vadd.f32 %v2932, %v3020
        %v3022 = vpop.f32.mrf.mxu0
        %v3023 = vadd.f32 %v2934, %v3022
        %3024 = vmatmul.bf16.gmra.mxu0 %v1019
        %v3025 = vpop.f32.mrf.mxu0
        %v3026 = vadd.f32 %v2937, %v3025
        %v3027 = vpop.f32.mrf.mxu0
        %v3028 = vadd.f32 %v2939, %v3027
        %3029 = vmatmul.bf16.gmra.mxu0 %v1024
        %v3030 = vpop.f32.mrf.mxu0
        %v3031 = vadd.f32 %v2942, %v3030
        %v3032 = vpop.f32.mrf.mxu0
        %v3033 = vadd.f32 %v2944, %v3032
        %3034 = vmatmul.bf16.gmra.mxu0 %v1029
        %v3035 = vpop.f32.mrf.mxu0
        %v3036 = vadd.f32 %v2947, %v3035
        %v3037 = vpop.f32.mrf.mxu0
        %v3038 = vadd.f32 %v2949, %v3037
        %3039 = vmatmul.bf16.gmra.mxu0 %v1034
        %v3040 = vpop.f32.mrf.mxu0
        %v3041 = vadd.f32 %v2952, %v3040
        %v3042 = vpop.f32.mrf.mxu0
        %v3043 = vadd.f32 %v2954, %v3042
        %3044 = vmatmul.bf16.gmra.mxu0 %v1039
        %v3045 = vpop.f32.mrf.mxu0
        %v3046 = vadd.f32 %v2957, %v3045
        %v3047 = vpop.f32.mrf.mxu0
        %v3048 = vadd.f32 %v2959, %v3047
        %3049 = vmatmul.bf16.gmra.mxu0 %v1044
        %v3050 = vpop.f32.mrf.mxu0
        %v3051 = vadd.f32 %v2962, %v3050
        %v3052 = vpop.f32.mrf.mxu0
        %v3053 = vadd.f32 %v2964, %v3052
        %3054 = vmatmul.bf16.gmra.mxu0 %v1049
        %v3055 = vpop.f32.mrf.mxu0
        %v3056 = vadd.f32 %v2967, %v3055
        %v3057 = vpop.f32.mrf.mxu0
        %v3058 = vadd.f32 %v2969, %v3057
        %3059 = vmatmul.bf16.gmra.mxu0 %v1054
        %v3060 = vpop.f32.mrf.mxu0
        %v3061 = vadd.f32 %v2972, %v3060
        %v3062 = vpop.f32.mrf.mxu0
        %v3063 = vadd.f32 %v2974, %v3062
        %3064 = vmatmul.bf16.gmra.mxu0 %v1059
        %v3065 = vpop.f32.mrf.mxu0
        %v3066 = vadd.f32 %v2977, %v3065
        %v3067 = vpop.f32.mrf.mxu0
        %v3068 = vadd.f32 %v2979, %v3067
        %3069 = vmatmul.bf16.gmra.mxu0 %v1064
        %v3070 = vpop.f32.mrf.mxu0
        %v3071 = vadd.f32 %v2982, %v3070
        %v3072 = vpop.f32.mrf.mxu0
        %v3073 = vadd.f32 %v2984, %v3072
        %3074 = vdwg.mxu0
        %3075 = vmatpush.bf16.msra.mxu0 %v1822
        %3076 = vmatpush.bf16.msra.mxu0 %v1817
        %3077 = vmatpush.bf16.msra.mxu0 %v1812
        %3078 = vmatpush.bf16.msra.mxu0 %v1807
        %3079 = vmatpush.bf16.msra.mxu0 %v1802
        %3080 = vmatpush.bf16.msra.mxu0 %v1797
        %3081 = vmatpush.bf16.msra.mxu0 %v1792
        %3082 = vmatpush.bf16.msra.mxu0 %v1787
        %3083 = vmatmul.bf16.gmra.mxu0 %v985
        %v3084 = vpop.f32.mrf.mxu0
        %v3085 = vadd.f32 %v721, %v3084
        %v3086 = vpop.f32.mrf.mxu0
        %v3087 = vadd.f32 %v721, %v3086
        %3088 = vmatmul.bf16.gmra.mxu0 %v990
        %v3089 = vpop.f32.mrf.mxu0
        %v3090 = vadd.f32 %v721, %v3089
        %v3091 = vpop.f32.mrf.mxu0
        %v3092 = vadd.f32 %v721, %v3091
        %3093 = vmatmul.bf16.gmra.mxu0 %v995
        %v3094 = vpop.f32.mrf.mxu0
        %v3095 = vadd.f32 %v721, %v3094
        %v3096 = vpop.f32.mrf.mxu0
        %v3097 = vadd.f32 %v721, %v3096
        %3098 = vmatmul.bf16.gmra.mxu0 %v1000
        %v3099 = vpop.f32.mrf.mxu0
        %v3100 = vadd.f32 %v721, %v3099
        %v3101 = vpop.f32.mrf.mxu0
        %v3102 = vadd.f32 %v721, %v3101
        %3103 = vmatmul.bf16.gmra.mxu0 %v1005
        %v3104 = vpop.f32.mrf.mxu0
        %v3105 = vadd.f32 %v721, %v3104
        %v3106 = vpop.f32.mrf.mxu0
        %v3107 = vadd.f32 %v721, %v3106
        %3108 = vmatmul.bf16.gmra.mxu0 %v1010
        %v3109 = vpop.f32.mrf.mxu0
        %v3110 = vadd.f32 %v721, %v3109
        %v3111 = vpop.f32.mrf.mxu0
        %v3112 = vadd.f32 %v721, %v3111
        %3113 = vmatmul.bf16.gmra.mxu0 %v1015
        %v3114 = vpop.f32.mrf.mxu0
        %v3115 = vadd.f32 %v721, %v3114
        %v3116 = vpop.f32.mrf.mxu0
        %v3117 = vadd.f32 %v721, %v3116
        %3118 = vmatmul.bf16.gmra.mxu0 %v1020
        %v3119 = vpop.f32.mrf.mxu0
        %v3120 = vadd.f32 %v721, %v3119
        %v3121 = vpop.f32.mrf.mxu0
        %v3122 = vadd.f32 %v721, %v3121
        %3123 = vmatmul.bf16.gmra.mxu0 %v1025
        %v3124 = vpop.f32.mrf.mxu0
        %v3125 = vadd.f32 %v721, %v3124
        %v3126 = vpop.f32.mrf.mxu0
        %v3127 = vadd.f32 %v721, %v3126
        %3128 = vmatmul.bf16.gmra.mxu0 %v1030
        %v3129 = vpop.f32.mrf.mxu0
        %v3130 = vadd.f32 %v721, %v3129
        %v3131 = vpop.f32.mrf.mxu0
        %v3132 = vadd.f32 %v721, %v3131
        %3133 = vmatmul.bf16.gmra.mxu0 %v1035
        %v3134 = vpop.f32.mrf.mxu0
        %v3135 = vadd.f32 %v721, %v3134
        %v3136 = vpop.f32.mrf.mxu0
        %v3137 = vadd.f32 %v721, %v3136
        %3138 = vmatmul.bf16.gmra.mxu0 %v1040
        %v3139 = vpop.f32.mrf.mxu0
        %v3140 = vadd.f32 %v721, %v3139
        %v3141 = vpop.f32.mrf.mxu0
        %v3142 = vadd.f32 %v721, %v3141
        %3143 = vmatmul.bf16.gmra.mxu0 %v1045
        %v3144 = vpop.f32.mrf.mxu0
        %v3145 = vadd.f32 %v721, %v3144
        %v3146 = vpop.f32.mrf.mxu0
        %v3147 = vadd.f32 %v721, %v3146
        %3148 = vmatmul.bf16.gmra.mxu0 %v1050
        %v3149 = vpop.f32.mrf.mxu0
        %v3150 = vadd.f32 %v721, %v3149
        %v3151 = vpop.f32.mrf.mxu0
        %v3152 = vadd.f32 %v721, %v3151
        %3153 = vmatmul.bf16.gmra.mxu0 %v1055
        %v3154 = vpop.f32.mrf.mxu0
        %v3155 = vadd.f32 %v721, %v3154
        %v3156 = vpop.f32.mrf.mxu0
        %v3157 = vadd.f32 %v721, %v3156
        %3158 = vmatmul.bf16.gmra.mxu0 %v1060
        %v3159 = vpop.f32.mrf.mxu0
        %v3160 = vadd.f32 %v721, %v3159
        %v3161 = vpop.f32.mrf.mxu0
        %v3162 = vadd.f32 %v721, %v3161
        %3163 = vdwg.mxu0
        %3164 = vmatpush.bf16.msra.mxu0 %v1862
        %3165 = vmatpush.bf16.msra.mxu0 %v1857
        %3166 = vmatpush.bf16.msra.mxu0 %v1852
        %3167 = vmatpush.bf16.msra.mxu0 %v1847
        %3168 = vmatpush.bf16.msra.mxu0 %v1842
        %3169 = vmatpush.bf16.msra.mxu0 %v1837
        %3170 = vmatpush.bf16.msra.mxu0 %v1832
        %3171 = vmatpush.bf16.msra.mxu0 %v1827
        %3172 = vmatmul.bf16.gmra.mxu0 %v986
        %v3173 = vpop.f32.mrf.mxu0
        %v3174 = vadd.f32 %v3085, %v3173
        %v3175 = vpop.f32.mrf.mxu0
        %v3176 = vadd.f32 %v3087, %v3175
        %3177 = vmatmul.bf16.gmra.mxu0 %v991
        %v3178 = vpop.f32.mrf.mxu0
        %v3179 = vadd.f32 %v3090, %v3178
        %v3180 = vpop.f32.mrf.mxu0
        %v3181 = vadd.f32 %v3092, %v3180
        %3182 = vmatmul.bf16.gmra.mxu0 %v996
        %v3183 = vpop.f32.mrf.mxu0
        %v3184 = vadd.f32 %v3095, %v3183
        %v3185 = vpop.f32.mrf.mxu0
        %v3186 = vadd.f32 %v3097, %v3185
        %3187 = vmatmul.bf16.gmra.mxu0 %v1001
        %v3188 = vpop.f32.mrf.mxu0
        %v3189 = vadd.f32 %v3100, %v3188
        %v3190 = vpop.f32.mrf.mxu0
        %v3191 = vadd.f32 %v3102, %v3190
        %3192 = vmatmul.bf16.gmra.mxu0 %v1006
        %v3193 = vpop.f32.mrf.mxu0
        %v3194 = vadd.f32 %v3105, %v3193
        %v3195 = vpop.f32.mrf.mxu0
        %v3196 = vadd.f32 %v3107, %v3195
        %3197 = vmatmul.bf16.gmra.mxu0 %v1011
        %v3198 = vpop.f32.mrf.mxu0
        %v3199 = vadd.f32 %v3110, %v3198
        %v3200 = vpop.f32.mrf.mxu0
        %v3201 = vadd.f32 %v3112, %v3200
        %3202 = vmatmul.bf16.gmra.mxu0 %v1016
        %v3203 = vpop.f32.mrf.mxu0
        %v3204 = vadd.f32 %v3115, %v3203
        %v3205 = vpop.f32.mrf.mxu0
        %v3206 = vadd.f32 %v3117, %v3205
        %3207 = vmatmul.bf16.gmra.mxu0 %v1021
        %v3208 = vpop.f32.mrf.mxu0
        %v3209 = vadd.f32 %v3120, %v3208
        %v3210 = vpop.f32.mrf.mxu0
        %v3211 = vadd.f32 %v3122, %v3210
        %3212 = vmatmul.bf16.gmra.mxu0 %v1026
        %v3213 = vpop.f32.mrf.mxu0
        %v3214 = vadd.f32 %v3125, %v3213
        %v3215 = vpop.f32.mrf.mxu0
        %v3216 = vadd.f32 %v3127, %v3215
        %3217 = vmatmul.bf16.gmra.mxu0 %v1031
        %v3218 = vpop.f32.mrf.mxu0
        %v3219 = vadd.f32 %v3130, %v3218
        %v3220 = vpop.f32.mrf.mxu0
        %v3221 = vadd.f32 %v3132, %v3220
        %3222 = vmatmul.bf16.gmra.mxu0 %v1036
        %v3223 = vpop.f32.mrf.mxu0
        %v3224 = vadd.f32 %v3135, %v3223
        %v3225 = vpop.f32.mrf.mxu0
        %v3226 = vadd.f32 %v3137, %v3225
        %3227 = vmatmul.bf16.gmra.mxu0 %v1041
        %v3228 = vpop.f32.mrf.mxu0
        %v3229 = vadd.f32 %v3140, %v3228
        %v3230 = vpop.f32.mrf.mxu0
        %v3231 = vadd.f32 %v3142, %v3230
        %3232 = vmatmul.bf16.gmra.mxu0 %v1046
        %v3233 = vpop.f32.mrf.mxu0
        %v3234 = vadd.f32 %v3145, %v3233
        %v3235 = vpop.f32.mrf.mxu0
        %v3236 = vadd.f32 %v3147, %v3235
        %3237 = vmatmul.bf16.gmra.mxu0 %v1051
        %v3238 = vpop.f32.mrf.mxu0
        %v3239 = vadd.f32 %v3150, %v3238
        %v3240 = vpop.f32.mrf.mxu0
        %v3241 = vadd.f32 %v3152, %v3240
        %3242 = vmatmul.bf16.gmra.mxu0 %v1056
        %v3243 = vpop.f32.mrf.mxu0
        %v3244 = vadd.f32 %v3155, %v3243
        %v3245 = vpop.f32.mrf.mxu0
        %v3246 = vadd.f32 %v3157, %v3245
        %3247 = vmatmul.bf16.gmra.mxu0 %v1061
        %v3248 = vpop.f32.mrf.mxu0
        %v3249 = vadd.f32 %v3160, %v3248
        %v3250 = vpop.f32.mrf.mxu0
        %v3251 = vadd.f32 %v3162, %v3250
        %3252 = vdwg.mxu0
        %3253 = vmatpush.bf16.msra.mxu0 %v1902
        %3254 = vmatpush.bf16.msra.mxu0 %v1897
        %3255 = vmatpush.bf16.msra.mxu0 %v1892
        %3256 = vmatpush.bf16.msra.mxu0 %v1887
        %3257 = vmatpush.bf16.msra.mxu0 %v1882
        %3258 = vmatpush.bf16.msra.mxu0 %v1877
        %3259 = vmatpush.bf16.msra.mxu0 %v1872
        %3260 = vmatpush.bf16.msra.mxu0 %v1867
        %3261 = vmatmul.bf16.gmra.mxu0 %v987
        %v3262 = vpop.f32.mrf.mxu0
        %v3263 = vadd.f32 %v3174, %v3262
        %v3264 = vpop.f32.mrf.mxu0
        %v3265 = vadd.f32 %v3176, %v3264
        %3266 = vmatmul.bf16.gmra.mxu0 %v992
        %v3267 = vpop.f32.mrf.mxu0
        %v3268 = vadd.f32 %v3179, %v3267
        %v3269 = vpop.f32.mrf.mxu0
        %v3270 = vadd.f32 %v3181, %v3269
        %3271 = vmatmul.bf16.gmra.mxu0 %v997
        %v3272 = vpop.f32.mrf.mxu0
        %v3273 = vadd.f32 %v3184, %v3272
        %v3274 = vpop.f32.mrf.mxu0
        %v3275 = vadd.f32 %v3186, %v3274
        %3276 = vmatmul.bf16.gmra.mxu0 %v1002
        %v3277 = vpop.f32.mrf.mxu0
        %v3278 = vadd.f32 %v3189, %v3277
        %v3279 = vpop.f32.mrf.mxu0
        %v3280 = vadd.f32 %v3191, %v3279
        %3281 = vmatmul.bf16.gmra.mxu0 %v1007
        %v3282 = vpop.f32.mrf.mxu0
        %v3283 = vadd.f32 %v3194, %v3282
        %v3284 = vpop.f32.mrf.mxu0
        %v3285 = vadd.f32 %v3196, %v3284
        %3286 = vmatmul.bf16.gmra.mxu0 %v1012
        %v3287 = vpop.f32.mrf.mxu0
        %v3288 = vadd.f32 %v3199, %v3287
        %v3289 = vpop.f32.mrf.mxu0
        %v3290 = vadd.f32 %v3201, %v3289
        %3291 = vmatmul.bf16.gmra.mxu0 %v1017
        %v3292 = vpop.f32.mrf.mxu0
        %v3293 = vadd.f32 %v3204, %v3292
        %v3294 = vpop.f32.mrf.mxu0
        %v3295 = vadd.f32 %v3206, %v3294
        %3296 = vmatmul.bf16.gmra.mxu0 %v1022
        %v3297 = vpop.f32.mrf.mxu0
        %v3298 = vadd.f32 %v3209, %v3297
        %v3299 = vpop.f32.mrf.mxu0
        %v3300 = vadd.f32 %v3211, %v3299
        %3301 = vmatmul.bf16.gmra.mxu0 %v1027
        %v3302 = vpop.f32.mrf.mxu0
        %v3303 = vadd.f32 %v3214, %v3302
        %v3304 = vpop.f32.mrf.mxu0
        %v3305 = vadd.f32 %v3216, %v3304
        %3306 = vmatmul.bf16.gmra.mxu0 %v1032
        %v3307 = vpop.f32.mrf.mxu0
        %v3308 = vadd.f32 %v3219, %v3307
        %v3309 = vpop.f32.mrf.mxu0
        %v3310 = vadd.f32 %v3221, %v3309
        %3311 = vmatmul.bf16.gmra.mxu0 %v1037
        %v3312 = vpop.f32.mrf.mxu0
        %v3313 = vadd.f32 %v3224, %v3312
        %v3314 = vpop.f32.mrf.mxu0
        %v3315 = vadd.f32 %v3226, %v3314
        %3316 = vmatmul.bf16.gmra.mxu0 %v1042
        %v3317 = vpop.f32.mrf.mxu0
        %v3318 = vadd.f32 %v3229, %v3317
        %v3319 = vpop.f32.mrf.mxu0
        %v3320 = vadd.f32 %v3231, %v3319
        %3321 = vmatmul.bf16.gmra.mxu0 %v1047
        %v3322 = vpop.f32.mrf.mxu0
        %v3323 = vadd.f32 %v3234, %v3322
        %v3324 = vpop.f32.mrf.mxu0
        %v3325 = vadd.f32 %v3236, %v3324
        %3326 = vmatmul.bf16.gmra.mxu0 %v1052
        %v3327 = vpop.f32.mrf.mxu0
        %v3328 = vadd.f32 %v3239, %v3327
        %v3329 = vpop.f32.mrf.mxu0
        %v3330 = vadd.f32 %v3241, %v3329
        %3331 = vmatmul.bf16.gmra.mxu0 %v1057
        %v3332 = vpop.f32.mrf.mxu0
        %v3333 = vadd.f32 %v3244, %v3332
        %v3334 = vpop.f32.mrf.mxu0
        %v3335 = vadd.f32 %v3246, %v3334
        %3336 = vmatmul.bf16.gmra.mxu0 %v1062
        %v3337 = vpop.f32.mrf.mxu0
        %v3338 = vadd.f32 %v3249, %v3337
        %v3339 = vpop.f32.mrf.mxu0
        %v3340 = vadd.f32 %v3251, %v3339
        %3341 = vdwg.mxu0
        %3342 = vmatpush.bf16.msra.mxu0 %v1942
        %3343 = vmatpush.bf16.msra.mxu0 %v1937
        %3344 = vmatpush.bf16.msra.mxu0 %v1932
        %3345 = vmatpush.bf16.msra.mxu0 %v1927
        %3346 = vmatpush.bf16.msra.mxu0 %v1922
        %3347 = vmatpush.bf16.msra.mxu0 %v1917
        %3348 = vmatpush.bf16.msra.mxu0 %v1912
        %3349 = vmatpush.bf16.msra.mxu0 %v1907
        %3350 = vmatmul.bf16.gmra.mxu0 %v988
        %v3351 = vpop.f32.mrf.mxu0
        %v3352 = vadd.f32 %v3263, %v3351
        %v3353 = vpop.f32.mrf.mxu0
        %v3354 = vadd.f32 %v3265, %v3353
        %3355 = vmatmul.bf16.gmra.mxu0 %v993
        %v3356 = vpop.f32.mrf.mxu0
        %v3357 = vadd.f32 %v3268, %v3356
        %v3358 = vpop.f32.mrf.mxu0
        %v3359 = vadd.f32 %v3270, %v3358
        %3360 = vmatmul.bf16.gmra.mxu0 %v998
        %v3361 = vpop.f32.mrf.mxu0
        %v3362 = vadd.f32 %v3273, %v3361
        %v3363 = vpop.f32.mrf.mxu0
        %v3364 = vadd.f32 %v3275, %v3363
        %3365 = vmatmul.bf16.gmra.mxu0 %v1003
        %v3366 = vpop.f32.mrf.mxu0
        %v3367 = vadd.f32 %v3278, %v3366
        %v3368 = vpop.f32.mrf.mxu0
        %v3369 = vadd.f32 %v3280, %v3368
        %3370 = vmatmul.bf16.gmra.mxu0 %v1008
        %v3371 = vpop.f32.mrf.mxu0
        %v3372 = vadd.f32 %v3283, %v3371
        %v3373 = vpop.f32.mrf.mxu0
        %v3374 = vadd.f32 %v3285, %v3373
        %3375 = vmatmul.bf16.gmra.mxu0 %v1013
        %v3376 = vpop.f32.mrf.mxu0
        %v3377 = vadd.f32 %v3288, %v3376
        %v3378 = vpop.f32.mrf.mxu0
        %v3379 = vadd.f32 %v3290, %v3378
        %3380 = vmatmul.bf16.gmra.mxu0 %v1018
        %v3381 = vpop.f32.mrf.mxu0
        %v3382 = vadd.f32 %v3293, %v3381
        %v3383 = vpop.f32.mrf.mxu0
        %v3384 = vadd.f32 %v3295, %v3383
        %3385 = vmatmul.bf16.gmra.mxu0 %v1023
        %v3386 = vpop.f32.mrf.mxu0
        %v3387 = vadd.f32 %v3298, %v3386
        %v3388 = vpop.f32.mrf.mxu0
        %v3389 = vadd.f32 %v3300, %v3388
        %3390 = vmatmul.bf16.gmra.mxu0 %v1028
        %v3391 = vpop.f32.mrf.mxu0
        %v3392 = vadd.f32 %v3303, %v3391
        %v3393 = vpop.f32.mrf.mxu0
        %v3394 = vadd.f32 %v3305, %v3393
        %3395 = vmatmul.bf16.gmra.mxu0 %v1033
        %v3396 = vpop.f32.mrf.mxu0
        %v3397 = vadd.f32 %v3308, %v3396
        %v3398 = vpop.f32.mrf.mxu0
        %v3399 = vadd.f32 %v3310, %v3398
        %3400 = vmatmul.bf16.gmra.mxu0 %v1038
        %v3401 = vpop.f32.mrf.mxu0
        %v3402 = vadd.f32 %v3313, %v3401
        %v3403 = vpop.f32.mrf.mxu0
        %v3404 = vadd.f32 %v3315, %v3403
        %3405 = vmatmul.bf16.gmra.mxu0 %v1043
        %v3406 = vpop.f32.mrf.mxu0
        %v3407 = vadd.f32 %v3318, %v3406
        %v3408 = vpop.f32.mrf.mxu0
        %v3409 = vadd.f32 %v3320, %v3408
        %3410 = vmatmul.bf16.gmra.mxu0 %v1048
        %v3411 = vpop.f32.mrf.mxu0
        %v3412 = vadd.f32 %v3323, %v3411
        %v3413 = vpop.f32.mrf.mxu0
        %v3414 = vadd.f32 %v3325, %v3413
        %3415 = vmatmul.bf16.gmra.mxu0 %v1053
        %v3416 = vpop.f32.mrf.mxu0
        %v3417 = vadd.f32 %v3328, %v3416
        %v3418 = vpop.f32.mrf.mxu0
        %v3419 = vadd.f32 %v3330, %v3418
        %3420 = vmatmul.bf16.gmra.mxu0 %v1058
        %v3421 = vpop.f32.mrf.mxu0
        %v3422 = vadd.f32 %v3333, %v3421
        %v3423 = vpop.f32.mrf.mxu0
        %v3424 = vadd.f32 %v3335, %v3423
        %3425 = vmatmul.bf16.gmra.mxu0 %v1063
        %v3426 = vpop.f32.mrf.mxu0
        %v3427 = vadd.f32 %v3338, %v3426
        %v3428 = vpop.f32.mrf.mxu0
        %v3429 = vadd.f32 %v3340, %v3428
        %3430 = vdwg.mxu0
        %3431 = vmatpush.bf16.msra.mxu0 %v1982
        %3432 = vmatpush.bf16.msra.mxu0 %v1977
        %3433 = vmatpush.bf16.msra.mxu0 %v1972
        %3434 = vmatpush.bf16.msra.mxu0 %v1967
        %3435 = vmatpush.bf16.msra.mxu0 %v1962
        %3436 = vmatpush.bf16.msra.mxu0 %v1957
        %3437 = vmatpush.bf16.msra.mxu0 %v1952
        %3438 = vmatpush.bf16.msra.mxu0 %v1947
        %3439 = vmatmul.bf16.gmra.mxu0 %v989
        %v3440 = vpop.f32.mrf.mxu0
        %v3441 = vadd.f32 %v3352, %v3440
        %v3442 = vpop.f32.mrf.mxu0
        %v3443 = vadd.f32 %v3354, %v3442
        %3444 = vmatmul.bf16.gmra.mxu0 %v994
        %v3445 = vpop.f32.mrf.mxu0
        %v3446 = vadd.f32 %v3357, %v3445
        %v3447 = vpop.f32.mrf.mxu0
        %v3448 = vadd.f32 %v3359, %v3447
        %3449 = vmatmul.bf16.gmra.mxu0 %v999
        %v3450 = vpop.f32.mrf.mxu0
        %v3451 = vadd.f32 %v3362, %v3450
        %v3452 = vpop.f32.mrf.mxu0
        %v3453 = vadd.f32 %v3364, %v3452
        %3454 = vmatmul.bf16.gmra.mxu0 %v1004
        %v3455 = vpop.f32.mrf.mxu0
        %v3456 = vadd.f32 %v3367, %v3455
        %v3457 = vpop.f32.mrf.mxu0
        %v3458 = vadd.f32 %v3369, %v3457
        %3459 = vmatmul.bf16.gmra.mxu0 %v1009
        %v3460 = vpop.f32.mrf.mxu0
        %v3461 = vadd.f32 %v3372, %v3460
        %v3462 = vpop.f32.mrf.mxu0
        %v3463 = vadd.f32 %v3374, %v3462
        %3464 = vmatmul.bf16.gmra.mxu0 %v1014
        %v3465 = vpop.f32.mrf.mxu0
        %v3466 = vadd.f32 %v3377, %v3465
        %v3467 = vpop.f32.mrf.mxu0
        %v3468 = vadd.f32 %v3379, %v3467
        %3469 = vmatmul.bf16.gmra.mxu0 %v1019
        %v3470 = vpop.f32.mrf.mxu0
        %v3471 = vadd.f32 %v3382, %v3470
        %v3472 = vpop.f32.mrf.mxu0
        %v3473 = vadd.f32 %v3384, %v3472
        %3474 = vmatmul.bf16.gmra.mxu0 %v1024
        %v3475 = vpop.f32.mrf.mxu0
        %v3476 = vadd.f32 %v3387, %v3475
        %v3477 = vpop.f32.mrf.mxu0
        %v3478 = vadd.f32 %v3389, %v3477
        %3479 = vmatmul.bf16.gmra.mxu0 %v1029
        %v3480 = vpop.f32.mrf.mxu0
        %v3481 = vadd.f32 %v3392, %v3480
        %v3482 = vpop.f32.mrf.mxu0
        %v3483 = vadd.f32 %v3394, %v3482
        %3484 = vmatmul.bf16.gmra.mxu0 %v1034
        %v3485 = vpop.f32.mrf.mxu0
        %v3486 = vadd.f32 %v3397, %v3485
        %v3487 = vpop.f32.mrf.mxu0
        %v3488 = vadd.f32 %v3399, %v3487
        %3489 = vmatmul.bf16.gmra.mxu0 %v1039
        %v3490 = vpop.f32.mrf.mxu0
        %v3491 = vadd.f32 %v3402, %v3490
        %v3492 = vpop.f32.mrf.mxu0
        %v3493 = vadd.f32 %v3404, %v3492
        %3494 = vmatmul.bf16.gmra.mxu0 %v1044
        %v3495 = vpop.f32.mrf.mxu0
        %v3496 = vadd.f32 %v3407, %v3495
        %v3497 = vpop.f32.mrf.mxu0
        %v3498 = vadd.f32 %v3409, %v3497
        %3499 = vmatmul.bf16.gmra.mxu0 %v1049
        %v3500 = vpop.f32.mrf.mxu0
        %v3501 = vadd.f32 %v3412, %v3500
        %v3502 = vpop.f32.mrf.mxu0
        %v3503 = vadd.f32 %v3414, %v3502
        %3504 = vmatmul.bf16.gmra.mxu0 %v1054
        %v3505 = vpop.f32.mrf.mxu0
        %v3506 = vadd.f32 %v3417, %v3505
        %v3507 = vpop.f32.mrf.mxu0
        %v3508 = vadd.f32 %v3419, %v3507
        %3509 = vmatmul.bf16.gmra.mxu0 %v1059
        %v3510 = vpop.f32.mrf.mxu0
        %v3511 = vadd.f32 %v3422, %v3510
        %v3512 = vpop.f32.mrf.mxu0
        %v3513 = vadd.f32 %v3424, %v3512
        %3514 = vmatmul.bf16.gmra.mxu0 %v1064
        %v3515 = vpop.f32.mrf.mxu0
        %v3516 = vadd.f32 %v3427, %v3515
        %v3517 = vpop.f32.mrf.mxu0
        %v3518 = vadd.f32 %v3429, %v3517
        %3519 = vdwg.mxu0
        %3520 = vmatpush.bf16.msra.mxu0 %v1823
        %3521 = vmatpush.bf16.msra.mxu0 %v1818
        %3522 = vmatpush.bf16.msra.mxu0 %v1813
        %3523 = vmatpush.bf16.msra.mxu0 %v1808
        %3524 = vmatpush.bf16.msra.mxu0 %v1803
        %3525 = vmatpush.bf16.msra.mxu0 %v1798
        %3526 = vmatpush.bf16.msra.mxu0 %v1793
        %3527 = vmatpush.bf16.msra.mxu0 %v1788
        %3528 = vmatmul.bf16.gmra.mxu0 %v985
        %v3529 = vpop.f32.mrf.mxu0
        %v3530 = vadd.f32 %v722, %v3529
        %v3531 = vpop.f32.mrf.mxu0
        %v3532 = vadd.f32 %v722, %v3531
        %3533 = vmatmul.bf16.gmra.mxu0 %v990
        %v3534 = vpop.f32.mrf.mxu0
        %v3535 = vadd.f32 %v722, %v3534
        %v3536 = vpop.f32.mrf.mxu0
        %v3537 = vadd.f32 %v722, %v3536
        %3538 = vmatmul.bf16.gmra.mxu0 %v995
        %v3539 = vpop.f32.mrf.mxu0
        %v3540 = vadd.f32 %v722, %v3539
        %v3541 = vpop.f32.mrf.mxu0
        %v3542 = vadd.f32 %v722, %v3541
        %3543 = vmatmul.bf16.gmra.mxu0 %v1000
        %v3544 = vpop.f32.mrf.mxu0
        %v3545 = vadd.f32 %v722, %v3544
        %v3546 = vpop.f32.mrf.mxu0
        %v3547 = vadd.f32 %v722, %v3546
        %3548 = vmatmul.bf16.gmra.mxu0 %v1005
        %v3549 = vpop.f32.mrf.mxu0
        %v3550 = vadd.f32 %v722, %v3549
        %v3551 = vpop.f32.mrf.mxu0
        %v3552 = vadd.f32 %v722, %v3551
        %3553 = vmatmul.bf16.gmra.mxu0 %v1010
        %v3554 = vpop.f32.mrf.mxu0
        %v3555 = vadd.f32 %v722, %v3554
        %v3556 = vpop.f32.mrf.mxu0
        %v3557 = vadd.f32 %v722, %v3556
        %3558 = vmatmul.bf16.gmra.mxu0 %v1015
        %v3559 = vpop.f32.mrf.mxu0
        %v3560 = vadd.f32 %v722, %v3559
        %v3561 = vpop.f32.mrf.mxu0
        %v3562 = vadd.f32 %v722, %v3561
        %3563 = vmatmul.bf16.gmra.mxu0 %v1020
        %v3564 = vpop.f32.mrf.mxu0
        %v3565 = vadd.f32 %v722, %v3564
        %v3566 = vpop.f32.mrf.mxu0
        %v3567 = vadd.f32 %v722, %v3566
        %3568 = vmatmul.bf16.gmra.mxu0 %v1025
        %v3569 = vpop.f32.mrf.mxu0
        %v3570 = vadd.f32 %v722, %v3569
        %v3571 = vpop.f32.mrf.mxu0
        %v3572 = vadd.f32 %v722, %v3571
        %3573 = vmatmul.bf16.gmra.mxu0 %v1030
        %v3574 = vpop.f32.mrf.mxu0
        %v3575 = vadd.f32 %v722, %v3574
        %v3576 = vpop.f32.mrf.mxu0
        %v3577 = vadd.f32 %v722, %v3576
        %3578 = vmatmul.bf16.gmra.mxu0 %v1035
        %v3579 = vpop.f32.mrf.mxu0
        %v3580 = vadd.f32 %v722, %v3579
        %v3581 = vpop.f32.mrf.mxu0
        %v3582 = vadd.f32 %v722, %v3581
        %3583 = vmatmul.bf16.gmra.mxu0 %v1040
        %v3584 = vpop.f32.mrf.mxu0
        %v3585 = vadd.f32 %v722, %v3584
        %v3586 = vpop.f32.mrf.mxu0
        %v3587 = vadd.f32 %v722, %v3586
        %3588 = vmatmul.bf16.gmra.mxu0 %v1045
        %v3589 = vpop.f32.mrf.mxu0
        %v3590 = vadd.f32 %v722, %v3589
        %v3591 = vpop.f32.mrf.mxu0
        %v3592 = vadd.f32 %v722, %v3591
        %3593 = vmatmul.bf16.gmra.mxu0 %v1050
        %v3594 = vpop.f32.mrf.mxu0
        %v3595 = vadd.f32 %v722, %v3594
        %v3596 = vpop.f32.mrf.mxu0
        %v3597 = vadd.f32 %v722, %v3596
        %3598 = vmatmul.bf16.gmra.mxu0 %v1055
        %v3599 = vpop.f32.mrf.mxu0
        %v3600 = vadd.f32 %v722, %v3599
        %v3601 = vpop.f32.mrf.mxu0
        %v3602 = vadd.f32 %v722, %v3601
        %3603 = vmatmul.bf16.gmra.mxu0 %v1060
        %v3604 = vpop.f32.mrf.mxu0
        %v3605 = vadd.f32 %v722, %v3604
        %v3606 = vpop.f32.mrf.mxu0
        %v3607 = vadd.f32 %v722, %v3606
        %3608 = vdwg.mxu0
        %3609 = vmatpush.bf16.msra.mxu0 %v1863
        %3610 = vmatpush.bf16.msra.mxu0 %v1858
        %3611 = vmatpush.bf16.msra.mxu0 %v1853
        %3612 = vmatpush.bf16.msra.mxu0 %v1848
        %3613 = vmatpush.bf16.msra.mxu0 %v1843
        %3614 = vmatpush.bf16.msra.mxu0 %v1838
        %3615 = vmatpush.bf16.msra.mxu0 %v1833
        %3616 = vmatpush.bf16.msra.mxu0 %v1828
        %3617 = vmatmul.bf16.gmra.mxu0 %v986
        %v3618 = vpop.f32.mrf.mxu0
        %v3619 = vadd.f32 %v3530, %v3618
        %v3620 = vpop.f32.mrf.mxu0
        %v3621 = vadd.f32 %v3532, %v3620
        %3622 = vmatmul.bf16.gmra.mxu0 %v991
        %v3623 = vpop.f32.mrf.mxu0
        %v3624 = vadd.f32 %v3535, %v3623
        %v3625 = vpop.f32.mrf.mxu0
        %v3626 = vadd.f32 %v3537, %v3625
        %3627 = vmatmul.bf16.gmra.mxu0 %v996
        %v3628 = vpop.f32.mrf.mxu0
        %v3629 = vadd.f32 %v3540, %v3628
        %v3630 = vpop.f32.mrf.mxu0
        %v3631 = vadd.f32 %v3542, %v3630
        %3632 = vmatmul.bf16.gmra.mxu0 %v1001
        %v3633 = vpop.f32.mrf.mxu0
        %v3634 = vadd.f32 %v3545, %v3633
        %v3635 = vpop.f32.mrf.mxu0
        %v3636 = vadd.f32 %v3547, %v3635
        %3637 = vmatmul.bf16.gmra.mxu0 %v1006
        %v3638 = vpop.f32.mrf.mxu0
        %v3639 = vadd.f32 %v3550, %v3638
        %v3640 = vpop.f32.mrf.mxu0
        %v3641 = vadd.f32 %v3552, %v3640
        %3642 = vmatmul.bf16.gmra.mxu0 %v1011
        %v3643 = vpop.f32.mrf.mxu0
        %v3644 = vadd.f32 %v3555, %v3643
        %v3645 = vpop.f32.mrf.mxu0
        %v3646 = vadd.f32 %v3557, %v3645
        %3647 = vmatmul.bf16.gmra.mxu0 %v1016
        %v3648 = vpop.f32.mrf.mxu0
        %v3649 = vadd.f32 %v3560, %v3648
        %v3650 = vpop.f32.mrf.mxu0
        %v3651 = vadd.f32 %v3562, %v3650
        %3652 = vmatmul.bf16.gmra.mxu0 %v1021
        %v3653 = vpop.f32.mrf.mxu0
        %v3654 = vadd.f32 %v3565, %v3653
        %v3655 = vpop.f32.mrf.mxu0
        %v3656 = vadd.f32 %v3567, %v3655
        %3657 = vmatmul.bf16.gmra.mxu0 %v1026
        %v3658 = vpop.f32.mrf.mxu0
        %v3659 = vadd.f32 %v3570, %v3658
        %v3660 = vpop.f32.mrf.mxu0
        %v3661 = vadd.f32 %v3572, %v3660
        %3662 = vmatmul.bf16.gmra.mxu0 %v1031
        %v3663 = vpop.f32.mrf.mxu0
        %v3664 = vadd.f32 %v3575, %v3663
        %v3665 = vpop.f32.mrf.mxu0
        %v3666 = vadd.f32 %v3577, %v3665
        %3667 = vmatmul.bf16.gmra.mxu0 %v1036
        %v3668 = vpop.f32.mrf.mxu0
        %v3669 = vadd.f32 %v3580, %v3668
        %v3670 = vpop.f32.mrf.mxu0
        %v3671 = vadd.f32 %v3582, %v3670
        %3672 = vmatmul.bf16.gmra.mxu0 %v1041
        %v3673 = vpop.f32.mrf.mxu0
        %v3674 = vadd.f32 %v3585, %v3673
        %v3675 = vpop.f32.mrf.mxu0
        %v3676 = vadd.f32 %v3587, %v3675
        %3677 = vmatmul.bf16.gmra.mxu0 %v1046
        %v3678 = vpop.f32.mrf.mxu0
        %v3679 = vadd.f32 %v3590, %v3678
        %v3680 = vpop.f32.mrf.mxu0
        %v3681 = vadd.f32 %v3592, %v3680
        %3682 = vmatmul.bf16.gmra.mxu0 %v1051
        %v3683 = vpop.f32.mrf.mxu0
        %v3684 = vadd.f32 %v3595, %v3683
        %v3685 = vpop.f32.mrf.mxu0
        %v3686 = vadd.f32 %v3597, %v3685
        %3687 = vmatmul.bf16.gmra.mxu0 %v1056
        %v3688 = vpop.f32.mrf.mxu0
        %v3689 = vadd.f32 %v3600, %v3688
        %v3690 = vpop.f32.mrf.mxu0
        %v3691 = vadd.f32 %v3602, %v3690
        %3692 = vmatmul.bf16.gmra.mxu0 %v1061
        %v3693 = vpop.f32.mrf.mxu0
        %v3694 = vadd.f32 %v3605, %v3693
        %v3695 = vpop.f32.mrf.mxu0
        %v3696 = vadd.f32 %v3607, %v3695
        %3697 = vdwg.mxu0
        %3698 = vmatpush.bf16.msra.mxu0 %v1903
        %3699 = vmatpush.bf16.msra.mxu0 %v1898
        %3700 = vmatpush.bf16.msra.mxu0 %v1893
        %3701 = vmatpush.bf16.msra.mxu0 %v1888
        %3702 = vmatpush.bf16.msra.mxu0 %v1883
        %3703 = vmatpush.bf16.msra.mxu0 %v1878
        %3704 = vmatpush.bf16.msra.mxu0 %v1873
        %3705 = vmatpush.bf16.msra.mxu0 %v1868
        %3706 = vmatmul.bf16.gmra.mxu0 %v987
        %v3707 = vpop.f32.mrf.mxu0
        %v3708 = vadd.f32 %v3619, %v3707
        %v3709 = vpop.f32.mrf.mxu0
        %v3710 = vadd.f32 %v3621, %v3709
        %3711 = vmatmul.bf16.gmra.mxu0 %v992
        %v3712 = vpop.f32.mrf.mxu0
        %v3713 = vadd.f32 %v3624, %v3712
        %v3714 = vpop.f32.mrf.mxu0
        %v3715 = vadd.f32 %v3626, %v3714
        %3716 = vmatmul.bf16.gmra.mxu0 %v997
        %v3717 = vpop.f32.mrf.mxu0
        %v3718 = vadd.f32 %v3629, %v3717
        %v3719 = vpop.f32.mrf.mxu0
        %v3720 = vadd.f32 %v3631, %v3719
        %3721 = vmatmul.bf16.gmra.mxu0 %v1002
        %v3722 = vpop.f32.mrf.mxu0
        %v3723 = vadd.f32 %v3634, %v3722
        %v3724 = vpop.f32.mrf.mxu0
        %v3725 = vadd.f32 %v3636, %v3724
        %3726 = vmatmul.bf16.gmra.mxu0 %v1007
        %v3727 = vpop.f32.mrf.mxu0
        %v3728 = vadd.f32 %v3639, %v3727
        %v3729 = vpop.f32.mrf.mxu0
        %v3730 = vadd.f32 %v3641, %v3729
        %3731 = vmatmul.bf16.gmra.mxu0 %v1012
        %v3732 = vpop.f32.mrf.mxu0
        %v3733 = vadd.f32 %v3644, %v3732
        %v3734 = vpop.f32.mrf.mxu0
        %v3735 = vadd.f32 %v3646, %v3734
        %3736 = vmatmul.bf16.gmra.mxu0 %v1017
        %v3737 = vpop.f32.mrf.mxu0
        %v3738 = vadd.f32 %v3649, %v3737
        %v3739 = vpop.f32.mrf.mxu0
        %v3740 = vadd.f32 %v3651, %v3739
        %3741 = vmatmul.bf16.gmra.mxu0 %v1022
        %v3742 = vpop.f32.mrf.mxu0
        %v3743 = vadd.f32 %v3654, %v3742
        %v3744 = vpop.f32.mrf.mxu0
        %v3745 = vadd.f32 %v3656, %v3744
        %3746 = vmatmul.bf16.gmra.mxu0 %v1027
        %v3747 = vpop.f32.mrf.mxu0
        %v3748 = vadd.f32 %v3659, %v3747
        %v3749 = vpop.f32.mrf.mxu0
        %v3750 = vadd.f32 %v3661, %v3749
        %3751 = vmatmul.bf16.gmra.mxu0 %v1032
        %v3752 = vpop.f32.mrf.mxu0
        %v3753 = vadd.f32 %v3664, %v3752
        %v3754 = vpop.f32.mrf.mxu0
        %v3755 = vadd.f32 %v3666, %v3754
        %3756 = vmatmul.bf16.gmra.mxu0 %v1037
        %v3757 = vpop.f32.mrf.mxu0
        %v3758 = vadd.f32 %v3669, %v3757
        %v3759 = vpop.f32.mrf.mxu0
        %v3760 = vadd.f32 %v3671, %v3759
        %3761 = vmatmul.bf16.gmra.mxu0 %v1042
        %v3762 = vpop.f32.mrf.mxu0
        %v3763 = vadd.f32 %v3674, %v3762
        %v3764 = vpop.f32.mrf.mxu0
        %v3765 = vadd.f32 %v3676, %v3764
        %3766 = vmatmul.bf16.gmra.mxu0 %v1047
        %v3767 = vpop.f32.mrf.mxu0
        %v3768 = vadd.f32 %v3679, %v3767
        %v3769 = vpop.f32.mrf.mxu0
        %v3770 = vadd.f32 %v3681, %v3769
        %3771 = vmatmul.bf16.gmra.mxu0 %v1052
        %v3772 = vpop.f32.mrf.mxu0
        %v3773 = vadd.f32 %v3684, %v3772
        %v3774 = vpop.f32.mrf.mxu0
        %v3775 = vadd.f32 %v3686, %v3774
        %3776 = vmatmul.bf16.gmra.mxu0 %v1057
        %v3777 = vpop.f32.mrf.mxu0
        %v3778 = vadd.f32 %v3689, %v3777
        %v3779 = vpop.f32.mrf.mxu0
        %v3780 = vadd.f32 %v3691, %v3779
        %3781 = vmatmul.bf16.gmra.mxu0 %v1062
        %v3782 = vpop.f32.mrf.mxu0
        %v3783 = vadd.f32 %v3694, %v3782
        %v3784 = vpop.f32.mrf.mxu0
        %v3785 = vadd.f32 %v3696, %v3784
        %3786 = vdwg.mxu0
        %3787 = vmatpush.bf16.msra.mxu0 %v1943
        %3788 = vmatpush.bf16.msra.mxu0 %v1938
        %3789 = vmatpush.bf16.msra.mxu0 %v1933
        %3790 = vmatpush.bf16.msra.mxu0 %v1928
        %3791 = vmatpush.bf16.msra.mxu0 %v1923
        %3792 = vmatpush.bf16.msra.mxu0 %v1918
        %3793 = vmatpush.bf16.msra.mxu0 %v1913
        %3794 = vmatpush.bf16.msra.mxu0 %v1908
        %3795 = vmatmul.bf16.gmra.mxu0 %v988
        %v3796 = vpop.f32.mrf.mxu0
        %v3797 = vadd.f32 %v3708, %v3796
        %v3798 = vpop.f32.mrf.mxu0
        %v3799 = vadd.f32 %v3710, %v3798
        %3800 = vmatmul.bf16.gmra.mxu0 %v993
        %v3801 = vpop.f32.mrf.mxu0
        %v3802 = vadd.f32 %v3713, %v3801
        %v3803 = vpop.f32.mrf.mxu0
        %v3804 = vadd.f32 %v3715, %v3803
        %3805 = vmatmul.bf16.gmra.mxu0 %v998
        %v3806 = vpop.f32.mrf.mxu0
        %v3807 = vadd.f32 %v3718, %v3806
        %v3808 = vpop.f32.mrf.mxu0
        %v3809 = vadd.f32 %v3720, %v3808
        %3810 = vmatmul.bf16.gmra.mxu0 %v1003
        %v3811 = vpop.f32.mrf.mxu0
        %v3812 = vadd.f32 %v3723, %v3811
        %v3813 = vpop.f32.mrf.mxu0
        %v3814 = vadd.f32 %v3725, %v3813
        %3815 = vmatmul.bf16.gmra.mxu0 %v1008
        %v3816 = vpop.f32.mrf.mxu0
        %v3817 = vadd.f32 %v3728, %v3816
        %v3818 = vpop.f32.mrf.mxu0
        %v3819 = vadd.f32 %v3730, %v3818
        %3820 = vmatmul.bf16.gmra.mxu0 %v1013
        %v3821 = vpop.f32.mrf.mxu0
        %v3822 = vadd.f32 %v3733, %v3821
        %v3823 = vpop.f32.mrf.mxu0
        %v3824 = vadd.f32 %v3735, %v3823
        %3825 = vmatmul.bf16.gmra.mxu0 %v1018
        %v3826 = vpop.f32.mrf.mxu0
        %v3827 = vadd.f32 %v3738, %v3826
        %v3828 = vpop.f32.mrf.mxu0
        %v3829 = vadd.f32 %v3740, %v3828
        %3830 = vmatmul.bf16.gmra.mxu0 %v1023
        %v3831 = vpop.f32.mrf.mxu0
        %v3832 = vadd.f32 %v3743, %v3831
        %v3833 = vpop.f32.mrf.mxu0
        %v3834 = vadd.f32 %v3745, %v3833
        %3835 = vmatmul.bf16.gmra.mxu0 %v1028
        %v3836 = vpop.f32.mrf.mxu0
        %v3837 = vadd.f32 %v3748, %v3836
        %v3838 = vpop.f32.mrf.mxu0
        %v3839 = vadd.f32 %v3750, %v3838
        %3840 = vmatmul.bf16.gmra.mxu0 %v1033
        %v3841 = vpop.f32.mrf.mxu0
        %v3842 = vadd.f32 %v3753, %v3841
        %v3843 = vpop.f32.mrf.mxu0
        %v3844 = vadd.f32 %v3755, %v3843
        %3845 = vmatmul.bf16.gmra.mxu0 %v1038
        %v3846 = vpop.f32.mrf.mxu0
        %v3847 = vadd.f32 %v3758, %v3846
        %v3848 = vpop.f32.mrf.mxu0
        %v3849 = vadd.f32 %v3760, %v3848
        %3850 = vmatmul.bf16.gmra.mxu0 %v1043
        %v3851 = vpop.f32.mrf.mxu0
        %v3852 = vadd.f32 %v3763, %v3851
        %v3853 = vpop.f32.mrf.mxu0
        %v3854 = vadd.f32 %v3765, %v3853
        %3855 = vmatmul.bf16.gmra.mxu0 %v1048
        %v3856 = vpop.f32.mrf.mxu0
        %v3857 = vadd.f32 %v3768, %v3856
        %v3858 = vpop.f32.mrf.mxu0
        %v3859 = vadd.f32 %v3770, %v3858
        %3860 = vmatmul.bf16.gmra.mxu0 %v1053
        %v3861 = vpop.f32.mrf.mxu0
        %v3862 = vadd.f32 %v3773, %v3861
        %v3863 = vpop.f32.mrf.mxu0
        %v3864 = vadd.f32 %v3775, %v3863
        %3865 = vmatmul.bf16.gmra.mxu0 %v1058
        %v3866 = vpop.f32.mrf.mxu0
        %v3867 = vadd.f32 %v3778, %v3866
        %v3868 = vpop.f32.mrf.mxu0
        %v3869 = vadd.f32 %v3780, %v3868
        %3870 = vmatmul.bf16.gmra.mxu0 %v1063
        %v3871 = vpop.f32.mrf.mxu0
        %v3872 = vadd.f32 %v3783, %v3871
        %v3873 = vpop.f32.mrf.mxu0
        %v3874 = vadd.f32 %v3785, %v3873
        %3875 = vdwg.mxu0
        %3876 = vmatpush.bf16.msra.mxu0 %v1983
        %3877 = vmatpush.bf16.msra.mxu0 %v1978
        %3878 = vmatpush.bf16.msra.mxu0 %v1973
        %3879 = vmatpush.bf16.msra.mxu0 %v1968
        %3880 = vmatpush.bf16.msra.mxu0 %v1963
        %3881 = vmatpush.bf16.msra.mxu0 %v1958
        %3882 = vmatpush.bf16.msra.mxu0 %v1953
        %3883 = vmatpush.bf16.msra.mxu0 %v1948
        %3884 = vmatmul.bf16.gmra.mxu0 %v989
        %v3885 = vpop.f32.mrf.mxu0
        %v3886 = vadd.f32 %v3797, %v3885
        %v3887 = vpop.f32.mrf.mxu0
        %v3888 = vadd.f32 %v3799, %v3887
        %3889 = vmatmul.bf16.gmra.mxu0 %v994
        %v3890 = vpop.f32.mrf.mxu0
        %v3891 = vadd.f32 %v3802, %v3890
        %v3892 = vpop.f32.mrf.mxu0
        %v3893 = vadd.f32 %v3804, %v3892
        %3894 = vmatmul.bf16.gmra.mxu0 %v999
        %v3895 = vpop.f32.mrf.mxu0
        %v3896 = vadd.f32 %v3807, %v3895
        %v3897 = vpop.f32.mrf.mxu0
        %v3898 = vadd.f32 %v3809, %v3897
        %3899 = vmatmul.bf16.gmra.mxu0 %v1004
        %v3900 = vpop.f32.mrf.mxu0
        %v3901 = vadd.f32 %v3812, %v3900
        %v3902 = vpop.f32.mrf.mxu0
        %v3903 = vadd.f32 %v3814, %v3902
        %3904 = vmatmul.bf16.gmra.mxu0 %v1009
        %v3905 = vpop.f32.mrf.mxu0
        %v3906 = vadd.f32 %v3817, %v3905
        %v3907 = vpop.f32.mrf.mxu0
        %v3908 = vadd.f32 %v3819, %v3907
        %3909 = vmatmul.bf16.gmra.mxu0 %v1014
        %v3910 = vpop.f32.mrf.mxu0
        %v3911 = vadd.f32 %v3822, %v3910
        %v3912 = vpop.f32.mrf.mxu0
        %v3913 = vadd.f32 %v3824, %v3912
        %3914 = vmatmul.bf16.gmra.mxu0 %v1019
        %v3915 = vpop.f32.mrf.mxu0
        %v3916 = vadd.f32 %v3827, %v3915
        %v3917 = vpop.f32.mrf.mxu0
        %v3918 = vadd.f32 %v3829, %v3917
        %3919 = vmatmul.bf16.gmra.mxu0 %v1024
        %v3920 = vpop.f32.mrf.mxu0
        %v3921 = vadd.f32 %v3832, %v3920
        %v3922 = vpop.f32.mrf.mxu0
        %v3923 = vadd.f32 %v3834, %v3922
        %3924 = vmatmul.bf16.gmra.mxu0 %v1029
        %v3925 = vpop.f32.mrf.mxu0
        %v3926 = vadd.f32 %v3837, %v3925
        %v3927 = vpop.f32.mrf.mxu0
        %v3928 = vadd.f32 %v3839, %v3927
        %3929 = vmatmul.bf16.gmra.mxu0 %v1034
        %v3930 = vpop.f32.mrf.mxu0
        %v3931 = vadd.f32 %v3842, %v3930
        %v3932 = vpop.f32.mrf.mxu0
        %v3933 = vadd.f32 %v3844, %v3932
        %3934 = vmatmul.bf16.gmra.mxu0 %v1039
        %v3935 = vpop.f32.mrf.mxu0
        %v3936 = vadd.f32 %v3847, %v3935
        %v3937 = vpop.f32.mrf.mxu0
        %v3938 = vadd.f32 %v3849, %v3937
        %3939 = vmatmul.bf16.gmra.mxu0 %v1044
        %v3940 = vpop.f32.mrf.mxu0
        %v3941 = vadd.f32 %v3852, %v3940
        %v3942 = vpop.f32.mrf.mxu0
        %v3943 = vadd.f32 %v3854, %v3942
        %3944 = vmatmul.bf16.gmra.mxu0 %v1049
        %v3945 = vpop.f32.mrf.mxu0
        %v3946 = vadd.f32 %v3857, %v3945
        %v3947 = vpop.f32.mrf.mxu0
        %v3948 = vadd.f32 %v3859, %v3947
        %3949 = vmatmul.bf16.gmra.mxu0 %v1054
        %v3950 = vpop.f32.mrf.mxu0
        %v3951 = vadd.f32 %v3862, %v3950
        %v3952 = vpop.f32.mrf.mxu0
        %v3953 = vadd.f32 %v3864, %v3952
        %3954 = vmatmul.bf16.gmra.mxu0 %v1059
        %v3955 = vpop.f32.mrf.mxu0
        %v3956 = vadd.f32 %v3867, %v3955
        %v3957 = vpop.f32.mrf.mxu0
        %v3958 = vadd.f32 %v3869, %v3957
        %3959 = vmatmul.bf16.gmra.mxu0 %v1064
        %v3960 = vpop.f32.mrf.mxu0
        %v3961 = vadd.f32 %v3872, %v3960
        %v3962 = vpop.f32.mrf.mxu0
        %v3963 = vadd.f32 %v3874, %v3962
        %3964 = vdwg.mxu0
        %3965 = vmatpush.bf16.msra.mxu0 %v1824
        %3966 = vmatpush.bf16.msra.mxu0 %v1819
        %3967 = vmatpush.bf16.msra.mxu0 %v1814
        %3968 = vmatpush.bf16.msra.mxu0 %v1809
        %3969 = vmatpush.bf16.msra.mxu0 %v1804
        %3970 = vmatpush.bf16.msra.mxu0 %v1799
        %3971 = vmatpush.bf16.msra.mxu0 %v1794
        %3972 = vmatpush.bf16.msra.mxu0 %v1789
        %3973 = vmatmul.bf16.gmra.mxu0 %v985
        %v3974 = vpop.f32.mrf.mxu0
        %v3975 = vadd.f32 %v723, %v3974
        %v3976 = vpop.f32.mrf.mxu0
        %v3977 = vadd.f32 %v723, %v3976
        %3978 = vmatmul.bf16.gmra.mxu0 %v990
        %v3979 = vpop.f32.mrf.mxu0
        %v3980 = vadd.f32 %v723, %v3979
        %v3981 = vpop.f32.mrf.mxu0
        %v3982 = vadd.f32 %v723, %v3981
        %3983 = vmatmul.bf16.gmra.mxu0 %v995
        %v3984 = vpop.f32.mrf.mxu0
        %v3985 = vadd.f32 %v723, %v3984
        %v3986 = vpop.f32.mrf.mxu0
        %v3987 = vadd.f32 %v723, %v3986
        %3988 = vmatmul.bf16.gmra.mxu0 %v1000
        %v3989 = vpop.f32.mrf.mxu0
        %v3990 = vadd.f32 %v723, %v3989
        %v3991 = vpop.f32.mrf.mxu0
        %v3992 = vadd.f32 %v723, %v3991
        %3993 = vmatmul.bf16.gmra.mxu0 %v1005
        %v3994 = vpop.f32.mrf.mxu0
        %v3995 = vadd.f32 %v723, %v3994
        %v3996 = vpop.f32.mrf.mxu0
        %v3997 = vadd.f32 %v723, %v3996
        %3998 = vmatmul.bf16.gmra.mxu0 %v1010
        %v3999 = vpop.f32.mrf.mxu0
        %v4000 = vadd.f32 %v723, %v3999
        %v4001 = vpop.f32.mrf.mxu0
        %v4002 = vadd.f32 %v723, %v4001
        %4003 = vmatmul.bf16.gmra.mxu0 %v1015
        %v4004 = vpop.f32.mrf.mxu0
        %v4005 = vadd.f32 %v723, %v4004
        %v4006 = vpop.f32.mrf.mxu0
        %v4007 = vadd.f32 %v723, %v4006
        %4008 = vmatmul.bf16.gmra.mxu0 %v1020
        %v4009 = vpop.f32.mrf.mxu0
        %v4010 = vadd.f32 %v723, %v4009
        %v4011 = vpop.f32.mrf.mxu0
        %v4012 = vadd.f32 %v723, %v4011
        %4013 = vmatmul.bf16.gmra.mxu0 %v1025
        %v4014 = vpop.f32.mrf.mxu0
        %v4015 = vadd.f32 %v723, %v4014
        %v4016 = vpop.f32.mrf.mxu0
        %v4017 = vadd.f32 %v723, %v4016
        %4018 = vmatmul.bf16.gmra.mxu0 %v1030
        %v4019 = vpop.f32.mrf.mxu0
        %v4020 = vadd.f32 %v723, %v4019
        %v4021 = vpop.f32.mrf.mxu0
        %v4022 = vadd.f32 %v723, %v4021
        %4023 = vmatmul.bf16.gmra.mxu0 %v1035
        %v4024 = vpop.f32.mrf.mxu0
        %v4025 = vadd.f32 %v723, %v4024
        %v4026 = vpop.f32.mrf.mxu0
        %v4027 = vadd.f32 %v723, %v4026
        %4028 = vmatmul.bf16.gmra.mxu0 %v1040
        %v4029 = vpop.f32.mrf.mxu0
        %v4030 = vadd.f32 %v723, %v4029
        %v4031 = vpop.f32.mrf.mxu0
        %v4032 = vadd.f32 %v723, %v4031
        %4033 = vmatmul.bf16.gmra.mxu0 %v1045
        %v4034 = vpop.f32.mrf.mxu0
        %v4035 = vadd.f32 %v723, %v4034
        %v4036 = vpop.f32.mrf.mxu0
        %v4037 = vadd.f32 %v723, %v4036
        %4038 = vmatmul.bf16.gmra.mxu0 %v1050
        %v4039 = vpop.f32.mrf.mxu0
        %v4040 = vadd.f32 %v723, %v4039
        %v4041 = vpop.f32.mrf.mxu0
        %v4042 = vadd.f32 %v723, %v4041
        %4043 = vmatmul.bf16.gmra.mxu0 %v1055
        %v4044 = vpop.f32.mrf.mxu0
        %v4045 = vadd.f32 %v723, %v4044
        %v4046 = vpop.f32.mrf.mxu0
        %v4047 = vadd.f32 %v723, %v4046
        %4048 = vmatmul.bf16.gmra.mxu0 %v1060
        %v4049 = vpop.f32.mrf.mxu0
        %v4050 = vadd.f32 %v723, %v4049
        %v4051 = vpop.f32.mrf.mxu0
        %v4052 = vadd.f32 %v723, %v4051
        %4053 = vdwg.mxu0
        %4054 = vmatpush.bf16.msra.mxu0 %v1864
        %4055 = vmatpush.bf16.msra.mxu0 %v1859
        %4056 = vmatpush.bf16.msra.mxu0 %v1854
        %4057 = vmatpush.bf16.msra.mxu0 %v1849
        %4058 = vmatpush.bf16.msra.mxu0 %v1844
        %4059 = vmatpush.bf16.msra.mxu0 %v1839
        %4060 = vmatpush.bf16.msra.mxu0 %v1834
        %4061 = vmatpush.bf16.msra.mxu0 %v1829
        %4062 = vmatmul.bf16.gmra.mxu0 %v986
        %v4063 = vpop.f32.mrf.mxu0
        %v4064 = vadd.f32 %v3975, %v4063
        %v4065 = vpop.f32.mrf.mxu0
        %v4066 = vadd.f32 %v3977, %v4065
        %4067 = vmatmul.bf16.gmra.mxu0 %v991
        %v4068 = vpop.f32.mrf.mxu0
        %v4069 = vadd.f32 %v3980, %v4068
        %v4070 = vpop.f32.mrf.mxu0
        %v4071 = vadd.f32 %v3982, %v4070
        %4072 = vmatmul.bf16.gmra.mxu0 %v996
        %v4073 = vpop.f32.mrf.mxu0
        %v4074 = vadd.f32 %v3985, %v4073
        %v4075 = vpop.f32.mrf.mxu0
        %v4076 = vadd.f32 %v3987, %v4075
        %4077 = vmatmul.bf16.gmra.mxu0 %v1001
        %v4078 = vpop.f32.mrf.mxu0
        %v4079 = vadd.f32 %v3990, %v4078
        %v4080 = vpop.f32.mrf.mxu0
        %v4081 = vadd.f32 %v3992, %v4080
        %4082 = vmatmul.bf16.gmra.mxu0 %v1006
        %v4083 = vpop.f32.mrf.mxu0
        %v4084 = vadd.f32 %v3995, %v4083
        %v4085 = vpop.f32.mrf.mxu0
        %v4086 = vadd.f32 %v3997, %v4085
        %4087 = vmatmul.bf16.gmra.mxu0 %v1011
        %v4088 = vpop.f32.mrf.mxu0
        %v4089 = vadd.f32 %v4000, %v4088
        %v4090 = vpop.f32.mrf.mxu0
        %v4091 = vadd.f32 %v4002, %v4090
        %4092 = vmatmul.bf16.gmra.mxu0 %v1016
        %v4093 = vpop.f32.mrf.mxu0
        %v4094 = vadd.f32 %v4005, %v4093
        %v4095 = vpop.f32.mrf.mxu0
        %v4096 = vadd.f32 %v4007, %v4095
        %4097 = vmatmul.bf16.gmra.mxu0 %v1021
        %v4098 = vpop.f32.mrf.mxu0
        %v4099 = vadd.f32 %v4010, %v4098
        %v4100 = vpop.f32.mrf.mxu0
        %v4101 = vadd.f32 %v4012, %v4100
        %4102 = vmatmul.bf16.gmra.mxu0 %v1026
        %v4103 = vpop.f32.mrf.mxu0
        %v4104 = vadd.f32 %v4015, %v4103
        %v4105 = vpop.f32.mrf.mxu0
        %v4106 = vadd.f32 %v4017, %v4105
        %4107 = vmatmul.bf16.gmra.mxu0 %v1031
        %v4108 = vpop.f32.mrf.mxu0
        %v4109 = vadd.f32 %v4020, %v4108
        %v4110 = vpop.f32.mrf.mxu0
        %v4111 = vadd.f32 %v4022, %v4110
        %4112 = vmatmul.bf16.gmra.mxu0 %v1036
        %v4113 = vpop.f32.mrf.mxu0
        %v4114 = vadd.f32 %v4025, %v4113
        %v4115 = vpop.f32.mrf.mxu0
        %v4116 = vadd.f32 %v4027, %v4115
        %4117 = vmatmul.bf16.gmra.mxu0 %v1041
        %v4118 = vpop.f32.mrf.mxu0
        %v4119 = vadd.f32 %v4030, %v4118
        %v4120 = vpop.f32.mrf.mxu0
        %v4121 = vadd.f32 %v4032, %v4120
        %4122 = vmatmul.bf16.gmra.mxu0 %v1046
        %v4123 = vpop.f32.mrf.mxu0
        %v4124 = vadd.f32 %v4035, %v4123
        %v4125 = vpop.f32.mrf.mxu0
        %v4126 = vadd.f32 %v4037, %v4125
        %4127 = vmatmul.bf16.gmra.mxu0 %v1051
        %v4128 = vpop.f32.mrf.mxu0
        %v4129 = vadd.f32 %v4040, %v4128
        %v4130 = vpop.f32.mrf.mxu0
        %v4131 = vadd.f32 %v4042, %v4130
        %4132 = vmatmul.bf16.gmra.mxu0 %v1056
        %v4133 = vpop.f32.mrf.mxu0
        %v4134 = vadd.f32 %v4045, %v4133
        %v4135 = vpop.f32.mrf.mxu0
        %v4136 = vadd.f32 %v4047, %v4135
        %4137 = vmatmul.bf16.gmra.mxu0 %v1061
        %v4138 = vpop.f32.mrf.mxu0
        %v4139 = vadd.f32 %v4050, %v4138
        %v4140 = vpop.f32.mrf.mxu0
        %v4141 = vadd.f32 %v4052, %v4140
        %4142 = vdwg.mxu0
        %4143 = vmatpush.bf16.msra.mxu0 %v1904
        %4144 = vmatpush.bf16.msra.mxu0 %v1899
        %4145 = vmatpush.bf16.msra.mxu0 %v1894
        %4146 = vmatpush.bf16.msra.mxu0 %v1889
        %4147 = vmatpush.bf16.msra.mxu0 %v1884
        %4148 = vmatpush.bf16.msra.mxu0 %v1879
        %4149 = vmatpush.bf16.msra.mxu0 %v1874
        %4150 = vmatpush.bf16.msra.mxu0 %v1869
        %4151 = vmatmul.bf16.gmra.mxu0 %v987
        %v4152 = vpop.f32.mrf.mxu0
        %v4153 = vadd.f32 %v4064, %v4152
        %v4154 = vpop.f32.mrf.mxu0
        %v4155 = vadd.f32 %v4066, %v4154
        %4156 = vmatmul.bf16.gmra.mxu0 %v992
        %v4157 = vpop.f32.mrf.mxu0
        %v4158 = vadd.f32 %v4069, %v4157
        %v4159 = vpop.f32.mrf.mxu0
        %v4160 = vadd.f32 %v4071, %v4159
        %4161 = vmatmul.bf16.gmra.mxu0 %v997
        %v4162 = vpop.f32.mrf.mxu0
        %v4163 = vadd.f32 %v4074, %v4162
        %v4164 = vpop.f32.mrf.mxu0
        %v4165 = vadd.f32 %v4076, %v4164
        %4166 = vmatmul.bf16.gmra.mxu0 %v1002
        %v4167 = vpop.f32.mrf.mxu0
        %v4168 = vadd.f32 %v4079, %v4167
        %v4169 = vpop.f32.mrf.mxu0
        %v4170 = vadd.f32 %v4081, %v4169
        %4171 = vmatmul.bf16.gmra.mxu0 %v1007
        %v4172 = vpop.f32.mrf.mxu0
        %v4173 = vadd.f32 %v4084, %v4172
        %v4174 = vpop.f32.mrf.mxu0
        %v4175 = vadd.f32 %v4086, %v4174
        %4176 = vmatmul.bf16.gmra.mxu0 %v1012
        %v4177 = vpop.f32.mrf.mxu0
        %v4178 = vadd.f32 %v4089, %v4177
        %v4179 = vpop.f32.mrf.mxu0
        %v4180 = vadd.f32 %v4091, %v4179
        %4181 = vmatmul.bf16.gmra.mxu0 %v1017
        %v4182 = vpop.f32.mrf.mxu0
        %v4183 = vadd.f32 %v4094, %v4182
        %v4184 = vpop.f32.mrf.mxu0
        %v4185 = vadd.f32 %v4096, %v4184
        %4186 = vmatmul.bf16.gmra.mxu0 %v1022
        %v4187 = vpop.f32.mrf.mxu0
        %v4188 = vadd.f32 %v4099, %v4187
        %v4189 = vpop.f32.mrf.mxu0
        %v4190 = vadd.f32 %v4101, %v4189
        %4191 = vmatmul.bf16.gmra.mxu0 %v1027
        %v4192 = vpop.f32.mrf.mxu0
        %v4193 = vadd.f32 %v4104, %v4192
        %v4194 = vpop.f32.mrf.mxu0
        %v4195 = vadd.f32 %v4106, %v4194
        %4196 = vmatmul.bf16.gmra.mxu0 %v1032
        %v4197 = vpop.f32.mrf.mxu0
        %v4198 = vadd.f32 %v4109, %v4197
        %v4199 = vpop.f32.mrf.mxu0
        %v4200 = vadd.f32 %v4111, %v4199
        %4201 = vmatmul.bf16.gmra.mxu0 %v1037
        %v4202 = vpop.f32.mrf.mxu0
        %v4203 = vadd.f32 %v4114, %v4202
        %v4204 = vpop.f32.mrf.mxu0
        %v4205 = vadd.f32 %v4116, %v4204
        %4206 = vmatmul.bf16.gmra.mxu0 %v1042
        %v4207 = vpop.f32.mrf.mxu0
        %v4208 = vadd.f32 %v4119, %v4207
        %v4209 = vpop.f32.mrf.mxu0
        %v4210 = vadd.f32 %v4121, %v4209
        %4211 = vmatmul.bf16.gmra.mxu0 %v1047
        %v4212 = vpop.f32.mrf.mxu0
        %v4213 = vadd.f32 %v4124, %v4212
        %v4214 = vpop.f32.mrf.mxu0
        %v4215 = vadd.f32 %v4126, %v4214
        %4216 = vmatmul.bf16.gmra.mxu0 %v1052
        %v4217 = vpop.f32.mrf.mxu0
        %v4218 = vadd.f32 %v4129, %v4217
        %v4219 = vpop.f32.mrf.mxu0
        %v4220 = vadd.f32 %v4131, %v4219
        %4221 = vmatmul.bf16.gmra.mxu0 %v1057
        %v4222 = vpop.f32.mrf.mxu0
        %v4223 = vadd.f32 %v4134, %v4222
        %v4224 = vpop.f32.mrf.mxu0
        %v4225 = vadd.f32 %v4136, %v4224
        %4226 = vmatmul.bf16.gmra.mxu0 %v1062
        %v4227 = vpop.f32.mrf.mxu0
        %v4228 = vadd.f32 %v4139, %v4227
        %v4229 = vpop.f32.mrf.mxu0
        %v4230 = vadd.f32 %v4141, %v4229
        %4231 = vdwg.mxu0
        %4232 = vmatpush.bf16.msra.mxu0 %v1944
        %4233 = vmatpush.bf16.msra.mxu0 %v1939
        %4234 = vmatpush.bf16.msra.mxu0 %v1934
        %4235 = vmatpush.bf16.msra.mxu0 %v1929
        %4236 = vmatpush.bf16.msra.mxu0 %v1924
        %4237 = vmatpush.bf16.msra.mxu0 %v1919
        %4238 = vmatpush.bf16.msra.mxu0 %v1914
        %4239 = vmatpush.bf16.msra.mxu0 %v1909
        %4240 = vmatmul.bf16.gmra.mxu0 %v988
        %v4241 = vpop.f32.mrf.mxu0
        %v4242 = vadd.f32 %v4153, %v4241
        %v4243 = vpop.f32.mrf.mxu0
        %v4244 = vadd.f32 %v4155, %v4243
        %4245 = vmatmul.bf16.gmra.mxu0 %v993
        %v4246 = vpop.f32.mrf.mxu0
        %v4247 = vadd.f32 %v4158, %v4246
        %v4248 = vpop.f32.mrf.mxu0
        %v4249 = vadd.f32 %v4160, %v4248
        %4250 = vmatmul.bf16.gmra.mxu0 %v998
        %v4251 = vpop.f32.mrf.mxu0
        %v4252 = vadd.f32 %v4163, %v4251
        %v4253 = vpop.f32.mrf.mxu0
        %v4254 = vadd.f32 %v4165, %v4253
        %4255 = vmatmul.bf16.gmra.mxu0 %v1003
        %v4256 = vpop.f32.mrf.mxu0
        %v4257 = vadd.f32 %v4168, %v4256
        %v4258 = vpop.f32.mrf.mxu0
        %v4259 = vadd.f32 %v4170, %v4258
        %4260 = vmatmul.bf16.gmra.mxu0 %v1008
        %v4261 = vpop.f32.mrf.mxu0
        %v4262 = vadd.f32 %v4173, %v4261
        %v4263 = vpop.f32.mrf.mxu0
        %v4264 = vadd.f32 %v4175, %v4263
        %4265 = vmatmul.bf16.gmra.mxu0 %v1013
        %v4266 = vpop.f32.mrf.mxu0
        %v4267 = vadd.f32 %v4178, %v4266
        %v4268 = vpop.f32.mrf.mxu0
        %v4269 = vadd.f32 %v4180, %v4268
        %4270 = vmatmul.bf16.gmra.mxu0 %v1018
        %v4271 = vpop.f32.mrf.mxu0
        %v4272 = vadd.f32 %v4183, %v4271
        %v4273 = vpop.f32.mrf.mxu0
        %v4274 = vadd.f32 %v4185, %v4273
        %4275 = vmatmul.bf16.gmra.mxu0 %v1023
        %v4276 = vpop.f32.mrf.mxu0
        %v4277 = vadd.f32 %v4188, %v4276
        %v4278 = vpop.f32.mrf.mxu0
        %v4279 = vadd.f32 %v4190, %v4278
        %4280 = vmatmul.bf16.gmra.mxu0 %v1028
        %v4281 = vpop.f32.mrf.mxu0
        %v4282 = vadd.f32 %v4193, %v4281
        %v4283 = vpop.f32.mrf.mxu0
        %v4284 = vadd.f32 %v4195, %v4283
        %4285 = vmatmul.bf16.gmra.mxu0 %v1033
        %v4286 = vpop.f32.mrf.mxu0
        %v4287 = vadd.f32 %v4198, %v4286
        %v4288 = vpop.f32.mrf.mxu0
        %v4289 = vadd.f32 %v4200, %v4288
        %4290 = vmatmul.bf16.gmra.mxu0 %v1038
        %v4291 = vpop.f32.mrf.mxu0
        %v4292 = vadd.f32 %v4203, %v4291
        %v4293 = vpop.f32.mrf.mxu0
        %v4294 = vadd.f32 %v4205, %v4293
        %4295 = vmatmul.bf16.gmra.mxu0 %v1043
        %v4296 = vpop.f32.mrf.mxu0
        %v4297 = vadd.f32 %v4208, %v4296
        %v4298 = vpop.f32.mrf.mxu0
        %v4299 = vadd.f32 %v4210, %v4298
        %4300 = vmatmul.bf16.gmra.mxu0 %v1048
        %v4301 = vpop.f32.mrf.mxu0
        %v4302 = vadd.f32 %v4213, %v4301
        %v4303 = vpop.f32.mrf.mxu0
        %v4304 = vadd.f32 %v4215, %v4303
        %4305 = vmatmul.bf16.gmra.mxu0 %v1053
        %v4306 = vpop.f32.mrf.mxu0
        %v4307 = vadd.f32 %v4218, %v4306
        %v4308 = vpop.f32.mrf.mxu0
        %v4309 = vadd.f32 %v4220, %v4308
        %4310 = vmatmul.bf16.gmra.mxu0 %v1058
        %v4311 = vpop.f32.mrf.mxu0
        %v4312 = vadd.f32 %v4223, %v4311
        %v4313 = vpop.f32.mrf.mxu0
        %v4314 = vadd.f32 %v4225, %v4313
        %4315 = vmatmul.bf16.gmra.mxu0 %v1063
        %v4316 = vpop.f32.mrf.mxu0
        %v4317 = vadd.f32 %v4228, %v4316
        %v4318 = vpop.f32.mrf.mxu0
        %v4319 = vadd.f32 %v4230, %v4318
        %4320 = vdwg.mxu0
        %4321 = vmatpush.bf16.msra.mxu0 %v1984
        %4322 = vmatpush.bf16.msra.mxu0 %v1979
        %4323 = vmatpush.bf16.msra.mxu0 %v1974
        %4324 = vmatpush.bf16.msra.mxu0 %v1969
        %4325 = vmatpush.bf16.msra.mxu0 %v1964
        %4326 = vmatpush.bf16.msra.mxu0 %v1959
        %4327 = vmatpush.bf16.msra.mxu0 %v1954
        %4328 = vmatpush.bf16.msra.mxu0 %v1949
        %4329 = vmatmul.bf16.gmra.mxu0 %v989
        %v4330 = vpop.f32.mrf.mxu0
        %v4331 = vadd.f32 %v4242, %v4330
        %v4332 = vpop.f32.mrf.mxu0
        %v4333 = vadd.f32 %v4244, %v4332
        %4334 = vmatmul.bf16.gmra.mxu0 %v994
        %v4335 = vpop.f32.mrf.mxu0
        %v4336 = vadd.f32 %v4247, %v4335
        %v4337 = vpop.f32.mrf.mxu0
        %v4338 = vadd.f32 %v4249, %v4337
        %4339 = vmatmul.bf16.gmra.mxu0 %v999
        %v4340 = vpop.f32.mrf.mxu0
        %v4341 = vadd.f32 %v4252, %v4340
        %v4342 = vpop.f32.mrf.mxu0
        %v4343 = vadd.f32 %v4254, %v4342
        %4344 = vmatmul.bf16.gmra.mxu0 %v1004
        %v4345 = vpop.f32.mrf.mxu0
        %v4346 = vadd.f32 %v4257, %v4345
        %v4347 = vpop.f32.mrf.mxu0
        %v4348 = vadd.f32 %v4259, %v4347
        %4349 = vmatmul.bf16.gmra.mxu0 %v1009
        %v4350 = vpop.f32.mrf.mxu0
        %v4351 = vadd.f32 %v4262, %v4350
        %v4352 = vpop.f32.mrf.mxu0
        %v4353 = vadd.f32 %v4264, %v4352
        %4354 = vmatmul.bf16.gmra.mxu0 %v1014
        %v4355 = vpop.f32.mrf.mxu0
        %v4356 = vadd.f32 %v4267, %v4355
        %v4357 = vpop.f32.mrf.mxu0
        %v4358 = vadd.f32 %v4269, %v4357
        %4359 = vmatmul.bf16.gmra.mxu0 %v1019
        %v4360 = vpop.f32.mrf.mxu0
        %v4361 = vadd.f32 %v4272, %v4360
        %v4362 = vpop.f32.mrf.mxu0
        %v4363 = vadd.f32 %v4274, %v4362
        %4364 = vmatmul.bf16.gmra.mxu0 %v1024
        %v4365 = vpop.f32.mrf.mxu0
        %v4366 = vadd.f32 %v4277, %v4365
        %v4367 = vpop.f32.mrf.mxu0
        %v4368 = vadd.f32 %v4279, %v4367
        %4369 = vmatmul.bf16.gmra.mxu0 %v1029
        %v4370 = vpop.f32.mrf.mxu0
        %v4371 = vadd.f32 %v4282, %v4370
        %v4372 = vpop.f32.mrf.mxu0
        %v4373 = vadd.f32 %v4284, %v4372
        %4374 = vmatmul.bf16.gmra.mxu0 %v1034
        %v4375 = vpop.f32.mrf.mxu0
        %v4376 = vadd.f32 %v4287, %v4375
        %v4377 = vpop.f32.mrf.mxu0
        %v4378 = vadd.f32 %v4289, %v4377
        %4379 = vmatmul.bf16.gmra.mxu0 %v1039
        %v4380 = vpop.f32.mrf.mxu0
        %v4381 = vadd.f32 %v4292, %v4380
        %v4382 = vpop.f32.mrf.mxu0
        %v4383 = vadd.f32 %v4294, %v4382
        %4384 = vmatmul.bf16.gmra.mxu0 %v1044
        %v4385 = vpop.f32.mrf.mxu0
        %v4386 = vadd.f32 %v4297, %v4385
        %v4387 = vpop.f32.mrf.mxu0
        %v4388 = vadd.f32 %v4299, %v4387
        %4389 = vmatmul.bf16.gmra.mxu0 %v1049
        %v4390 = vpop.f32.mrf.mxu0
        %v4391 = vadd.f32 %v4302, %v4390
        %v4392 = vpop.f32.mrf.mxu0
        %v4393 = vadd.f32 %v4304, %v4392
        %4394 = vmatmul.bf16.gmra.mxu0 %v1054
        %v4395 = vpop.f32.mrf.mxu0
        %v4396 = vadd.f32 %v4307, %v4395
        %v4397 = vpop.f32.mrf.mxu0
        %v4398 = vadd.f32 %v4309, %v4397
        %4399 = vmatmul.bf16.gmra.mxu0 %v1059
        %v4400 = vpop.f32.mrf.mxu0
        %v4401 = vadd.f32 %v4312, %v4400
        %v4402 = vpop.f32.mrf.mxu0
        %v4403 = vadd.f32 %v4314, %v4402
        %4404 = vmatmul.bf16.gmra.mxu0 %v1064
        %v4405 = vpop.f32.mrf.mxu0
        %v4406 = vadd.f32 %v4317, %v4405
        %v4407 = vpop.f32.mrf.mxu0
        %v4408 = vadd.f32 %v4319, %v4407
        %4409 = vdwg.mxu0
        %v4410 = vmax.f32 %v2551, 0.0
        %v4411 = vmax.f32 %v2996, 0.0
        %v4412 = vmax.f32 %v3441, 0.0
        %v4413 = vmax.f32 %v3886, 0.0
        %v4414 = vmax.f32 %v4331, 0.0
        %v4415 = vmax.f32 %v2553, 0.0
        %v4416 = vmax.f32 %v2998, 0.0
        %v4417 = vmax.f32 %v3443, 0.0
        %v4418 = vmax.f32 %v3888, 0.0
        %v4419 = vmax.f32 %v4333, 0.0
        %v4420 = vmax.f32 %v2556, 0.0
        %v4421 = vmax.f32 %v3001, 0.0
        %v4422 = vmax.f32 %v3446, 0.0
        %v4423 = vmax.f32 %v3891, 0.0
        %v4424 = vmax.f32 %v4336, 0.0
        %v4425 = vmax.f32 %v2558, 0.0
        %v4426 = vmax.f32 %v3003, 0.0
        %v4427 = vmax.f32 %v3448, 0.0
        %v4428 = vmax.f32 %v3893, 0.0
        %v4429 = vmax.f32 %v4338, 0.0
        %v4430 = vmax.f32 %v2561, 0.0
        %v4431 = vmax.f32 %v3006, 0.0
        %v4432 = vmax.f32 %v3451, 0.0
        %v4433 = vmax.f32 %v3896, 0.0
        %v4434 = vmax.f32 %v4341, 0.0
        %v4435 = vmax.f32 %v2563, 0.0
        %v4436 = vmax.f32 %v3008, 0.0
        %v4437 = vmax.f32 %v3453, 0.0
        %v4438 = vmax.f32 %v3898, 0.0
        %v4439 = vmax.f32 %v4343, 0.0
        %v4440 = vmax.f32 %v2566, 0.0
        %v4441 = vmax.f32 %v3011, 0.0
        %v4442 = vmax.f32 %v3456, 0.0
        %v4443 = vmax.f32 %v3901, 0.0
        %v4444 = vmax.f32 %v4346, 0.0
        %v4445 = vmax.f32 %v2568, 0.0
        %v4446 = vmax.f32 %v3013, 0.0
        %v4447 = vmax.f32 %v3458, 0.0
        %v4448 = vmax.f32 %v3903, 0.0
        %v4449 = vmax.f32 %v4348, 0.0
        %v4450 = vmax.f32 %v2571, 0.0
        %v4451 = vmax.f32 %v3016, 0.0
        %v4452 = vmax.f32 %v3461, 0.0
        %v4453 = vmax.f32 %v3906, 0.0
        %v4454 = vmax.f32 %v4351, 0.0
        %v4455 = vmax.f32 %v2573, 0.0
        %v4456 = vmax.f32 %v3018, 0.0
        %v4457 = vmax.f32 %v3463, 0.0
        %v4458 = vmax.f32 %v3908, 0.0
        %v4459 = vmax.f32 %v4353, 0.0
        %v4460 = vmax.f32 %v2576, 0.0
        %v4461 = vmax.f32 %v3021, 0.0
        %v4462 = vmax.f32 %v3466, 0.0
        %v4463 = vmax.f32 %v3911, 0.0
        %v4464 = vmax.f32 %v4356, 0.0
        %v4465 = vmax.f32 %v2578, 0.0
        %v4466 = vmax.f32 %v3023, 0.0
        %v4467 = vmax.f32 %v3468, 0.0
        %v4468 = vmax.f32 %v3913, 0.0
        %v4469 = vmax.f32 %v4358, 0.0
        %v4470 = vmax.f32 %v2581, 0.0
        %v4471 = vmax.f32 %v3026, 0.0
        %v4472 = vmax.f32 %v3471, 0.0
        %v4473 = vmax.f32 %v3916, 0.0
        %v4474 = vmax.f32 %v4361, 0.0
        %v4475 = vmax.f32 %v2583, 0.0
        %v4476 = vmax.f32 %v3028, 0.0
        %v4477 = vmax.f32 %v3473, 0.0
        %v4478 = vmax.f32 %v3918, 0.0
        %v4479 = vmax.f32 %v4363, 0.0
        %v4480 = vmax.f32 %v2586, 0.0
        %v4481 = vmax.f32 %v3031, 0.0
        %v4482 = vmax.f32 %v3476, 0.0
        %v4483 = vmax.f32 %v3921, 0.0
        %v4484 = vmax.f32 %v4366, 0.0
        %v4485 = vmax.f32 %v2588, 0.0
        %v4486 = vmax.f32 %v3033, 0.0
        %v4487 = vmax.f32 %v3478, 0.0
        %v4488 = vmax.f32 %v3923, 0.0
        %v4489 = vmax.f32 %v4368, 0.0
        %v4490 = vmax.f32 %v2591, 0.0
        %v4491 = vmax.f32 %v3036, 0.0
        %v4492 = vmax.f32 %v3481, 0.0
        %v4493 = vmax.f32 %v3926, 0.0
        %v4494 = vmax.f32 %v4371, 0.0
        %v4495 = vmax.f32 %v2593, 0.0
        %v4496 = vmax.f32 %v3038, 0.0
        %v4497 = vmax.f32 %v3483, 0.0
        %v4498 = vmax.f32 %v3928, 0.0
        %v4499 = vmax.f32 %v4373, 0.0
        %v4500 = vmax.f32 %v2596, 0.0
        %v4501 = vmax.f32 %v3041, 0.0
        %v4502 = vmax.f32 %v3486, 0.0
        %v4503 = vmax.f32 %v3931, 0.0
        %v4504 = vmax.f32 %v4376, 0.0
        %v4505 = vmax.f32 %v2598, 0.0
        %v4506 = vmax.f32 %v3043, 0.0
        %v4507 = vmax.f32 %v3488, 0.0
        %v4508 = vmax.f32 %v3933, 0.0
        %v4509 = vmax.f32 %v4378, 0.0
        %v4510 = vmax.f32 %v2601, 0.0
        %v4511 = vmax.f32 %v3046, 0.0
        %v4512 = vmax.f32 %v3491, 0.0
        %v4513 = vmax.f32 %v3936, 0.0
        %v4514 = vmax.f32 %v4381, 0.0
        %v4515 = vmax.f32 %v2603, 0.0
        %v4516 = vmax.f32 %v3048, 0.0
        %v4517 = vmax.f32 %v3493, 0.0
        %v4518 = vmax.f32 %v3938, 0.0
        %v4519 = vmax.f32 %v4383, 0.0
        %v4520 = vmax.f32 %v2606, 0.0
        %v4521 = vmax.f32 %v3051, 0.0
        %v4522 = vmax.f32 %v3496, 0.0
        %v4523 = vmax.f32 %v3941, 0.0
        %v4524 = vmax.f32 %v4386, 0.0
        %v4525 = vmax.f32 %v2608, 0.0
        %v4526 = vmax.f32 %v3053, 0.0
        %v4527 = vmax.f32 %v3498, 0.0
        %v4528 = vmax.f32 %v3943, 0.0
        %v4529 = vmax.f32 %v4388, 0.0
        %v4530 = vmax.f32 %v2611, 0.0
        %v4531 = vmax.f32 %v3056, 0.0
        %v4532 = vmax.f32 %v3501, 0.0
        %v4533 = vmax.f32 %v3946, 0.0
        %v4534 = vmax.f32 %v4391, 0.0
        %v4535 = vmax.f32 %v2613, 0.0
        %v4536 = vmax.f32 %v3058, 0.0
        %v4537 = vmax.f32 %v3503, 0.0
        %v4538 = vmax.f32 %v3948, 0.0
        %v4539 = vmax.f32 %v4393, 0.0
        %v4540 = vmax.f32 %v2616, 0.0
        %v4541 = vmax.f32 %v3061, 0.0
        %v4542 = vmax.f32 %v3506, 0.0
        %v4543 = vmax.f32 %v3951, 0.0
        %v4544 = vmax.f32 %v4396, 0.0
        %v4545 = vmax.f32 %v2618, 0.0
        %v4546 = vmax.f32 %v3063, 0.0
        %v4547 = vmax.f32 %v3508, 0.0
        %v4548 = vmax.f32 %v3953, 0.0
        %v4549 = vmax.f32 %v4398, 0.0
        %v4550 = vmax.f32 %v2621, 0.0
        %v4551 = vmax.f32 %v3066, 0.0
        %v4552 = vmax.f32 %v3511, 0.0
        %v4553 = vmax.f32 %v3956, 0.0
        %v4554 = vmax.f32 %v4401, 0.0
        %v4555 = vmax.f32 %v2623, 0.0
        %v4556 = vmax.f32 %v3068, 0.0
        %v4557 = vmax.f32 %v3513, 0.0
        %v4558 = vmax.f32 %v3958, 0.0
        %v4559 = vmax.f32 %v4403, 0.0
        %v4560 = vmax.f32 %v2626, 0.0
        %v4561 = vmax.f32 %v3071, 0.0
        %v4562 = vmax.f32 %v3516, 0.0
        %v4563 = vmax.f32 %v3961, 0.0
        %v4564 = vmax.f32 %v4406, 0.0
        %v4565 = vmax.f32 %v2628, 0.0
        %v4566 = vmax.f32 %v3073, 0.0
        %v4567 = vmax.f32 %v3518, 0.0
        %v4568 = vmax.f32 %v3963, 0.0
        %v4569 = vmax.f32 %v4408, 0.0
        %v4570 = vpack.c.bf16 %v4415, %v4410
        %v4571 = vpack.c.bf16 %v4416, %v4411
        %v4572 = vpack.c.bf16 %v4417, %v4412
        %v4573 = vpack.c.bf16 %v4418, %v4413
        %v4574 = vpack.c.bf16 %v4419, %v4414
        %v4575 = vpack.c.bf16 %v4425, %v4420
        %v4576 = vpack.c.bf16 %v4426, %v4421
        %v4577 = vpack.c.bf16 %v4427, %v4422
        %v4578 = vpack.c.bf16 %v4428, %v4423
        %v4579 = vpack.c.bf16 %v4429, %v4424
        %v4580 = vpack.c.bf16 %v4435, %v4430
        %v4581 = vpack.c.bf16 %v4436, %v4431
        %v4582 = vpack.c.bf16 %v4437, %v4432
        %v4583 = vpack.c.bf16 %v4438, %v4433
        %v4584 = vpack.c.bf16 %v4439, %v4434
        %v4585 = vpack.c.bf16 %v4445, %v4440
        %v4586 = vpack.c.bf16 %v4446, %v4441
        %v4587 = vpack.c.bf16 %v4447, %v4442
        %v4588 = vpack.c.bf16 %v4448, %v4443
        %v4589 = vpack.c.bf16 %v4449, %v4444
        %v4590 = vpack.c.bf16 %v4455, %v4450
        %v4591 = vpack.c.bf16 %v4456, %v4451
        %v4592 = vpack.c.bf16 %v4457, %v4452
        %v4593 = vpack.c.bf16 %v4458, %v4453
        %v4594 = vpack.c.bf16 %v4459, %v4454
        %v4595 = vpack.c.bf16 %v4465, %v4460
        %v4596 = vpack.c.bf16 %v4466, %v4461
        %v4597 = vpack.c.bf16 %v4467, %v4462
        %v4598 = vpack.c.bf16 %v4468, %v4463
        %v4599 = vpack.c.bf16 %v4469, %v4464
        %v4600 = vpack.c.bf16 %v4475, %v4470
        %v4601 = vpack.c.bf16 %v4476, %v4471
        %v4602 = vpack.c.bf16 %v4477, %v4472
        %v4603 = vpack.c.bf16 %v4478, %v4473
        %v4604 = vpack.c.bf16 %v4479, %v4474
        %v4605 = vpack.c.bf16 %v4485, %v4480
        %v4606 = vpack.c.bf16 %v4486, %v4481
        %v4607 = vpack.c.bf16 %v4487, %v4482
        %v4608 = vpack.c.bf16 %v4488, %v4483
        %v4609 = vpack.c.bf16 %v4489, %v4484
        %v4610 = vpack.c.bf16 %v4495, %v4490
        %v4611 = vpack.c.bf16 %v4496, %v4491
        %v4612 = vpack.c.bf16 %v4497, %v4492
        %v4613 = vpack.c.bf16 %v4498, %v4493
        %v4614 = vpack.c.bf16 %v4499, %v4494
        %v4615 = vpack.c.bf16 %v4505, %v4500
        %v4616 = vpack.c.bf16 %v4506, %v4501
        %v4617 = vpack.c.bf16 %v4507, %v4502
        %v4618 = vpack.c.bf16 %v4508, %v4503
        %v4619 = vpack.c.bf16 %v4509, %v4504
        %v4620 = vpack.c.bf16 %v4515, %v4510
        %v4621 = vpack.c.bf16 %v4516, %v4511
        %v4622 = vpack.c.bf16 %v4517, %v4512
        %v4623 = vpack.c.bf16 %v4518, %v4513
        %v4624 = vpack.c.bf16 %v4519, %v4514
        %v4625 = vpack.c.bf16 %v4525, %v4520
        %v4626 = vpack.c.bf16 %v4526, %v4521
        %v4627 = vpack.c.bf16 %v4527, %v4522
        %v4628 = vpack.c.bf16 %v4528, %v4523
        %v4629 = vpack.c.bf16 %v4529, %v4524
        %v4630 = vpack.c.bf16 %v4535, %v4530
        %v4631 = vpack.c.bf16 %v4536, %v4531
        %v4632 = vpack.c.bf16 %v4537, %v4532
        %v4633 = vpack.c.bf16 %v4538, %v4533
        %v4634 = vpack.c.bf16 %v4539, %v4534
        %v4635 = vpack.c.bf16 %v4545, %v4540
        %v4636 = vpack.c.bf16 %v4546, %v4541
        %v4637 = vpack.c.bf16 %v4547, %v4542
        %v4638 = vpack.c.bf16 %v4548, %v4543
        %v4639 = vpack.c.bf16 %v4549, %v4544
        %v4640 = vpack.c.bf16 %v4555, %v4550
        %v4641 = vpack.c.bf16 %v4556, %v4551
        %v4642 = vpack.c.bf16 %v4557, %v4552
        %v4643 = vpack.c.bf16 %v4558, %v4553
        %v4644 = vpack.c.bf16 %v4559, %v4554
        %v4645 = vpack.c.bf16 %v4565, %v4560
        %v4646 = vpack.c.bf16 %v4566, %v4561
        %v4647 = vpack.c.bf16 %v4567, %v4562
        %v4648 = vpack.c.bf16 %v4568, %v4563
        %v4649 = vpack.c.bf16 %v4569, %v4564
        %v4650 = vld [vmem:[#allocation8] sm:$0xff]
        %v4651 = vld [vmem:[#allocation8 + $0x8] sm:$0xff]
        %v4652 = vld [vmem:[#allocation8 + $0x10] sm:$0xf]
        %v4653 = vld [vmem:[#allocation8 + $0x14] sm:$0xff]
        %v4654 = vld [vmem:[#allocation8 + $0x1c] sm:$0xff]
        %v4655 = vld [vmem:[#allocation8 + $0x24] sm:$0xf]
        %v4656 = vld [vmem:[#allocation8 + $0x28] sm:$0xff]
        %v4657 = vld [vmem:[#allocation8 + $0x30] sm:$0xff]
        %v4658 = vld [vmem:[#allocation8 + $0x38] sm:$0xf]
        %v4659 = vld [vmem:[#allocation8 + $0x3c] sm:$0xff]
        %v4660 = vld [vmem:[#allocation8 + $0x44] sm:$0xff]
        %v4661 = vld [vmem:[#allocation8 + $0x4c] sm:$0xf]
        %v4662 = vld [vmem:[#allocation8 + $0x50] sm:$0xff]
        %v4663 = vld [vmem:[#allocation8 + $0x58] sm:$0xff]
        %v4664 = vld [vmem:[#allocation8 + $0x60] sm:$0xf]
        %v4665 = vld [vmem:[#allocation8 + $0x64] sm:$0xff]
        %v4666 = vld [vmem:[#allocation8 + $0x6c] sm:$0xff]
        %v4667 = vld [vmem:[#allocation8 + $0x74] sm:$0xf]
        %v4668 = vld [vmem:[#allocation8 + $0x78] sm:$0xff]
        %v4669 = vld [vmem:[#allocation8 + $0x80] sm:$0xff]
        %v4670 = vld [vmem:[#allocation8 + $0x88] sm:$0xf]
        %v4671 = vld [vmem:[#allocation8 + $0x8c] sm:$0xff]
        %v4672 = vld [vmem:[#allocation8 + $0x94] sm:$0xff]
        %v4673 = vld [vmem:[#allocation8 + $0x9c] sm:$0xf]
        %v4674 = vld [vmem:[#allocation8 + $0xa0] sm:$0xff]
        %v4675 = vld [vmem:[#allocation8 + $0xa8] sm:$0xff]
        %v4676 = vld [vmem:[#allocation8 + $0xb0] sm:$0xf]
        %v4677 = vld [vmem:[#allocation8 + $0xb4] sm:$0xff]
        %v4678 = vld [vmem:[#allocation8 + $0xbc] sm:$0xff]
        %v4679 = vld [vmem:[#allocation8 + $0xc4] sm:$0xf]
        %v4680 = vld [vmem:[#allocation8 + $0xc8] sm:$0xff]
        %v4681 = vld [vmem:[#allocation8 + $0xd0] sm:$0xff]
        %v4682 = vld [vmem:[#allocation8 + $0xd8] sm:$0xf]
        %v4683 = vld [vmem:[#allocation8 + $0xdc] sm:$0xff]
        %v4684 = vld [vmem:[#allocation8 + $0xe4] sm:$0xff]
        %v4685 = vld [vmem:[#allocation8 + $0xec] sm:$0xf]
        %v4686 = vld [vmem:[#allocation8 + $0xf0] sm:$0xff]
        %v4687 = vld [vmem:[#allocation8 + $0xf8] sm:$0xff]
        %v4688 = vld [vmem:[#allocation8 + $0x100] sm:$0xf]
        %v4689 = vld [vmem:[#allocation8 + $0x104] sm:$0xff]
        %v4690 = vld [vmem:[#allocation8 + $0x10c] sm:$0xff]
        %v4691 = vld [vmem:[#allocation8 + $0x114] sm:$0xf]
        %v4692 = vld [vmem:[#allocation8 + $0x118] sm:$0xff]
        %v4693 = vld [vmem:[#allocation8 + $0x120] sm:$0xff]
        %v4694 = vld [vmem:[#allocation8 + $0x128] sm:$0xf]
        %v4695 = vld [vmem:[#allocation8 + $0x12c] sm:$0xff]
        %v4696 = vld [vmem:[#allocation8 + $0x134] sm:$0xff]
        %v4697 = vld [vmem:[#allocation8 + $0x13c] sm:$0xf]
        %v4698 = vld [vmem:[#allocation8 + $0x140] sm:$0xff]
        %v4699 = vld [vmem:[#allocation8 + $0x148] sm:$0xff]
        %v4700 = vld [vmem:[#allocation8 + $0x150] sm:$0xf]
        %v4701 = vld [vmem:[#allocation8 + $0x154] sm:$0xff]
        %v4702 = vld [vmem:[#allocation8 + $0x15c] sm:$0xff]
        %v4703 = vld [vmem:[#allocation8 + $0x164] sm:$0xf]
        %v4704 = vld [vmem:[#allocation8 + $0x168] sm:$0xff]
        %v4705 = vld [vmem:[#allocation8 + $0x170] sm:$0xff]
        %v4706 = vld [vmem:[#allocation8 + $0x178] sm:$0xf]
        %v4707 = vld [vmem:[#allocation8 + $0x17c] sm:$0xff]
        %v4708 = vld [vmem:[#allocation8 + $0x184] sm:$0xff]
        %v4709 = vld [vmem:[#allocation8 + $0x18c] sm:$0xf]
        %v4710 = vld [vmem:[#allocation8 + $0x190] sm:$0xff]
        %v4711 = vld [vmem:[#allocation8 + $0x198] sm:$0xff]
        %v4712 = vld [vmem:[#allocation8 + $0x1a0] sm:$0xf]
        %v4713 = vld [vmem:[#allocation8 + $0x1a4] sm:$0xff]
        %v4714 = vld [vmem:[#allocation8 + $0x1ac] sm:$0xff]
        %v4715 = vld [vmem:[#allocation8 + $0x1b4] sm:$0xf]
        %v4716 = vld [vmem:[#allocation8 + $0x1b8] sm:$0xff]
        %v4717 = vld [vmem:[#allocation8 + $0x1c0] sm:$0xff]
        %v4718 = vld [vmem:[#allocation8 + $0x1c8] sm:$0xf]
        %v4719 = vld [vmem:[#allocation8 + $0x1cc] sm:$0xff]
        %v4720 = vld [vmem:[#allocation8 + $0x1d4] sm:$0xff]
        %v4721 = vld [vmem:[#allocation8 + $0x1dc] sm:$0xf]
        %v4722 = vld [vmem:[#allocation8 + $0x1e0] sm:$0xff]
        %v4723 = vld [vmem:[#allocation8 + $0x1e8] sm:$0xff]
        %v4724 = vld [vmem:[#allocation8 + $0x1f0] sm:$0xf]
        %v4725 = vld [vmem:[#allocation8 + $0x1f4] sm:$0xff]
        %v4726 = vld [vmem:[#allocation8 + $0x1fc] sm:$0xff]
        %v4727 = vld [vmem:[#allocation8 + $0x204] sm:$0xf]
        %v4728 = vld [vmem:[#allocation8 + $0x208] sm:$0xff]
        %v4729 = vld [vmem:[#allocation8 + $0x210] sm:$0xff]
        %v4730 = vld [vmem:[#allocation8 + $0x218] sm:$0xf]
        %v4731 = vld [vmem:[#allocation8 + $0x21c] sm:$0xff]
        %v4732 = vld [vmem:[#allocation8 + $0x224] sm:$0xff]
        %v4733 = vld [vmem:[#allocation8 + $0x22c] sm:$0xf]
        %v4734 = vld [vmem:[#allocation8 + $0x230] sm:$0xff]
        %v4735 = vld [vmem:[#allocation8 + $0x238] sm:$0xff]
        %v4736 = vld [vmem:[#allocation8 + $0x240] sm:$0xf]
        %v4737 = vld [vmem:[#allocation8 + $0x244] sm:$0xff]
        %v4738 = vld [vmem:[#allocation8 + $0x24c] sm:$0xff]
        %v4739 = vld [vmem:[#allocation8 + $0x254] sm:$0xf]
        %v4740 = vld [vmem:[#allocation8 + $0x258] sm:$0xff]
        %v4741 = vld [vmem:[#allocation8 + $0x260] sm:$0xff]
        %v4742 = vld [vmem:[#allocation8 + $0x268] sm:$0xf]
        %v4743 = vld [vmem:[#allocation8 + $0x26c] sm:$0xff]
        %v4744 = vld [vmem:[#allocation8 + $0x274] sm:$0xff]
        %v4745 = vld [vmem:[#allocation8 + $0x27c] sm:$0xf]
        %v4746 = vld [vmem:[#allocation8 + $0x280] sm:$0xff]
        %v4747 = vld [vmem:[#allocation8 + $0x288] sm:$0xff]
        %v4748 = vld [vmem:[#allocation8 + $0x290] sm:$0xf]
        %v4749 = vld [vmem:[#allocation8 + $0x294] sm:$0xff]
        %v4750 = vld [vmem:[#allocation8 + $0x29c] sm:$0xff]
        %v4751 = vld [vmem:[#allocation8 + $0x2a4] sm:$0xf]
        %v4752 = vld [vmem:[#allocation8 + $0x2a8] sm:$0xff]
        %v4753 = vld [vmem:[#allocation8 + $0x2b0] sm:$0xff]
        %v4754 = vld [vmem:[#allocation8 + $0x2b8] sm:$0xf]
        %v4755 = vld [vmem:[#allocation8 + $0x2bc] sm:$0xff]
        %v4756 = vld [vmem:[#allocation8 + $0x2c4] sm:$0xff]
        %v4757 = vld [vmem:[#allocation8 + $0x2cc] sm:$0xf]
        %v4758 = vld [vmem:[#allocation8 + $0x2d0] sm:$0xff]
        %v4759 = vld [vmem:[#allocation8 + $0x2d8] sm:$0xff]
        %v4760 = vld [vmem:[#allocation8 + $0x2e0] sm:$0xf]
        %v4761 = vld [vmem:[#allocation8 + $0x2e4] sm:$0xff]
        %v4762 = vld [vmem:[#allocation8 + $0x2ec] sm:$0xff]
        %v4763 = vld [vmem:[#allocation8 + $0x2f4] sm:$0xf]
        %v4764 = vld [vmem:[#allocation8 + $0x2f8] sm:$0xff]
        %v4765 = vld [vmem:[#allocation8 + $0x300] sm:$0xff]
        %v4766 = vld [vmem:[#allocation8 + $0x308] sm:$0xf]
        %v4767 = vld [vmem:[#allocation8 + $0x30c] sm:$0xff]
        %v4768 = vld [vmem:[#allocation8 + $0x314] sm:$0xff]
        %v4769 = vld [vmem:[#allocation8 + $0x31c] sm:$0xf]
        %v4770 = vld [vmem:[#allocation8 + $0x320] sm:$0xff]
        %v4771 = vld [vmem:[#allocation8 + $0x328] sm:$0xff]
        %v4772 = vld [vmem:[#allocation8 + $0x330] sm:$0xf]
        %v4773 = vld [vmem:[#allocation8 + $0x334] sm:$0xff]
        %v4774 = vld [vmem:[#allocation8 + $0x33c] sm:$0xff]
        %v4775 = vld [vmem:[#allocation8 + $0x344] sm:$0xf]
        %v4776 = vld [vmem:[#allocation8 + $0x348] sm:$0xff]
        %v4777 = vld [vmem:[#allocation8 + $0x350] sm:$0xff]
        %v4778 = vld [vmem:[#allocation8 + $0x358] sm:$0xf]
        %v4779 = vld [vmem:[#allocation8 + $0x35c] sm:$0xff]
        %v4780 = vld [vmem:[#allocation8 + $0x364] sm:$0xff]
        %v4781 = vld [vmem:[#allocation8 + $0x36c] sm:$0xf]
        %v4782 = vld [vmem:[#allocation8 + $0x370] sm:$0xff]
        %v4783 = vld [vmem:[#allocation8 + $0x378] sm:$0xff]
        %v4784 = vld [vmem:[#allocation8 + $0x380] sm:$0xf]
        %v4785 = vld [vmem:[#allocation8 + $0x384] sm:$0xff]
        %v4786 = vld [vmem:[#allocation8 + $0x38c] sm:$0xff]
        %v4787 = vld [vmem:[#allocation8 + $0x394] sm:$0xf]
        %v4788 = vld [vmem:[#allocation8 + $0x398] sm:$0xff]
        %v4789 = vld [vmem:[#allocation8 + $0x3a0] sm:$0xff]
        %v4790 = vld [vmem:[#allocation8 + $0x3a8] sm:$0xf]
        %v4791 = vld [vmem:[#allocation8 + $0x3ac] sm:$0xff]
        %v4792 = vld [vmem:[#allocation8 + $0x3b4] sm:$0xff]
        %v4793 = vld [vmem:[#allocation8 + $0x3bc] sm:$0xf]
        %v4794 = vld [vmem:[#allocation8 + $0x3c0] sm:$0xff]
        %v4795 = vld [vmem:[#allocation8 + $0x3c8] sm:$0xff]
        %v4796 = vld [vmem:[#allocation8 + $0x3d0] sm:$0xf]
        %v4797 = vld [vmem:[#allocation8 + $0x3d4] sm:$0xff]
        %v4798 = vld [vmem:[#allocation8 + $0x3dc] sm:$0xff]
        %v4799 = vld [vmem:[#allocation8 + $0x3e4] sm:$0xf]
        %v4800 = vld [vmem:[#allocation8 + $0x3e8] sm:$0xff]
        %v4801 = vld [vmem:[#allocation8 + $0x3f0] sm:$0xff]
        %v4802 = vld [vmem:[#allocation8 + $0x3f8] sm:$0xf]
        %v4803 = vld [vmem:[#allocation8 + $0x3fc] sm:$0xff]
        %v4804 = vld [vmem:[#allocation8 + $0x404] sm:$0xff]
        %v4805 = vld [vmem:[#allocation8 + $0x40c] sm:$0xf]
        %v4806 = vld [vmem:[#allocation8 + $0x410] sm:$0xff]
        %v4807 = vld [vmem:[#allocation8 + $0x418] sm:$0xff]
        %v4808 = vld [vmem:[#allocation8 + $0x420] sm:$0xf]
        %v4809 = vld [vmem:[#allocation8 + $0x424] sm:$0xff]
        %v4810 = vld [vmem:[#allocation8 + $0x42c] sm:$0xff]
        %v4811 = vld [vmem:[#allocation8 + $0x434] sm:$0xf]
        %v4812 = vld [vmem:[#allocation8 + $0x438] sm:$0xff]
        %v4813 = vld [vmem:[#allocation8 + $0x440] sm:$0xff]
        %v4814 = vld [vmem:[#allocation8 + $0x448] sm:$0xf]
        %v4815 = vld [vmem:[#allocation8 + $0x44c] sm:$0xff]
        %v4816 = vld [vmem:[#allocation8 + $0x454] sm:$0xff]
        %v4817 = vld [vmem:[#allocation8 + $0x45c] sm:$0xf]
        %v4818 = vld [vmem:[#allocation8 + $0x460] sm:$0xff]
        %v4819 = vld [vmem:[#allocation8 + $0x468] sm:$0xff]
        %v4820 = vld [vmem:[#allocation8 + $0x470] sm:$0xf]
        %v4821 = vld [vmem:[#allocation8 + $0x474] sm:$0xff]
        %v4822 = vld [vmem:[#allocation8 + $0x47c] sm:$0xff]
        %v4823 = vld [vmem:[#allocation8 + $0x484] sm:$0xf]
        %v4824 = vld [vmem:[#allocation8 + $0x488] sm:$0xff]
        %v4825 = vld [vmem:[#allocation8 + $0x490] sm:$0xff]
        %v4826 = vld [vmem:[#allocation8 + $0x498] sm:$0xf]
        %v4827 = vld [vmem:[#allocation8 + $0x49c] sm:$0xff]
        %v4828 = vld [vmem:[#allocation8 + $0x4a4] sm:$0xff]
        %v4829 = vld [vmem:[#allocation8 + $0x4ac] sm:$0xf]
        %v4830 = vld [vmem:[#allocation8 + $0x4b0] sm:$0xff]
        %v4831 = vld [vmem:[#allocation8 + $0x4b8] sm:$0xff]
        %v4832 = vld [vmem:[#allocation8 + $0x4c0] sm:$0xf]
        %v4833 = vld [vmem:[#allocation8 + $0x4c4] sm:$0xff]
        %v4834 = vld [vmem:[#allocation8 + $0x4cc] sm:$0xff]
        %v4835 = vld [vmem:[#allocation8 + $0x4d4] sm:$0xf]
        %v4836 = vld [vmem:[#allocation8 + $0x4d8] sm:$0xff]
        %v4837 = vld [vmem:[#allocation8 + $0x4e0] sm:$0xff]
        %v4838 = vld [vmem:[#allocation8 + $0x4e8] sm:$0xf]
        %v4839 = vld [vmem:[#allocation8 + $0x4ec] sm:$0xff]
        %v4840 = vld [vmem:[#allocation8 + $0x4f4] sm:$0xff]
        %v4841 = vld [vmem:[#allocation8 + $0x4fc] sm:$0xf]
        %v4842 = vld [vmem:[#allocation8 + $0x500] sm:$0xff]
        %v4843 = vld [vmem:[#allocation8 + $0x508] sm:$0xff]
        %v4844 = vld [vmem:[#allocation8 + $0x510] sm:$0xf]
        %v4845 = vld [vmem:[#allocation8 + $0x514] sm:$0xff]
        %v4846 = vld [vmem:[#allocation8 + $0x51c] sm:$0xff]
        %v4847 = vld [vmem:[#allocation8 + $0x524] sm:$0xf]
        %v4848 = vld [vmem:[#allocation8 + $0x528] sm:$0xff]
        %v4849 = vld [vmem:[#allocation8 + $0x530] sm:$0xff]
        %v4850 = vld [vmem:[#allocation8 + $0x538] sm:$0xf]
        %v4851 = vld [vmem:[#allocation8 + $0x53c] sm:$0xff]
        %v4852 = vld [vmem:[#allocation8 + $0x544] sm:$0xff]
        %v4853 = vld [vmem:[#allocation8 + $0x54c] sm:$0xf]
        %v4854 = vld [vmem:[#allocation8 + $0x550] sm:$0xff]
        %v4855 = vld [vmem:[#allocation8 + $0x558] sm:$0xff]
        %v4856 = vld [vmem:[#allocation8 + $0x560] sm:$0xf]
        %v4857 = vld [vmem:[#allocation8 + $0x564] sm:$0xff]
        %v4858 = vld [vmem:[#allocation8 + $0x56c] sm:$0xff]
        %v4859 = vld [vmem:[#allocation8 + $0x574] sm:$0xf]
        %v4860 = vld [vmem:[#allocation8 + $0x578] sm:$0xff]
        %v4861 = vld [vmem:[#allocation8 + $0x580] sm:$0xff]
        %v4862 = vld [vmem:[#allocation8 + $0x588] sm:$0xf]
        %v4863 = vld [vmem:[#allocation8 + $0x58c] sm:$0xff]
        %v4864 = vld [vmem:[#allocation8 + $0x594] sm:$0xff]
        %v4865 = vld [vmem:[#allocation8 + $0x59c] sm:$0xf]
        %v4866 = vld [vmem:[#allocation8 + $0x5a0] sm:$0xff]
        %v4867 = vld [vmem:[#allocation8 + $0x5a8] sm:$0xff]
        %v4868 = vld [vmem:[#allocation8 + $0x5b0] sm:$0xf]
        %v4869 = vld [vmem:[#allocation8 + $0x5b4] sm:$0xff]
        %v4870 = vld [vmem:[#allocation8 + $0x5bc] sm:$0xff]
        %v4871 = vld [vmem:[#allocation8 + $0x5c4] sm:$0xf]
        %v4872 = vld [vmem:[#allocation8 + $0x5c8] sm:$0xff]
        %v4873 = vld [vmem:[#allocation8 + $0x5d0] sm:$0xff]
        %v4874 = vld [vmem:[#allocation8 + $0x5d8] sm:$0xf]
        %v4875 = vld [vmem:[#allocation8 + $0x5dc] sm:$0xff]
        %v4876 = vld [vmem:[#allocation8 + $0x5e4] sm:$0xff]
        %v4877 = vld [vmem:[#allocation8 + $0x5ec] sm:$0xf]
        %v4878 = vld [vmem:[#allocation8 + $0x5f0] sm:$0xff]
        %v4879 = vld [vmem:[#allocation8 + $0x5f8] sm:$0xff]
        %v4880 = vld [vmem:[#allocation8 + $0x600] sm:$0xf]
        %v4881 = vld [vmem:[#allocation8 + $0x604] sm:$0xff]
        %v4882 = vld [vmem:[#allocation8 + $0x60c] sm:$0xff]
        %v4883 = vld [vmem:[#allocation8 + $0x614] sm:$0xf]
        %v4884 = vld [vmem:[#allocation8 + $0x618] sm:$0xff]
        %v4885 = vld [vmem:[#allocation8 + $0x620] sm:$0xff]
        %v4886 = vld [vmem:[#allocation8 + $0x628] sm:$0xf]
        %v4887 = vld [vmem:[#allocation8 + $0x62c] sm:$0xff]
        %v4888 = vld [vmem:[#allocation8 + $0x634] sm:$0xff]
        %v4889 = vld [vmem:[#allocation8 + $0x63c] sm:$0xf]
        %v4890 = vld [vmem:[#allocation10] sm:$0x1f]
        %v4892 = vperm.slane %v4890, 0
        %v4893 = vperm.slane %v4890, 1
        %v4894 = vperm.slane %v4890, 2
        %v4895 = vperm.slane %v4890, 3
        %v4896 = vperm.slane %v4890, 4
        %v5142 = vunpack.c.l.b16 %v4650
        %v5143 = vunpack.c.h.b16 %v4650
        %v5144 = vunpack.c.l.b16 %v4651
        %v5145 = vunpack.c.h.b16 %v4651
        %v5146 = vunpack.c.l.b16 %v4652
        %v5147 = vunpack.c.l.b16 %v4653
        %v5148 = vunpack.c.h.b16 %v4653
        %v5149 = vunpack.c.l.b16 %v4654
        %v5150 = vunpack.c.h.b16 %v4654
        %v5151 = vunpack.c.l.b16 %v4655
        %v5152 = vunpack.c.l.b16 %v4656
        %v5153 = vunpack.c.h.b16 %v4656
        %v5154 = vunpack.c.l.b16 %v4657
        %v5155 = vunpack.c.h.b16 %v4657
        %v5156 = vunpack.c.l.b16 %v4658
        %v5157 = vunpack.c.l.b16 %v4659
        %v5158 = vunpack.c.h.b16 %v4659
        %v5159 = vunpack.c.l.b16 %v4660
        %v5160 = vunpack.c.h.b16 %v4660
        %v5161 = vunpack.c.l.b16 %v4661
        %v5162 = vunpack.c.l.b16 %v4662
        %v5163 = vunpack.c.h.b16 %v4662
        %v5164 = vunpack.c.l.b16 %v4663
        %v5165 = vunpack.c.h.b16 %v4663
        %v5166 = vunpack.c.l.b16 %v4664
        %v5167 = vunpack.c.l.b16 %v4665
        %v5168 = vunpack.c.h.b16 %v4665
        %v5169 = vunpack.c.l.b16 %v4666
        %v5170 = vunpack.c.h.b16 %v4666
        %v5171 = vunpack.c.l.b16 %v4667
        %v5172 = vunpack.c.l.b16 %v4668
        %v5173 = vunpack.c.h.b16 %v4668
        %v5174 = vunpack.c.l.b16 %v4669
        %v5175 = vunpack.c.h.b16 %v4669
        %v5176 = vunpack.c.l.b16 %v4670
        %v5177 = vunpack.c.l.b16 %v4671
        %v5178 = vunpack.c.h.b16 %v4671
        %v5179 = vunpack.c.l.b16 %v4672
        %v5180 = vunpack.c.h.b16 %v4672
        %v5181 = vunpack.c.l.b16 %v4673
        %v5182 = vunpack.c.l.b16 %v4674
        %v5183 = vunpack.c.h.b16 %v4674
        %v5184 = vunpack.c.l.b16 %v4675
        %v5185 = vunpack.c.h.b16 %v4675
        %v5186 = vunpack.c.l.b16 %v4676
        %v5187 = vunpack.c.l.b16 %v4677
        %v5188 = vunpack.c.h.b16 %v4677
        %v5189 = vunpack.c.l.b16 %v4678
        %v5190 = vunpack.c.h.b16 %v4678
        %v5191 = vunpack.c.l.b16 %v4679
        %v5192 = vunpack.c.l.b16 %v4680
        %v5193 = vunpack.c.h.b16 %v4680
        %v5194 = vunpack.c.l.b16 %v4681
        %v5195 = vunpack.c.h.b16 %v4681
        %v5196 = vunpack.c.l.b16 %v4682
        %v5197 = vunpack.c.l.b16 %v4683
        %v5198 = vunpack.c.h.b16 %v4683
        %v5199 = vunpack.c.l.b16 %v4684
        %v5200 = vunpack.c.h.b16 %v4684
        %v5201 = vunpack.c.l.b16 %v4685
        %v5202 = vunpack.c.l.b16 %v4686
        %v5203 = vunpack.c.h.b16 %v4686
        %v5204 = vunpack.c.l.b16 %v4687
        %v5205 = vunpack.c.h.b16 %v4687
        %v5206 = vunpack.c.l.b16 %v4688
        %v5207 = vunpack.c.l.b16 %v4689
        %v5208 = vunpack.c.h.b16 %v4689
        %v5209 = vunpack.c.l.b16 %v4690
        %v5210 = vunpack.c.h.b16 %v4690
        %v5211 = vunpack.c.l.b16 %v4691
        %v5212 = vunpack.c.l.b16 %v4692
        %v5213 = vunpack.c.h.b16 %v4692
        %v5214 = vunpack.c.l.b16 %v4693
        %v5215 = vunpack.c.h.b16 %v4693
        %v5216 = vunpack.c.l.b16 %v4694
        %v5217 = vunpack.c.l.b16 %v4695
        %v5218 = vunpack.c.h.b16 %v4695
        %v5219 = vunpack.c.l.b16 %v4696
        %v5220 = vunpack.c.h.b16 %v4696
        %v5221 = vunpack.c.l.b16 %v4697
        %v5222 = vunpack.c.l.b16 %v4698
        %v5223 = vunpack.c.h.b16 %v4698
        %v5224 = vunpack.c.l.b16 %v4699
        %v5225 = vunpack.c.h.b16 %v4699
        %v5226 = vunpack.c.l.b16 %v4700
        %v5227 = vunpack.c.l.b16 %v4701
        %v5228 = vunpack.c.h.b16 %v4701
        %v5229 = vunpack.c.l.b16 %v4702
        %v5230 = vunpack.c.h.b16 %v4702
        %v5231 = vunpack.c.l.b16 %v4703
        %v5232 = vunpack.c.l.b16 %v4704
        %v5233 = vunpack.c.h.b16 %v4704
        %v5234 = vunpack.c.l.b16 %v4705
        %v5235 = vunpack.c.h.b16 %v4705
        %v5236 = vunpack.c.l.b16 %v4706
        %v5237 = vunpack.c.l.b16 %v4707
        %v5238 = vunpack.c.h.b16 %v4707
        %v5239 = vunpack.c.l.b16 %v4708
        %v5240 = vunpack.c.h.b16 %v4708
        %v5241 = vunpack.c.l.b16 %v4709
        %v5242 = vunpack.c.l.b16 %v4710
        %v5243 = vunpack.c.h.b16 %v4710
        %v5244 = vunpack.c.l.b16 %v4711
        %v5245 = vunpack.c.h.b16 %v4711
        %v5246 = vunpack.c.l.b16 %v4712
        %v5247 = vunpack.c.l.b16 %v4713
        %v5248 = vunpack.c.h.b16 %v4713
        %v5249 = vunpack.c.l.b16 %v4714
        %v5250 = vunpack.c.h.b16 %v4714
        %v5251 = vunpack.c.l.b16 %v4715
        %v5252 = vunpack.c.l.b16 %v4716
        %v5253 = vunpack.c.h.b16 %v4716
        %v5254 = vunpack.c.l.b16 %v4717
        %v5255 = vunpack.c.h.b16 %v4717
        %v5256 = vunpack.c.l.b16 %v4718
        %v5257 = vunpack.c.l.b16 %v4719
        %v5258 = vunpack.c.h.b16 %v4719
        %v5259 = vunpack.c.l.b16 %v4720
        %v5260 = vunpack.c.h.b16 %v4720
        %v5261 = vunpack.c.l.b16 %v4721
        %v5262 = vunpack.c.l.b16 %v4722
        %v5263 = vunpack.c.h.b16 %v4722
        %v5264 = vunpack.c.l.b16 %v4723
        %v5265 = vunpack.c.h.b16 %v4723
        %v5266 = vunpack.c.l.b16 %v4724
        %v5267 = vunpack.c.l.b16 %v4725
        %v5268 = vunpack.c.h.b16 %v4725
        %v5269 = vunpack.c.l.b16 %v4726
        %v5270 = vunpack.c.h.b16 %v4726
        %v5271 = vunpack.c.l.b16 %v4727
        %v5272 = vunpack.c.l.b16 %v4728
        %v5273 = vunpack.c.h.b16 %v4728
        %v5274 = vunpack.c.l.b16 %v4729
        %v5275 = vunpack.c.h.b16 %v4729
        %v5276 = vunpack.c.l.b16 %v4730
        %v5277 = vunpack.c.l.b16 %v4731
        %v5278 = vunpack.c.h.b16 %v4731
        %v5279 = vunpack.c.l.b16 %v4732
        %v5280 = vunpack.c.h.b16 %v4732
        %v5281 = vunpack.c.l.b16 %v4733
        %v5282 = vunpack.c.l.b16 %v4734
        %v5283 = vunpack.c.h.b16 %v4734
        %v5284 = vunpack.c.l.b16 %v4735
        %v5285 = vunpack.c.h.b16 %v4735
        %v5286 = vunpack.c.l.b16 %v4736
        %v5287 = vunpack.c.l.b16 %v4737
        %v5288 = vunpack.c.h.b16 %v4737
        %v5289 = vunpack.c.l.b16 %v4738
        %v5290 = vunpack.c.h.b16 %v4738
        %v5291 = vunpack.c.l.b16 %v4739
        %v5292 = vunpack.c.l.b16 %v4740
        %v5293 = vunpack.c.h.b16 %v4740
        %v5294 = vunpack.c.l.b16 %v4741
        %v5295 = vunpack.c.h.b16 %v4741
        %v5296 = vunpack.c.l.b16 %v4742
        %v5297 = vunpack.c.l.b16 %v4743
        %v5298 = vunpack.c.h.b16 %v4743
        %v5299 = vunpack.c.l.b16 %v4744
        %v5300 = vunpack.c.h.b16 %v4744
        %v5301 = vunpack.c.l.b16 %v4745
        %v5302 = vunpack.c.l.b16 %v4746
        %v5303 = vunpack.c.h.b16 %v4746
        %v5304 = vunpack.c.l.b16 %v4747
        %v5305 = vunpack.c.h.b16 %v4747
        %v5306 = vunpack.c.l.b16 %v4748
        %v5307 = vunpack.c.l.b16 %v4749
        %v5308 = vunpack.c.h.b16 %v4749
        %v5309 = vunpack.c.l.b16 %v4750
        %v5310 = vunpack.c.h.b16 %v4750
        %v5311 = vunpack.c.l.b16 %v4751
        %v5312 = vunpack.c.l.b16 %v4752
        %v5313 = vunpack.c.h.b16 %v4752
        %v5314 = vunpack.c.l.b16 %v4753
        %v5315 = vunpack.c.h.b16 %v4753
        %v5316 = vunpack.c.l.b16 %v4754
        %v5317 = vunpack.c.l.b16 %v4755
        %v5318 = vunpack.c.h.b16 %v4755
        %v5319 = vunpack.c.l.b16 %v4756
        %v5320 = vunpack.c.h.b16 %v4756
        %v5321 = vunpack.c.l.b16 %v4757
        %v5322 = vunpack.c.l.b16 %v4758
        %v5323 = vunpack.c.h.b16 %v4758
        %v5324 = vunpack.c.l.b16 %v4759
        %v5325 = vunpack.c.h.b16 %v4759
        %v5326 = vunpack.c.l.b16 %v4760
        %v5327 = vunpack.c.l.b16 %v4761
        %v5328 = vunpack.c.h.b16 %v4761
        %v5329 = vunpack.c.l.b16 %v4762
        %v5330 = vunpack.c.h.b16 %v4762
        %v5331 = vunpack.c.l.b16 %v4763
        %v5332 = vunpack.c.l.b16 %v4764
        %v5333 = vunpack.c.h.b16 %v4764
        %v5334 = vunpack.c.l.b16 %v4765
        %v5335 = vunpack.c.h.b16 %v4765
        %v5336 = vunpack.c.l.b16 %v4766
        %v5337 = vunpack.c.l.b16 %v4767
        %v5338 = vunpack.c.h.b16 %v4767
        %v5339 = vunpack.c.l.b16 %v4768
        %v5340 = vunpack.c.h.b16 %v4768
        %v5341 = vunpack.c.l.b16 %v4769
        %v5342 = vunpack.c.l.b16 %v4770
        %v5343 = vunpack.c.h.b16 %v4770
        %v5344 = vunpack.c.l.b16 %v4771
        %v5345 = vunpack.c.h.b16 %v4771
        %v5346 = vunpack.c.l.b16 %v4772
        %v5347 = vunpack.c.l.b16 %v4773
        %v5348 = vunpack.c.h.b16 %v4773
        %v5349 = vunpack.c.l.b16 %v4774
        %v5350 = vunpack.c.h.b16 %v4774
        %v5351 = vunpack.c.l.b16 %v4775
        %v5352 = vunpack.c.l.b16 %v4776
        %v5353 = vunpack.c.h.b16 %v4776
        %v5354 = vunpack.c.l.b16 %v4777
        %v5355 = vunpack.c.h.b16 %v4777
        %v5356 = vunpack.c.l.b16 %v4778
        %v5357 = vunpack.c.l.b16 %v4779
        %v5358 = vunpack.c.h.b16 %v4779
        %v5359 = vunpack.c.l.b16 %v4780
        %v5360 = vunpack.c.h.b16 %v4780
        %v5361 = vunpack.c.l.b16 %v4781
        %v5362 = vunpack.c.l.b16 %v4782
        %v5363 = vunpack.c.h.b16 %v4782
        %v5364 = vunpack.c.l.b16 %v4783
        %v5365 = vunpack.c.h.b16 %v4783
        %v5366 = vunpack.c.l.b16 %v4784
        %v5367 = vunpack.c.l.b16 %v4785
        %v5368 = vunpack.c.h.b16 %v4785
        %v5369 = vunpack.c.l.b16 %v4786
        %v5370 = vunpack.c.h.b16 %v4786
        %v5371 = vunpack.c.l.b16 %v4787
        %v5372 = vunpack.c.l.b16 %v4788
        %v5373 = vunpack.c.h.b16 %v4788
        %v5374 = vunpack.c.l.b16 %v4789
        %v5375 = vunpack.c.h.b16 %v4789
        %v5376 = vunpack.c.l.b16 %v4790
        %v5377 = vunpack.c.l.b16 %v4791
        %v5378 = vunpack.c.h.b16 %v4791
        %v5379 = vunpack.c.l.b16 %v4792
        %v5380 = vunpack.c.h.b16 %v4792
        %v5381 = vunpack.c.l.b16 %v4793
        %v5382 = vunpack.c.l.b16 %v4794
        %v5383 = vunpack.c.h.b16 %v4794
        %v5384 = vunpack.c.l.b16 %v4795
        %v5385 = vunpack.c.h.b16 %v4795
        %v5386 = vunpack.c.l.b16 %v4796
        %v5387 = vunpack.c.l.b16 %v4797
        %v5388 = vunpack.c.h.b16 %v4797
        %v5389 = vunpack.c.l.b16 %v4798
        %v5390 = vunpack.c.h.b16 %v4798
        %v5391 = vunpack.c.l.b16 %v4799
        %v5392 = vunpack.c.l.b16 %v4800
        %v5393 = vunpack.c.h.b16 %v4800
        %v5394 = vunpack.c.l.b16 %v4801
        %v5395 = vunpack.c.h.b16 %v4801
        %v5396 = vunpack.c.l.b16 %v4802
        %v5397 = vunpack.c.l.b16 %v4803
        %v5398 = vunpack.c.h.b16 %v4803
        %v5399 = vunpack.c.l.b16 %v4804
        %v5400 = vunpack.c.h.b16 %v4804
        %v5401 = vunpack.c.l.b16 %v4805
        %v5402 = vunpack.c.l.b16 %v4806
        %v5403 = vunpack.c.h.b16 %v4806
        %v5404 = vunpack.c.l.b16 %v4807
        %v5405 = vunpack.c.h.b16 %v4807
        %v5406 = vunpack.c.l.b16 %v4808
        %v5407 = vunpack.c.l.b16 %v4809
        %v5408 = vunpack.c.h.b16 %v4809
        %v5409 = vunpack.c.l.b16 %v4810
        %v5410 = vunpack.c.h.b16 %v4810
        %v5411 = vunpack.c.l.b16 %v4811
        %v5412 = vunpack.c.l.b16 %v4812
        %v5413 = vunpack.c.h.b16 %v4812
        %v5414 = vunpack.c.l.b16 %v4813
        %v5415 = vunpack.c.h.b16 %v4813
        %v5416 = vunpack.c.l.b16 %v4814
        %v5417 = vunpack.c.l.b16 %v4815
        %v5418 = vunpack.c.h.b16 %v4815
        %v5419 = vunpack.c.l.b16 %v4816
        %v5420 = vunpack.c.h.b16 %v4816
        %v5421 = vunpack.c.l.b16 %v4817
        %v5422 = vunpack.c.l.b16 %v4818
        %v5423 = vunpack.c.h.b16 %v4818
        %v5424 = vunpack.c.l.b16 %v4819
        %v5425 = vunpack.c.h.b16 %v4819
        %v5426 = vunpack.c.l.b16 %v4820
        %v5427 = vunpack.c.l.b16 %v4821
        %v5428 = vunpack.c.h.b16 %v4821
        %v5429 = vunpack.c.l.b16 %v4822
        %v5430 = vunpack.c.h.b16 %v4822
        %v5431 = vunpack.c.l.b16 %v4823
        %v5432 = vunpack.c.l.b16 %v4824
        %v5433 = vunpack.c.h.b16 %v4824
        %v5434 = vunpack.c.l.b16 %v4825
        %v5435 = vunpack.c.h.b16 %v4825
        %v5436 = vunpack.c.l.b16 %v4826
        %v5437 = vunpack.c.l.b16 %v4827
        %v5438 = vunpack.c.h.b16 %v4827
        %v5439 = vunpack.c.l.b16 %v4828
        %v5440 = vunpack.c.h.b16 %v4828
        %v5441 = vunpack.c.l.b16 %v4829
        %v5442 = vunpack.c.l.b16 %v4830
        %v5443 = vunpack.c.h.b16 %v4830
        %v5444 = vunpack.c.l.b16 %v4831
        %v5445 = vunpack.c.h.b16 %v4831
        %v5446 = vunpack.c.l.b16 %v4832
        %v5447 = vunpack.c.l.b16 %v4833
        %v5448 = vunpack.c.h.b16 %v4833
        %v5449 = vunpack.c.l.b16 %v4834
        %v5450 = vunpack.c.h.b16 %v4834
        %v5451 = vunpack.c.l.b16 %v4835
        %v5452 = vunpack.c.l.b16 %v4836
        %v5453 = vunpack.c.h.b16 %v4836
        %v5454 = vunpack.c.l.b16 %v4837
        %v5455 = vunpack.c.h.b16 %v4837
        %v5456 = vunpack.c.l.b16 %v4838
        %v5457 = vunpack.c.l.b16 %v4839
        %v5458 = vunpack.c.h.b16 %v4839
        %v5459 = vunpack.c.l.b16 %v4840
        %v5460 = vunpack.c.h.b16 %v4840
        %v5461 = vunpack.c.l.b16 %v4841
        %v5462 = vunpack.c.l.b16 %v4842
        %v5463 = vunpack.c.h.b16 %v4842
        %v5464 = vunpack.c.l.b16 %v4843
        %v5465 = vunpack.c.h.b16 %v4843
        %v5466 = vunpack.c.l.b16 %v4844
        %v5467 = vunpack.c.l.b16 %v4845
        %v5468 = vunpack.c.h.b16 %v4845
        %v5469 = vunpack.c.l.b16 %v4846
        %v5470 = vunpack.c.h.b16 %v4846
        %v5471 = vunpack.c.l.b16 %v4847
        %v5472 = vunpack.c.l.b16 %v4848
        %v5473 = vunpack.c.h.b16 %v4848
        %v5474 = vunpack.c.l.b16 %v4849
        %v5475 = vunpack.c.h.b16 %v4849
        %v5476 = vunpack.c.l.b16 %v4850
        %v5477 = vunpack.c.l.b16 %v4851
        %v5478 = vunpack.c.h.b16 %v4851
        %v5479 = vunpack.c.l.b16 %v4852
        %v5480 = vunpack.c.h.b16 %v4852
        %v5481 = vunpack.c.l.b16 %v4853
        %v5482 = vunpack.c.l.b16 %v4854
        %v5483 = vunpack.c.h.b16 %v4854
        %v5484 = vunpack.c.l.b16 %v4855
        %v5485 = vunpack.c.h.b16 %v4855
        %v5486 = vunpack.c.l.b16 %v4856
        %v5487 = vunpack.c.l.b16 %v4857
        %v5488 = vunpack.c.h.b16 %v4857
        %v5489 = vunpack.c.l.b16 %v4858
        %v5490 = vunpack.c.h.b16 %v4858
        %v5491 = vunpack.c.l.b16 %v4859
        %v5492 = vunpack.c.l.b16 %v4860
        %v5493 = vunpack.c.h.b16 %v4860
        %v5494 = vunpack.c.l.b16 %v4861
        %v5495 = vunpack.c.h.b16 %v4861
        %v5496 = vunpack.c.l.b16 %v4862
        %v5497 = vunpack.c.l.b16 %v4863
        %v5498 = vunpack.c.h.b16 %v4863
        %v5499 = vunpack.c.l.b16 %v4864
        %v5500 = vunpack.c.h.b16 %v4864
        %v5501 = vunpack.c.l.b16 %v4865
        %v5502 = vunpack.c.l.b16 %v4866
        %v5503 = vunpack.c.h.b16 %v4866
        %v5504 = vunpack.c.l.b16 %v4867
        %v5505 = vunpack.c.h.b16 %v4867
        %v5506 = vunpack.c.l.b16 %v4868
        %v5507 = vunpack.c.l.b16 %v4869
        %v5508 = vunpack.c.h.b16 %v4869
        %v5509 = vunpack.c.l.b16 %v4870
        %v5510 = vunpack.c.h.b16 %v4870
        %v5511 = vunpack.c.l.b16 %v4871
        %v5512 = vunpack.c.l.b16 %v4872
        %v5513 = vunpack.c.h.b16 %v4872
        %v5514 = vunpack.c.l.b16 %v4873
        %v5515 = vunpack.c.h.b16 %v4873
        %v5516 = vunpack.c.l.b16 %v4874
        %v5517 = vunpack.c.l.b16 %v4875
        %v5518 = vunpack.c.h.b16 %v4875
        %v5519 = vunpack.c.l.b16 %v4876
        %v5520 = vunpack.c.h.b16 %v4876
        %v5521 = vunpack.c.l.b16 %v4877
        %v5522 = vunpack.c.l.b16 %v4878
        %v5523 = vunpack.c.h.b16 %v4878
        %v5524 = vunpack.c.l.b16 %v4879
        %v5525 = vunpack.c.h.b16 %v4879
        %v5526 = vunpack.c.l.b16 %v4880
        %v5527 = vunpack.c.l.b16 %v4881
        %v5528 = vunpack.c.h.b16 %v4881
        %v5529 = vunpack.c.l.b16 %v4882
        %v5530 = vunpack.c.h.b16 %v4882
        %v5531 = vunpack.c.l.b16 %v4883
        %v5532 = vunpack.c.l.b16 %v4884
        %v5533 = vunpack.c.h.b16 %v4884
        %v5534 = vunpack.c.l.b16 %v4885
        %v5535 = vunpack.c.h.b16 %v4885
        %v5536 = vunpack.c.l.b16 %v4886
        %v5537 = vunpack.c.l.b16 %v4887
        %v5538 = vunpack.c.h.b16 %v4887
        %v5539 = vunpack.c.l.b16 %v4888
        %v5540 = vunpack.c.h.b16 %v4888
        %v5541 = vunpack.c.l.b16 %v4889
        %v5542 = vpack.c.b16 %v5147, %v5142
        %v5543 = vpack.c.b16 %v5148, %v5143
        %v5544 = vpack.c.b16 %v5149, %v5144
        %v5545 = vpack.c.b16 %v5150, %v5145
        %v5546 = vpack.c.b16 %v5151, %v5146
        %v5547 = vpack.c.b16 %v5157, %v5152
        %v5548 = vpack.c.b16 %v5158, %v5153
        %v5549 = vpack.c.b16 %v5159, %v5154
        %v5550 = vpack.c.b16 %v5160, %v5155
        %v5551 = vpack.c.b16 %v5161, %v5156
        %v5552 = vpack.c.b16 %v5167, %v5162
        %v5553 = vpack.c.b16 %v5168, %v5163
        %v5554 = vpack.c.b16 %v5169, %v5164
        %v5555 = vpack.c.b16 %v5170, %v5165
        %v5556 = vpack.c.b16 %v5171, %v5166
        %v5557 = vpack.c.b16 %v5177, %v5172
        %v5558 = vpack.c.b16 %v5178, %v5173
        %v5559 = vpack.c.b16 %v5179, %v5174
        %v5560 = vpack.c.b16 %v5180, %v5175
        %v5561 = vpack.c.b16 %v5181, %v5176
        %v5562 = vpack.c.b16 %v5187, %v5182
        %v5563 = vpack.c.b16 %v5188, %v5183
        %v5564 = vpack.c.b16 %v5189, %v5184
        %v5565 = vpack.c.b16 %v5190, %v5185
        %v5566 = vpack.c.b16 %v5191, %v5186
        %v5567 = vpack.c.b16 %v5197, %v5192
        %v5568 = vpack.c.b16 %v5198, %v5193
        %v5569 = vpack.c.b16 %v5199, %v5194
        %v5570 = vpack.c.b16 %v5200, %v5195
        %v5571 = vpack.c.b16 %v5201, %v5196
        %v5572 = vpack.c.b16 %v5207, %v5202
        %v5573 = vpack.c.b16 %v5208, %v5203
        %v5574 = vpack.c.b16 %v5209, %v5204
        %v5575 = vpack.c.b16 %v5210, %v5205
        %v5576 = vpack.c.b16 %v5211, %v5206
        %v5577 = vpack.c.b16 %v5217, %v5212
        %v5578 = vpack.c.b16 %v5218, %v5213
        %v5579 = vpack.c.b16 %v5219, %v5214
        %v5580 = vpack.c.b16 %v5220, %v5215
        %v5581 = vpack.c.b16 %v5221, %v5216
        %v5582 = vpack.c.b16 %v5227, %v5222
        %v5583 = vpack.c.b16 %v5228, %v5223
        %v5584 = vpack.c.b16 %v5229, %v5224
        %v5585 = vpack.c.b16 %v5230, %v5225
        %v5586 = vpack.c.b16 %v5231, %v5226
        %v5587 = vpack.c.b16 %v5237, %v5232
        %v5588 = vpack.c.b16 %v5238, %v5233
        %v5589 = vpack.c.b16 %v5239, %v5234
        %v5590 = vpack.c.b16 %v5240, %v5235
        %v5591 = vpack.c.b16 %v5241, %v5236
        %v5592 = vpack.c.b16 %v5247, %v5242
        %v5593 = vpack.c.b16 %v5248, %v5243
        %v5594 = vpack.c.b16 %v5249, %v5244
        %v5595 = vpack.c.b16 %v5250, %v5245
        %v5596 = vpack.c.b16 %v5251, %v5246
        %v5597 = vpack.c.b16 %v5257, %v5252
        %v5598 = vpack.c.b16 %v5258, %v5253
        %v5599 = vpack.c.b16 %v5259, %v5254
        %v5600 = vpack.c.b16 %v5260, %v5255
        %v5601 = vpack.c.b16 %v5261, %v5256
        %v5602 = vpack.c.b16 %v5267, %v5262
        %v5603 = vpack.c.b16 %v5268, %v5263
        %v5604 = vpack.c.b16 %v5269, %v5264
        %v5605 = vpack.c.b16 %v5270, %v5265
        %v5606 = vpack.c.b16 %v5271, %v5266
        %v5607 = vpack.c.b16 %v5277, %v5272
        %v5608 = vpack.c.b16 %v5278, %v5273
        %v5609 = vpack.c.b16 %v5279, %v5274
        %v5610 = vpack.c.b16 %v5280, %v5275
        %v5611 = vpack.c.b16 %v5281, %v5276
        %v5612 = vpack.c.b16 %v5287, %v5282
        %v5613 = vpack.c.b16 %v5288, %v5283
        %v5614 = vpack.c.b16 %v5289, %v5284
        %v5615 = vpack.c.b16 %v5290, %v5285
        %v5616 = vpack.c.b16 %v5291, %v5286
        %v5617 = vpack.c.b16 %v5297, %v5292
        %v5618 = vpack.c.b16 %v5298, %v5293
        %v5619 = vpack.c.b16 %v5299, %v5294
        %v5620 = vpack.c.b16 %v5300, %v5295
        %v5621 = vpack.c.b16 %v5301, %v5296
        %v5622 = vpack.c.b16 %v5307, %v5302
        %v5623 = vpack.c.b16 %v5308, %v5303
        %v5624 = vpack.c.b16 %v5309, %v5304
        %v5625 = vpack.c.b16 %v5310, %v5305
        %v5626 = vpack.c.b16 %v5311, %v5306
        %v5627 = vpack.c.b16 %v5317, %v5312
        %v5628 = vpack.c.b16 %v5318, %v5313
        %v5629 = vpack.c.b16 %v5319, %v5314
        %v5630 = vpack.c.b16 %v5320, %v5315
        %v5631 = vpack.c.b16 %v5321, %v5316
        %v5632 = vpack.c.b16 %v5327, %v5322
        %v5633 = vpack.c.b16 %v5328, %v5323
        %v5634 = vpack.c.b16 %v5329, %v5324
        %v5635 = vpack.c.b16 %v5330, %v5325
        %v5636 = vpack.c.b16 %v5331, %v5326
        %v5637 = vpack.c.b16 %v5337, %v5332
        %v5638 = vpack.c.b16 %v5338, %v5333
        %v5639 = vpack.c.b16 %v5339, %v5334
        %v5640 = vpack.c.b16 %v5340, %v5335
        %v5641 = vpack.c.b16 %v5341, %v5336
        %v5642 = vpack.c.b16 %v5347, %v5342
        %v5643 = vpack.c.b16 %v5348, %v5343
        %v5644 = vpack.c.b16 %v5349, %v5344
        %v5645 = vpack.c.b16 %v5350, %v5345
        %v5646 = vpack.c.b16 %v5351, %v5346
        %v5647 = vpack.c.b16 %v5357, %v5352
        %v5648 = vpack.c.b16 %v5358, %v5353
        %v5649 = vpack.c.b16 %v5359, %v5354
        %v5650 = vpack.c.b16 %v5360, %v5355
        %v5651 = vpack.c.b16 %v5361, %v5356
        %v5652 = vpack.c.b16 %v5367, %v5362
        %v5653 = vpack.c.b16 %v5368, %v5363
        %v5654 = vpack.c.b16 %v5369, %v5364
        %v5655 = vpack.c.b16 %v5370, %v5365
        %v5656 = vpack.c.b16 %v5371, %v5366
        %v5657 = vpack.c.b16 %v5377, %v5372
        %v5658 = vpack.c.b16 %v5378, %v5373
        %v5659 = vpack.c.b16 %v5379, %v5374
        %v5660 = vpack.c.b16 %v5380, %v5375
        %v5661 = vpack.c.b16 %v5381, %v5376
        %v5662 = vpack.c.b16 %v5387, %v5382
        %v5663 = vpack.c.b16 %v5388, %v5383
        %v5664 = vpack.c.b16 %v5389, %v5384
        %v5665 = vpack.c.b16 %v5390, %v5385
        %v5666 = vpack.c.b16 %v5391, %v5386
        %v5667 = vpack.c.b16 %v5397, %v5392
        %v5668 = vpack.c.b16 %v5398, %v5393
        %v5669 = vpack.c.b16 %v5399, %v5394
        %v5670 = vpack.c.b16 %v5400, %v5395
        %v5671 = vpack.c.b16 %v5401, %v5396
        %v5672 = vpack.c.b16 %v5407, %v5402
        %v5673 = vpack.c.b16 %v5408, %v5403
        %v5674 = vpack.c.b16 %v5409, %v5404
        %v5675 = vpack.c.b16 %v5410, %v5405
        %v5676 = vpack.c.b16 %v5411, %v5406
        %v5677 = vpack.c.b16 %v5417, %v5412
        %v5678 = vpack.c.b16 %v5418, %v5413
        %v5679 = vpack.c.b16 %v5419, %v5414
        %v5680 = vpack.c.b16 %v5420, %v5415
        %v5681 = vpack.c.b16 %v5421, %v5416
        %v5682 = vpack.c.b16 %v5427, %v5422
        %v5683 = vpack.c.b16 %v5428, %v5423
        %v5684 = vpack.c.b16 %v5429, %v5424
        %v5685 = vpack.c.b16 %v5430, %v5425
        %v5686 = vpack.c.b16 %v5431, %v5426
        %v5687 = vpack.c.b16 %v5437, %v5432
        %v5688 = vpack.c.b16 %v5438, %v5433
        %v5689 = vpack.c.b16 %v5439, %v5434
        %v5690 = vpack.c.b16 %v5440, %v5435
        %v5691 = vpack.c.b16 %v5441, %v5436
        %v5692 = vpack.c.b16 %v5447, %v5442
        %v5693 = vpack.c.b16 %v5448, %v5443
        %v5694 = vpack.c.b16 %v5449, %v5444
        %v5695 = vpack.c.b16 %v5450, %v5445
        %v5696 = vpack.c.b16 %v5451, %v5446
        %v5697 = vpack.c.b16 %v5457, %v5452
        %v5698 = vpack.c.b16 %v5458, %v5453
        %v5699 = vpack.c.b16 %v5459, %v5454
        %v5700 = vpack.c.b16 %v5460, %v5455
        %v5701 = vpack.c.b16 %v5461, %v5456
        %v5702 = vpack.c.b16 %v5467, %v5462
        %v5703 = vpack.c.b16 %v5468, %v5463
        %v5704 = vpack.c.b16 %v5469, %v5464
        %v5705 = vpack.c.b16 %v5470, %v5465
        %v5706 = vpack.c.b16 %v5471, %v5466
        %v5707 = vpack.c.b16 %v5477, %v5472
        %v5708 = vpack.c.b16 %v5478, %v5473
        %v5709 = vpack.c.b16 %v5479, %v5474
        %v5710 = vpack.c.b16 %v5480, %v5475
        %v5711 = vpack.c.b16 %v5481, %v5476
        %v5712 = vpack.c.b16 %v5487, %v5482
        %v5713 = vpack.c.b16 %v5488, %v5483
        %v5714 = vpack.c.b16 %v5489, %v5484
        %v5715 = vpack.c.b16 %v5490, %v5485
        %v5716 = vpack.c.b16 %v5491, %v5486
        %v5717 = vpack.c.b16 %v5497, %v5492
        %v5718 = vpack.c.b16 %v5498, %v5493
        %v5719 = vpack.c.b16 %v5499, %v5494
        %v5720 = vpack.c.b16 %v5500, %v5495
        %v5721 = vpack.c.b16 %v5501, %v5496
        %v5722 = vpack.c.b16 %v5507, %v5502
        %v5723 = vpack.c.b16 %v5508, %v5503
        %v5724 = vpack.c.b16 %v5509, %v5504
        %v5725 = vpack.c.b16 %v5510, %v5505
        %v5726 = vpack.c.b16 %v5511, %v5506
        %v5727 = vpack.c.b16 %v5517, %v5512
        %v5728 = vpack.c.b16 %v5518, %v5513
        %v5729 = vpack.c.b16 %v5519, %v5514
        %v5730 = vpack.c.b16 %v5520, %v5515
        %v5731 = vpack.c.b16 %v5521, %v5516
        %v5732 = vpack.c.b16 %v5527, %v5522
        %v5733 = vpack.c.b16 %v5528, %v5523
        %v5734 = vpack.c.b16 %v5529, %v5524
        %v5735 = vpack.c.b16 %v5530, %v5525
        %v5736 = vpack.c.b16 %v5531, %v5526
        %v5737 = vpack.c.b16 %v5537, %v5532
        %v5738 = vpack.c.b16 %v5538, %v5533
        %v5739 = vpack.c.b16 %v5539, %v5534
        %v5740 = vpack.c.b16 %v5540, %v5535
        %v5741 = vpack.c.b16 %v5541, %v5536
        %5942 = vmatpush.bf16.msra.mxu0 %v5577
        %5943 = vmatpush.bf16.msra.mxu0 %v5572
        %5944 = vmatpush.bf16.msra.mxu0 %v5567
        %5945 = vmatpush.bf16.msra.mxu0 %v5562
        %5946 = vmatpush.bf16.msra.mxu0 %v5557
        %5947 = vmatpush.bf16.msra.mxu0 %v5552
        %5948 = vmatpush.bf16.msra.mxu0 %v5547
        %5949 = vmatpush.bf16.msra.mxu0 %v5542
        %5950 = vmatmul.bf16.gmra.mxu0 %v4570
        %v5951 = vpop.f32.mrf.mxu0
        %v5952 = vadd.f32 %v4892, %v5951
        %v5953 = vpop.f32.mrf.mxu0
        %v5954 = vadd.f32 %v4892, %v5953
        %5955 = vmatmul.bf16.gmra.mxu0 %v4575
        %v5956 = vpop.f32.mrf.mxu0
        %v5957 = vadd.f32 %v4892, %v5956
        %v5958 = vpop.f32.mrf.mxu0
        %v5959 = vadd.f32 %v4892, %v5958
        %5960 = vmatmul.bf16.gmra.mxu0 %v4580
        %v5961 = vpop.f32.mrf.mxu0
        %v5962 = vadd.f32 %v4892, %v5961
        %v5963 = vpop.f32.mrf.mxu0
        %v5964 = vadd.f32 %v4892, %v5963
        %5965 = vmatmul.bf16.gmra.mxu0 %v4585
        %v5966 = vpop.f32.mrf.mxu0
        %v5967 = vadd.f32 %v4892, %v5966
        %v5968 = vpop.f32.mrf.mxu0
        %v5969 = vadd.f32 %v4892, %v5968
        %5970 = vmatmul.bf16.gmra.mxu0 %v4590
        %v5971 = vpop.f32.mrf.mxu0
        %v5972 = vadd.f32 %v4892, %v5971
        %v5973 = vpop.f32.mrf.mxu0
        %v5974 = vadd.f32 %v4892, %v5973
        %5975 = vmatmul.bf16.gmra.mxu0 %v4595
        %v5976 = vpop.f32.mrf.mxu0
        %v5977 = vadd.f32 %v4892, %v5976
        %v5978 = vpop.f32.mrf.mxu0
        %v5979 = vadd.f32 %v4892, %v5978
        %5980 = vmatmul.bf16.gmra.mxu0 %v4600
        %v5981 = vpop.f32.mrf.mxu0
        %v5982 = vadd.f32 %v4892, %v5981
        %v5983 = vpop.f32.mrf.mxu0
        %v5984 = vadd.f32 %v4892, %v5983
        %5985 = vmatmul.bf16.gmra.mxu0 %v4605
        %v5986 = vpop.f32.mrf.mxu0
        %v5987 = vadd.f32 %v4892, %v5986
        %v5988 = vpop.f32.mrf.mxu0
        %v5989 = vadd.f32 %v4892, %v5988
        %5990 = vmatmul.bf16.gmra.mxu0 %v4610
        %v5991 = vpop.f32.mrf.mxu0
        %v5992 = vadd.f32 %v4892, %v5991
        %v5993 = vpop.f32.mrf.mxu0
        %v5994 = vadd.f32 %v4892, %v5993
        %5995 = vmatmul.bf16.gmra.mxu0 %v4615
        %v5996 = vpop.f32.mrf.mxu0
        %v5997 = vadd.f32 %v4892, %v5996
        %v5998 = vpop.f32.mrf.mxu0
        %v5999 = vadd.f32 %v4892, %v5998
        %6000 = vmatmul.bf16.gmra.mxu0 %v4620
        %v6001 = vpop.f32.mrf.mxu0
        %v6002 = vadd.f32 %v4892, %v6001
        %v6003 = vpop.f32.mrf.mxu0
        %v6004 = vadd.f32 %v4892, %v6003
        %6005 = vmatmul.bf16.gmra.mxu0 %v4625
        %v6006 = vpop.f32.mrf.mxu0
        %v6007 = vadd.f32 %v4892, %v6006
        %v6008 = vpop.f32.mrf.mxu0
        %v6009 = vadd.f32 %v4892, %v6008
        %6010 = vmatmul.bf16.gmra.mxu0 %v4630
        %v6011 = vpop.f32.mrf.mxu0
        %v6012 = vadd.f32 %v4892, %v6011
        %v6013 = vpop.f32.mrf.mxu0
        %v6014 = vadd.f32 %v4892, %v6013
        %6015 = vmatmul.bf16.gmra.mxu0 %v4635
        %v6016 = vpop.f32.mrf.mxu0
        %v6017 = vadd.f32 %v4892, %v6016
        %v6018 = vpop.f32.mrf.mxu0
        %v6019 = vadd.f32 %v4892, %v6018
        %6020 = vmatmul.bf16.gmra.mxu0 %v4640
        %v6021 = vpop.f32.mrf.mxu0
        %v6022 = vadd.f32 %v4892, %v6021
        %v6023 = vpop.f32.mrf.mxu0
        %v6024 = vadd.f32 %v4892, %v6023
        %6025 = vmatmul.bf16.gmra.mxu0 %v4645
        %v6026 = vpop.f32.mrf.mxu0
        %v6027 = vadd.f32 %v4892, %v6026
        %v6028 = vpop.f32.mrf.mxu0
        %v6029 = vadd.f32 %v4892, %v6028
        %6030 = vdwg.mxu0
        %6031 = vmatpush.bf16.msra.mxu0 %v5617
        %6032 = vmatpush.bf16.msra.mxu0 %v5612
        %6033 = vmatpush.bf16.msra.mxu0 %v5607
        %6034 = vmatpush.bf16.msra.mxu0 %v5602
        %6035 = vmatpush.bf16.msra.mxu0 %v5597
        %6036 = vmatpush.bf16.msra.mxu0 %v5592
        %6037 = vmatpush.bf16.msra.mxu0 %v5587
        %6038 = vmatpush.bf16.msra.mxu0 %v5582
        %6039 = vmatmul.bf16.gmra.mxu0 %v4571
        %v6040 = vpop.f32.mrf.mxu0
        %v6041 = vadd.f32 %v5952, %v6040
        %v6042 = vpop.f32.mrf.mxu0
        %v6043 = vadd.f32 %v5954, %v6042
        %6044 = vmatmul.bf16.gmra.mxu0 %v4576
        %v6045 = vpop.f32.mrf.mxu0
        %v6046 = vadd.f32 %v5957, %v6045
        %v6047 = vpop.f32.mrf.mxu0
        %v6048 = vadd.f32 %v5959, %v6047
        %6049 = vmatmul.bf16.gmra.mxu0 %v4581
        %v6050 = vpop.f32.mrf.mxu0
        %v6051 = vadd.f32 %v5962, %v6050
        %v6052 = vpop.f32.mrf.mxu0
        %v6053 = vadd.f32 %v5964, %v6052
        %6054 = vmatmul.bf16.gmra.mxu0 %v4586
        %v6055 = vpop.f32.mrf.mxu0
        %v6056 = vadd.f32 %v5967, %v6055
        %v6057 = vpop.f32.mrf.mxu0
        %v6058 = vadd.f32 %v5969, %v6057
        %6059 = vmatmul.bf16.gmra.mxu0 %v4591
        %v6060 = vpop.f32.mrf.mxu0
        %v6061 = vadd.f32 %v5972, %v6060
        %v6062 = vpop.f32.mrf.mxu0
        %v6063 = vadd.f32 %v5974, %v6062
        %6064 = vmatmul.bf16.gmra.mxu0 %v4596
        %v6065 = vpop.f32.mrf.mxu0
        %v6066 = vadd.f32 %v5977, %v6065
        %v6067 = vpop.f32.mrf.mxu0
        %v6068 = vadd.f32 %v5979, %v6067
        %6069 = vmatmul.bf16.gmra.mxu0 %v4601
        %v6070 = vpop.f32.mrf.mxu0
        %v6071 = vadd.f32 %v5982, %v6070
        %v6072 = vpop.f32.mrf.mxu0
        %v6073 = vadd.f32 %v5984, %v6072
        %6074 = vmatmul.bf16.gmra.mxu0 %v4606
        %v6075 = vpop.f32.mrf.mxu0
        %v6076 = vadd.f32 %v5987, %v6075
        %v6077 = vpop.f32.mrf.mxu0
        %v6078 = vadd.f32 %v5989, %v6077
        %6079 = vmatmul.bf16.gmra.mxu0 %v4611
        %v6080 = vpop.f32.mrf.mxu0
        %v6081 = vadd.f32 %v5992, %v6080
        %v6082 = vpop.f32.mrf.mxu0
        %v6083 = vadd.f32 %v5994, %v6082
        %6084 = vmatmul.bf16.gmra.mxu0 %v4616
        %v6085 = vpop.f32.mrf.mxu0
        %v6086 = vadd.f32 %v5997, %v6085
        %v6087 = vpop.f32.mrf.mxu0
        %v6088 = vadd.f32 %v5999, %v6087
        %6089 = vmatmul.bf16.gmra.mxu0 %v4621
        %v6090 = vpop.f32.mrf.mxu0
        %v6091 = vadd.f32 %v6002, %v6090
        %v6092 = vpop.f32.mrf.mxu0
        %v6093 = vadd.f32 %v6004, %v6092
        %6094 = vmatmul.bf16.gmra.mxu0 %v4626
        %v6095 = vpop.f32.mrf.mxu0
        %v6096 = vadd.f32 %v6007, %v6095
        %v6097 = vpop.f32.mrf.mxu0
        %v6098 = vadd.f32 %v6009, %v6097
        %6099 = vmatmul.bf16.gmra.mxu0 %v4631
        %v6100 = vpop.f32.mrf.mxu0
        %v6101 = vadd.f32 %v6012, %v6100
        %v6102 = vpop.f32.mrf.mxu0
        %v6103 = vadd.f32 %v6014, %v6102
        %6104 = vmatmul.bf16.gmra.mxu0 %v4636
        %v6105 = vpop.f32.mrf.mxu0
        %v6106 = vadd.f32 %v6017, %v6105
        %v6107 = vpop.f32.mrf.mxu0
        %v6108 = vadd.f32 %v6019, %v6107
        %6109 = vmatmul.bf16.gmra.mxu0 %v4641
        %v6110 = vpop.f32.mrf.mxu0
        %v6111 = vadd.f32 %v6022, %v6110
        %v6112 = vpop.f32.mrf.mxu0
        %v6113 = vadd.f32 %v6024, %v6112
        %6114 = vmatmul.bf16.gmra.mxu0 %v4646
        %v6115 = vpop.f32.mrf.mxu0
        %v6116 = vadd.f32 %v6027, %v6115
        %v6117 = vpop.f32.mrf.mxu0
        %v6118 = vadd.f32 %v6029, %v6117
        %6119 = vdwg.mxu0
        %6120 = vmatpush.bf16.msra.mxu0 %v5657
        %6121 = vmatpush.bf16.msra.mxu0 %v5652
        %6122 = vmatpush.bf16.msra.mxu0 %v5647
        %6123 = vmatpush.bf16.msra.mxu0 %v5642
        %6124 = vmatpush.bf16.msra.mxu0 %v5637
        %6125 = vmatpush.bf16.msra.mxu0 %v5632
        %6126 = vmatpush.bf16.msra.mxu0 %v5627
        %6127 = vmatpush.bf16.msra.mxu0 %v5622
        %6128 = vmatmul.bf16.gmra.mxu0 %v4572
        %v6129 = vpop.f32.mrf.mxu0
        %v6130 = vadd.f32 %v6041, %v6129
        %v6131 = vpop.f32.mrf.mxu0
        %v6132 = vadd.f32 %v6043, %v6131
        %6133 = vmatmul.bf16.gmra.mxu0 %v4577
        %v6134 = vpop.f32.mrf.mxu0
        %v6135 = vadd.f32 %v6046, %v6134
        %v6136 = vpop.f32.mrf.mxu0
        %v6137 = vadd.f32 %v6048, %v6136
        %6138 = vmatmul.bf16.gmra.mxu0 %v4582
        %v6139 = vpop.f32.mrf.mxu0
        %v6140 = vadd.f32 %v6051, %v6139
        %v6141 = vpop.f32.mrf.mxu0
        %v6142 = vadd.f32 %v6053, %v6141
        %6143 = vmatmul.bf16.gmra.mxu0 %v4587
        %v6144 = vpop.f32.mrf.mxu0
        %v6145 = vadd.f32 %v6056, %v6144
        %v6146 = vpop.f32.mrf.mxu0
        %v6147 = vadd.f32 %v6058, %v6146
        %6148 = vmatmul.bf16.gmra.mxu0 %v4592
        %v6149 = vpop.f32.mrf.mxu0
        %v6150 = vadd.f32 %v6061, %v6149
        %v6151 = vpop.f32.mrf.mxu0
        %v6152 = vadd.f32 %v6063, %v6151
        %6153 = vmatmul.bf16.gmra.mxu0 %v4597
        %v6154 = vpop.f32.mrf.mxu0
        %v6155 = vadd.f32 %v6066, %v6154
        %v6156 = vpop.f32.mrf.mxu0
        %v6157 = vadd.f32 %v6068, %v6156
        %6158 = vmatmul.bf16.gmra.mxu0 %v4602
        %v6159 = vpop.f32.mrf.mxu0
        %v6160 = vadd.f32 %v6071, %v6159
        %v6161 = vpop.f32.mrf.mxu0
        %v6162 = vadd.f32 %v6073, %v6161
        %6163 = vmatmul.bf16.gmra.mxu0 %v4607
        %v6164 = vpop.f32.mrf.mxu0
        %v6165 = vadd.f32 %v6076, %v6164
        %v6166 = vpop.f32.mrf.mxu0
        %v6167 = vadd.f32 %v6078, %v6166
        %6168 = vmatmul.bf16.gmra.mxu0 %v4612
        %v6169 = vpop.f32.mrf.mxu0
        %v6170 = vadd.f32 %v6081, %v6169
        %v6171 = vpop.f32.mrf.mxu0
        %v6172 = vadd.f32 %v6083, %v6171
        %6173 = vmatmul.bf16.gmra.mxu0 %v4617
        %v6174 = vpop.f32.mrf.mxu0
        %v6175 = vadd.f32 %v6086, %v6174
        %v6176 = vpop.f32.mrf.mxu0
        %v6177 = vadd.f32 %v6088, %v6176
        %6178 = vmatmul.bf16.gmra.mxu0 %v4622
        %v6179 = vpop.f32.mrf.mxu0
        %v6180 = vadd.f32 %v6091, %v6179
        %v6181 = vpop.f32.mrf.mxu0
        %v6182 = vadd.f32 %v6093, %v6181
        %6183 = vmatmul.bf16.gmra.mxu0 %v4627
        %v6184 = vpop.f32.mrf.mxu0
        %v6185 = vadd.f32 %v6096, %v6184
        %v6186 = vpop.f32.mrf.mxu0
        %v6187 = vadd.f32 %v6098, %v6186
        %6188 = vmatmul.bf16.gmra.mxu0 %v4632
        %v6189 = vpop.f32.mrf.mxu0
        %v6190 = vadd.f32 %v6101, %v6189
        %v6191 = vpop.f32.mrf.mxu0
        %v6192 = vadd.f32 %v6103, %v6191
        %6193 = vmatmul.bf16.gmra.mxu0 %v4637
        %v6194 = vpop.f32.mrf.mxu0
        %v6195 = vadd.f32 %v6106, %v6194
        %v6196 = vpop.f32.mrf.mxu0
        %v6197 = vadd.f32 %v6108, %v6196
        %6198 = vmatmul.bf16.gmra.mxu0 %v4642
        %v6199 = vpop.f32.mrf.mxu0
        %v6200 = vadd.f32 %v6111, %v6199
        %v6201 = vpop.f32.mrf.mxu0
        %v6202 = vadd.f32 %v6113, %v6201
        %6203 = vmatmul.bf16.gmra.mxu0 %v4647
        %v6204 = vpop.f32.mrf.mxu0
        %v6205 = vadd.f32 %v6116, %v6204
        %v6206 = vpop.f32.mrf.mxu0
        %v6207 = vadd.f32 %v6118, %v6206
        %6208 = vdwg.mxu0
        %6209 = vmatpush.bf16.msra.mxu0 %v5697
        %6210 = vmatpush.bf16.msra.mxu0 %v5692
        %6211 = vmatpush.bf16.msra.mxu0 %v5687
        %6212 = vmatpush.bf16.msra.mxu0 %v5682
        %6213 = vmatpush.bf16.msra.mxu0 %v5677
        %6214 = vmatpush.bf16.msra.mxu0 %v5672
        %6215 = vmatpush.bf16.msra.mxu0 %v5667
        %6216 = vmatpush.bf16.msra.mxu0 %v5662
        %6217 = vmatmul.bf16.gmra.mxu0 %v4573
        %v6218 = vpop.f32.mrf.mxu0
        %v6219 = vadd.f32 %v6130, %v6218
        %v6220 = vpop.f32.mrf.mxu0
        %v6221 = vadd.f32 %v6132, %v6220
        %6222 = vmatmul.bf16.gmra.mxu0 %v4578
        %v6223 = vpop.f32.mrf.mxu0
        %v6224 = vadd.f32 %v6135, %v6223
        %v6225 = vpop.f32.mrf.mxu0
        %v6226 = vadd.f32 %v6137, %v6225
        %6227 = vmatmul.bf16.gmra.mxu0 %v4583
        %v6228 = vpop.f32.mrf.mxu0
        %v6229 = vadd.f32 %v6140, %v6228
        %v6230 = vpop.f32.mrf.mxu0
        %v6231 = vadd.f32 %v6142, %v6230
        %6232 = vmatmul.bf16.gmra.mxu0 %v4588
        %v6233 = vpop.f32.mrf.mxu0
        %v6234 = vadd.f32 %v6145, %v6233
        %v6235 = vpop.f32.mrf.mxu0
        %v6236 = vadd.f32 %v6147, %v6235
        %6237 = vmatmul.bf16.gmra.mxu0 %v4593
        %v6238 = vpop.f32.mrf.mxu0
        %v6239 = vadd.f32 %v6150, %v6238
        %v6240 = vpop.f32.mrf.mxu0
        %v6241 = vadd.f32 %v6152, %v6240
        %6242 = vmatmul.bf16.gmra.mxu0 %v4598
        %v6243 = vpop.f32.mrf.mxu0
        %v6244 = vadd.f32 %v6155, %v6243
        %v6245 = vpop.f32.mrf.mxu0
        %v6246 = vadd.f32 %v6157, %v6245
        %6247 = vmatmul.bf16.gmra.mxu0 %v4603
        %v6248 = vpop.f32.mrf.mxu0
        %v6249 = vadd.f32 %v6160, %v6248
        %v6250 = vpop.f32.mrf.mxu0
        %v6251 = vadd.f32 %v6162, %v6250
        %6252 = vmatmul.bf16.gmra.mxu0 %v4608
        %v6253 = vpop.f32.mrf.mxu0
        %v6254 = vadd.f32 %v6165, %v6253
        %v6255 = vpop.f32.mrf.mxu0
        %v6256 = vadd.f32 %v6167, %v6255
        %6257 = vmatmul.bf16.gmra.mxu0 %v4613
        %v6258 = vpop.f32.mrf.mxu0
        %v6259 = vadd.f32 %v6170, %v6258
        %v6260 = vpop.f32.mrf.mxu0
        %v6261 = vadd.f32 %v6172, %v6260
        %6262 = vmatmul.bf16.gmra.mxu0 %v4618
        %v6263 = vpop.f32.mrf.mxu0
        %v6264 = vadd.f32 %v6175, %v6263
        %v6265 = vpop.f32.mrf.mxu0
        %v6266 = vadd.f32 %v6177, %v6265
        %6267 = vmatmul.bf16.gmra.mxu0 %v4623
        %v6268 = vpop.f32.mrf.mxu0
        %v6269 = vadd.f32 %v6180, %v6268
        %v6270 = vpop.f32.mrf.mxu0
        %v6271 = vadd.f32 %v6182, %v6270
        %6272 = vmatmul.bf16.gmra.mxu0 %v4628
        %v6273 = vpop.f32.mrf.mxu0
        %v6274 = vadd.f32 %v6185, %v6273
        %v6275 = vpop.f32.mrf.mxu0
        %v6276 = vadd.f32 %v6187, %v6275
        %6277 = vmatmul.bf16.gmra.mxu0 %v4633
        %v6278 = vpop.f32.mrf.mxu0
        %v6279 = vadd.f32 %v6190, %v6278
        %v6280 = vpop.f32.mrf.mxu0
        %v6281 = vadd.f32 %v6192, %v6280
        %6282 = vmatmul.bf16.gmra.mxu0 %v4638
        %v6283 = vpop.f32.mrf.mxu0
        %v6284 = vadd.f32 %v6195, %v6283
        %v6285 = vpop.f32.mrf.mxu0
        %v6286 = vadd.f32 %v6197, %v6285
        %6287 = vmatmul.bf16.gmra.mxu0 %v4643
        %v6288 = vpop.f32.mrf.mxu0
        %v6289 = vadd.f32 %v6200, %v6288
        %v6290 = vpop.f32.mrf.mxu0
        %v6291 = vadd.f32 %v6202, %v6290
        %6292 = vmatmul.bf16.gmra.mxu0 %v4648
        %v6293 = vpop.f32.mrf.mxu0
        %v6294 = vadd.f32 %v6205, %v6293
        %v6295 = vpop.f32.mrf.mxu0
        %v6296 = vadd.f32 %v6207, %v6295
        %6297 = vdwg.mxu0
        %6298 = vmatpush.bf16.msra.mxu0 %v5737
        %6299 = vmatpush.bf16.msra.mxu0 %v5732
        %6300 = vmatpush.bf16.msra.mxu0 %v5727
        %6301 = vmatpush.bf16.msra.mxu0 %v5722
        %6302 = vmatpush.bf16.msra.mxu0 %v5717
        %6303 = vmatpush.bf16.msra.mxu0 %v5712
        %6304 = vmatpush.bf16.msra.mxu0 %v5707
        %6305 = vmatpush.bf16.msra.mxu0 %v5702
        %6306 = vmatmul.bf16.gmra.mxu0 %v4574
        %v6307 = vpop.f32.mrf.mxu0
        %v6308 = vadd.f32 %v6219, %v6307
        %v6309 = vpop.f32.mrf.mxu0
        %v6310 = vadd.f32 %v6221, %v6309
        %6311 = vmatmul.bf16.gmra.mxu0 %v4579
        %v6312 = vpop.f32.mrf.mxu0
        %v6313 = vadd.f32 %v6224, %v6312
        %v6314 = vpop.f32.mrf.mxu0
        %v6315 = vadd.f32 %v6226, %v6314
        %6316 = vmatmul.bf16.gmra.mxu0 %v4584
        %v6317 = vpop.f32.mrf.mxu0
        %v6318 = vadd.f32 %v6229, %v6317
        %v6319 = vpop.f32.mrf.mxu0
        %v6320 = vadd.f32 %v6231, %v6319
        %6321 = vmatmul.bf16.gmra.mxu0 %v4589
        %v6322 = vpop.f32.mrf.mxu0
        %v6323 = vadd.f32 %v6234, %v6322
        %v6324 = vpop.f32.mrf.mxu0
        %v6325 = vadd.f32 %v6236, %v6324
        %6326 = vmatmul.bf16.gmra.mxu0 %v4594
        %v6327 = vpop.f32.mrf.mxu0
        %v6328 = vadd.f32 %v6239, %v6327
        %v6329 = vpop.f32.mrf.mxu0
        %v6330 = vadd.f32 %v6241, %v6329
        %6331 = vmatmul.bf16.gmra.mxu0 %v4599
        %v6332 = vpop.f32.mrf.mxu0
        %v6333 = vadd.f32 %v6244, %v6332
        %v6334 = vpop.f32.mrf.mxu0
        %v6335 = vadd.f32 %v6246, %v6334
        %6336 = vmatmul.bf16.gmra.mxu0 %v4604
        %v6337 = vpop.f32.mrf.mxu0
        %v6338 = vadd.f32 %v6249, %v6337
        %v6339 = vpop.f32.mrf.mxu0
        %v6340 = vadd.f32 %v6251, %v6339
        %6341 = vmatmul.bf16.gmra.mxu0 %v4609
        %v6342 = vpop.f32.mrf.mxu0
        %v6343 = vadd.f32 %v6254, %v6342
        %v6344 = vpop.f32.mrf.mxu0
        %v6345 = vadd.f32 %v6256, %v6344
        %6346 = vmatmul.bf16.gmra.mxu0 %v4614
        %v6347 = vpop.f32.mrf.mxu0
        %v6348 = vadd.f32 %v6259, %v6347
        %v6349 = vpop.f32.mrf.mxu0
        %v6350 = vadd.f32 %v6261, %v6349
        %6351 = vmatmul.bf16.gmra.mxu0 %v4619
        %v6352 = vpop.f32.mrf.mxu0
        %v6353 = vadd.f32 %v6264, %v6352
        %v6354 = vpop.f32.mrf.mxu0
        %v6355 = vadd.f32 %v6266, %v6354
        %6356 = vmatmul.bf16.gmra.mxu0 %v4624
        %v6357 = vpop.f32.mrf.mxu0
        %v6358 = vadd.f32 %v6269, %v6357
        %v6359 = vpop.f32.mrf.mxu0
        %v6360 = vadd.f32 %v6271, %v6359
        %6361 = vmatmul.bf16.gmra.mxu0 %v4629
        %v6362 = vpop.f32.mrf.mxu0
        %v6363 = vadd.f32 %v6274, %v6362
        %v6364 = vpop.f32.mrf.mxu0
        %v6365 = vadd.f32 %v6276, %v6364
        %6366 = vmatmul.bf16.gmra.mxu0 %v4634
        %v6367 = vpop.f32.mrf.mxu0
        %v6368 = vadd.f32 %v6279, %v6367
        %v6369 = vpop.f32.mrf.mxu0
        %v6370 = vadd.f32 %v6281, %v6369
        %6371 = vmatmul.bf16.gmra.mxu0 %v4639
        %v6372 = vpop.f32.mrf.mxu0
        %v6373 = vadd.f32 %v6284, %v6372
        %v6374 = vpop.f32.mrf.mxu0
        %v6375 = vadd.f32 %v6286, %v6374
        %6376 = vmatmul.bf16.gmra.mxu0 %v4644
        %v6377 = vpop.f32.mrf.mxu0
        %v6378 = vadd.f32 %v6289, %v6377
        %v6379 = vpop.f32.mrf.mxu0
        %v6380 = vadd.f32 %v6291, %v6379
        %6381 = vmatmul.bf16.gmra.mxu0 %v4649
        %v6382 = vpop.f32.mrf.mxu0
        %v6383 = vadd.f32 %v6294, %v6382
        %v6384 = vpop.f32.mrf.mxu0
        %v6385 = vadd.f32 %v6296, %v6384
        %6386 = vdwg.mxu0
        %6387 = vmatpush.bf16.msra.mxu0 %v5578
        %6388 = vmatpush.bf16.msra.mxu0 %v5573
        %6389 = vmatpush.bf16.msra.mxu0 %v5568
        %6390 = vmatpush.bf16.msra.mxu0 %v5563
        %6391 = vmatpush.bf16.msra.mxu0 %v5558
        %6392 = vmatpush.bf16.msra.mxu0 %v5553
        %6393 = vmatpush.bf16.msra.mxu0 %v5548
        %6394 = vmatpush.bf16.msra.mxu0 %v5543
        %6395 = vmatmul.bf16.gmra.mxu0 %v4570
        %v6396 = vpop.f32.mrf.mxu0
        %v6397 = vadd.f32 %v4893, %v6396
        %v6398 = vpop.f32.mrf.mxu0
        %v6399 = vadd.f32 %v4893, %v6398
        %6400 = vmatmul.bf16.gmra.mxu0 %v4575
        %v6401 = vpop.f32.mrf.mxu0
        %v6402 = vadd.f32 %v4893, %v6401
        %v6403 = vpop.f32.mrf.mxu0
        %v6404 = vadd.f32 %v4893, %v6403
        %6405 = vmatmul.bf16.gmra.mxu0 %v4580
        %v6406 = vpop.f32.mrf.mxu0
        %v6407 = vadd.f32 %v4893, %v6406
        %v6408 = vpop.f32.mrf.mxu0
        %v6409 = vadd.f32 %v4893, %v6408
        %6410 = vmatmul.bf16.gmra.mxu0 %v4585
        %v6411 = vpop.f32.mrf.mxu0
        %v6412 = vadd.f32 %v4893, %v6411
        %v6413 = vpop.f32.mrf.mxu0
        %v6414 = vadd.f32 %v4893, %v6413
        %6415 = vmatmul.bf16.gmra.mxu0 %v4590
        %v6416 = vpop.f32.mrf.mxu0
        %v6417 = vadd.f32 %v4893, %v6416
        %v6418 = vpop.f32.mrf.mxu0
        %v6419 = vadd.f32 %v4893, %v6418
        %6420 = vmatmul.bf16.gmra.mxu0 %v4595
        %v6421 = vpop.f32.mrf.mxu0
        %v6422 = vadd.f32 %v4893, %v6421
        %v6423 = vpop.f32.mrf.mxu0
        %v6424 = vadd.f32 %v4893, %v6423
        %6425 = vmatmul.bf16.gmra.mxu0 %v4600
        %v6426 = vpop.f32.mrf.mxu0
        %v6427 = vadd.f32 %v4893, %v6426
        %v6428 = vpop.f32.mrf.mxu0
        %v6429 = vadd.f32 %v4893, %v6428
        %6430 = vmatmul.bf16.gmra.mxu0 %v4605
        %v6431 = vpop.f32.mrf.mxu0
        %v6432 = vadd.f32 %v4893, %v6431
        %v6433 = vpop.f32.mrf.mxu0
        %v6434 = vadd.f32 %v4893, %v6433
        %6435 = vmatmul.bf16.gmra.mxu0 %v4610
        %v6436 = vpop.f32.mrf.mxu0
        %v6437 = vadd.f32 %v4893, %v6436
        %v6438 = vpop.f32.mrf.mxu0
        %v6439 = vadd.f32 %v4893, %v6438
        %6440 = vmatmul.bf16.gmra.mxu0 %v4615
        %v6441 = vpop.f32.mrf.mxu0
        %v6442 = vadd.f32 %v4893, %v6441
        %v6443 = vpop.f32.mrf.mxu0
        %v6444 = vadd.f32 %v4893, %v6443
        %6445 = vmatmul.bf16.gmra.mxu0 %v4620
        %v6446 = vpop.f32.mrf.mxu0
        %v6447 = vadd.f32 %v4893, %v6446
        %v6448 = vpop.f32.mrf.mxu0
        %v6449 = vadd.f32 %v4893, %v6448
        %6450 = vmatmul.bf16.gmra.mxu0 %v4625
        %v6451 = vpop.f32.mrf.mxu0
        %v6452 = vadd.f32 %v4893, %v6451
        %v6453 = vpop.f32.mrf.mxu0
        %v6454 = vadd.f32 %v4893, %v6453
        %6455 = vmatmul.bf16.gmra.mxu0 %v4630
        %v6456 = vpop.f32.mrf.mxu0
        %v6457 = vadd.f32 %v4893, %v6456
        %v6458 = vpop.f32.mrf.mxu0
        %v6459 = vadd.f32 %v4893, %v6458
        %6460 = vmatmul.bf16.gmra.mxu0 %v4635
        %v6461 = vpop.f32.mrf.mxu0
        %v6462 = vadd.f32 %v4893, %v6461
        %v6463 = vpop.f32.mrf.mxu0
        %v6464 = vadd.f32 %v4893, %v6463
        %6465 = vmatmul.bf16.gmra.mxu0 %v4640
        %v6466 = vpop.f32.mrf.mxu0
        %v6467 = vadd.f32 %v4893, %v6466
        %v6468 = vpop.f32.mrf.mxu0
        %v6469 = vadd.f32 %v4893, %v6468
        %6470 = vmatmul.bf16.gmra.mxu0 %v4645
        %v6471 = vpop.f32.mrf.mxu0
        %v6472 = vadd.f32 %v4893, %v6471
        %v6473 = vpop.f32.mrf.mxu0
        %v6474 = vadd.f32 %v4893, %v6473
        %6475 = vdwg.mxu0
        %6476 = vmatpush.bf16.msra.mxu0 %v5618
        %6477 = vmatpush.bf16.msra.mxu0 %v5613
        %6478 = vmatpush.bf16.msra.mxu0 %v5608
        %6479 = vmatpush.bf16.msra.mxu0 %v5603
        %6480 = vmatpush.bf16.msra.mxu0 %v5598
        %6481 = vmatpush.bf16.msra.mxu0 %v5593
        %6482 = vmatpush.bf16.msra.mxu0 %v5588
        %6483 = vmatpush.bf16.msra.mxu0 %v5583
        %6484 = vmatmul.bf16.gmra.mxu0 %v4571
        %v6485 = vpop.f32.mrf.mxu0
        %v6486 = vadd.f32 %v6397, %v6485
        %v6487 = vpop.f32.mrf.mxu0
        %v6488 = vadd.f32 %v6399, %v6487
        %6489 = vmatmul.bf16.gmra.mxu0 %v4576
        %v6490 = vpop.f32.mrf.mxu0
        %v6491 = vadd.f32 %v6402, %v6490
        %v6492 = vpop.f32.mrf.mxu0
        %v6493 = vadd.f32 %v6404, %v6492
        %6494 = vmatmul.bf16.gmra.mxu0 %v4581
        %v6495 = vpop.f32.mrf.mxu0
        %v6496 = vadd.f32 %v6407, %v6495
        %v6497 = vpop.f32.mrf.mxu0
        %v6498 = vadd.f32 %v6409, %v6497
        %6499 = vmatmul.bf16.gmra.mxu0 %v4586
        %v6500 = vpop.f32.mrf.mxu0
        %v6501 = vadd.f32 %v6412, %v6500
        %v6502 = vpop.f32.mrf.mxu0
        %v6503 = vadd.f32 %v6414, %v6502
        %6504 = vmatmul.bf16.gmra.mxu0 %v4591
        %v6505 = vpop.f32.mrf.mxu0
        %v6506 = vadd.f32 %v6417, %v6505
        %v6507 = vpop.f32.mrf.mxu0
        %v6508 = vadd.f32 %v6419, %v6507
        %6509 = vmatmul.bf16.gmra.mxu0 %v4596
        %v6510 = vpop.f32.mrf.mxu0
        %v6511 = vadd.f32 %v6422, %v6510
        %v6512 = vpop.f32.mrf.mxu0
        %v6513 = vadd.f32 %v6424, %v6512
        %6514 = vmatmul.bf16.gmra.mxu0 %v4601
        %v6515 = vpop.f32.mrf.mxu0
        %v6516 = vadd.f32 %v6427, %v6515
        %v6517 = vpop.f32.mrf.mxu0
        %v6518 = vadd.f32 %v6429, %v6517
        %6519 = vmatmul.bf16.gmra.mxu0 %v4606
        %v6520 = vpop.f32.mrf.mxu0
        %v6521 = vadd.f32 %v6432, %v6520
        %v6522 = vpop.f32.mrf.mxu0
        %v6523 = vadd.f32 %v6434, %v6522
        %6524 = vmatmul.bf16.gmra.mxu0 %v4611
        %v6525 = vpop.f32.mrf.mxu0
        %v6526 = vadd.f32 %v6437, %v6525
        %v6527 = vpop.f32.mrf.mxu0
        %v6528 = vadd.f32 %v6439, %v6527
        %6529 = vmatmul.bf16.gmra.mxu0 %v4616
        %v6530 = vpop.f32.mrf.mxu0
        %v6531 = vadd.f32 %v6442, %v6530
        %v6532 = vpop.f32.mrf.mxu0
        %v6533 = vadd.f32 %v6444, %v6532
        %6534 = vmatmul.bf16.gmra.mxu0 %v4621
        %v6535 = vpop.f32.mrf.mxu0
        %v6536 = vadd.f32 %v6447, %v6535
        %v6537 = vpop.f32.mrf.mxu0
        %v6538 = vadd.f32 %v6449, %v6537
        %6539 = vmatmul.bf16.gmra.mxu0 %v4626
        %v6540 = vpop.f32.mrf.mxu0
        %v6541 = vadd.f32 %v6452, %v6540
        %v6542 = vpop.f32.mrf.mxu0
        %v6543 = vadd.f32 %v6454, %v6542
        %6544 = vmatmul.bf16.gmra.mxu0 %v4631
        %v6545 = vpop.f32.mrf.mxu0
        %v6546 = vadd.f32 %v6457, %v6545
        %v6547 = vpop.f32.mrf.mxu0
        %v6548 = vadd.f32 %v6459, %v6547
        %6549 = vmatmul.bf16.gmra.mxu0 %v4636
        %v6550 = vpop.f32.mrf.mxu0
        %v6551 = vadd.f32 %v6462, %v6550
        %v6552 = vpop.f32.mrf.mxu0
        %v6553 = vadd.f32 %v6464, %v6552
        %6554 = vmatmul.bf16.gmra.mxu0 %v4641
        %v6555 = vpop.f32.mrf.mxu0
        %v6556 = vadd.f32 %v6467, %v6555
        %v6557 = vpop.f32.mrf.mxu0
        %v6558 = vadd.f32 %v6469, %v6557
        %6559 = vmatmul.bf16.gmra.mxu0 %v4646
        %v6560 = vpop.f32.mrf.mxu0
        %v6561 = vadd.f32 %v6472, %v6560
        %v6562 = vpop.f32.mrf.mxu0
        %v6563 = vadd.f32 %v6474, %v6562
        %6564 = vdwg.mxu0
        %6565 = vmatpush.bf16.msra.mxu0 %v5658
        %6566 = vmatpush.bf16.msra.mxu0 %v5653
        %6567 = vmatpush.bf16.msra.mxu0 %v5648
        %6568 = vmatpush.bf16.msra.mxu0 %v5643
        %6569 = vmatpush.bf16.msra.mxu0 %v5638
        %6570 = vmatpush.bf16.msra.mxu0 %v5633
        %6571 = vmatpush.bf16.msra.mxu0 %v5628
        %6572 = vmatpush.bf16.msra.mxu0 %v5623
        %6573 = vmatmul.bf16.gmra.mxu0 %v4572
        %v6574 = vpop.f32.mrf.mxu0
        %v6575 = vadd.f32 %v6486, %v6574
        %v6576 = vpop.f32.mrf.mxu0
        %v6577 = vadd.f32 %v6488, %v6576
        %6578 = vmatmul.bf16.gmra.mxu0 %v4577
        %v6579 = vpop.f32.mrf.mxu0
        %v6580 = vadd.f32 %v6491, %v6579
        %v6581 = vpop.f32.mrf.mxu0
        %v6582 = vadd.f32 %v6493, %v6581
        %6583 = vmatmul.bf16.gmra.mxu0 %v4582
        %v6584 = vpop.f32.mrf.mxu0
        %v6585 = vadd.f32 %v6496, %v6584
        %v6586 = vpop.f32.mrf.mxu0
        %v6587 = vadd.f32 %v6498, %v6586
        %6588 = vmatmul.bf16.gmra.mxu0 %v4587
        %v6589 = vpop.f32.mrf.mxu0
        %v6590 = vadd.f32 %v6501, %v6589
        %v6591 = vpop.f32.mrf.mxu0
        %v6592 = vadd.f32 %v6503, %v6591
        %6593 = vmatmul.bf16.gmra.mxu0 %v4592
        %v6594 = vpop.f32.mrf.mxu0
        %v6595 = vadd.f32 %v6506, %v6594
        %v6596 = vpop.f32.mrf.mxu0
        %v6597 = vadd.f32 %v6508, %v6596
        %6598 = vmatmul.bf16.gmra.mxu0 %v4597
        %v6599 = vpop.f32.mrf.mxu0
        %v6600 = vadd.f32 %v6511, %v6599
        %v6601 = vpop.f32.mrf.mxu0
        %v6602 = vadd.f32 %v6513, %v6601
        %6603 = vmatmul.bf16.gmra.mxu0 %v4602
        %v6604 = vpop.f32.mrf.mxu0
        %v6605 = vadd.f32 %v6516, %v6604
        %v6606 = vpop.f32.mrf.mxu0
        %v6607 = vadd.f32 %v6518, %v6606
        %6608 = vmatmul.bf16.gmra.mxu0 %v4607
        %v6609 = vpop.f32.mrf.mxu0
        %v6610 = vadd.f32 %v6521, %v6609
        %v6611 = vpop.f32.mrf.mxu0
        %v6612 = vadd.f32 %v6523, %v6611
        %6613 = vmatmul.bf16.gmra.mxu0 %v4612
        %v6614 = vpop.f32.mrf.mxu0
        %v6615 = vadd.f32 %v6526, %v6614
        %v6616 = vpop.f32.mrf.mxu0
        %v6617 = vadd.f32 %v6528, %v6616
        %6618 = vmatmul.bf16.gmra.mxu0 %v4617
        %v6619 = vpop.f32.mrf.mxu0
        %v6620 = vadd.f32 %v6531, %v6619
        %v6621 = vpop.f32.mrf.mxu0
        %v6622 = vadd.f32 %v6533, %v6621
        %6623 = vmatmul.bf16.gmra.mxu0 %v4622
        %v6624 = vpop.f32.mrf.mxu0
        %v6625 = vadd.f32 %v6536, %v6624
        %v6626 = vpop.f32.mrf.mxu0
        %v6627 = vadd.f32 %v6538, %v6626
        %6628 = vmatmul.bf16.gmra.mxu0 %v4627
        %v6629 = vpop.f32.mrf.mxu0
        %v6630 = vadd.f32 %v6541, %v6629
        %v6631 = vpop.f32.mrf.mxu0
        %v6632 = vadd.f32 %v6543, %v6631
        %6633 = vmatmul.bf16.gmra.mxu0 %v4632
        %v6634 = vpop.f32.mrf.mxu0
        %v6635 = vadd.f32 %v6546, %v6634
        %v6636 = vpop.f32.mrf.mxu0
        %v6637 = vadd.f32 %v6548, %v6636
        %6638 = vmatmul.bf16.gmra.mxu0 %v4637
        %v6639 = vpop.f32.mrf.mxu0
        %v6640 = vadd.f32 %v6551, %v6639
        %v6641 = vpop.f32.mrf.mxu0
        %v6642 = vadd.f32 %v6553, %v6641
        %6643 = vmatmul.bf16.gmra.mxu0 %v4642
        %v6644 = vpop.f32.mrf.mxu0
        %v6645 = vadd.f32 %v6556, %v6644
        %v6646 = vpop.f32.mrf.mxu0
        %v6647 = vadd.f32 %v6558, %v6646
        %6648 = vmatmul.bf16.gmra.mxu0 %v4647
        %v6649 = vpop.f32.mrf.mxu0
        %v6650 = vadd.f32 %v6561, %v6649
        %v6651 = vpop.f32.mrf.mxu0
        %v6652 = vadd.f32 %v6563, %v6651
        %6653 = vdwg.mxu0
        %6654 = vmatpush.bf16.msra.mxu0 %v5698
        %6655 = vmatpush.bf16.msra.mxu0 %v5693
        %6656 = vmatpush.bf16.msra.mxu0 %v5688
        %6657 = vmatpush.bf16.msra.mxu0 %v5683
        %6658 = vmatpush.bf16.msra.mxu0 %v5678
        %6659 = vmatpush.bf16.msra.mxu0 %v5673
        %6660 = vmatpush.bf16.msra.mxu0 %v5668
        %6661 = vmatpush.bf16.msra.mxu0 %v5663
        %6662 = vmatmul.bf16.gmra.mxu0 %v4573
        %v6663 = vpop.f32.mrf.mxu0
        %v6664 = vadd.f32 %v6575, %v6663
        %v6665 = vpop.f32.mrf.mxu0
        %v6666 = vadd.f32 %v6577, %v6665
        %6667 = vmatmul.bf16.gmra.mxu0 %v4578
        %v6668 = vpop.f32.mrf.mxu0
        %v6669 = vadd.f32 %v6580, %v6668
        %v6670 = vpop.f32.mrf.mxu0
        %v6671 = vadd.f32 %v6582, %v6670
        %6672 = vmatmul.bf16.gmra.mxu0 %v4583
        %v6673 = vpop.f32.mrf.mxu0
        %v6674 = vadd.f32 %v6585, %v6673
        %v6675 = vpop.f32.mrf.mxu0
        %v6676 = vadd.f32 %v6587, %v6675
        %6677 = vmatmul.bf16.gmra.mxu0 %v4588
        %v6678 = vpop.f32.mrf.mxu0
        %v6679 = vadd.f32 %v6590, %v6678
        %v6680 = vpop.f32.mrf.mxu0
        %v6681 = vadd.f32 %v6592, %v6680
        %6682 = vmatmul.bf16.gmra.mxu0 %v4593
        %v6683 = vpop.f32.mrf.mxu0
        %v6684 = vadd.f32 %v6595, %v6683
        %v6685 = vpop.f32.mrf.mxu0
        %v6686 = vadd.f32 %v6597, %v6685
        %6687 = vmatmul.bf16.gmra.mxu0 %v4598
        %v6688 = vpop.f32.mrf.mxu0
        %v6689 = vadd.f32 %v6600, %v6688
        %v6690 = vpop.f32.mrf.mxu0
        %v6691 = vadd.f32 %v6602, %v6690
        %6692 = vmatmul.bf16.gmra.mxu0 %v4603
        %v6693 = vpop.f32.mrf.mxu0
        %v6694 = vadd.f32 %v6605, %v6693
        %v6695 = vpop.f32.mrf.mxu0
        %v6696 = vadd.f32 %v6607, %v6695
        %6697 = vmatmul.bf16.gmra.mxu0 %v4608
        %v6698 = vpop.f32.mrf.mxu0
        %v6699 = vadd.f32 %v6610, %v6698
        %v6700 = vpop.f32.mrf.mxu0
        %v6701 = vadd.f32 %v6612, %v6700
        %6702 = vmatmul.bf16.gmra.mxu0 %v4613
        %v6703 = vpop.f32.mrf.mxu0
        %v6704 = vadd.f32 %v6615, %v6703
        %v6705 = vpop.f32.mrf.mxu0
        %v6706 = vadd.f32 %v6617, %v6705
        %6707 = vmatmul.bf16.gmra.mxu0 %v4618
        %v6708 = vpop.f32.mrf.mxu0
        %v6709 = vadd.f32 %v6620, %v6708
        %v6710 = vpop.f32.mrf.mxu0
        %v6711 = vadd.f32 %v6622, %v6710
        %6712 = vmatmul.bf16.gmra.mxu0 %v4623
        %v6713 = vpop.f32.mrf.mxu0
        %v6714 = vadd.f32 %v6625, %v6713
        %v6715 = vpop.f32.mrf.mxu0
        %v6716 = vadd.f32 %v6627, %v6715
        %6717 = vmatmul.bf16.gmra.mxu0 %v4628
        %v6718 = vpop.f32.mrf.mxu0
        %v6719 = vadd.f32 %v6630, %v6718
        %v6720 = vpop.f32.mrf.mxu0
        %v6721 = vadd.f32 %v6632, %v6720
        %6722 = vmatmul.bf16.gmra.mxu0 %v4633
        %v6723 = vpop.f32.mrf.mxu0
        %v6724 = vadd.f32 %v6635, %v6723
        %v6725 = vpop.f32.mrf.mxu0
        %v6726 = vadd.f32 %v6637, %v6725
        %6727 = vmatmul.bf16.gmra.mxu0 %v4638
        %v6728 = vpop.f32.mrf.mxu0
        %v6729 = vadd.f32 %v6640, %v6728
        %v6730 = vpop.f32.mrf.mxu0
        %v6731 = vadd.f32 %v6642, %v6730
        %6732 = vmatmul.bf16.gmra.mxu0 %v4643
        %v6733 = vpop.f32.mrf.mxu0
        %v6734 = vadd.f32 %v6645, %v6733
        %v6735 = vpop.f32.mrf.mxu0
        %v6736 = vadd.f32 %v6647, %v6735
        %6737 = vmatmul.bf16.gmra.mxu0 %v4648
        %v6738 = vpop.f32.mrf.mxu0
        %v6739 = vadd.f32 %v6650, %v6738
        %v6740 = vpop.f32.mrf.mxu0
        %v6741 = vadd.f32 %v6652, %v6740
        %6742 = vdwg.mxu0
        %6743 = vmatpush.bf16.msra.mxu0 %v5738
        %6744 = vmatpush.bf16.msra.mxu0 %v5733
        %6745 = vmatpush.bf16.msra.mxu0 %v5728
        %6746 = vmatpush.bf16.msra.mxu0 %v5723
        %6747 = vmatpush.bf16.msra.mxu0 %v5718
        %6748 = vmatpush.bf16.msra.mxu0 %v5713
        %6749 = vmatpush.bf16.msra.mxu0 %v5708
        %6750 = vmatpush.bf16.msra.mxu0 %v5703
        %6751 = vmatmul.bf16.gmra.mxu0 %v4574
        %v6752 = vpop.f32.mrf.mxu0
        %v6753 = vadd.f32 %v6664, %v6752
        %v6754 = vpop.f32.mrf.mxu0
        %v6755 = vadd.f32 %v6666, %v6754
        %6756 = vmatmul.bf16.gmra.mxu0 %v4579
        %v6757 = vpop.f32.mrf.mxu0
        %v6758 = vadd.f32 %v6669, %v6757
        %v6759 = vpop.f32.mrf.mxu0
        %v6760 = vadd.f32 %v6671, %v6759
        %6761 = vmatmul.bf16.gmra.mxu0 %v4584
        %v6762 = vpop.f32.mrf.mxu0
        %v6763 = vadd.f32 %v6674, %v6762
        %v6764 = vpop.f32.mrf.mxu0
        %v6765 = vadd.f32 %v6676, %v6764
        %6766 = vmatmul.bf16.gmra.mxu0 %v4589
        %v6767 = vpop.f32.mrf.mxu0
        %v6768 = vadd.f32 %v6679, %v6767
        %v6769 = vpop.f32.mrf.mxu0
        %v6770 = vadd.f32 %v6681, %v6769
        %6771 = vmatmul.bf16.gmra.mxu0 %v4594
        %v6772 = vpop.f32.mrf.mxu0
        %v6773 = vadd.f32 %v6684, %v6772
        %v6774 = vpop.f32.mrf.mxu0
        %v6775 = vadd.f32 %v6686, %v6774
        %6776 = vmatmul.bf16.gmra.mxu0 %v4599
        %v6777 = vpop.f32.mrf.mxu0
        %v6778 = vadd.f32 %v6689, %v6777
        %v6779 = vpop.f32.mrf.mxu0
        %v6780 = vadd.f32 %v6691, %v6779
        %6781 = vmatmul.bf16.gmra.mxu0 %v4604
        %v6782 = vpop.f32.mrf.mxu0
        %v6783 = vadd.f32 %v6694, %v6782
        %v6784 = vpop.f32.mrf.mxu0
        %v6785 = vadd.f32 %v6696, %v6784
        %6786 = vmatmul.bf16.gmra.mxu0 %v4609
        %v6787 = vpop.f32.mrf.mxu0
        %v6788 = vadd.f32 %v6699, %v6787
        %v6789 = vpop.f32.mrf.mxu0
        %v6790 = vadd.f32 %v6701, %v6789
        %6791 = vmatmul.bf16.gmra.mxu0 %v4614
        %v6792 = vpop.f32.mrf.mxu0
        %v6793 = vadd.f32 %v6704, %v6792
        %v6794 = vpop.f32.mrf.mxu0
        %v6795 = vadd.f32 %v6706, %v6794
        %6796 = vmatmul.bf16.gmra.mxu0 %v4619
        %v6797 = vpop.f32.mrf.mxu0
        %v6798 = vadd.f32 %v6709, %v6797
        %v6799 = vpop.f32.mrf.mxu0
        %v6800 = vadd.f32 %v6711, %v6799
        %6801 = vmatmul.bf16.gmra.mxu0 %v4624
        %v6802 = vpop.f32.mrf.mxu0
        %v6803 = vadd.f32 %v6714, %v6802
        %v6804 = vpop.f32.mrf.mxu0
        %v6805 = vadd.f32 %v6716, %v6804
        %6806 = vmatmul.bf16.gmra.mxu0 %v4629
        %v6807 = vpop.f32.mrf.mxu0
        %v6808 = vadd.f32 %v6719, %v6807
        %v6809 = vpop.f32.mrf.mxu0
        %v6810 = vadd.f32 %v6721, %v6809
        %6811 = vmatmul.bf16.gmra.mxu0 %v4634
        %v6812 = vpop.f32.mrf.mxu0
        %v6813 = vadd.f32 %v6724, %v6812
        %v6814 = vpop.f32.mrf.mxu0
        %v6815 = vadd.f32 %v6726, %v6814
        %6816 = vmatmul.bf16.gmra.mxu0 %v4639
        %v6817 = vpop.f32.mrf.mxu0
        %v6818 = vadd.f32 %v6729, %v6817
        %v6819 = vpop.f32.mrf.mxu0
        %v6820 = vadd.f32 %v6731, %v6819
        %6821 = vmatmul.bf16.gmra.mxu0 %v4644
        %v6822 = vpop.f32.mrf.mxu0
        %v6823 = vadd.f32 %v6734, %v6822
        %v6824 = vpop.f32.mrf.mxu0
        %v6825 = vadd.f32 %v6736, %v6824
        %6826 = vmatmul.bf16.gmra.mxu0 %v4649
        %v6827 = vpop.f32.mrf.mxu0
        %v6828 = vadd.f32 %v6739, %v6827
        %v6829 = vpop.f32.mrf.mxu0
        %v6830 = vadd.f32 %v6741, %v6829
        %6831 = vdwg.mxu0
        %6832 = vmatpush.bf16.msra.mxu0 %v5579
        %6833 = vmatpush.bf16.msra.mxu0 %v5574
        %6834 = vmatpush.bf16.msra.mxu0 %v5569
        %6835 = vmatpush.bf16.msra.mxu0 %v5564
        %6836 = vmatpush.bf16.msra.mxu0 %v5559
        %6837 = vmatpush.bf16.msra.mxu0 %v5554
        %6838 = vmatpush.bf16.msra.mxu0 %v5549
        %6839 = vmatpush.bf16.msra.mxu0 %v5544
        %6840 = vmatmul.bf16.gmra.mxu0 %v4570
        %v6841 = vpop.f32.mrf.mxu0
        %v6842 = vadd.f32 %v4894, %v6841
        %v6843 = vpop.f32.mrf.mxu0
        %v6844 = vadd.f32 %v4894, %v6843
        %6845 = vmatmul.bf16.gmra.mxu0 %v4575
        %v6846 = vpop.f32.mrf.mxu0
        %v6847 = vadd.f32 %v4894, %v6846
        %v6848 = vpop.f32.mrf.mxu0
        %v6849 = vadd.f32 %v4894, %v6848
        %6850 = vmatmul.bf16.gmra.mxu0 %v4580
        %v6851 = vpop.f32.mrf.mxu0
        %v6852 = vadd.f32 %v4894, %v6851
        %v6853 = vpop.f32.mrf.mxu0
        %v6854 = vadd.f32 %v4894, %v6853
        %6855 = vmatmul.bf16.gmra.mxu0 %v4585
        %v6856 = vpop.f32.mrf.mxu0
        %v6857 = vadd.f32 %v4894, %v6856
        %v6858 = vpop.f32.mrf.mxu0
        %v6859 = vadd.f32 %v4894, %v6858
        %6860 = vmatmul.bf16.gmra.mxu0 %v4590
        %v6861 = vpop.f32.mrf.mxu0
        %v6862 = vadd.f32 %v4894, %v6861
        %v6863 = vpop.f32.mrf.mxu0
        %v6864 = vadd.f32 %v4894, %v6863
        %6865 = vmatmul.bf16.gmra.mxu0 %v4595
        %v6866 = vpop.f32.mrf.mxu0
        %v6867 = vadd.f32 %v4894, %v6866
        %v6868 = vpop.f32.mrf.mxu0
        %v6869 = vadd.f32 %v4894, %v6868
        %6870 = vmatmul.bf16.gmra.mxu0 %v4600
        %v6871 = vpop.f32.mrf.mxu0
        %v6872 = vadd.f32 %v4894, %v6871
        %v6873 = vpop.f32.mrf.mxu0
        %v6874 = vadd.f32 %v4894, %v6873
        %6875 = vmatmul.bf16.gmra.mxu0 %v4605
        %v6876 = vpop.f32.mrf.mxu0
        %v6877 = vadd.f32 %v4894, %v6876
        %v6878 = vpop.f32.mrf.mxu0
        %v6879 = vadd.f32 %v4894, %v6878
        %6880 = vmatmul.bf16.gmra.mxu0 %v4610
        %v6881 = vpop.f32.mrf.mxu0
        %v6882 = vadd.f32 %v4894, %v6881
        %v6883 = vpop.f32.mrf.mxu0
        %v6884 = vadd.f32 %v4894, %v6883
        %6885 = vmatmul.bf16.gmra.mxu0 %v4615
        %v6886 = vpop.f32.mrf.mxu0
        %v6887 = vadd.f32 %v4894, %v6886
        %v6888 = vpop.f32.mrf.mxu0
        %v6889 = vadd.f32 %v4894, %v6888
        %6890 = vmatmul.bf16.gmra.mxu0 %v4620
        %v6891 = vpop.f32.mrf.mxu0
        %v6892 = vadd.f32 %v4894, %v6891
        %v6893 = vpop.f32.mrf.mxu0
        %v6894 = vadd.f32 %v4894, %v6893
        %6895 = vmatmul.bf16.gmra.mxu0 %v4625
        %v6896 = vpop.f32.mrf.mxu0
        %v6897 = vadd.f32 %v4894, %v6896
        %v6898 = vpop.f32.mrf.mxu0
        %v6899 = vadd.f32 %v4894, %v6898
        %6900 = vmatmul.bf16.gmra.mxu0 %v4630
        %v6901 = vpop.f32.mrf.mxu0
        %v6902 = vadd.f32 %v4894, %v6901
        %v6903 = vpop.f32.mrf.mxu0
        %v6904 = vadd.f32 %v4894, %v6903
        %6905 = vmatmul.bf16.gmra.mxu0 %v4635
        %v6906 = vpop.f32.mrf.mxu0
        %v6907 = vadd.f32 %v4894, %v6906
        %v6908 = vpop.f32.mrf.mxu0
        %v6909 = vadd.f32 %v4894, %v6908
        %6910 = vmatmul.bf16.gmra.mxu0 %v4640
        %v6911 = vpop.f32.mrf.mxu0
        %v6912 = vadd.f32 %v4894, %v6911
        %v6913 = vpop.f32.mrf.mxu0
        %v6914 = vadd.f32 %v4894, %v6913
        %6915 = vmatmul.bf16.gmra.mxu0 %v4645
        %v6916 = vpop.f32.mrf.mxu0
        %v6917 = vadd.f32 %v4894, %v6916
        %v6918 = vpop.f32.mrf.mxu0
        %v6919 = vadd.f32 %v4894, %v6918
        %6920 = vdwg.mxu0
        %6921 = vmatpush.bf16.msra.mxu0 %v5619
        %6922 = vmatpush.bf16.msra.mxu0 %v5614
        %6923 = vmatpush.bf16.msra.mxu0 %v5609
        %6924 = vmatpush.bf16.msra.mxu0 %v5604
        %6925 = vmatpush.bf16.msra.mxu0 %v5599
        %6926 = vmatpush.bf16.msra.mxu0 %v5594
        %6927 = vmatpush.bf16.msra.mxu0 %v5589
        %6928 = vmatpush.bf16.msra.mxu0 %v5584
        %6929 = vmatmul.bf16.gmra.mxu0 %v4571
        %v6930 = vpop.f32.mrf.mxu0
        %v6931 = vadd.f32 %v6842, %v6930
        %v6932 = vpop.f32.mrf.mxu0
        %v6933 = vadd.f32 %v6844, %v6932
        %6934 = vmatmul.bf16.gmra.mxu0 %v4576
        %v6935 = vpop.f32.mrf.mxu0
        %v6936 = vadd.f32 %v6847, %v6935
        %v6937 = vpop.f32.mrf.mxu0
        %v6938 = vadd.f32 %v6849, %v6937
        %6939 = vmatmul.bf16.gmra.mxu0 %v4581
        %v6940 = vpop.f32.mrf.mxu0
        %v6941 = vadd.f32 %v6852, %v6940
        %v6942 = vpop.f32.mrf.mxu0
        %v6943 = vadd.f32 %v6854, %v6942
        %6944 = vmatmul.bf16.gmra.mxu0 %v4586
        %v6945 = vpop.f32.mrf.mxu0
        %v6946 = vadd.f32 %v6857, %v6945
        %v6947 = vpop.f32.mrf.mxu0
        %v6948 = vadd.f32 %v6859, %v6947
        %6949 = vmatmul.bf16.gmra.mxu0 %v4591
        %v6950 = vpop.f32.mrf.mxu0
        %v6951 = vadd.f32 %v6862, %v6950
        %v6952 = vpop.f32.mrf.mxu0
        %v6953 = vadd.f32 %v6864, %v6952
        %6954 = vmatmul.bf16.gmra.mxu0 %v4596
        %v6955 = vpop.f32.mrf.mxu0
        %v6956 = vadd.f32 %v6867, %v6955
        %v6957 = vpop.f32.mrf.mxu0
        %v6958 = vadd.f32 %v6869, %v6957
        %6959 = vmatmul.bf16.gmra.mxu0 %v4601
        %v6960 = vpop.f32.mrf.mxu0
        %v6961 = vadd.f32 %v6872, %v6960
        %v6962 = vpop.f32.mrf.mxu0
        %v6963 = vadd.f32 %v6874, %v6962
        %6964 = vmatmul.bf16.gmra.mxu0 %v4606
        %v6965 = vpop.f32.mrf.mxu0
        %v6966 = vadd.f32 %v6877, %v6965
        %v6967 = vpop.f32.mrf.mxu0
        %v6968 = vadd.f32 %v6879, %v6967
        %6969 = vmatmul.bf16.gmra.mxu0 %v4611
        %v6970 = vpop.f32.mrf.mxu0
        %v6971 = vadd.f32 %v6882, %v6970
        %v6972 = vpop.f32.mrf.mxu0
        %v6973 = vadd.f32 %v6884, %v6972
        %6974 = vmatmul.bf16.gmra.mxu0 %v4616
        %v6975 = vpop.f32.mrf.mxu0
        %v6976 = vadd.f32 %v6887, %v6975
        %v6977 = vpop.f32.mrf.mxu0
        %v6978 = vadd.f32 %v6889, %v6977
        %6979 = vmatmul.bf16.gmra.mxu0 %v4621
        %v6980 = vpop.f32.mrf.mxu0
        %v6981 = vadd.f32 %v6892, %v6980
        %v6982 = vpop.f32.mrf.mxu0
        %v6983 = vadd.f32 %v6894, %v6982
        %6984 = vmatmul.bf16.gmra.mxu0 %v4626
        %v6985 = vpop.f32.mrf.mxu0
        %v6986 = vadd.f32 %v6897, %v6985
        %v6987 = vpop.f32.mrf.mxu0
        %v6988 = vadd.f32 %v6899, %v6987
        %6989 = vmatmul.bf16.gmra.mxu0 %v4631
        %v6990 = vpop.f32.mrf.mxu0
        %v6991 = vadd.f32 %v6902, %v6990
        %v6992 = vpop.f32.mrf.mxu0
        %v6993 = vadd.f32 %v6904, %v6992
        %6994 = vmatmul.bf16.gmra.mxu0 %v4636
        %v6995 = vpop.f32.mrf.mxu0
        %v6996 = vadd.f32 %v6907, %v6995
        %v6997 = vpop.f32.mrf.mxu0
        %v6998 = vadd.f32 %v6909, %v6997
        %6999 = vmatmul.bf16.gmra.mxu0 %v4641
        %v7000 = vpop.f32.mrf.mxu0
        %v7001 = vadd.f32 %v6912, %v7000
        %v7002 = vpop.f32.mrf.mxu0
        %v7003 = vadd.f32 %v6914, %v7002
        %7004 = vmatmul.bf16.gmra.mxu0 %v4646
        %v7005 = vpop.f32.mrf.mxu0
        %v7006 = vadd.f32 %v6917, %v7005
        %v7007 = vpop.f32.mrf.mxu0
        %v7008 = vadd.f32 %v6919, %v7007
        %7009 = vdwg.mxu0
        %7010 = vmatpush.bf16.msra.mxu0 %v5659
        %7011 = vmatpush.bf16.msra.mxu0 %v5654
        %7012 = vmatpush.bf16.msra.mxu0 %v5649
        %7013 = vmatpush.bf16.msra.mxu0 %v5644
        %7014 = vmatpush.bf16.msra.mxu0 %v5639
        %7015 = vmatpush.bf16.msra.mxu0 %v5634
        %7016 = vmatpush.bf16.msra.mxu0 %v5629
        %7017 = vmatpush.bf16.msra.mxu0 %v5624
        %7018 = vmatmul.bf16.gmra.mxu0 %v4572
        %v7019 = vpop.f32.mrf.mxu0
        %v7020 = vadd.f32 %v6931, %v7019
        %v7021 = vpop.f32.mrf.mxu0
        %v7022 = vadd.f32 %v6933, %v7021
        %7023 = vmatmul.bf16.gmra.mxu0 %v4577
        %v7024 = vpop.f32.mrf.mxu0
        %v7025 = vadd.f32 %v6936, %v7024
        %v7026 = vpop.f32.mrf.mxu0
        %v7027 = vadd.f32 %v6938, %v7026
        %7028 = vmatmul.bf16.gmra.mxu0 %v4582
        %v7029 = vpop.f32.mrf.mxu0
        %v7030 = vadd.f32 %v6941, %v7029
        %v7031 = vpop.f32.mrf.mxu0
        %v7032 = vadd.f32 %v6943, %v7031
        %7033 = vmatmul.bf16.gmra.mxu0 %v4587
        %v7034 = vpop.f32.mrf.mxu0
        %v7035 = vadd.f32 %v6946, %v7034
        %v7036 = vpop.f32.mrf.mxu0
        %v7037 = vadd.f32 %v6948, %v7036
        %7038 = vmatmul.bf16.gmra.mxu0 %v4592
        %v7039 = vpop.f32.mrf.mxu0
        %v7040 = vadd.f32 %v6951, %v7039
        %v7041 = vpop.f32.mrf.mxu0
        %v7042 = vadd.f32 %v6953, %v7041
        %7043 = vmatmul.bf16.gmra.mxu0 %v4597
        %v7044 = vpop.f32.mrf.mxu0
        %v7045 = vadd.f32 %v6956, %v7044
        %v7046 = vpop.f32.mrf.mxu0
        %v7047 = vadd.f32 %v6958, %v7046
        %7048 = vmatmul.bf16.gmra.mxu0 %v4602
        %v7049 = vpop.f32.mrf.mxu0
        %v7050 = vadd.f32 %v6961, %v7049
        %v7051 = vpop.f32.mrf.mxu0
        %v7052 = vadd.f32 %v6963, %v7051
        %7053 = vmatmul.bf16.gmra.mxu0 %v4607
        %v7054 = vpop.f32.mrf.mxu0
        %v7055 = vadd.f32 %v6966, %v7054
        %v7056 = vpop.f32.mrf.mxu0
        %v7057 = vadd.f32 %v6968, %v7056
        %7058 = vmatmul.bf16.gmra.mxu0 %v4612
        %v7059 = vpop.f32.mrf.mxu0
        %v7060 = vadd.f32 %v6971, %v7059
        %v7061 = vpop.f32.mrf.mxu0
        %v7062 = vadd.f32 %v6973, %v7061
        %7063 = vmatmul.bf16.gmra.mxu0 %v4617
        %v7064 = vpop.f32.mrf.mxu0
        %v7065 = vadd.f32 %v6976, %v7064
        %v7066 = vpop.f32.mrf.mxu0
        %v7067 = vadd.f32 %v6978, %v7066
        %7068 = vmatmul.bf16.gmra.mxu0 %v4622
        %v7069 = vpop.f32.mrf.mxu0
        %v7070 = vadd.f32 %v6981, %v7069
        %v7071 = vpop.f32.mrf.mxu0
        %v7072 = vadd.f32 %v6983, %v7071
        %7073 = vmatmul.bf16.gmra.mxu0 %v4627
        %v7074 = vpop.f32.mrf.mxu0
        %v7075 = vadd.f32 %v6986, %v7074
        %v7076 = vpop.f32.mrf.mxu0
        %v7077 = vadd.f32 %v6988, %v7076
        %7078 = vmatmul.bf16.gmra.mxu0 %v4632
        %v7079 = vpop.f32.mrf.mxu0
        %v7080 = vadd.f32 %v6991, %v7079
        %v7081 = vpop.f32.mrf.mxu0
        %v7082 = vadd.f32 %v6993, %v7081
        %7083 = vmatmul.bf16.gmra.mxu0 %v4637
        %v7084 = vpop.f32.mrf.mxu0
        %v7085 = vadd.f32 %v6996, %v7084
        %v7086 = vpop.f32.mrf.mxu0
        %v7087 = vadd.f32 %v6998, %v7086
        %7088 = vmatmul.bf16.gmra.mxu0 %v4642
        %v7089 = vpop.f32.mrf.mxu0
        %v7090 = vadd.f32 %v7001, %v7089
        %v7091 = vpop.f32.mrf.mxu0
        %v7092 = vadd.f32 %v7003, %v7091
        %7093 = vmatmul.bf16.gmra.mxu0 %v4647
        %v7094 = vpop.f32.mrf.mxu0
        %v7095 = vadd.f32 %v7006, %v7094
        %v7096 = vpop.f32.mrf.mxu0
        %v7097 = vadd.f32 %v7008, %v7096
        %7098 = vdwg.mxu0
        %7099 = vmatpush.bf16.msra.mxu0 %v5699
        %7100 = vmatpush.bf16.msra.mxu0 %v5694
        %7101 = vmatpush.bf16.msra.mxu0 %v5689
        %7102 = vmatpush.bf16.msra.mxu0 %v5684
        %7103 = vmatpush.bf16.msra.mxu0 %v5679
        %7104 = vmatpush.bf16.msra.mxu0 %v5674
        %7105 = vmatpush.bf16.msra.mxu0 %v5669
        %7106 = vmatpush.bf16.msra.mxu0 %v5664
        %7107 = vmatmul.bf16.gmra.mxu0 %v4573
        %v7108 = vpop.f32.mrf.mxu0
        %v7109 = vadd.f32 %v7020, %v7108
        %v7110 = vpop.f32.mrf.mxu0
        %v7111 = vadd.f32 %v7022, %v7110
        %7112 = vmatmul.bf16.gmra.mxu0 %v4578
        %v7113 = vpop.f32.mrf.mxu0
        %v7114 = vadd.f32 %v7025, %v7113
        %v7115 = vpop.f32.mrf.mxu0
        %v7116 = vadd.f32 %v7027, %v7115
        %7117 = vmatmul.bf16.gmra.mxu0 %v4583
        %v7118 = vpop.f32.mrf.mxu0
        %v7119 = vadd.f32 %v7030, %v7118
        %v7120 = vpop.f32.mrf.mxu0
        %v7121 = vadd.f32 %v7032, %v7120
        %7122 = vmatmul.bf16.gmra.mxu0 %v4588
        %v7123 = vpop.f32.mrf.mxu0
        %v7124 = vadd.f32 %v7035, %v7123
        %v7125 = vpop.f32.mrf.mxu0
        %v7126 = vadd.f32 %v7037, %v7125
        %7127 = vmatmul.bf16.gmra.mxu0 %v4593
        %v7128 = vpop.f32.mrf.mxu0
        %v7129 = vadd.f32 %v7040, %v7128
        %v7130 = vpop.f32.mrf.mxu0
        %v7131 = vadd.f32 %v7042, %v7130
        %7132 = vmatmul.bf16.gmra.mxu0 %v4598
        %v7133 = vpop.f32.mrf.mxu0
        %v7134 = vadd.f32 %v7045, %v7133
        %v7135 = vpop.f32.mrf.mxu0
        %v7136 = vadd.f32 %v7047, %v7135
        %7137 = vmatmul.bf16.gmra.mxu0 %v4603
        %v7138 = vpop.f32.mrf.mxu0
        %v7139 = vadd.f32 %v7050, %v7138
        %v7140 = vpop.f32.mrf.mxu0
        %v7141 = vadd.f32 %v7052, %v7140
        %7142 = vmatmul.bf16.gmra.mxu0 %v4608
        %v7143 = vpop.f32.mrf.mxu0
        %v7144 = vadd.f32 %v7055, %v7143
        %v7145 = vpop.f32.mrf.mxu0
        %v7146 = vadd.f32 %v7057, %v7145
        %7147 = vmatmul.bf16.gmra.mxu0 %v4613
        %v7148 = vpop.f32.mrf.mxu0
        %v7149 = vadd.f32 %v7060, %v7148
        %v7150 = vpop.f32.mrf.mxu0
        %v7151 = vadd.f32 %v7062, %v7150
        %7152 = vmatmul.bf16.gmra.mxu0 %v4618
        %v7153 = vpop.f32.mrf.mxu0
        %v7154 = vadd.f32 %v7065, %v7153
        %v7155 = vpop.f32.mrf.mxu0
        %v7156 = vadd.f32 %v7067, %v7155
        %7157 = vmatmul.bf16.gmra.mxu0 %v4623
        %v7158 = vpop.f32.mrf.mxu0
        %v7159 = vadd.f32 %v7070, %v7158
        %v7160 = vpop.f32.mrf.mxu0
        %v7161 = vadd.f32 %v7072, %v7160
        %7162 = vmatmul.bf16.gmra.mxu0 %v4628
        %v7163 = vpop.f32.mrf.mxu0
        %v7164 = vadd.f32 %v7075, %v7163
        %v7165 = vpop.f32.mrf.mxu0
        %v7166 = vadd.f32 %v7077, %v7165
        %7167 = vmatmul.bf16.gmra.mxu0 %v4633
        %v7168 = vpop.f32.mrf.mxu0
        %v7169 = vadd.f32 %v7080, %v7168
        %v7170 = vpop.f32.mrf.mxu0
        %v7171 = vadd.f32 %v7082, %v7170
        %7172 = vmatmul.bf16.gmra.mxu0 %v4638
        %v7173 = vpop.f32.mrf.mxu0
        %v7174 = vadd.f32 %v7085, %v7173
        %v7175 = vpop.f32.mrf.mxu0
        %v7176 = vadd.f32 %v7087, %v7175
        %7177 = vmatmul.bf16.gmra.mxu0 %v4643
        %v7178 = vpop.f32.mrf.mxu0
        %v7179 = vadd.f32 %v7090, %v7178
        %v7180 = vpop.f32.mrf.mxu0
        %v7181 = vadd.f32 %v7092, %v7180
        %7182 = vmatmul.bf16.gmra.mxu0 %v4648
        %v7183 = vpop.f32.mrf.mxu0
        %v7184 = vadd.f32 %v7095, %v7183
        %v7185 = vpop.f32.mrf.mxu0
        %v7186 = vadd.f32 %v7097, %v7185
        %7187 = vdwg.mxu0
        %7188 = vmatpush.bf16.msra.mxu0 %v5739
        %7189 = vmatpush.bf16.msra.mxu0 %v5734
        %7190 = vmatpush.bf16.msra.mxu0 %v5729
        %7191 = vmatpush.bf16.msra.mxu0 %v5724
        %7192 = vmatpush.bf16.msra.mxu0 %v5719
        %7193 = vmatpush.bf16.msra.mxu0 %v5714
        %7194 = vmatpush.bf16.msra.mxu0 %v5709
        %7195 = vmatpush.bf16.msra.mxu0 %v5704
        %7196 = vmatmul.bf16.gmra.mxu0 %v4574
        %v7197 = vpop.f32.mrf.mxu0
        %v7198 = vadd.f32 %v7109, %v7197
        %v7199 = vpop.f32.mrf.mxu0
        %v7200 = vadd.f32 %v7111, %v7199
        %7201 = vmatmul.bf16.gmra.mxu0 %v4579
        %v7202 = vpop.f32.mrf.mxu0
        %v7203 = vadd.f32 %v7114, %v7202
        %v7204 = vpop.f32.mrf.mxu0
        %v7205 = vadd.f32 %v7116, %v7204
        %7206 = vmatmul.bf16.gmra.mxu0 %v4584
        %v7207 = vpop.f32.mrf.mxu0
        %v7208 = vadd.f32 %v7119, %v7207
        %v7209 = vpop.f32.mrf.mxu0
        %v7210 = vadd.f32 %v7121, %v7209
        %7211 = vmatmul.bf16.gmra.mxu0 %v4589
        %v7212 = vpop.f32.mrf.mxu0
        %v7213 = vadd.f32 %v7124, %v7212
        %v7214 = vpop.f32.mrf.mxu0
        %v7215 = vadd.f32 %v7126, %v7214
        %7216 = vmatmul.bf16.gmra.mxu0 %v4594
        %v7217 = vpop.f32.mrf.mxu0
        %v7218 = vadd.f32 %v7129, %v7217
        %v7219 = vpop.f32.mrf.mxu0
        %v7220 = vadd.f32 %v7131, %v7219
        %7221 = vmatmul.bf16.gmra.mxu0 %v4599
        %v7222 = vpop.f32.mrf.mxu0
        %v7223 = vadd.f32 %v7134, %v7222
        %v7224 = vpop.f32.mrf.mxu0
        %v7225 = vadd.f32 %v7136, %v7224
        %7226 = vmatmul.bf16.gmra.mxu0 %v4604
        %v7227 = vpop.f32.mrf.mxu0
        %v7228 = vadd.f32 %v7139, %v7227
        %v7229 = vpop.f32.mrf.mxu0
        %v7230 = vadd.f32 %v7141, %v7229
        %7231 = vmatmul.bf16.gmra.mxu0 %v4609
        %v7232 = vpop.f32.mrf.mxu0
        %v7233 = vadd.f32 %v7144, %v7232
        %v7234 = vpop.f32.mrf.mxu0
        %v7235 = vadd.f32 %v7146, %v7234
        %7236 = vmatmul.bf16.gmra.mxu0 %v4614
        %v7237 = vpop.f32.mrf.mxu0
        %v7238 = vadd.f32 %v7149, %v7237
        %v7239 = vpop.f32.mrf.mxu0
        %v7240 = vadd.f32 %v7151, %v7239
        %7241 = vmatmul.bf16.gmra.mxu0 %v4619
        %v7242 = vpop.f32.mrf.mxu0
        %v7243 = vadd.f32 %v7154, %v7242
        %v7244 = vpop.f32.mrf.mxu0
        %v7245 = vadd.f32 %v7156, %v7244
        %7246 = vmatmul.bf16.gmra.mxu0 %v4624
        %v7247 = vpop.f32.mrf.mxu0
        %v7248 = vadd.f32 %v7159, %v7247
        %v7249 = vpop.f32.mrf.mxu0
        %v7250 = vadd.f32 %v7161, %v7249
        %7251 = vmatmul.bf16.gmra.mxu0 %v4629
        %v7252 = vpop.f32.mrf.mxu0
        %v7253 = vadd.f32 %v7164, %v7252
        %v7254 = vpop.f32.mrf.mxu0
        %v7255 = vadd.f32 %v7166, %v7254
        %7256 = vmatmul.bf16.gmra.mxu0 %v4634
        %v7257 = vpop.f32.mrf.mxu0
        %v7258 = vadd.f32 %v7169, %v7257
        %v7259 = vpop.f32.mrf.mxu0
        %v7260 = vadd.f32 %v7171, %v7259
        %7261 = vmatmul.bf16.gmra.mxu0 %v4639
        %v7262 = vpop.f32.mrf.mxu0
        %v7263 = vadd.f32 %v7174, %v7262
        %v7264 = vpop.f32.mrf.mxu0
        %v7265 = vadd.f32 %v7176, %v7264
        %7266 = vmatmul.bf16.gmra.mxu0 %v4644
        %v7267 = vpop.f32.mrf.mxu0
        %v7268 = vadd.f32 %v7179, %v7267
        %v7269 = vpop.f32.mrf.mxu0
        %v7270 = vadd.f32 %v7181, %v7269
        %7271 = vmatmul.bf16.gmra.mxu0 %v4649
        %v7272 = vpop.f32.mrf.mxu0
        %v7273 = vadd.f32 %v7184, %v7272
        %v7274 = vpop.f32.mrf.mxu0
        %v7275 = vadd.f32 %v7186, %v7274
        %7276 = vdwg.mxu0
        %7277 = vmatpush.bf16.msra.mxu0 %v5580
        %7278 = vmatpush.bf16.msra.mxu0 %v5575
        %7279 = vmatpush.bf16.msra.mxu0 %v5570
        %7280 = vmatpush.bf16.msra.mxu0 %v5565
        %7281 = vmatpush.bf16.msra.mxu0 %v5560
        %7282 = vmatpush.bf16.msra.mxu0 %v5555
        %7283 = vmatpush.bf16.msra.mxu0 %v5550
        %7284 = vmatpush.bf16.msra.mxu0 %v5545
        %7285 = vmatmul.bf16.gmra.mxu0 %v4570
        %v7286 = vpop.f32.mrf.mxu0
        %v7287 = vadd.f32 %v4895, %v7286
        %v7288 = vpop.f32.mrf.mxu0
        %v7289 = vadd.f32 %v4895, %v7288
        %7290 = vmatmul.bf16.gmra.mxu0 %v4575
        %v7291 = vpop.f32.mrf.mxu0
        %v7292 = vadd.f32 %v4895, %v7291
        %v7293 = vpop.f32.mrf.mxu0
        %v7294 = vadd.f32 %v4895, %v7293
        %7295 = vmatmul.bf16.gmra.mxu0 %v4580
        %v7296 = vpop.f32.mrf.mxu0
        %v7297 = vadd.f32 %v4895, %v7296
        %v7298 = vpop.f32.mrf.mxu0
        %v7299 = vadd.f32 %v4895, %v7298
        %7300 = vmatmul.bf16.gmra.mxu0 %v4585
        %v7301 = vpop.f32.mrf.mxu0
        %v7302 = vadd.f32 %v4895, %v7301
        %v7303 = vpop.f32.mrf.mxu0
        %v7304 = vadd.f32 %v4895, %v7303
        %7305 = vmatmul.bf16.gmra.mxu0 %v4590
        %v7306 = vpop.f32.mrf.mxu0
        %v7307 = vadd.f32 %v4895, %v7306
        %v7308 = vpop.f32.mrf.mxu0
        %v7309 = vadd.f32 %v4895, %v7308
        %7310 = vmatmul.bf16.gmra.mxu0 %v4595
        %v7311 = vpop.f32.mrf.mxu0
        %v7312 = vadd.f32 %v4895, %v7311
        %v7313 = vpop.f32.mrf.mxu0
        %v7314 = vadd.f32 %v4895, %v7313
        %7315 = vmatmul.bf16.gmra.mxu0 %v4600
        %v7316 = vpop.f32.mrf.mxu0
        %v7317 = vadd.f32 %v4895, %v7316
        %v7318 = vpop.f32.mrf.mxu0
        %v7319 = vadd.f32 %v4895, %v7318
        %7320 = vmatmul.bf16.gmra.mxu0 %v4605
        %v7321 = vpop.f32.mrf.mxu0
        %v7322 = vadd.f32 %v4895, %v7321
        %v7323 = vpop.f32.mrf.mxu0
        %v7324 = vadd.f32 %v4895, %v7323
        %7325 = vmatmul.bf16.gmra.mxu0 %v4610
        %v7326 = vpop.f32.mrf.mxu0
        %v7327 = vadd.f32 %v4895, %v7326
        %v7328 = vpop.f32.mrf.mxu0
        %v7329 = vadd.f32 %v4895, %v7328
        %7330 = vmatmul.bf16.gmra.mxu0 %v4615
        %v7331 = vpop.f32.mrf.mxu0
        %v7332 = vadd.f32 %v4895, %v7331
        %v7333 = vpop.f32.mrf.mxu0
        %v7334 = vadd.f32 %v4895, %v7333
        %7335 = vmatmul.bf16.gmra.mxu0 %v4620
        %v7336 = vpop.f32.mrf.mxu0
        %v7337 = vadd.f32 %v4895, %v7336
        %v7338 = vpop.f32.mrf.mxu0
        %v7339 = vadd.f32 %v4895, %v7338
        %7340 = vmatmul.bf16.gmra.mxu0 %v4625
        %v7341 = vpop.f32.mrf.mxu0
        %v7342 = vadd.f32 %v4895, %v7341
        %v7343 = vpop.f32.mrf.mxu0
        %v7344 = vadd.f32 %v4895, %v7343
        %7345 = vmatmul.bf16.gmra.mxu0 %v4630
        %v7346 = vpop.f32.mrf.mxu0
        %v7347 = vadd.f32 %v4895, %v7346
        %v7348 = vpop.f32.mrf.mxu0
        %v7349 = vadd.f32 %v4895, %v7348
        %7350 = vmatmul.bf16.gmra.mxu0 %v4635
        %v7351 = vpop.f32.mrf.mxu0
        %v7352 = vadd.f32 %v4895, %v7351
        %v7353 = vpop.f32.mrf.mxu0
        %v7354 = vadd.f32 %v4895, %v7353
        %7355 = vmatmul.bf16.gmra.mxu0 %v4640
        %v7356 = vpop.f32.mrf.mxu0
        %v7357 = vadd.f32 %v4895, %v7356
        %v7358 = vpop.f32.mrf.mxu0
        %v7359 = vadd.f32 %v4895, %v7358
        %7360 = vmatmul.bf16.gmra.mxu0 %v4645
        %v7361 = vpop.f32.mrf.mxu0
        %v7362 = vadd.f32 %v4895, %v7361
        %v7363 = vpop.f32.mrf.mxu0
        %v7364 = vadd.f32 %v4895, %v7363
        %7365 = vdwg.mxu0
        %7366 = vmatpush.bf16.msra.mxu0 %v5620
        %7367 = vmatpush.bf16.msra.mxu0 %v5615
        %7368 = vmatpush.bf16.msra.mxu0 %v5610
        %7369 = vmatpush.bf16.msra.mxu0 %v5605
        %7370 = vmatpush.bf16.msra.mxu0 %v5600
        %7371 = vmatpush.bf16.msra.mxu0 %v5595
        %7372 = vmatpush.bf16.msra.mxu0 %v5590
        %7373 = vmatpush.bf16.msra.mxu0 %v5585
        %7374 = vmatmul.bf16.gmra.mxu0 %v4571
        %v7375 = vpop.f32.mrf.mxu0
        %v7376 = vadd.f32 %v7287, %v7375
        %v7377 = vpop.f32.mrf.mxu0
        %v7378 = vadd.f32 %v7289, %v7377
        %7379 = vmatmul.bf16.gmra.mxu0 %v4576
        %v7380 = vpop.f32.mrf.mxu0
        %v7381 = vadd.f32 %v7292, %v7380
        %v7382 = vpop.f32.mrf.mxu0
        %v7383 = vadd.f32 %v7294, %v7382
        %7384 = vmatmul.bf16.gmra.mxu0 %v4581
        %v7385 = vpop.f32.mrf.mxu0
        %v7386 = vadd.f32 %v7297, %v7385
        %v7387 = vpop.f32.mrf.mxu0
        %v7388 = vadd.f32 %v7299, %v7387
        %7389 = vmatmul.bf16.gmra.mxu0 %v4586
        %v7390 = vpop.f32.mrf.mxu0
        %v7391 = vadd.f32 %v7302, %v7390
        %v7392 = vpop.f32.mrf.mxu0
        %v7393 = vadd.f32 %v7304, %v7392
        %7394 = vmatmul.bf16.gmra.mxu0 %v4591
        %v7395 = vpop.f32.mrf.mxu0
        %v7396 = vadd.f32 %v7307, %v7395
        %v7397 = vpop.f32.mrf.mxu0
        %v7398 = vadd.f32 %v7309, %v7397
        %7399 = vmatmul.bf16.gmra.mxu0 %v4596
        %v7400 = vpop.f32.mrf.mxu0
        %v7401 = vadd.f32 %v7312, %v7400
        %v7402 = vpop.f32.mrf.mxu0
        %v7403 = vadd.f32 %v7314, %v7402
        %7404 = vmatmul.bf16.gmra.mxu0 %v4601
        %v7405 = vpop.f32.mrf.mxu0
        %v7406 = vadd.f32 %v7317, %v7405
        %v7407 = vpop.f32.mrf.mxu0
        %v7408 = vadd.f32 %v7319, %v7407
        %7409 = vmatmul.bf16.gmra.mxu0 %v4606
        %v7410 = vpop.f32.mrf.mxu0
        %v7411 = vadd.f32 %v7322, %v7410
        %v7412 = vpop.f32.mrf.mxu0
        %v7413 = vadd.f32 %v7324, %v7412
        %7414 = vmatmul.bf16.gmra.mxu0 %v4611
        %v7415 = vpop.f32.mrf.mxu0
        %v7416 = vadd.f32 %v7327, %v7415
        %v7417 = vpop.f32.mrf.mxu0
        %v7418 = vadd.f32 %v7329, %v7417
        %7419 = vmatmul.bf16.gmra.mxu0 %v4616
        %v7420 = vpop.f32.mrf.mxu0
        %v7421 = vadd.f32 %v7332, %v7420
        %v7422 = vpop.f32.mrf.mxu0
        %v7423 = vadd.f32 %v7334, %v7422
        %7424 = vmatmul.bf16.gmra.mxu0 %v4621
        %v7425 = vpop.f32.mrf.mxu0
        %v7426 = vadd.f32 %v7337, %v7425
        %v7427 = vpop.f32.mrf.mxu0
        %v7428 = vadd.f32 %v7339, %v7427
        %7429 = vmatmul.bf16.gmra.mxu0 %v4626
        %v7430 = vpop.f32.mrf.mxu0
        %v7431 = vadd.f32 %v7342, %v7430
        %v7432 = vpop.f32.mrf.mxu0
        %v7433 = vadd.f32 %v7344, %v7432
        %7434 = vmatmul.bf16.gmra.mxu0 %v4631
        %v7435 = vpop.f32.mrf.mxu0
        %v7436 = vadd.f32 %v7347, %v7435
        %v7437 = vpop.f32.mrf.mxu0
        %v7438 = vadd.f32 %v7349, %v7437
        %7439 = vmatmul.bf16.gmra.mxu0 %v4636
        %v7440 = vpop.f32.mrf.mxu0
        %v7441 = vadd.f32 %v7352, %v7440
        %v7442 = vpop.f32.mrf.mxu0
        %v7443 = vadd.f32 %v7354, %v7442
        %7444 = vmatmul.bf16.gmra.mxu0 %v4641
        %v7445 = vpop.f32.mrf.mxu0
        %v7446 = vadd.f32 %v7357, %v7445
        %v7447 = vpop.f32.mrf.mxu0
        %v7448 = vadd.f32 %v7359, %v7447
        %7449 = vmatmul.bf16.gmra.mxu0 %v4646
        %v7450 = vpop.f32.mrf.mxu0
        %v7451 = vadd.f32 %v7362, %v7450
        %v7452 = vpop.f32.mrf.mxu0
        %v7453 = vadd.f32 %v7364, %v7452
        %7454 = vdwg.mxu0
        %7455 = vmatpush.bf16.msra.mxu0 %v5660
        %7456 = vmatpush.bf16.msra.mxu0 %v5655
        %7457 = vmatpush.bf16.msra.mxu0 %v5650
        %7458 = vmatpush.bf16.msra.mxu0 %v5645
        %7459 = vmatpush.bf16.msra.mxu0 %v5640
        %7460 = vmatpush.bf16.msra.mxu0 %v5635
        %7461 = vmatpush.bf16.msra.mxu0 %v5630
        %7462 = vmatpush.bf16.msra.mxu0 %v5625
        %7463 = vmatmul.bf16.gmra.mxu0 %v4572
        %v7464 = vpop.f32.mrf.mxu0
        %v7465 = vadd.f32 %v7376, %v7464
        %v7466 = vpop.f32.mrf.mxu0
        %v7467 = vadd.f32 %v7378, %v7466
        %7468 = vmatmul.bf16.gmra.mxu0 %v4577
        %v7469 = vpop.f32.mrf.mxu0
        %v7470 = vadd.f32 %v7381, %v7469
        %v7471 = vpop.f32.mrf.mxu0
        %v7472 = vadd.f32 %v7383, %v7471
        %7473 = vmatmul.bf16.gmra.mxu0 %v4582
        %v7474 = vpop.f32.mrf.mxu0
        %v7475 = vadd.f32 %v7386, %v7474
        %v7476 = vpop.f32.mrf.mxu0
        %v7477 = vadd.f32 %v7388, %v7476
        %7478 = vmatmul.bf16.gmra.mxu0 %v4587
        %v7479 = vpop.f32.mrf.mxu0
        %v7480 = vadd.f32 %v7391, %v7479
        %v7481 = vpop.f32.mrf.mxu0
        %v7482 = vadd.f32 %v7393, %v7481
        %7483 = vmatmul.bf16.gmra.mxu0 %v4592
        %v7484 = vpop.f32.mrf.mxu0
        %v7485 = vadd.f32 %v7396, %v7484
        %v7486 = vpop.f32.mrf.mxu0
        %v7487 = vadd.f32 %v7398, %v7486
        %7488 = vmatmul.bf16.gmra.mxu0 %v4597
        %v7489 = vpop.f32.mrf.mxu0
        %v7490 = vadd.f32 %v7401, %v7489
        %v7491 = vpop.f32.mrf.mxu0
        %v7492 = vadd.f32 %v7403, %v7491
        %7493 = vmatmul.bf16.gmra.mxu0 %v4602
        %v7494 = vpop.f32.mrf.mxu0
        %v7495 = vadd.f32 %v7406, %v7494
        %v7496 = vpop.f32.mrf.mxu0
        %v7497 = vadd.f32 %v7408, %v7496
        %7498 = vmatmul.bf16.gmra.mxu0 %v4607
        %v7499 = vpop.f32.mrf.mxu0
        %v7500 = vadd.f32 %v7411, %v7499
        %v7501 = vpop.f32.mrf.mxu0
        %v7502 = vadd.f32 %v7413, %v7501
        %7503 = vmatmul.bf16.gmra.mxu0 %v4612
        %v7504 = vpop.f32.mrf.mxu0
        %v7505 = vadd.f32 %v7416, %v7504
        %v7506 = vpop.f32.mrf.mxu0
        %v7507 = vadd.f32 %v7418, %v7506
        %7508 = vmatmul.bf16.gmra.mxu0 %v4617
        %v7509 = vpop.f32.mrf.mxu0
        %v7510 = vadd.f32 %v7421, %v7509
        %v7511 = vpop.f32.mrf.mxu0
        %v7512 = vadd.f32 %v7423, %v7511
        %7513 = vmatmul.bf16.gmra.mxu0 %v4622
        %v7514 = vpop.f32.mrf.mxu0
        %v7515 = vadd.f32 %v7426, %v7514
        %v7516 = vpop.f32.mrf.mxu0
        %v7517 = vadd.f32 %v7428, %v7516
        %7518 = vmatmul.bf16.gmra.mxu0 %v4627
        %v7519 = vpop.f32.mrf.mxu0
        %v7520 = vadd.f32 %v7431, %v7519
        %v7521 = vpop.f32.mrf.mxu0
        %v7522 = vadd.f32 %v7433, %v7521
        %7523 = vmatmul.bf16.gmra.mxu0 %v4632
        %v7524 = vpop.f32.mrf.mxu0
        %v7525 = vadd.f32 %v7436, %v7524
        %v7526 = vpop.f32.mrf.mxu0
        %v7527 = vadd.f32 %v7438, %v7526
        %7528 = vmatmul.bf16.gmra.mxu0 %v4637
        %v7529 = vpop.f32.mrf.mxu0
        %v7530 = vadd.f32 %v7441, %v7529
        %v7531 = vpop.f32.mrf.mxu0
        %v7532 = vadd.f32 %v7443, %v7531
        %7533 = vmatmul.bf16.gmra.mxu0 %v4642
        %v7534 = vpop.f32.mrf.mxu0
        %v7535 = vadd.f32 %v7446, %v7534
        %v7536 = vpop.f32.mrf.mxu0
        %v7537 = vadd.f32 %v7448, %v7536
        %7538 = vmatmul.bf16.gmra.mxu0 %v4647
        %v7539 = vpop.f32.mrf.mxu0
        %v7540 = vadd.f32 %v7451, %v7539
        %v7541 = vpop.f32.mrf.mxu0
        %v7542 = vadd.f32 %v7453, %v7541
        %7543 = vdwg.mxu0
        %7544 = vmatpush.bf16.msra.mxu0 %v5700
        %7545 = vmatpush.bf16.msra.mxu0 %v5695
        %7546 = vmatpush.bf16.msra.mxu0 %v5690
        %7547 = vmatpush.bf16.msra.mxu0 %v5685
        %7548 = vmatpush.bf16.msra.mxu0 %v5680
        %7549 = vmatpush.bf16.msra.mxu0 %v5675
        %7550 = vmatpush.bf16.msra.mxu0 %v5670
        %7551 = vmatpush.bf16.msra.mxu0 %v5665
        %7552 = vmatmul.bf16.gmra.mxu0 %v4573
        %v7553 = vpop.f32.mrf.mxu0
        %v7554 = vadd.f32 %v7465, %v7553
        %v7555 = vpop.f32.mrf.mxu0
        %v7556 = vadd.f32 %v7467, %v7555
        %7557 = vmatmul.bf16.gmra.mxu0 %v4578
        %v7558 = vpop.f32.mrf.mxu0
        %v7559 = vadd.f32 %v7470, %v7558
        %v7560 = vpop.f32.mrf.mxu0
        %v7561 = vadd.f32 %v7472, %v7560
        %7562 = vmatmul.bf16.gmra.mxu0 %v4583
        %v7563 = vpop.f32.mrf.mxu0
        %v7564 = vadd.f32 %v7475, %v7563
        %v7565 = vpop.f32.mrf.mxu0
        %v7566 = vadd.f32 %v7477, %v7565
        %7567 = vmatmul.bf16.gmra.mxu0 %v4588
        %v7568 = vpop.f32.mrf.mxu0
        %v7569 = vadd.f32 %v7480, %v7568
        %v7570 = vpop.f32.mrf.mxu0
        %v7571 = vadd.f32 %v7482, %v7570
        %7572 = vmatmul.bf16.gmra.mxu0 %v4593
        %v7573 = vpop.f32.mrf.mxu0
        %v7574 = vadd.f32 %v7485, %v7573
        %v7575 = vpop.f32.mrf.mxu0
        %v7576 = vadd.f32 %v7487, %v7575
        %7577 = vmatmul.bf16.gmra.mxu0 %v4598
        %v7578 = vpop.f32.mrf.mxu0
        %v7579 = vadd.f32 %v7490, %v7578
        %v7580 = vpop.f32.mrf.mxu0
        %v7581 = vadd.f32 %v7492, %v7580
        %7582 = vmatmul.bf16.gmra.mxu0 %v4603
        %v7583 = vpop.f32.mrf.mxu0
        %v7584 = vadd.f32 %v7495, %v7583
        %v7585 = vpop.f32.mrf.mxu0
        %v7586 = vadd.f32 %v7497, %v7585
        %7587 = vmatmul.bf16.gmra.mxu0 %v4608
        %v7588 = vpop.f32.mrf.mxu0
        %v7589 = vadd.f32 %v7500, %v7588
        %v7590 = vpop.f32.mrf.mxu0
        %v7591 = vadd.f32 %v7502, %v7590
        %7592 = vmatmul.bf16.gmra.mxu0 %v4613
        %v7593 = vpop.f32.mrf.mxu0
        %v7594 = vadd.f32 %v7505, %v7593
        %v7595 = vpop.f32.mrf.mxu0
        %v7596 = vadd.f32 %v7507, %v7595
        %7597 = vmatmul.bf16.gmra.mxu0 %v4618
        %v7598 = vpop.f32.mrf.mxu0
        %v7599 = vadd.f32 %v7510, %v7598
        %v7600 = vpop.f32.mrf.mxu0
        %v7601 = vadd.f32 %v7512, %v7600
        %7602 = vmatmul.bf16.gmra.mxu0 %v4623
        %v7603 = vpop.f32.mrf.mxu0
        %v7604 = vadd.f32 %v7515, %v7603
        %v7605 = vpop.f32.mrf.mxu0
        %v7606 = vadd.f32 %v7517, %v7605
        %7607 = vmatmul.bf16.gmra.mxu0 %v4628
        %v7608 = vpop.f32.mrf.mxu0
        %v7609 = vadd.f32 %v7520, %v7608
        %v7610 = vpop.f32.mrf.mxu0
        %v7611 = vadd.f32 %v7522, %v7610
        %7612 = vmatmul.bf16.gmra.mxu0 %v4633
        %v7613 = vpop.f32.mrf.mxu0
        %v7614 = vadd.f32 %v7525, %v7613
        %v7615 = vpop.f32.mrf.mxu0
        %v7616 = vadd.f32 %v7527, %v7615
        %7617 = vmatmul.bf16.gmra.mxu0 %v4638
        %v7618 = vpop.f32.mrf.mxu0
        %v7619 = vadd.f32 %v7530, %v7618
        %v7620 = vpop.f32.mrf.mxu0
        %v7621 = vadd.f32 %v7532, %v7620
        %7622 = vmatmul.bf16.gmra.mxu0 %v4643
        %v7623 = vpop.f32.mrf.mxu0
        %v7624 = vadd.f32 %v7535, %v7623
        %v7625 = vpop.f32.mrf.mxu0
        %v7626 = vadd.f32 %v7537, %v7625
        %7627 = vmatmul.bf16.gmra.mxu0 %v4648
        %v7628 = vpop.f32.mrf.mxu0
        %v7629 = vadd.f32 %v7540, %v7628
        %v7630 = vpop.f32.mrf.mxu0
        %v7631 = vadd.f32 %v7542, %v7630
        %7632 = vdwg.mxu0
        %7633 = vmatpush.bf16.msra.mxu0 %v5740
        %7634 = vmatpush.bf16.msra.mxu0 %v5735
        %7635 = vmatpush.bf16.msra.mxu0 %v5730
        %7636 = vmatpush.bf16.msra.mxu0 %v5725
        %7637 = vmatpush.bf16.msra.mxu0 %v5720
        %7638 = vmatpush.bf16.msra.mxu0 %v5715
        %7639 = vmatpush.bf16.msra.mxu0 %v5710
        %7640 = vmatpush.bf16.msra.mxu0 %v5705
        %7641 = vmatmul.bf16.gmra.mxu0 %v4574
        %v7642 = vpop.f32.mrf.mxu0
        %v7643 = vadd.f32 %v7554, %v7642
        %v7644 = vpop.f32.mrf.mxu0
        %v7645 = vadd.f32 %v7556, %v7644
        %7646 = vmatmul.bf16.gmra.mxu0 %v4579
        %v7647 = vpop.f32.mrf.mxu0
        %v7648 = vadd.f32 %v7559, %v7647
        %v7649 = vpop.f32.mrf.mxu0
        %v7650 = vadd.f32 %v7561, %v7649
        %7651 = vmatmul.bf16.gmra.mxu0 %v4584
        %v7652 = vpop.f32.mrf.mxu0
        %v7653 = vadd.f32 %v7564, %v7652
        %v7654 = vpop.f32.mrf.mxu0
        %v7655 = vadd.f32 %v7566, %v7654
        %7656 = vmatmul.bf16.gmra.mxu0 %v4589
        %v7657 = vpop.f32.mrf.mxu0
        %v7658 = vadd.f32 %v7569, %v7657
        %v7659 = vpop.f32.mrf.mxu0
        %v7660 = vadd.f32 %v7571, %v7659
        %7661 = vmatmul.bf16.gmra.mxu0 %v4594
        %v7662 = vpop.f32.mrf.mxu0
        %v7663 = vadd.f32 %v7574, %v7662
        %v7664 = vpop.f32.mrf.mxu0
        %v7665 = vadd.f32 %v7576, %v7664
        %7666 = vmatmul.bf16.gmra.mxu0 %v4599
        %v7667 = vpop.f32.mrf.mxu0
        %v7668 = vadd.f32 %v7579, %v7667
        %v7669 = vpop.f32.mrf.mxu0
        %v7670 = vadd.f32 %v7581, %v7669
        %7671 = vmatmul.bf16.gmra.mxu0 %v4604
        %v7672 = vpop.f32.mrf.mxu0
        %v7673 = vadd.f32 %v7584, %v7672
        %v7674 = vpop.f32.mrf.mxu0
        %v7675 = vadd.f32 %v7586, %v7674
        %7676 = vmatmul.bf16.gmra.mxu0 %v4609
        %v7677 = vpop.f32.mrf.mxu0
        %v7678 = vadd.f32 %v7589, %v7677
        %v7679 = vpop.f32.mrf.mxu0
        %v7680 = vadd.f32 %v7591, %v7679
        %7681 = vmatmul.bf16.gmra.mxu0 %v4614
        %v7682 = vpop.f32.mrf.mxu0
        %v7683 = vadd.f32 %v7594, %v7682
        %v7684 = vpop.f32.mrf.mxu0
        %v7685 = vadd.f32 %v7596, %v7684
        %7686 = vmatmul.bf16.gmra.mxu0 %v4619
        %v7687 = vpop.f32.mrf.mxu0
        %v7688 = vadd.f32 %v7599, %v7687
        %v7689 = vpop.f32.mrf.mxu0
        %v7690 = vadd.f32 %v7601, %v7689
        %7691 = vmatmul.bf16.gmra.mxu0 %v4624
        %v7692 = vpop.f32.mrf.mxu0
        %v7693 = vadd.f32 %v7604, %v7692
        %v7694 = vpop.f32.mrf.mxu0
        %v7695 = vadd.f32 %v7606, %v7694
        %7696 = vmatmul.bf16.gmra.mxu0 %v4629
        %v7697 = vpop.f32.mrf.mxu0
        %v7698 = vadd.f32 %v7609, %v7697
        %v7699 = vpop.f32.mrf.mxu0
        %v7700 = vadd.f32 %v7611, %v7699
        %7701 = vmatmul.bf16.gmra.mxu0 %v4634
        %v7702 = vpop.f32.mrf.mxu0
        %v7703 = vadd.f32 %v7614, %v7702
        %v7704 = vpop.f32.mrf.mxu0
        %v7705 = vadd.f32 %v7616, %v7704
        %7706 = vmatmul.bf16.gmra.mxu0 %v4639
        %v7707 = vpop.f32.mrf.mxu0
        %v7708 = vadd.f32 %v7619, %v7707
        %v7709 = vpop.f32.mrf.mxu0
        %v7710 = vadd.f32 %v7621, %v7709
        %7711 = vmatmul.bf16.gmra.mxu0 %v4644
        %v7712 = vpop.f32.mrf.mxu0
        %v7713 = vadd.f32 %v7624, %v7712
        %v7714 = vpop.f32.mrf.mxu0
        %v7715 = vadd.f32 %v7626, %v7714
        %7716 = vmatmul.bf16.gmra.mxu0 %v4649
        %v7717 = vpop.f32.mrf.mxu0
        %v7718 = vadd.f32 %v7629, %v7717
        %v7719 = vpop.f32.mrf.mxu0
        %v7720 = vadd.f32 %v7631, %v7719
        %7721 = vdwg.mxu0
        %7722 = vmatpush.bf16.msra.mxu0 %v5581
        %7723 = vmatpush.bf16.msra.mxu0 %v5576
        %7724 = vmatpush.bf16.msra.mxu0 %v5571
        %7725 = vmatpush.bf16.msra.mxu0 %v5566
        %7726 = vmatpush.bf16.msra.mxu0 %v5561
        %7727 = vmatpush.bf16.msra.mxu0 %v5556
        %7728 = vmatpush.bf16.msra.mxu0 %v5551
        %7729 = vmatpush.bf16.msra.mxu0 %v5546
        %7730 = vmatmul.bf16.gmra.mxu0 %v4570
        %v7731 = vpop.f32.mrf.mxu0
        %v7732 = vadd.f32 %v4896, %v7731
        %v7733 = vpop.f32.mrf.mxu0
        %v7734 = vadd.f32 %v4896, %v7733
        %7735 = vmatmul.bf16.gmra.mxu0 %v4575
        %v7736 = vpop.f32.mrf.mxu0
        %v7737 = vadd.f32 %v4896, %v7736
        %v7738 = vpop.f32.mrf.mxu0
        %v7739 = vadd.f32 %v4896, %v7738
        %7740 = vmatmul.bf16.gmra.mxu0 %v4580
        %v7741 = vpop.f32.mrf.mxu0
        %v7742 = vadd.f32 %v4896, %v7741
        %v7743 = vpop.f32.mrf.mxu0
        %v7744 = vadd.f32 %v4896, %v7743
        %7745 = vmatmul.bf16.gmra.mxu0 %v4585
        %v7746 = vpop.f32.mrf.mxu0
        %v7747 = vadd.f32 %v4896, %v7746
        %v7748 = vpop.f32.mrf.mxu0
        %v7749 = vadd.f32 %v4896, %v7748
        %7750 = vmatmul.bf16.gmra.mxu0 %v4590
        %v7751 = vpop.f32.mrf.mxu0
        %v7752 = vadd.f32 %v4896, %v7751
        %v7753 = vpop.f32.mrf.mxu0
        %v7754 = vadd.f32 %v4896, %v7753
        %7755 = vmatmul.bf16.gmra.mxu0 %v4595
        %v7756 = vpop.f32.mrf.mxu0
        %v7757 = vadd.f32 %v4896, %v7756
        %v7758 = vpop.f32.mrf.mxu0
        %v7759 = vadd.f32 %v4896, %v7758
        %7760 = vmatmul.bf16.gmra.mxu0 %v4600
        %v7761 = vpop.f32.mrf.mxu0
        %v7762 = vadd.f32 %v4896, %v7761
        %v7763 = vpop.f32.mrf.mxu0
        %v7764 = vadd.f32 %v4896, %v7763
        %7765 = vmatmul.bf16.gmra.mxu0 %v4605
        %v7766 = vpop.f32.mrf.mxu0
        %v7767 = vadd.f32 %v4896, %v7766
        %v7768 = vpop.f32.mrf.mxu0
        %v7769 = vadd.f32 %v4896, %v7768
        %7770 = vmatmul.bf16.gmra.mxu0 %v4610
        %v7771 = vpop.f32.mrf.mxu0
        %v7772 = vadd.f32 %v4896, %v7771
        %v7773 = vpop.f32.mrf.mxu0
        %v7774 = vadd.f32 %v4896, %v7773
        %7775 = vmatmul.bf16.gmra.mxu0 %v4615
        %v7776 = vpop.f32.mrf.mxu0
        %v7777 = vadd.f32 %v4896, %v7776
        %v7778 = vpop.f32.mrf.mxu0
        %v7779 = vadd.f32 %v4896, %v7778
        %7780 = vmatmul.bf16.gmra.mxu0 %v4620
        %v7781 = vpop.f32.mrf.mxu0
        %v7782 = vadd.f32 %v4896, %v7781
        %v7783 = vpop.f32.mrf.mxu0
        %v7784 = vadd.f32 %v4896, %v7783
        %7785 = vmatmul.bf16.gmra.mxu0 %v4625
        %v7786 = vpop.f32.mrf.mxu0
        %v7787 = vadd.f32 %v4896, %v7786
        %v7788 = vpop.f32.mrf.mxu0
        %v7789 = vadd.f32 %v4896, %v7788
        %7790 = vmatmul.bf16.gmra.mxu0 %v4630
        %v7791 = vpop.f32.mrf.mxu0
        %v7792 = vadd.f32 %v4896, %v7791
        %v7793 = vpop.f32.mrf.mxu0
        %v7794 = vadd.f32 %v4896, %v7793
        %7795 = vmatmul.bf16.gmra.mxu0 %v4635
        %v7796 = vpop.f32.mrf.mxu0
        %v7797 = vadd.f32 %v4896, %v7796
        %v7798 = vpop.f32.mrf.mxu0
        %v7799 = vadd.f32 %v4896, %v7798
        %7800 = vmatmul.bf16.gmra.mxu0 %v4640
        %v7801 = vpop.f32.mrf.mxu0
        %v7802 = vadd.f32 %v4896, %v7801
        %v7803 = vpop.f32.mrf.mxu0
        %v7804 = vadd.f32 %v4896, %v7803
        %7805 = vmatmul.bf16.gmra.mxu0 %v4645
        %v7806 = vpop.f32.mrf.mxu0
        %v7807 = vadd.f32 %v4896, %v7806
        %v7808 = vpop.f32.mrf.mxu0
        %v7809 = vadd.f32 %v4896, %v7808
        %7810 = vdwg.mxu0
        %7811 = vmatpush.bf16.msra.mxu0 %v5621
        %7812 = vmatpush.bf16.msra.mxu0 %v5616
        %7813 = vmatpush.bf16.msra.mxu0 %v5611
        %7814 = vmatpush.bf16.msra.mxu0 %v5606
        %7815 = vmatpush.bf16.msra.mxu0 %v5601
        %7816 = vmatpush.bf16.msra.mxu0 %v5596
        %7817 = vmatpush.bf16.msra.mxu0 %v5591
        %7818 = vmatpush.bf16.msra.mxu0 %v5586
        %7819 = vmatmul.bf16.gmra.mxu0 %v4571
        %v7820 = vpop.f32.mrf.mxu0
        %v7821 = vadd.f32 %v7732, %v7820
        %v7822 = vpop.f32.mrf.mxu0
        %v7823 = vadd.f32 %v7734, %v7822
        %7824 = vmatmul.bf16.gmra.mxu0 %v4576
        %v7825 = vpop.f32.mrf.mxu0
        %v7826 = vadd.f32 %v7737, %v7825
        %v7827 = vpop.f32.mrf.mxu0
        %v7828 = vadd.f32 %v7739, %v7827
        %7829 = vmatmul.bf16.gmra.mxu0 %v4581
        %v7830 = vpop.f32.mrf.mxu0
        %v7831 = vadd.f32 %v7742, %v7830
        %v7832 = vpop.f32.mrf.mxu0
        %v7833 = vadd.f32 %v7744, %v7832
        %7834 = vmatmul.bf16.gmra.mxu0 %v4586
        %v7835 = vpop.f32.mrf.mxu0
        %v7836 = vadd.f32 %v7747, %v7835
        %v7837 = vpop.f32.mrf.mxu0
        %v7838 = vadd.f32 %v7749, %v7837
        %7839 = vmatmul.bf16.gmra.mxu0 %v4591
        %v7840 = vpop.f32.mrf.mxu0
        %v7841 = vadd.f32 %v7752, %v7840
        %v7842 = vpop.f32.mrf.mxu0
        %v7843 = vadd.f32 %v7754, %v7842
        %7844 = vmatmul.bf16.gmra.mxu0 %v4596
        %v7845 = vpop.f32.mrf.mxu0
        %v7846 = vadd.f32 %v7757, %v7845
        %v7847 = vpop.f32.mrf.mxu0
        %v7848 = vadd.f32 %v7759, %v7847
        %7849 = vmatmul.bf16.gmra.mxu0 %v4601
        %v7850 = vpop.f32.mrf.mxu0
        %v7851 = vadd.f32 %v7762, %v7850
        %v7852 = vpop.f32.mrf.mxu0
        %v7853 = vadd.f32 %v7764, %v7852
        %7854 = vmatmul.bf16.gmra.mxu0 %v4606
        %v7855 = vpop.f32.mrf.mxu0
        %v7856 = vadd.f32 %v7767, %v7855
        %v7857 = vpop.f32.mrf.mxu0
        %v7858 = vadd.f32 %v7769, %v7857
        %7859 = vmatmul.bf16.gmra.mxu0 %v4611
        %v7860 = vpop.f32.mrf.mxu0
        %v7861 = vadd.f32 %v7772, %v7860
        %v7862 = vpop.f32.mrf.mxu0
        %v7863 = vadd.f32 %v7774, %v7862
        %7864 = vmatmul.bf16.gmra.mxu0 %v4616
        %v7865 = vpop.f32.mrf.mxu0
        %v7866 = vadd.f32 %v7777, %v7865
        %v7867 = vpop.f32.mrf.mxu0
        %v7868 = vadd.f32 %v7779, %v7867
        %7869 = vmatmul.bf16.gmra.mxu0 %v4621
        %v7870 = vpop.f32.mrf.mxu0
        %v7871 = vadd.f32 %v7782, %v7870
        %v7872 = vpop.f32.mrf.mxu0
        %v7873 = vadd.f32 %v7784, %v7872
        %7874 = vmatmul.bf16.gmra.mxu0 %v4626
        %v7875 = vpop.f32.mrf.mxu0
        %v7876 = vadd.f32 %v7787, %v7875
        %v7877 = vpop.f32.mrf.mxu0
        %v7878 = vadd.f32 %v7789, %v7877
        %7879 = vmatmul.bf16.gmra.mxu0 %v4631
        %v7880 = vpop.f32.mrf.mxu0
        %v7881 = vadd.f32 %v7792, %v7880
        %v7882 = vpop.f32.mrf.mxu0
        %v7883 = vadd.f32 %v7794, %v7882
        %7884 = vmatmul.bf16.gmra.mxu0 %v4636
        %v7885 = vpop.f32.mrf.mxu0
        %v7886 = vadd.f32 %v7797, %v7885
        %v7887 = vpop.f32.mrf.mxu0
        %v7888 = vadd.f32 %v7799, %v7887
        %7889 = vmatmul.bf16.gmra.mxu0 %v4641
        %v7890 = vpop.f32.mrf.mxu0
        %v7891 = vadd.f32 %v7802, %v7890
        %v7892 = vpop.f32.mrf.mxu0
        %v7893 = vadd.f32 %v7804, %v7892
        %7894 = vmatmul.bf16.gmra.mxu0 %v4646
        %v7895 = vpop.f32.mrf.mxu0
        %v7896 = vadd.f32 %v7807, %v7895
        %v7897 = vpop.f32.mrf.mxu0
        %v7898 = vadd.f32 %v7809, %v7897
        %7899 = vdwg.mxu0
        %7900 = vmatpush.bf16.msra.mxu0 %v5661
        %7901 = vmatpush.bf16.msra.mxu0 %v5656
        %7902 = vmatpush.bf16.msra.mxu0 %v5651
        %7903 = vmatpush.bf16.msra.mxu0 %v5646
        %7904 = vmatpush.bf16.msra.mxu0 %v5641
        %7905 = vmatpush.bf16.msra.mxu0 %v5636
        %7906 = vmatpush.bf16.msra.mxu0 %v5631
        %7907 = vmatpush.bf16.msra.mxu0 %v5626
        %7908 = vmatmul.bf16.gmra.mxu0 %v4572
        %v7909 = vpop.f32.mrf.mxu0
        %v7910 = vadd.f32 %v7821, %v7909
        %v7911 = vpop.f32.mrf.mxu0
        %v7912 = vadd.f32 %v7823, %v7911
        %7913 = vmatmul.bf16.gmra.mxu0 %v4577
        %v7914 = vpop.f32.mrf.mxu0
        %v7915 = vadd.f32 %v7826, %v7914
        %v7916 = vpop.f32.mrf.mxu0
        %v7917 = vadd.f32 %v7828, %v7916
        %7918 = vmatmul.bf16.gmra.mxu0 %v4582
        %v7919 = vpop.f32.mrf.mxu0
        %v7920 = vadd.f32 %v7831, %v7919
        %v7921 = vpop.f32.mrf.mxu0
        %v7922 = vadd.f32 %v7833, %v7921
        %7923 = vmatmul.bf16.gmra.mxu0 %v4587
        %v7924 = vpop.f32.mrf.mxu0
        %v7925 = vadd.f32 %v7836, %v7924
        %v7926 = vpop.f32.mrf.mxu0
        %v7927 = vadd.f32 %v7838, %v7926
        %7928 = vmatmul.bf16.gmra.mxu0 %v4592
        %v7929 = vpop.f32.mrf.mxu0
        %v7930 = vadd.f32 %v7841, %v7929
        %v7931 = vpop.f32.mrf.mxu0
        %v7932 = vadd.f32 %v7843, %v7931
        %7933 = vmatmul.bf16.gmra.mxu0 %v4597
        %v7934 = vpop.f32.mrf.mxu0
        %v7935 = vadd.f32 %v7846, %v7934
        %v7936 = vpop.f32.mrf.mxu0
        %v7937 = vadd.f32 %v7848, %v7936
        %7938 = vmatmul.bf16.gmra.mxu0 %v4602
        %v7939 = vpop.f32.mrf.mxu0
        %v7940 = vadd.f32 %v7851, %v7939
        %v7941 = vpop.f32.mrf.mxu0
        %v7942 = vadd.f32 %v7853, %v7941
        %7943 = vmatmul.bf16.gmra.mxu0 %v4607
        %v7944 = vpop.f32.mrf.mxu0
        %v7945 = vadd.f32 %v7856, %v7944
        %v7946 = vpop.f32.mrf.mxu0
        %v7947 = vadd.f32 %v7858, %v7946
        %7948 = vmatmul.bf16.gmra.mxu0 %v4612
        %v7949 = vpop.f32.mrf.mxu0
        %v7950 = vadd.f32 %v7861, %v7949
        %v7951 = vpop.f32.mrf.mxu0
        %v7952 = vadd.f32 %v7863, %v7951
        %7953 = vmatmul.bf16.gmra.mxu0 %v4617
        %v7954 = vpop.f32.mrf.mxu0
        %v7955 = vadd.f32 %v7866, %v7954
        %v7956 = vpop.f32.mrf.mxu0
        %v7957 = vadd.f32 %v7868, %v7956
        %7958 = vmatmul.bf16.gmra.mxu0 %v4622
        %v7959 = vpop.f32.mrf.mxu0
        %v7960 = vadd.f32 %v7871, %v7959
        %v7961 = vpop.f32.mrf.mxu0
        %v7962 = vadd.f32 %v7873, %v7961
        %7963 = vmatmul.bf16.gmra.mxu0 %v4627
        %v7964 = vpop.f32.mrf.mxu0
        %v7965 = vadd.f32 %v7876, %v7964
        %v7966 = vpop.f32.mrf.mxu0
        %v7967 = vadd.f32 %v7878, %v7966
        %7968 = vmatmul.bf16.gmra.mxu0 %v4632
        %v7969 = vpop.f32.mrf.mxu0
        %v7970 = vadd.f32 %v7881, %v7969
        %v7971 = vpop.f32.mrf.mxu0
        %v7972 = vadd.f32 %v7883, %v7971
        %7973 = vmatmul.bf16.gmra.mxu0 %v4637
        %v7974 = vpop.f32.mrf.mxu0
        %v7975 = vadd.f32 %v7886, %v7974
        %v7976 = vpop.f32.mrf.mxu0
        %v7977 = vadd.f32 %v7888, %v7976
        %7978 = vmatmul.bf16.gmra.mxu0 %v4642
        %v7979 = vpop.f32.mrf.mxu0
        %v7980 = vadd.f32 %v7891, %v7979
        %v7981 = vpop.f32.mrf.mxu0
        %v7982 = vadd.f32 %v7893, %v7981
        %7983 = vmatmul.bf16.gmra.mxu0 %v4647
        %v7984 = vpop.f32.mrf.mxu0
        %v7985 = vadd.f32 %v7896, %v7984
        %v7986 = vpop.f32.mrf.mxu0
        %v7987 = vadd.f32 %v7898, %v7986
        %7988 = vdwg.mxu0
        %7989 = vmatpush.bf16.msra.mxu0 %v5701
        %7990 = vmatpush.bf16.msra.mxu0 %v5696
        %7991 = vmatpush.bf16.msra.mxu0 %v5691
        %7992 = vmatpush.bf16.msra.mxu0 %v5686
        %7993 = vmatpush.bf16.msra.mxu0 %v5681
        %7994 = vmatpush.bf16.msra.mxu0 %v5676
        %7995 = vmatpush.bf16.msra.mxu0 %v5671
        %7996 = vmatpush.bf16.msra.mxu0 %v5666
        %7997 = vmatmul.bf16.gmra.mxu0 %v4573
        %v7998 = vpop.f32.mrf.mxu0
        %v7999 = vadd.f32 %v7910, %v7998
        %v8000 = vpop.f32.mrf.mxu0
        %v8001 = vadd.f32 %v7912, %v8000
        %8002 = vmatmul.bf16.gmra.mxu0 %v4578
        %v8003 = vpop.f32.mrf.mxu0
        %v8004 = vadd.f32 %v7915, %v8003
        %v8005 = vpop.f32.mrf.mxu0
        %v8006 = vadd.f32 %v7917, %v8005
        %8007 = vmatmul.bf16.gmra.mxu0 %v4583
        %v8008 = vpop.f32.mrf.mxu0
        %v8009 = vadd.f32 %v7920, %v8008
        %v8010 = vpop.f32.mrf.mxu0
        %v8011 = vadd.f32 %v7922, %v8010
        %8012 = vmatmul.bf16.gmra.mxu0 %v4588
        %v8013 = vpop.f32.mrf.mxu0
        %v8014 = vadd.f32 %v7925, %v8013
        %v8015 = vpop.f32.mrf.mxu0
        %v8016 = vadd.f32 %v7927, %v8015
        %8017 = vmatmul.bf16.gmra.mxu0 %v4593
        %v8018 = vpop.f32.mrf.mxu0
        %v8019 = vadd.f32 %v7930, %v8018
        %v8020 = vpop.f32.mrf.mxu0
        %v8021 = vadd.f32 %v7932, %v8020
        %8022 = vmatmul.bf16.gmra.mxu0 %v4598
        %v8023 = vpop.f32.mrf.mxu0
        %v8024 = vadd.f32 %v7935, %v8023
        %v8025 = vpop.f32.mrf.mxu0
        %v8026 = vadd.f32 %v7937, %v8025
        %8027 = vmatmul.bf16.gmra.mxu0 %v4603
        %v8028 = vpop.f32.mrf.mxu0
        %v8029 = vadd.f32 %v7940, %v8028
        %v8030 = vpop.f32.mrf.mxu0
        %v8031 = vadd.f32 %v7942, %v8030
        %8032 = vmatmul.bf16.gmra.mxu0 %v4608
        %v8033 = vpop.f32.mrf.mxu0
        %v8034 = vadd.f32 %v7945, %v8033
        %v8035 = vpop.f32.mrf.mxu0
        %v8036 = vadd.f32 %v7947, %v8035
        %8037 = vmatmul.bf16.gmra.mxu0 %v4613
        %v8038 = vpop.f32.mrf.mxu0
        %v8039 = vadd.f32 %v7950, %v8038
        %v8040 = vpop.f32.mrf.mxu0
        %v8041 = vadd.f32 %v7952, %v8040
        %8042 = vmatmul.bf16.gmra.mxu0 %v4618
        %v8043 = vpop.f32.mrf.mxu0
        %v8044 = vadd.f32 %v7955, %v8043
        %v8045 = vpop.f32.mrf.mxu0
        %v8046 = vadd.f32 %v7957, %v8045
        %8047 = vmatmul.bf16.gmra.mxu0 %v4623
        %v8048 = vpop.f32.mrf.mxu0
        %v8049 = vadd.f32 %v7960, %v8048
        %v8050 = vpop.f32.mrf.mxu0
        %v8051 = vadd.f32 %v7962, %v8050
        %8052 = vmatmul.bf16.gmra.mxu0 %v4628
        %v8053 = vpop.f32.mrf.mxu0
        %v8054 = vadd.f32 %v7965, %v8053
        %v8055 = vpop.f32.mrf.mxu0
        %v8056 = vadd.f32 %v7967, %v8055
        %8057 = vmatmul.bf16.gmra.mxu0 %v4633
        %v8058 = vpop.f32.mrf.mxu0
        %v8059 = vadd.f32 %v7970, %v8058
        %v8060 = vpop.f32.mrf.mxu0
        %v8061 = vadd.f32 %v7972, %v8060
        %8062 = vmatmul.bf16.gmra.mxu0 %v4638
        %v8063 = vpop.f32.mrf.mxu0
        %v8064 = vadd.f32 %v7975, %v8063
        %v8065 = vpop.f32.mrf.mxu0
        %v8066 = vadd.f32 %v7977, %v8065
        %8067 = vmatmul.bf16.gmra.mxu0 %v4643
        %v8068 = vpop.f32.mrf.mxu0
        %v8069 = vadd.f32 %v7980, %v8068
        %v8070 = vpop.f32.mrf.mxu0
        %v8071 = vadd.f32 %v7982, %v8070
        %8072 = vmatmul.bf16.gmra.mxu0 %v4648
        %v8073 = vpop.f32.mrf.mxu0
        %v8074 = vadd.f32 %v7985, %v8073
        %v8075 = vpop.f32.mrf.mxu0
        %v8076 = vadd.f32 %v7987, %v8075
        %8077 = vdwg.mxu0
        %8078 = vmatpush.bf16.msra.mxu0 %v5741
        %8079 = vmatpush.bf16.msra.mxu0 %v5736
        %8080 = vmatpush.bf16.msra.mxu0 %v5731
        %8081 = vmatpush.bf16.msra.mxu0 %v5726
        %8082 = vmatpush.bf16.msra.mxu0 %v5721
        %8083 = vmatpush.bf16.msra.mxu0 %v5716
        %8084 = vmatpush.bf16.msra.mxu0 %v5711
        %8085 = vmatpush.bf16.msra.mxu0 %v5706
        %8086 = vmatmul.bf16.gmra.mxu0 %v4574
        %v8087 = vpop.f32.mrf.mxu0
        %v8088 = vadd.f32 %v7999, %v8087
        %v8089 = vpop.f32.mrf.mxu0
        %v8090 = vadd.f32 %v8001, %v8089
        %8091 = vmatmul.bf16.gmra.mxu0 %v4579
        %v8092 = vpop.f32.mrf.mxu0
        %v8093 = vadd.f32 %v8004, %v8092
        %v8094 = vpop.f32.mrf.mxu0
        %v8095 = vadd.f32 %v8006, %v8094
        %8096 = vmatmul.bf16.gmra.mxu0 %v4584
        %v8097 = vpop.f32.mrf.mxu0
        %v8098 = vadd.f32 %v8009, %v8097
        %v8099 = vpop.f32.mrf.mxu0
        %v8100 = vadd.f32 %v8011, %v8099
        %8101 = vmatmul.bf16.gmra.mxu0 %v4589
        %v8102 = vpop.f32.mrf.mxu0
        %v8103 = vadd.f32 %v8014, %v8102
        %v8104 = vpop.f32.mrf.mxu0
        %v8105 = vadd.f32 %v8016, %v8104
        %8106 = vmatmul.bf16.gmra.mxu0 %v4594
        %v8107 = vpop.f32.mrf.mxu0
        %v8108 = vadd.f32 %v8019, %v8107
        %v8109 = vpop.f32.mrf.mxu0
        %v8110 = vadd.f32 %v8021, %v8109
        %8111 = vmatmul.bf16.gmra.mxu0 %v4599
        %v8112 = vpop.f32.mrf.mxu0
        %v8113 = vadd.f32 %v8024, %v8112
        %v8114 = vpop.f32.mrf.mxu0
        %v8115 = vadd.f32 %v8026, %v8114
        %8116 = vmatmul.bf16.gmra.mxu0 %v4604
        %v8117 = vpop.f32.mrf.mxu0
        %v8118 = vadd.f32 %v8029, %v8117
        %v8119 = vpop.f32.mrf.mxu0
        %v8120 = vadd.f32 %v8031, %v8119
        %8121 = vmatmul.bf16.gmra.mxu0 %v4609
        %v8122 = vpop.f32.mrf.mxu0
        %v8123 = vadd.f32 %v8034, %v8122
        %v8124 = vpop.f32.mrf.mxu0
        %v8125 = vadd.f32 %v8036, %v8124
        %8126 = vmatmul.bf16.gmra.mxu0 %v4614
        %v8127 = vpop.f32.mrf.mxu0
        %v8128 = vadd.f32 %v8039, %v8127
        %v8129 = vpop.f32.mrf.mxu0
        %v8130 = vadd.f32 %v8041, %v8129
        %8131 = vmatmul.bf16.gmra.mxu0 %v4619
        %v8132 = vpop.f32.mrf.mxu0
        %v8133 = vadd.f32 %v8044, %v8132
        %v8134 = vpop.f32.mrf.mxu0
        %v8135 = vadd.f32 %v8046, %v8134
        %8136 = vmatmul.bf16.gmra.mxu0 %v4624
        %v8137 = vpop.f32.mrf.mxu0
        %v8138 = vadd.f32 %v8049, %v8137
        %v8139 = vpop.f32.mrf.mxu0
        %v8140 = vadd.f32 %v8051, %v8139
        %8141 = vmatmul.bf16.gmra.mxu0 %v4629
        %v8142 = vpop.f32.mrf.mxu0
        %v8143 = vadd.f32 %v8054, %v8142
        %v8144 = vpop.f32.mrf.mxu0
        %v8145 = vadd.f32 %v8056, %v8144
        %8146 = vmatmul.bf16.gmra.mxu0 %v4634
        %v8147 = vpop.f32.mrf.mxu0
        %v8148 = vadd.f32 %v8059, %v8147
        %v8149 = vpop.f32.mrf.mxu0
        %v8150 = vadd.f32 %v8061, %v8149
        %8151 = vmatmul.bf16.gmra.mxu0 %v4639
        %v8152 = vpop.f32.mrf.mxu0
        %v8153 = vadd.f32 %v8064, %v8152
        %v8154 = vpop.f32.mrf.mxu0
        %v8155 = vadd.f32 %v8066, %v8154
        %8156 = vmatmul.bf16.gmra.mxu0 %v4644
        %v8157 = vpop.f32.mrf.mxu0
        %v8158 = vadd.f32 %v8069, %v8157
        %v8159 = vpop.f32.mrf.mxu0
        %v8160 = vadd.f32 %v8071, %v8159
        %8161 = vmatmul.bf16.gmra.mxu0 %v4649
        %v8162 = vpop.f32.mrf.mxu0
        %v8163 = vadd.f32 %v8074, %v8162
        %v8164 = vpop.f32.mrf.mxu0
        %v8165 = vadd.f32 %v8076, %v8164
        %8166 = vdwg.mxu0
        %v8167 = vmax.f32 %v6308, 0.0
        %v8168 = vmax.f32 %v6753, 0.0
        %v8169 = vmax.f32 %v7198, 0.0
        %v8170 = vmax.f32 %v7643, 0.0
        %v8171 = vmax.f32 %v8088, 0.0
        %v8172 = vmax.f32 %v6310, 0.0
        %v8173 = vmax.f32 %v6755, 0.0
        %v8174 = vmax.f32 %v7200, 0.0
        %v8175 = vmax.f32 %v7645, 0.0
        %v8176 = vmax.f32 %v8090, 0.0
        %v8177 = vmax.f32 %v6313, 0.0
        %v8178 = vmax.f32 %v6758, 0.0
        %v8179 = vmax.f32 %v7203, 0.0
        %v8180 = vmax.f32 %v7648, 0.0
        %v8181 = vmax.f32 %v8093, 0.0
        %v8182 = vmax.f32 %v6315, 0.0
        %v8183 = vmax.f32 %v6760, 0.0
        %v8184 = vmax.f32 %v7205, 0.0
        %v8185 = vmax.f32 %v7650, 0.0
        %v8186 = vmax.f32 %v8095, 0.0
        %v8187 = vmax.f32 %v6318, 0.0
        %v8188 = vmax.f32 %v6763, 0.0
        %v8189 = vmax.f32 %v7208, 0.0
        %v8190 = vmax.f32 %v7653, 0.0
        %v8191 = vmax.f32 %v8098, 0.0
        %v8192 = vmax.f32 %v6320, 0.0
        %v8193 = vmax.f32 %v6765, 0.0
        %v8194 = vmax.f32 %v7210, 0.0
        %v8195 = vmax.f32 %v7655, 0.0
        %v8196 = vmax.f32 %v8100, 0.0
        %v8197 = vmax.f32 %v6323, 0.0
        %v8198 = vmax.f32 %v6768, 0.0
        %v8199 = vmax.f32 %v7213, 0.0
        %v8200 = vmax.f32 %v7658, 0.0
        %v8201 = vmax.f32 %v8103, 0.0
        %v8202 = vmax.f32 %v6325, 0.0
        %v8203 = vmax.f32 %v6770, 0.0
        %v8204 = vmax.f32 %v7215, 0.0
        %v8205 = vmax.f32 %v7660, 0.0
        %v8206 = vmax.f32 %v8105, 0.0
        %v8207 = vmax.f32 %v6328, 0.0
        %v8208 = vmax.f32 %v6773, 0.0
        %v8209 = vmax.f32 %v7218, 0.0
        %v8210 = vmax.f32 %v7663, 0.0
        %v8211 = vmax.f32 %v8108, 0.0
        %v8212 = vmax.f32 %v6330, 0.0
        %v8213 = vmax.f32 %v6775, 0.0
        %v8214 = vmax.f32 %v7220, 0.0
        %v8215 = vmax.f32 %v7665, 0.0
        %v8216 = vmax.f32 %v8110, 0.0
        %v8217 = vmax.f32 %v6333, 0.0
        %v8218 = vmax.f32 %v6778, 0.0
        %v8219 = vmax.f32 %v7223, 0.0
        %v8220 = vmax.f32 %v7668, 0.0
        %v8221 = vmax.f32 %v8113, 0.0
        %v8222 = vmax.f32 %v6335, 0.0
        %v8223 = vmax.f32 %v6780, 0.0
        %v8224 = vmax.f32 %v7225, 0.0
        %v8225 = vmax.f32 %v7670, 0.0
        %v8226 = vmax.f32 %v8115, 0.0
        %v8227 = vmax.f32 %v6338, 0.0
        %v8228 = vmax.f32 %v6783, 0.0
        %v8229 = vmax.f32 %v7228, 0.0
        %v8230 = vmax.f32 %v7673, 0.0
        %v8231 = vmax.f32 %v8118, 0.0
        %v8232 = vmax.f32 %v6340, 0.0
        %v8233 = vmax.f32 %v6785, 0.0
        %v8234 = vmax.f32 %v7230, 0.0
        %v8235 = vmax.f32 %v7675, 0.0
        %v8236 = vmax.f32 %v8120, 0.0
        %v8237 = vmax.f32 %v6343, 0.0
        %v8238 = vmax.f32 %v6788, 0.0
        %v8239 = vmax.f32 %v7233, 0.0
        %v8240 = vmax.f32 %v7678, 0.0
        %v8241 = vmax.f32 %v8123, 0.0
        %v8242 = vmax.f32 %v6345, 0.0
        %v8243 = vmax.f32 %v6790, 0.0
        %v8244 = vmax.f32 %v7235, 0.0
        %v8245 = vmax.f32 %v7680, 0.0
        %v8246 = vmax.f32 %v8125, 0.0
        %v8247 = vmax.f32 %v6348, 0.0
        %v8248 = vmax.f32 %v6793, 0.0
        %v8249 = vmax.f32 %v7238, 0.0
        %v8250 = vmax.f32 %v7683, 0.0
        %v8251 = vmax.f32 %v8128, 0.0
        %v8252 = vmax.f32 %v6350, 0.0
        %v8253 = vmax.f32 %v6795, 0.0
        %v8254 = vmax.f32 %v7240, 0.0
        %v8255 = vmax.f32 %v7685, 0.0
        %v8256 = vmax.f32 %v8130, 0.0
        %v8257 = vmax.f32 %v6353, 0.0
        %v8258 = vmax.f32 %v6798, 0.0
        %v8259 = vmax.f32 %v7243, 0.0
        %v8260 = vmax.f32 %v7688, 0.0
        %v8261 = vmax.f32 %v8133, 0.0
        %v8262 = vmax.f32 %v6355, 0.0
        %v8263 = vmax.f32 %v6800, 0.0
        %v8264 = vmax.f32 %v7245, 0.0
        %v8265 = vmax.f32 %v7690, 0.0
        %v8266 = vmax.f32 %v8135, 0.0
        %v8267 = vmax.f32 %v6358, 0.0
        %v8268 = vmax.f32 %v6803, 0.0
        %v8269 = vmax.f32 %v7248, 0.0
        %v8270 = vmax.f32 %v7693, 0.0
        %v8271 = vmax.f32 %v8138, 0.0
        %v8272 = vmax.f32 %v6360, 0.0
        %v8273 = vmax.f32 %v6805, 0.0
        %v8274 = vmax.f32 %v7250, 0.0
        %v8275 = vmax.f32 %v7695, 0.0
        %v8276 = vmax.f32 %v8140, 0.0
        %v8277 = vmax.f32 %v6363, 0.0
        %v8278 = vmax.f32 %v6808, 0.0
        %v8279 = vmax.f32 %v7253, 0.0
        %v8280 = vmax.f32 %v7698, 0.0
        %v8281 = vmax.f32 %v8143, 0.0
        %v8282 = vmax.f32 %v6365, 0.0
        %v8283 = vmax.f32 %v6810, 0.0
        %v8284 = vmax.f32 %v7255, 0.0
        %v8285 = vmax.f32 %v7700, 0.0
        %v8286 = vmax.f32 %v8145, 0.0
        %v8287 = vmax.f32 %v6368, 0.0
        %v8288 = vmax.f32 %v6813, 0.0
        %v8289 = vmax.f32 %v7258, 0.0
        %v8290 = vmax.f32 %v7703, 0.0
        %v8291 = vmax.f32 %v8148, 0.0
        %v8292 = vmax.f32 %v6370, 0.0
        %v8293 = vmax.f32 %v6815, 0.0
        %v8294 = vmax.f32 %v7260, 0.0
        %v8295 = vmax.f32 %v7705, 0.0
        %v8296 = vmax.f32 %v8150, 0.0
        %v8297 = vmax.f32 %v6373, 0.0
        %v8298 = vmax.f32 %v6818, 0.0
        %v8299 = vmax.f32 %v7263, 0.0
        %v8300 = vmax.f32 %v7708, 0.0
        %v8301 = vmax.f32 %v8153, 0.0
        %v8302 = vmax.f32 %v6375, 0.0
        %v8303 = vmax.f32 %v6820, 0.0
        %v8304 = vmax.f32 %v7265, 0.0
        %v8305 = vmax.f32 %v7710, 0.0
        %v8306 = vmax.f32 %v8155, 0.0
        %v8307 = vmax.f32 %v6378, 0.0
        %v8308 = vmax.f32 %v6823, 0.0
        %v8309 = vmax.f32 %v7268, 0.0
        %v8310 = vmax.f32 %v7713, 0.0
        %v8311 = vmax.f32 %v8158, 0.0
        %v8312 = vmax.f32 %v6380, 0.0
        %v8313 = vmax.f32 %v6825, 0.0
        %v8314 = vmax.f32 %v7270, 0.0
        %v8315 = vmax.f32 %v7715, 0.0
        %v8316 = vmax.f32 %v8160, 0.0
        %v8317 = vmax.f32 %v6383, 0.0
        %v8318 = vmax.f32 %v6828, 0.0
        %v8319 = vmax.f32 %v7273, 0.0
        %v8320 = vmax.f32 %v7718, 0.0
        %v8321 = vmax.f32 %v8163, 0.0
        %v8322 = vmax.f32 %v6385, 0.0
        %v8323 = vmax.f32 %v6830, 0.0
        %v8324 = vmax.f32 %v7275, 0.0
        %v8325 = vmax.f32 %v7720, 0.0
        %v8326 = vmax.f32 %v8165, 0.0
        %v8327 = vpack.c.bf16 %v8172, %v8167
        %v8328 = vpack.c.bf16 %v8173, %v8168
        %v8329 = vpack.c.bf16 %v8174, %v8169
        %v8330 = vpack.c.bf16 %v8175, %v8170
        %v8331 = vpack.c.bf16 %v8176, %v8171
        %v8332 = vpack.c.bf16 %v8182, %v8177
        %v8333 = vpack.c.bf16 %v8183, %v8178
        %v8334 = vpack.c.bf16 %v8184, %v8179
        %v8335 = vpack.c.bf16 %v8185, %v8180
        %v8336 = vpack.c.bf16 %v8186, %v8181
        %v8337 = vpack.c.bf16 %v8192, %v8187
        %v8338 = vpack.c.bf16 %v8193, %v8188
        %v8339 = vpack.c.bf16 %v8194, %v8189
        %v8340 = vpack.c.bf16 %v8195, %v8190
        %v8341 = vpack.c.bf16 %v8196, %v8191
        %v8342 = vpack.c.bf16 %v8202, %v8197
        %v8343 = vpack.c.bf16 %v8203, %v8198
        %v8344 = vpack.c.bf16 %v8204, %v8199
        %v8345 = vpack.c.bf16 %v8205, %v8200
        %v8346 = vpack.c.bf16 %v8206, %v8201
        %v8347 = vpack.c.bf16 %v8212, %v8207
        %v8348 = vpack.c.bf16 %v8213, %v8208
        %v8349 = vpack.c.bf16 %v8214, %v8209
        %v8350 = vpack.c.bf16 %v8215, %v8210
        %v8351 = vpack.c.bf16 %v8216, %v8211
        %v8352 = vpack.c.bf16 %v8222, %v8217
        %v8353 = vpack.c.bf16 %v8223, %v8218
        %v8354 = vpack.c.bf16 %v8224, %v8219
        %v8355 = vpack.c.bf16 %v8225, %v8220
        %v8356 = vpack.c.bf16 %v8226, %v8221
        %v8357 = vpack.c.bf16 %v8232, %v8227
        %v8358 = vpack.c.bf16 %v8233, %v8228
        %v8359 = vpack.c.bf16 %v8234, %v8229
        %v8360 = vpack.c.bf16 %v8235, %v8230
        %v8361 = vpack.c.bf16 %v8236, %v8231
        %v8362 = vpack.c.bf16 %v8242, %v8237
        %v8363 = vpack.c.bf16 %v8243, %v8238
        %v8364 = vpack.c.bf16 %v8244, %v8239
        %v8365 = vpack.c.bf16 %v8245, %v8240
        %v8366 = vpack.c.bf16 %v8246, %v8241
        %v8367 = vpack.c.bf16 %v8252, %v8247
        %v8368 = vpack.c.bf16 %v8253, %v8248
        %v8369 = vpack.c.bf16 %v8254, %v8249
        %v8370 = vpack.c.bf16 %v8255, %v8250
        %v8371 = vpack.c.bf16 %v8256, %v8251
        %v8372 = vpack.c.bf16 %v8262, %v8257
        %v8373 = vpack.c.bf16 %v8263, %v8258
        %v8374 = vpack.c.bf16 %v8264, %v8259
        %v8375 = vpack.c.bf16 %v8265, %v8260
        %v8376 = vpack.c.bf16 %v8266, %v8261
        %v8377 = vpack.c.bf16 %v8272, %v8267
        %v8378 = vpack.c.bf16 %v8273, %v8268
        %v8379 = vpack.c.bf16 %v8274, %v8269
        %v8380 = vpack.c.bf16 %v8275, %v8270
        %v8381 = vpack.c.bf16 %v8276, %v8271
        %v8382 = vpack.c.bf16 %v8282, %v8277
        %v8383 = vpack.c.bf16 %v8283, %v8278
        %v8384 = vpack.c.bf16 %v8284, %v8279
        %v8385 = vpack.c.bf16 %v8285, %v8280
        %v8386 = vpack.c.bf16 %v8286, %v8281
        %v8387 = vpack.c.bf16 %v8292, %v8287
        %v8388 = vpack.c.bf16 %v8293, %v8288
        %v8389 = vpack.c.bf16 %v8294, %v8289
        %v8390 = vpack.c.bf16 %v8295, %v8290
        %v8391 = vpack.c.bf16 %v8296, %v8291
        %v8392 = vpack.c.bf16 %v8302, %v8297
        %v8393 = vpack.c.bf16 %v8303, %v8298
        %v8394 = vpack.c.bf16 %v8304, %v8299
        %v8395 = vpack.c.bf16 %v8305, %v8300
        %v8396 = vpack.c.bf16 %v8306, %v8301
        %v8397 = vpack.c.bf16 %v8312, %v8307
        %v8398 = vpack.c.bf16 %v8313, %v8308
        %v8399 = vpack.c.bf16 %v8314, %v8309
        %v8400 = vpack.c.bf16 %v8315, %v8310
        %v8401 = vpack.c.bf16 %v8316, %v8311
        %v8402 = vpack.c.bf16 %v8322, %v8317
        %v8403 = vpack.c.bf16 %v8323, %v8318
        %v8404 = vpack.c.bf16 %v8324, %v8319
        %v8405 = vpack.c.bf16 %v8325, %v8320
        %v8406 = vpack.c.bf16 %v8326, %v8321
        %v8407 = vld [vmem:[#allocation11] sm:$0xf]
        %v8408 = vld [vmem:[#allocation11 + $0x4] sm:$0xf]
        %v8409 = vld [vmem:[#allocation11 + $0x8] sm:$0xf]
        %v8410 = vld [vmem:[#allocation11 + $0xc] sm:$0xf]
        %v8411 = vld [vmem:[#allocation11 + $0x10] sm:$0xf]
        %v8412 = vld [vmem:[#allocation11 + $0x14] sm:$0xf]
        %v8413 = vld [vmem:[#allocation11 + $0x18] sm:$0xf]
        %v8414 = vld [vmem:[#allocation11 + $0x1c] sm:$0xf]
        %v8415 = vld [vmem:[#allocation11 + $0x20] sm:$0xf]
        %v8416 = vld [vmem:[#allocation11 + $0x24] sm:$0xf]
        %v8417 = vld [vmem:[#allocation11 + $0x28] sm:$0xf]
        %v8418 = vld [vmem:[#allocation11 + $0x2c] sm:$0xf]
        %v8419 = vld [vmem:[#allocation11 + $0x30] sm:$0xf]
        %v8420 = vld [vmem:[#allocation11 + $0x34] sm:$0xf]
        %v8421 = vld [vmem:[#allocation11 + $0x38] sm:$0xf]
        %v8422 = vld [vmem:[#allocation11 + $0x3c] sm:$0xf]
        %v8423 = vld [vmem:[#allocation11 + $0x40] sm:$0xf]
        %v8424 = vld [vmem:[#allocation11 + $0x44] sm:$0xf]
        %v8425 = vld [vmem:[#allocation11 + $0x48] sm:$0xf]
        %v8426 = vld [vmem:[#allocation11 + $0x4c] sm:$0xf]
        %v8427 = vld [vmem:[#allocation11 + $0x50] sm:$0xf]
        %v8428 = vld [vmem:[#allocation11 + $0x54] sm:$0xf]
        %v8429 = vld [vmem:[#allocation11 + $0x58] sm:$0xf]
        %v8430 = vld [vmem:[#allocation11 + $0x5c] sm:$0xf]
        %v8431 = vld [vmem:[#allocation11 + $0x60] sm:$0xf]
        %v8432 = vld [vmem:[#allocation11 + $0x64] sm:$0xf]
        %v8433 = vld [vmem:[#allocation11 + $0x68] sm:$0xf]
        %v8434 = vld [vmem:[#allocation11 + $0x6c] sm:$0xf]
        %v8435 = vld [vmem:[#allocation11 + $0x70] sm:$0xf]
        %v8436 = vld [vmem:[#allocation11 + $0x74] sm:$0xf]
        %v8437 = vld [vmem:[#allocation11 + $0x78] sm:$0xf]
        %v8438 = vld [vmem:[#allocation11 + $0x7c] sm:$0xf]
        %v8439 = vld [vmem:[#allocation11 + $0x80] sm:$0xf]
        %v8440 = vld [vmem:[#allocation11 + $0x84] sm:$0xf]
        %v8441 = vld [vmem:[#allocation11 + $0x88] sm:$0xf]
        %v8442 = vld [vmem:[#allocation11 + $0x8c] sm:$0xf]
        %v8443 = vld [vmem:[#allocation11 + $0x90] sm:$0xf]
        %v8444 = vld [vmem:[#allocation11 + $0x94] sm:$0xf]
        %v8445 = vld [vmem:[#allocation11 + $0x98] sm:$0xf]
        %v8446 = vld [vmem:[#allocation11 + $0x9c] sm:$0xf]
        %v8447 = vld [vmem:[#allocation11 + $0xa0] sm:$0xf]
        %v8448 = vld [vmem:[#allocation11 + $0xa4] sm:$0xf]
        %v8449 = vld [vmem:[#allocation11 + $0xa8] sm:$0xf]
        %v8450 = vld [vmem:[#allocation11 + $0xac] sm:$0xf]
        %v8451 = vld [vmem:[#allocation11 + $0xb0] sm:$0xf]
        %v8452 = vld [vmem:[#allocation11 + $0xb4] sm:$0xf]
        %v8453 = vld [vmem:[#allocation11 + $0xb8] sm:$0xf]
        %v8454 = vld [vmem:[#allocation11 + $0xbc] sm:$0xf]
        %v8455 = vld [vmem:[#allocation11 + $0xc0] sm:$0xf]
        %v8456 = vld [vmem:[#allocation11 + $0xc4] sm:$0xf]
        %v8457 = vld [vmem:[#allocation11 + $0xc8] sm:$0xf]
        %v8458 = vld [vmem:[#allocation11 + $0xcc] sm:$0xf]
        %v8459 = vld [vmem:[#allocation11 + $0xd0] sm:$0xf]
        %v8460 = vld [vmem:[#allocation11 + $0xd4] sm:$0xf]
        %v8461 = vld [vmem:[#allocation11 + $0xd8] sm:$0xf]
        %v8462 = vld [vmem:[#allocation11 + $0xdc] sm:$0xf]
        %v8463 = vld [vmem:[#allocation11 + $0xe0] sm:$0xf]
        %v8464 = vld [vmem:[#allocation11 + $0xe4] sm:$0xf]
        %v8465 = vld [vmem:[#allocation11 + $0xe8] sm:$0xf]
        %v8466 = vld [vmem:[#allocation11 + $0xec] sm:$0xf]
        %v8467 = vld [vmem:[#allocation11 + $0xf0] sm:$0xf]
        %v8468 = vld [vmem:[#allocation11 + $0xf4] sm:$0xf]
        %v8469 = vld [vmem:[#allocation11 + $0xf8] sm:$0xf]
        %v8470 = vld [vmem:[#allocation11 + $0xfc] sm:$0xf]
        %v8471 = vld [vmem:[#allocation11 + $0x100] sm:$0xf]
        %v8472 = vld [vmem:[#allocation11 + $0x104] sm:$0xf]
        %v8473 = vld [vmem:[#allocation11 + $0x108] sm:$0xf]
        %v8474 = vld [vmem:[#allocation11 + $0x10c] sm:$0xf]
        %v8475 = vld [vmem:[#allocation11 + $0x110] sm:$0xf]
        %v8476 = vld [vmem:[#allocation11 + $0x114] sm:$0xf]
        %v8477 = vld [vmem:[#allocation11 + $0x118] sm:$0xf]
        %v8478 = vld [vmem:[#allocation11 + $0x11c] sm:$0xf]
        %v8479 = vld [vmem:[#allocation11 + $0x120] sm:$0xf]
        %v8480 = vld [vmem:[#allocation11 + $0x124] sm:$0xf]
        %v8481 = vld [vmem:[#allocation11 + $0x128] sm:$0xf]
        %v8482 = vld [vmem:[#allocation11 + $0x12c] sm:$0xf]
        %v8483 = vld [vmem:[#allocation11 + $0x130] sm:$0xf]
        %v8484 = vld [vmem:[#allocation11 + $0x134] sm:$0xf]
        %v8485 = vld [vmem:[#allocation11 + $0x138] sm:$0xf]
        %v8486 = vld [vmem:[#allocation11 + $0x13c] sm:$0xf]
        %v8487 = vld [vmem:[%s6] sm:$0x1]
        %v8489 = vperm.slane %v8487, 0
        %v8571 = vunpack.c.l.b16 %v8407
        %v8572 = vunpack.c.l.b16 %v8408
        %v8573 = vunpack.c.l.b16 %v8409
        %v8574 = vunpack.c.l.b16 %v8410
        %v8575 = vunpack.c.l.b16 %v8411
        %v8576 = vunpack.c.l.b16 %v8412
        %v8577 = vunpack.c.l.b16 %v8413
        %v8578 = vunpack.c.l.b16 %v8414
        %v8579 = vunpack.c.l.b16 %v8415
        %v8580 = vunpack.c.l.b16 %v8416
        %v8581 = vunpack.c.l.b16 %v8417
        %v8582 = vunpack.c.l.b16 %v8418
        %v8583 = vunpack.c.l.b16 %v8419
        %v8584 = vunpack.c.l.b16 %v8420
        %v8585 = vunpack.c.l.b16 %v8421
        %v8586 = vunpack.c.l.b16 %v8422
        %v8587 = vunpack.c.l.b16 %v8423
        %v8588 = vunpack.c.l.b16 %v8424
        %v8589 = vunpack.c.l.b16 %v8425
        %v8590 = vunpack.c.l.b16 %v8426
        %v8591 = vunpack.c.l.b16 %v8427
        %v8592 = vunpack.c.l.b16 %v8428
        %v8593 = vunpack.c.l.b16 %v8429
        %v8594 = vunpack.c.l.b16 %v8430
        %v8595 = vunpack.c.l.b16 %v8431
        %v8596 = vunpack.c.l.b16 %v8432
        %v8597 = vunpack.c.l.b16 %v8433
        %v8598 = vunpack.c.l.b16 %v8434
        %v8599 = vunpack.c.l.b16 %v8435
        %v8600 = vunpack.c.l.b16 %v8436
        %v8601 = vunpack.c.l.b16 %v8437
        %v8602 = vunpack.c.l.b16 %v8438
        %v8603 = vunpack.c.l.b16 %v8439
        %v8604 = vunpack.c.l.b16 %v8440
        %v8605 = vunpack.c.l.b16 %v8441
        %v8606 = vunpack.c.l.b16 %v8442
        %v8607 = vunpack.c.l.b16 %v8443
        %v8608 = vunpack.c.l.b16 %v8444
        %v8609 = vunpack.c.l.b16 %v8445
        %v8610 = vunpack.c.l.b16 %v8446
        %v8611 = vunpack.c.l.b16 %v8447
        %v8612 = vunpack.c.l.b16 %v8448
        %v8613 = vunpack.c.l.b16 %v8449
        %v8614 = vunpack.c.l.b16 %v8450
        %v8615 = vunpack.c.l.b16 %v8451
        %v8616 = vunpack.c.l.b16 %v8452
        %v8617 = vunpack.c.l.b16 %v8453
        %v8618 = vunpack.c.l.b16 %v8454
        %v8619 = vunpack.c.l.b16 %v8455
        %v8620 = vunpack.c.l.b16 %v8456
        %v8621 = vunpack.c.l.b16 %v8457
        %v8622 = vunpack.c.l.b16 %v8458
        %v8623 = vunpack.c.l.b16 %v8459
        %v8624 = vunpack.c.l.b16 %v8460
        %v8625 = vunpack.c.l.b16 %v8461
        %v8626 = vunpack.c.l.b16 %v8462
        %v8627 = vunpack.c.l.b16 %v8463
        %v8628 = vunpack.c.l.b16 %v8464
        %v8629 = vunpack.c.l.b16 %v8465
        %v8630 = vunpack.c.l.b16 %v8466
        %v8631 = vunpack.c.l.b16 %v8467
        %v8632 = vunpack.c.l.b16 %v8468
        %v8633 = vunpack.c.l.b16 %v8469
        %v8634 = vunpack.c.l.b16 %v8470
        %v8635 = vunpack.c.l.b16 %v8471
        %v8636 = vunpack.c.l.b16 %v8472
        %v8637 = vunpack.c.l.b16 %v8473
        %v8638 = vunpack.c.l.b16 %v8474
        %v8639 = vunpack.c.l.b16 %v8475
        %v8640 = vunpack.c.l.b16 %v8476
        %v8641 = vunpack.c.l.b16 %v8477
        %v8642 = vunpack.c.l.b16 %v8478
        %v8643 = vunpack.c.l.b16 %v8479
        %v8644 = vunpack.c.l.b16 %v8480
        %v8645 = vunpack.c.l.b16 %v8481
        %v8646 = vunpack.c.l.b16 %v8482
        %v8647 = vunpack.c.l.b16 %v8483
        %v8648 = vunpack.c.l.b16 %v8484
        %v8649 = vunpack.c.l.b16 %v8485
        %v8650 = vunpack.c.l.b16 %v8486
        %v8651 = vpack.c.b16 %v8572, %v8571
        %v8652 = vpack.c.b16 %v8574, %v8573
        %v8653 = vpack.c.b16 %v8576, %v8575
        %v8654 = vpack.c.b16 %v8578, %v8577
        %v8655 = vpack.c.b16 %v8580, %v8579
        %v8656 = vpack.c.b16 %v8582, %v8581
        %v8657 = vpack.c.b16 %v8584, %v8583
        %v8658 = vpack.c.b16 %v8586, %v8585
        %v8659 = vpack.c.b16 %v8588, %v8587
        %v8660 = vpack.c.b16 %v8590, %v8589
        %v8661 = vpack.c.b16 %v8592, %v8591
        %v8662 = vpack.c.b16 %v8594, %v8593
        %v8663 = vpack.c.b16 %v8596, %v8595
        %v8664 = vpack.c.b16 %v8598, %v8597
        %v8665 = vpack.c.b16 %v8600, %v8599
        %v8666 = vpack.c.b16 %v8602, %v8601
        %v8667 = vpack.c.b16 %v8604, %v8603
        %v8668 = vpack.c.b16 %v8606, %v8605
        %v8669 = vpack.c.b16 %v8608, %v8607
        %v8670 = vpack.c.b16 %v8610, %v8609
        %v8671 = vpack.c.b16 %v8612, %v8611
        %v8672 = vpack.c.b16 %v8614, %v8613
        %v8673 = vpack.c.b16 %v8616, %v8615
        %v8674 = vpack.c.b16 %v8618, %v8617
        %v8675 = vpack.c.b16 %v8620, %v8619
        %v8676 = vpack.c.b16 %v8622, %v8621
        %v8677 = vpack.c.b16 %v8624, %v8623
        %v8678 = vpack.c.b16 %v8626, %v8625
        %v8679 = vpack.c.b16 %v8628, %v8627
        %v8680 = vpack.c.b16 %v8630, %v8629
        %v8681 = vpack.c.b16 %v8632, %v8631
        %v8682 = vpack.c.b16 %v8634, %v8633
        %v8683 = vpack.c.b16 %v8636, %v8635
        %v8684 = vpack.c.b16 %v8638, %v8637
        %v8685 = vpack.c.b16 %v8640, %v8639
        %v8686 = vpack.c.b16 %v8642, %v8641
        %v8687 = vpack.c.b16 %v8644, %v8643
        %v8688 = vpack.c.b16 %v8646, %v8645
        %v8689 = vpack.c.b16 %v8648, %v8647
        %v8690 = vpack.c.b16 %v8650, %v8649
        %8731 = vmatpush.bf16.msra.mxu0 %v8658
        %8732 = vmatpush.bf16.msra.mxu0 %v8657
        %8733 = vmatpush.bf16.msra.mxu0 %v8656
        %8734 = vmatpush.bf16.msra.mxu0 %v8655
        %8735 = vmatpush.bf16.msra.mxu0 %v8654
        %8736 = vmatpush.bf16.msra.mxu0 %v8653
        %8737 = vmatpush.bf16.msra.mxu0 %v8652
        %8738 = vmatpush.bf16.msra.mxu0 %v8651
        %8739 = vmatmul.bf16.gmra.mxu0 %v8327
        %v8740 = vpop.f32.mrf.mxu0
        %v8741 = vadd.f32 %v8489, %v8740
        %v8742 = vpop.f32.mrf.mxu0
        %v8743 = vadd.f32 %v8489, %v8742
        %8744 = vmatmul.bf16.gmra.mxu0 %v8332
        %v8745 = vpop.f32.mrf.mxu0
        %v8746 = vadd.f32 %v8489, %v8745
        %v8747 = vpop.f32.mrf.mxu0
        %v8748 = vadd.f32 %v8489, %v8747
        %8749 = vmatmul.bf16.gmra.mxu0 %v8337
        %v8750 = vpop.f32.mrf.mxu0
        %v8751 = vadd.f32 %v8489, %v8750
        %v8752 = vpop.f32.mrf.mxu0
        %v8753 = vadd.f32 %v8489, %v8752
        %8754 = vmatmul.bf16.gmra.mxu0 %v8342
        %v8755 = vpop.f32.mrf.mxu0
        %v8756 = vadd.f32 %v8489, %v8755
        %v8757 = vpop.f32.mrf.mxu0
        %v8758 = vadd.f32 %v8489, %v8757
        %8759 = vmatmul.bf16.gmra.mxu0 %v8347
        %v8760 = vpop.f32.mrf.mxu0
        %v8761 = vadd.f32 %v8489, %v8760
        %v8762 = vpop.f32.mrf.mxu0
        %v8763 = vadd.f32 %v8489, %v8762
        %8764 = vmatmul.bf16.gmra.mxu0 %v8352
        %v8765 = vpop.f32.mrf.mxu0
        %v8766 = vadd.f32 %v8489, %v8765
        %v8767 = vpop.f32.mrf.mxu0
        %v8768 = vadd.f32 %v8489, %v8767
        %8769 = vmatmul.bf16.gmra.mxu0 %v8357
        %v8770 = vpop.f32.mrf.mxu0
        %v8771 = vadd.f32 %v8489, %v8770
        %v8772 = vpop.f32.mrf.mxu0
        %v8773 = vadd.f32 %v8489, %v8772
        %8774 = vmatmul.bf16.gmra.mxu0 %v8362
        %v8775 = vpop.f32.mrf.mxu0
        %v8776 = vadd.f32 %v8489, %v8775
        %v8777 = vpop.f32.mrf.mxu0
        %v8778 = vadd.f32 %v8489, %v8777
        %8779 = vmatmul.bf16.gmra.mxu0 %v8367
        %v8780 = vpop.f32.mrf.mxu0
        %v8781 = vadd.f32 %v8489, %v8780
        %v8782 = vpop.f32.mrf.mxu0
        %v8783 = vadd.f32 %v8489, %v8782
        %8784 = vmatmul.bf16.gmra.mxu0 %v8372
        %v8785 = vpop.f32.mrf.mxu0
        %v8786 = vadd.f32 %v8489, %v8785
        %v8787 = vpop.f32.mrf.mxu0
        %v8788 = vadd.f32 %v8489, %v8787
        %8789 = vmatmul.bf16.gmra.mxu0 %v8377
        %v8790 = vpop.f32.mrf.mxu0
        %v8791 = vadd.f32 %v8489, %v8790
        %v8792 = vpop.f32.mrf.mxu0
        %v8793 = vadd.f32 %v8489, %v8792
        %8794 = vmatmul.bf16.gmra.mxu0 %v8382
        %v8795 = vpop.f32.mrf.mxu0
        %v8796 = vadd.f32 %v8489, %v8795
        %v8797 = vpop.f32.mrf.mxu0
        %v8798 = vadd.f32 %v8489, %v8797
        %8799 = vmatmul.bf16.gmra.mxu0 %v8387
        %v8800 = vpop.f32.mrf.mxu0
        %v8801 = vadd.f32 %v8489, %v8800
        %v8802 = vpop.f32.mrf.mxu0
        %v8803 = vadd.f32 %v8489, %v8802
        %8804 = vmatmul.bf16.gmra.mxu0 %v8392
        %v8805 = vpop.f32.mrf.mxu0
        %v8806 = vadd.f32 %v8489, %v8805
        %v8807 = vpop.f32.mrf.mxu0
        %v8808 = vadd.f32 %v8489, %v8807
        %8809 = vmatmul.bf16.gmra.mxu0 %v8397
        %v8810 = vpop.f32.mrf.mxu0
        %v8811 = vadd.f32 %v8489, %v8810
        %v8812 = vpop.f32.mrf.mxu0
        %v8813 = vadd.f32 %v8489, %v8812
        %8814 = vmatmul.bf16.gmra.mxu0 %v8402
        %v8815 = vpop.f32.mrf.mxu0
        %v8816 = vadd.f32 %v8489, %v8815
        %v8817 = vpop.f32.mrf.mxu0
        %v8818 = vadd.f32 %v8489, %v8817
        %8819 = vdwg.mxu0
        %8820 = vmatpush.bf16.msra.mxu0 %v8666
        %8821 = vmatpush.bf16.msra.mxu0 %v8665
        %8822 = vmatpush.bf16.msra.mxu0 %v8664
        %8823 = vmatpush.bf16.msra.mxu0 %v8663
        %8824 = vmatpush.bf16.msra.mxu0 %v8662
        %8825 = vmatpush.bf16.msra.mxu0 %v8661
        %8826 = vmatpush.bf16.msra.mxu0 %v8660
        %8827 = vmatpush.bf16.msra.mxu0 %v8659
        %8828 = vmatmul.bf16.gmra.mxu0 %v8328
        %v8829 = vpop.f32.mrf.mxu0
        %v8830 = vadd.f32 %v8741, %v8829
        %v8831 = vpop.f32.mrf.mxu0
        %v8832 = vadd.f32 %v8743, %v8831
        %8833 = vmatmul.bf16.gmra.mxu0 %v8333
        %v8834 = vpop.f32.mrf.mxu0
        %v8835 = vadd.f32 %v8746, %v8834
        %v8836 = vpop.f32.mrf.mxu0
        %v8837 = vadd.f32 %v8748, %v8836
        %8838 = vmatmul.bf16.gmra.mxu0 %v8338
        %v8839 = vpop.f32.mrf.mxu0
        %v8840 = vadd.f32 %v8751, %v8839
        %v8841 = vpop.f32.mrf.mxu0
        %v8842 = vadd.f32 %v8753, %v8841
        %8843 = vmatmul.bf16.gmra.mxu0 %v8343
        %v8844 = vpop.f32.mrf.mxu0
        %v8845 = vadd.f32 %v8756, %v8844
        %v8846 = vpop.f32.mrf.mxu0
        %v8847 = vadd.f32 %v8758, %v8846
        %8848 = vmatmul.bf16.gmra.mxu0 %v8348
        %v8849 = vpop.f32.mrf.mxu0
        %v8850 = vadd.f32 %v8761, %v8849
        %v8851 = vpop.f32.mrf.mxu0
        %v8852 = vadd.f32 %v8763, %v8851
        %8853 = vmatmul.bf16.gmra.mxu0 %v8353
        %v8854 = vpop.f32.mrf.mxu0
        %v8855 = vadd.f32 %v8766, %v8854
        %v8856 = vpop.f32.mrf.mxu0
        %v8857 = vadd.f32 %v8768, %v8856
        %8858 = vmatmul.bf16.gmra.mxu0 %v8358
        %v8859 = vpop.f32.mrf.mxu0
        %v8860 = vadd.f32 %v8771, %v8859
        %v8861 = vpop.f32.mrf.mxu0
        %v8862 = vadd.f32 %v8773, %v8861
        %8863 = vmatmul.bf16.gmra.mxu0 %v8363
        %v8864 = vpop.f32.mrf.mxu0
        %v8865 = vadd.f32 %v8776, %v8864
        %v8866 = vpop.f32.mrf.mxu0
        %v8867 = vadd.f32 %v8778, %v8866
        %8868 = vmatmul.bf16.gmra.mxu0 %v8368
        %v8869 = vpop.f32.mrf.mxu0
        %v8870 = vadd.f32 %v8781, %v8869
        %v8871 = vpop.f32.mrf.mxu0
        %v8872 = vadd.f32 %v8783, %v8871
        %8873 = vmatmul.bf16.gmra.mxu0 %v8373
        %v8874 = vpop.f32.mrf.mxu0
        %v8875 = vadd.f32 %v8786, %v8874
        %v8876 = vpop.f32.mrf.mxu0
        %v8877 = vadd.f32 %v8788, %v8876
        %8878 = vmatmul.bf16.gmra.mxu0 %v8378
        %v8879 = vpop.f32.mrf.mxu0
        %v8880 = vadd.f32 %v8791, %v8879
        %v8881 = vpop.f32.mrf.mxu0
        %v8882 = vadd.f32 %v8793, %v8881
        %8883 = vmatmul.bf16.gmra.mxu0 %v8383
        %v8884 = vpop.f32.mrf.mxu0
        %v8885 = vadd.f32 %v8796, %v8884
        %v8886 = vpop.f32.mrf.mxu0
        %v8887 = vadd.f32 %v8798, %v8886
        %8888 = vmatmul.bf16.gmra.mxu0 %v8388
        %v8889 = vpop.f32.mrf.mxu0
        %v8890 = vadd.f32 %v8801, %v8889
        %v8891 = vpop.f32.mrf.mxu0
        %v8892 = vadd.f32 %v8803, %v8891
        %8893 = vmatmul.bf16.gmra.mxu0 %v8393
        %v8894 = vpop.f32.mrf.mxu0
        %v8895 = vadd.f32 %v8806, %v8894
        %v8896 = vpop.f32.mrf.mxu0
        %v8897 = vadd.f32 %v8808, %v8896
        %8898 = vmatmul.bf16.gmra.mxu0 %v8398
        %v8899 = vpop.f32.mrf.mxu0
        %v8900 = vadd.f32 %v8811, %v8899
        %v8901 = vpop.f32.mrf.mxu0
        %v8902 = vadd.f32 %v8813, %v8901
        %8903 = vmatmul.bf16.gmra.mxu0 %v8403
        %v8904 = vpop.f32.mrf.mxu0
        %v8905 = vadd.f32 %v8816, %v8904
        %v8906 = vpop.f32.mrf.mxu0
        %v8907 = vadd.f32 %v8818, %v8906
        %8908 = vdwg.mxu0
        %8909 = vmatpush.bf16.msra.mxu0 %v8674
        %8910 = vmatpush.bf16.msra.mxu0 %v8673
        %8911 = vmatpush.bf16.msra.mxu0 %v8672
        %8912 = vmatpush.bf16.msra.mxu0 %v8671
        %8913 = vmatpush.bf16.msra.mxu0 %v8670
        %8914 = vmatpush.bf16.msra.mxu0 %v8669
        %8915 = vmatpush.bf16.msra.mxu0 %v8668
        %8916 = vmatpush.bf16.msra.mxu0 %v8667
        %8917 = vmatmul.bf16.gmra.mxu0 %v8329
        %v8918 = vpop.f32.mrf.mxu0
        %v8919 = vadd.f32 %v8830, %v8918
        %v8920 = vpop.f32.mrf.mxu0
        %v8921 = vadd.f32 %v8832, %v8920
        %8922 = vmatmul.bf16.gmra.mxu0 %v8334
        %v8923 = vpop.f32.mrf.mxu0
        %v8924 = vadd.f32 %v8835, %v8923
        %v8925 = vpop.f32.mrf.mxu0
        %v8926 = vadd.f32 %v8837, %v8925
        %8927 = vmatmul.bf16.gmra.mxu0 %v8339
        %v8928 = vpop.f32.mrf.mxu0
        %v8929 = vadd.f32 %v8840, %v8928
        %v8930 = vpop.f32.mrf.mxu0
        %v8931 = vadd.f32 %v8842, %v8930
        %8932 = vmatmul.bf16.gmra.mxu0 %v8344
        %v8933 = vpop.f32.mrf.mxu0
        %v8934 = vadd.f32 %v8845, %v8933
        %v8935 = vpop.f32.mrf.mxu0
        %v8936 = vadd.f32 %v8847, %v8935
        %8937 = vmatmul.bf16.gmra.mxu0 %v8349
        %v8938 = vpop.f32.mrf.mxu0
        %v8939 = vadd.f32 %v8850, %v8938
        %v8940 = vpop.f32.mrf.mxu0
        %v8941 = vadd.f32 %v8852, %v8940
        %8942 = vmatmul.bf16.gmra.mxu0 %v8354
        %v8943 = vpop.f32.mrf.mxu0
        %v8944 = vadd.f32 %v8855, %v8943
        %v8945 = vpop.f32.mrf.mxu0
        %v8946 = vadd.f32 %v8857, %v8945
        %8947 = vmatmul.bf16.gmra.mxu0 %v8359
        %v8948 = vpop.f32.mrf.mxu0
        %v8949 = vadd.f32 %v8860, %v8948
        %v8950 = vpop.f32.mrf.mxu0
        %v8951 = vadd.f32 %v8862, %v8950
        %8952 = vmatmul.bf16.gmra.mxu0 %v8364
        %v8953 = vpop.f32.mrf.mxu0
        %v8954 = vadd.f32 %v8865, %v8953
        %v8955 = vpop.f32.mrf.mxu0
        %v8956 = vadd.f32 %v8867, %v8955
        %8957 = vmatmul.bf16.gmra.mxu0 %v8369
        %v8958 = vpop.f32.mrf.mxu0
        %v8959 = vadd.f32 %v8870, %v8958
        %v8960 = vpop.f32.mrf.mxu0
        %v8961 = vadd.f32 %v8872, %v8960
        %8962 = vmatmul.bf16.gmra.mxu0 %v8374
        %v8963 = vpop.f32.mrf.mxu0
        %v8964 = vadd.f32 %v8875, %v8963
        %v8965 = vpop.f32.mrf.mxu0
        %v8966 = vadd.f32 %v8877, %v8965
        %8967 = vmatmul.bf16.gmra.mxu0 %v8379
        %v8968 = vpop.f32.mrf.mxu0
        %v8969 = vadd.f32 %v8880, %v8968
        %v8970 = vpop.f32.mrf.mxu0
        %v8971 = vadd.f32 %v8882, %v8970
        %8972 = vmatmul.bf16.gmra.mxu0 %v8384
        %v8973 = vpop.f32.mrf.mxu0
        %v8974 = vadd.f32 %v8885, %v8973
        %v8975 = vpop.f32.mrf.mxu0
        %v8976 = vadd.f32 %v8887, %v8975
        %8977 = vmatmul.bf16.gmra.mxu0 %v8389
        %v8978 = vpop.f32.mrf.mxu0
        %v8979 = vadd.f32 %v8890, %v8978
        %v8980 = vpop.f32.mrf.mxu0
        %v8981 = vadd.f32 %v8892, %v8980
        %8982 = vmatmul.bf16.gmra.mxu0 %v8394
        %v8983 = vpop.f32.mrf.mxu0
        %v8984 = vadd.f32 %v8895, %v8983
        %v8985 = vpop.f32.mrf.mxu0
        %v8986 = vadd.f32 %v8897, %v8985
        %8987 = vmatmul.bf16.gmra.mxu0 %v8399
        %v8988 = vpop.f32.mrf.mxu0
        %v8989 = vadd.f32 %v8900, %v8988
        %v8990 = vpop.f32.mrf.mxu0
        %v8991 = vadd.f32 %v8902, %v8990
        %8992 = vmatmul.bf16.gmra.mxu0 %v8404
        %v8993 = vpop.f32.mrf.mxu0
        %v8994 = vadd.f32 %v8905, %v8993
        %v8995 = vpop.f32.mrf.mxu0
        %v8996 = vadd.f32 %v8907, %v8995
        %8997 = vdwg.mxu0
        %8998 = vmatpush.bf16.msra.mxu0 %v8682
        %8999 = vmatpush.bf16.msra.mxu0 %v8681
        %9000 = vmatpush.bf16.msra.mxu0 %v8680
        %9001 = vmatpush.bf16.msra.mxu0 %v8679
        %9002 = vmatpush.bf16.msra.mxu0 %v8678
        %9003 = vmatpush.bf16.msra.mxu0 %v8677
        %9004 = vmatpush.bf16.msra.mxu0 %v8676
        %9005 = vmatpush.bf16.msra.mxu0 %v8675
        %9006 = vmatmul.bf16.gmra.mxu0 %v8330
        %v9007 = vpop.f32.mrf.mxu0
        %v9008 = vadd.f32 %v8919, %v9007
        %v9009 = vpop.f32.mrf.mxu0
        %v9010 = vadd.f32 %v8921, %v9009
        %9011 = vmatmul.bf16.gmra.mxu0 %v8335
        %v9012 = vpop.f32.mrf.mxu0
        %v9013 = vadd.f32 %v8924, %v9012
        %v9014 = vpop.f32.mrf.mxu0
        %v9015 = vadd.f32 %v8926, %v9014
        %9016 = vmatmul.bf16.gmra.mxu0 %v8340
        %v9017 = vpop.f32.mrf.mxu0
        %v9018 = vadd.f32 %v8929, %v9017
        %v9019 = vpop.f32.mrf.mxu0
        %v9020 = vadd.f32 %v8931, %v9019
        %9021 = vmatmul.bf16.gmra.mxu0 %v8345
        %v9022 = vpop.f32.mrf.mxu0
        %v9023 = vadd.f32 %v8934, %v9022
        %v9024 = vpop.f32.mrf.mxu0
        %v9025 = vadd.f32 %v8936, %v9024
        %9026 = vmatmul.bf16.gmra.mxu0 %v8350
        %v9027 = vpop.f32.mrf.mxu0
        %v9028 = vadd.f32 %v8939, %v9027
        %v9029 = vpop.f32.mrf.mxu0
        %v9030 = vadd.f32 %v8941, %v9029
        %9031 = vmatmul.bf16.gmra.mxu0 %v8355
        %v9032 = vpop.f32.mrf.mxu0
        %v9033 = vadd.f32 %v8944, %v9032
        %v9034 = vpop.f32.mrf.mxu0
        %v9035 = vadd.f32 %v8946, %v9034
        %9036 = vmatmul.bf16.gmra.mxu0 %v8360
        %v9037 = vpop.f32.mrf.mxu0
        %v9038 = vadd.f32 %v8949, %v9037
        %v9039 = vpop.f32.mrf.mxu0
        %v9040 = vadd.f32 %v8951, %v9039
        %9041 = vmatmul.bf16.gmra.mxu0 %v8365
        %v9042 = vpop.f32.mrf.mxu0
        %v9043 = vadd.f32 %v8954, %v9042
        %v9044 = vpop.f32.mrf.mxu0
        %v9045 = vadd.f32 %v8956, %v9044
        %9046 = vmatmul.bf16.gmra.mxu0 %v8370
        %v9047 = vpop.f32.mrf.mxu0
        %v9048 = vadd.f32 %v8959, %v9047
        %v9049 = vpop.f32.mrf.mxu0
        %v9050 = vadd.f32 %v8961, %v9049
        %9051 = vmatmul.bf16.gmra.mxu0 %v8375
        %v9052 = vpop.f32.mrf.mxu0
        %v9053 = vadd.f32 %v8964, %v9052
        %v9054 = vpop.f32.mrf.mxu0
        %v9055 = vadd.f32 %v8966, %v9054
        %9056 = vmatmul.bf16.gmra.mxu0 %v8380
        %v9057 = vpop.f32.mrf.mxu0
        %v9058 = vadd.f32 %v8969, %v9057
        %v9059 = vpop.f32.mrf.mxu0
        %v9060 = vadd.f32 %v8971, %v9059
        %9061 = vmatmul.bf16.gmra.mxu0 %v8385
        %v9062 = vpop.f32.mrf.mxu0
        %v9063 = vadd.f32 %v8974, %v9062
        %v9064 = vpop.f32.mrf.mxu0
        %v9065 = vadd.f32 %v8976, %v9064
        %9066 = vmatmul.bf16.gmra.mxu0 %v8390
        %v9067 = vpop.f32.mrf.mxu0
        %v9068 = vadd.f32 %v8979, %v9067
        %v9069 = vpop.f32.mrf.mxu0
        %v9070 = vadd.f32 %v8981, %v9069
        %9071 = vmatmul.bf16.gmra.mxu0 %v8395
        %v9072 = vpop.f32.mrf.mxu0
        %v9073 = vadd.f32 %v8984, %v9072
        %v9074 = vpop.f32.mrf.mxu0
        %v9075 = vadd.f32 %v8986, %v9074
        %9076 = vmatmul.bf16.gmra.mxu0 %v8400
        %v9077 = vpop.f32.mrf.mxu0
        %v9078 = vadd.f32 %v8989, %v9077
        %v9079 = vpop.f32.mrf.mxu0
        %v9080 = vadd.f32 %v8991, %v9079
        %9081 = vmatmul.bf16.gmra.mxu0 %v8405
        %v9082 = vpop.f32.mrf.mxu0
        %v9083 = vadd.f32 %v8994, %v9082
        %v9084 = vpop.f32.mrf.mxu0
        %v9085 = vadd.f32 %v8996, %v9084
        %9086 = vdwg.mxu0
        %9087 = vmatpush.bf16.msra.mxu0 %v8690
        %9088 = vmatpush.bf16.msra.mxu0 %v8689
        %9089 = vmatpush.bf16.msra.mxu0 %v8688
        %9090 = vmatpush.bf16.msra.mxu0 %v8687
        %9091 = vmatpush.bf16.msra.mxu0 %v8686
        %9092 = vmatpush.bf16.msra.mxu0 %v8685
        %9093 = vmatpush.bf16.msra.mxu0 %v8684
        %9094 = vmatpush.bf16.msra.mxu0 %v8683
        %9095 = vmatmul.bf16.gmra.mxu0 %v8331
        %v9096 = vpop.f32.mrf.mxu0
        %v9097 = vadd.f32 %v9008, %v9096
        %v9098 = vpop.f32.mrf.mxu0
        %v9099 = vadd.f32 %v9010, %v9098
        %9100 = vmatmul.bf16.gmra.mxu0 %v8336
        %v9101 = vpop.f32.mrf.mxu0
        %v9102 = vadd.f32 %v9013, %v9101
        %v9103 = vpop.f32.mrf.mxu0
        %v9104 = vadd.f32 %v9015, %v9103
        %9105 = vmatmul.bf16.gmra.mxu0 %v8341
        %v9106 = vpop.f32.mrf.mxu0
        %v9107 = vadd.f32 %v9018, %v9106
        %v9108 = vpop.f32.mrf.mxu0
        %v9109 = vadd.f32 %v9020, %v9108
        %9110 = vmatmul.bf16.gmra.mxu0 %v8346
        %v9111 = vpop.f32.mrf.mxu0
        %v9112 = vadd.f32 %v9023, %v9111
        %v9113 = vpop.f32.mrf.mxu0
        %v9114 = vadd.f32 %v9025, %v9113
        %9115 = vmatmul.bf16.gmra.mxu0 %v8351
        %v9116 = vpop.f32.mrf.mxu0
        %v9117 = vadd.f32 %v9028, %v9116
        %v9118 = vpop.f32.mrf.mxu0
        %v9119 = vadd.f32 %v9030, %v9118
        %9120 = vmatmul.bf16.gmra.mxu0 %v8356
        %v9121 = vpop.f32.mrf.mxu0
        %v9122 = vadd.f32 %v9033, %v9121
        %v9123 = vpop.f32.mrf.mxu0
        %v9124 = vadd.f32 %v9035, %v9123
        %9125 = vmatmul.bf16.gmra.mxu0 %v8361
        %v9126 = vpop.f32.mrf.mxu0
        %v9127 = vadd.f32 %v9038, %v9126
        %v9128 = vpop.f32.mrf.mxu0
        %v9129 = vadd.f32 %v9040, %v9128
        %9130 = vmatmul.bf16.gmra.mxu0 %v8366
        %v9131 = vpop.f32.mrf.mxu0
        %v9132 = vadd.f32 %v9043, %v9131
        %v9133 = vpop.f32.mrf.mxu0
        %v9134 = vadd.f32 %v9045, %v9133
        %9135 = vmatmul.bf16.gmra.mxu0 %v8371
        %v9136 = vpop.f32.mrf.mxu0
        %v9137 = vadd.f32 %v9048, %v9136
        %v9138 = vpop.f32.mrf.mxu0
        %v9139 = vadd.f32 %v9050, %v9138
        %9140 = vmatmul.bf16.gmra.mxu0 %v8376
        %v9141 = vpop.f32.mrf.mxu0
        %v9142 = vadd.f32 %v9053, %v9141
        %v9143 = vpop.f32.mrf.mxu0
        %v9144 = vadd.f32 %v9055, %v9143
        %9145 = vmatmul.bf16.gmra.mxu0 %v8381
        %v9146 = vpop.f32.mrf.mxu0
        %v9147 = vadd.f32 %v9058, %v9146
        %v9148 = vpop.f32.mrf.mxu0
        %v9149 = vadd.f32 %v9060, %v9148
        %9150 = vmatmul.bf16.gmra.mxu0 %v8386
        %v9151 = vpop.f32.mrf.mxu0
        %v9152 = vadd.f32 %v9063, %v9151
        %v9153 = vpop.f32.mrf.mxu0
        %v9154 = vadd.f32 %v9065, %v9153
        %9155 = vmatmul.bf16.gmra.mxu0 %v8391
        %v9156 = vpop.f32.mrf.mxu0
        %v9157 = vadd.f32 %v9068, %v9156
        %v9158 = vpop.f32.mrf.mxu0
        %v9159 = vadd.f32 %v9070, %v9158
        %9160 = vmatmul.bf16.gmra.mxu0 %v8396
        %v9161 = vpop.f32.mrf.mxu0
        %v9162 = vadd.f32 %v9073, %v9161
        %v9163 = vpop.f32.mrf.mxu0
        %v9164 = vadd.f32 %v9075, %v9163
        %9165 = vmatmul.bf16.gmra.mxu0 %v8401
        %v9166 = vpop.f32.mrf.mxu0
        %v9167 = vadd.f32 %v9078, %v9166
        %v9168 = vpop.f32.mrf.mxu0
        %v9169 = vadd.f32 %v9080, %v9168
        %9170 = vmatmul.bf16.gmra.mxu0 %v8406
        %v9171 = vpop.f32.mrf.mxu0
        %v9172 = vadd.f32 %v9083, %v9171
        %v9173 = vpop.f32.mrf.mxu0
        %v9174 = vadd.f32 %v9085, %v9173
        %9175 = vdwg.mxu0
        %9176 = vst [vmem:[%s378] sm:$0xff] %v9097
        %9177 = vst [vmem:[%s378 + $0x8] sm:$0xff] %v9099
        %9178 = vst [vmem:[%s378 + $0x10] sm:$0xff] %v9102
        %9179 = vst [vmem:[%s378 + $0x18] sm:$0xff] %v9104
        %9180 = vst [vmem:[%s378 + $0x20] sm:$0xff] %v9107
        %9181 = vst [vmem:[%s378 + $0x28] sm:$0xff] %v9109
        %9182 = vst [vmem:[%s378 + $0x30] sm:$0xff] %v9112
        %9183 = vst [vmem:[%s378 + $0x38] sm:$0xff] %v9114
        %9184 = vst [vmem:[%s378 + $0x40] sm:$0xff] %v9117
        %9185 = vst [vmem:[%s378 + $0x48] sm:$0xff] %v9119
        %9186 = vst [vmem:[%s378 + $0x50] sm:$0xff] %v9122
        %9187 = vst [vmem:[%s378 + $0x58] sm:$0xff] %v9124
        %9188 = vst [vmem:[%s378 + $0x60] sm:$0xff] %v9127
        %9189 = vst [vmem:[%s378 + $0x68] sm:$0xff] %v9129
        %9190 = vst [vmem:[%s378 + $0x70] sm:$0xff] %v9132
        %9191 = vst [vmem:[%s378 + $0x78] sm:$0xff] %v9134
        %9192 = vst [vmem:[%s378 + $0x80] sm:$0xff] %v9137
        %9193 = vst [vmem:[%s378 + $0x88] sm:$0xff] %v9139
        %9194 = vst [vmem:[%s378 + $0x90] sm:$0xff] %v9142
        %9195 = vst [vmem:[%s378 + $0x98] sm:$0xff] %v9144
        %9196 = vst [vmem:[%s378 + $0xa0] sm:$0xff] %v9147
        %9197 = vst [vmem:[%s378 + $0xa8] sm:$0xff] %v9149
        %9198 = vst [vmem:[%s378 + $0xb0] sm:$0xff] %v9152
        %9199 = vst [vmem:[%s378 + $0xb8] sm:$0xff] %v9154
        %9200 = vst [vmem:[%s378 + $0xc0] sm:$0xff] %v9157
        %9201 = vst [vmem:[%s378 + $0xc8] sm:$0xff] %v9159
        %9202 = vst [vmem:[%s378 + $0xd0] sm:$0xff] %v9162
        %9203 = vst [vmem:[%s378 + $0xd8] sm:$0xff] %v9164
        %9204 = vst [vmem:[%s378 + $0xe0] sm:$0xff] %v9167
        %9205 = vst [vmem:[%s378 + $0xe8] sm:$0xff] %v9169
        %9206 = vst [vmem:[%s378 + $0xf0] sm:$0xff] %v9172
        %9207 = vst [vmem:[%s378 + $0xf8] sm:$0xff] %v9174
        %s9208 = sand.u32 %s187, 1
        %s9209 = scalar_lea.sflag [#allocation4], %s9208
        %s9210 = sand.u32 %s187, 1
        %s9211 = smul.addr %s9210, 256
        %s9212 = scalar_lea.vmem [#allocation13], %s9211
        // Predicated region
        $region73: #{tpu_custom_call.1} parent=47 // pred_check
          %p9213 = pneg %p197
        $region74: #{tpu_custom_call.1} parent=47 // pred_check_branch
          %9215 = sbr.rel (%p9213) target = $region76
        $region75: #{tpu_custom_call.1} parent=47 // pred_region
          %s9216 = smul.u32 32, %s27
          %9218 = vsyncadd %s9209, 0
          %s9219 = smul.addr %s9216, 8
          %s9220 = scalar_lea.hbm %s7, %s9219
          %s9221 = sshll.u32 %s9212, 4
          %s9222 = int_to_ptr.vmem [resolvable:$true] %s9221
          %s9223 = sshll.u32 %s9220, 4
          %s9224 = int_to_ptr.hbm [resolvable:$true] %s9223
          %9229 = dma.vmem_to_hbm [thread:$0]  %s9222, 4096, %s9224, %s9209, 128, 128, 8
        $region76: #{tpu_custom_call.1} parent=47 // pred_fallthru
          _
      $region48: #{tpu_custom_call.1} parent=5 // pred_fallthru
        _
      %p9230 = scmp.le.s32.totalorder 2, %s22
      // Predicated region
      $region77: #{tpu_custom_call.1} parent=5 // pred_check
        %p9231 = pneg %p9230
      $region78: #{tpu_custom_call.1} parent=5 // pred_check_branch
        %9233 = sbr.rel (%p9231) target = $region80
      $region79: #{tpu_custom_call.1} parent=5 // pred_region
        %s9234 = ssub.s32 %s22, 2
        // Predicated region
        $region81: #{tpu_custom_call.1} parent=79 // pred_check
          %p9235 = pneg %p203
        $region82: #{tpu_custom_call.1} parent=79 // pred_check_branch
          %9237 = sbr.rel (%p9235) target = $region84
        $region83: #{tpu_custom_call.1} parent=79 // pred_region
          %s9238 = sand.u32 %s188, 1
          %s9239 = scalar_lea.sflag [#allocation4], %s9238
          %s9240 = sand.u32 %s188, 1
          %s9241 = smul.addr %s9240, 256
          %s9242 = scalar_lea.vmem [#allocation13], %s9241
          %9244 = dma.done %s9239, 4096
        $region84: #{tpu_custom_call.1} parent=79 // pred_fallthru
          _
      $region80: #{tpu_custom_call.1} parent=5 // pred_fallthru
        _
    $region6: #{tpu_custom_call.1} parent=1 // loop_footer
      %s26 = sadd.s32 1, %s22
    $region7: #{tpu_custom_call.1} parent=1 // loop_footer_branch
      %21 = sbr.rel target = $region3
    $region8: #{tpu_custom_call.1} parent=1 // loop_exit
      _
    %9245 = vsyncpa [#allocation3], 1
    %s9246 = scalar_lea.sflag [#allocation3], 1
    %9247 = vsyncpa %s9246, 1
    %9248 = vsyncpa [#allocation6], 1
    %9249 = vsyncpa [#allocation9], 1
    %9250 = vsyncpa [#allocation12], 1
    %9251 = vsyncpa [#allocation4], 1
    %s9252 = scalar_lea.sflag [#allocation4], 1
    %9253 = vsyncpa %s9252, 1

</llo_original>
